<compile_context>
chip_gen: v7x
topology: tpu7x:2x2x1
jax: 0.10.0
libtpu: 0.0.40
codegen_flags: <defaults>
</compile_context>

<pallas_src>
import numpy as np
import jax
import jax.numpy as jnp
from jax.experimental import pallas as pl
from jax.experimental.pallas import tpu as pltpu


# Set to jnp.bfloat16 for ~2-4x MXU throughput (changes numerics vs f32 reference).
_MXU_DTYPE = jnp.float32


def _mx(x):
    return x.astype(_MXU_DTYPE)


# ----------------------- helpers -----------------------

def _round_up(x, m):
    return (x + m - 1) // m * m


def _tile_rows(n, max_tile=512):
    """Row tile (multiple of 8) and padded row count for row-tiled kernels."""
    if n >= max_tile:
        return max_tile, _round_up(n, max_tile)
    t = _round_up(max(n, 8), 8)
    return t, t


# ----------------------- recurrence kernel (fused projection + LSTM cell) -----------------------

def _make_bilstm_kernel(n_streams, TB, Bp, Hp, Nc, G4):
    """One grid step = one (direction, time-chunk). Gate projection for the whole
    chunk is one MXU matmul; only h @ W_hh remains inside the unrolled time loop."""

    def sigmoid(x):  # one EUP transcendental per gate instead of exp + divide
        return 0.5 * jnp.tanh(0.5 * x) + 0.5

    def kernel(*args):
        lens_ref = args[0]
        x_refs = args[1:1 + n_streams]
        w_refs = args[1 + n_streams:1 + 2 * n_streams]
        b_ref = args[1 + 2 * n_streams]
        whh_ref = args[2 + 2 * n_streams]
        out_ref = args[3 + 2 * n_streams]
        g_sc = args[4 + 2 * n_streams]
        h_sc = args[5 + 2 * n_streams]
        c_sc = args[6 + 2 * n_streams]

        d = pl.program_id(0)          # 0 = forward direction, 1 = backward direction
        chunk = pl.program_id(1)      # time-chunk index within this direction

        @pl.when(chunk == 0)
        def _():
            h_sc[...] = jnp.zeros_like(h_sc)
            c_sc[...] = jnp.zeros_like(c_sc)

        # ---- fused input projection for this (direction, time-chunk) ----
        acc = jnp.dot(_mx(x_refs[0][...]), _mx(w_refs[0][...]),
                      preferred_element_type=jnp.float32)
        for j in range(1, n_streams):
            acc = acc + jnp.dot(_mx(x_refs[j][...]), _mx(w_refs[j][...]),
                                preferred_element_type=jnp.float32)
        g_sc[...] = acc + b_ref[...]                     # (TB*Bp, 4Hp)

        lens = lens_ref[...]                             # (Bp, 1) int32

        def step(t_glob, ls, h, c):
            r0 = pl.multiple_of(ls * Bp, Bp)             # sublane-aligned row offset
            gates = (g_sc[pl.ds(r0, Bp), :]
                     + jnp.dot(_mx(h), _mx(whh_ref[...]),
                               preferred_element_type=jnp.float32))
            i_g = sigmoid(gates[:, 0 * Hp:1 * Hp])       # lane-aligned 128-wide slices
            f_g = sigmoid(gates[:, 1 * Hp:2 * Hp])
            g_g = jnp.tanh(gates[:, 2 * Hp:3 * Hp])
            o_g = sigmoid(gates[:, 3 * Hp:4 * Hp])
            c_new = f_g * c + i_g * g_g
            h_new = o_g * jnp.tanh(c_new)
            m = lens > t_glob                            # (Bp, 1) packed-seq mask
            h = jnp.where(m, h_new, h)
            c = jnp.where(m, c_new, c)
            out_ref[pl.ds(r0, Bp), :] = jnp.where(m, h_new, 0.0)
            return h, c

        def run_chunk(slot, base_t, flip):
            def body(s, carry):
                ls = (TB - 1 - s) if flip else s
                return step(base_t + ls, ls, *carry)
            h, c = jax.lax.fori_loop(0, TB, body, (h_sc[slot], c_sc[slot]),
                                     unroll=True)
            h_sc[slot] = h
            c_sc[slot] = c

        @pl.when(d == 0)
        def _():
            run_chunk(0, chunk * TB, False)              # time ascending

        @pl.when(d == 1)
        def _():
            run_chunk(1, (Nc - 1 - chunk) * TB, True)    # time descending

    return kernel


def bilstm_layer(x_stacked, lens2d, lp, TB, Bp, Hp, Nc):
    """x_stacked: (S, T_pad*Bp, F) input stream(s), time-major rows (row = t*Bp + b).
    Returns the stacked per-direction outputs (2, T_pad*Bp, Hp). The two directions
    are a leading 'parallel' grid axis (runs on both TensorCores on v7x)."""
    S, NT, F = x_stacked.shape
    G4 = 4 * Hp
    TBB = TB * Bp
    w_streams = lp["w_streams"]
    assert len(w_streams) == S

    def _tb(d, i):                       # time-block index for direction d
        return i + d * (Nc - 1 - 2 * i)  # i if d == 0 else Nc - 1 - i

    in_specs = [pl.BlockSpec((Bp, 1), lambda d, i: (0, 0))]
    ins = [lens2d]
    for j in range(S):
        in_specs.append(pl.BlockSpec((None, TBB, F),
                                     lambda d, i, j=j: (j, _tb(d, i), 0)))
        ins.append(x_stacked)            # same array, different stream index map
    for w in w_streams:                  # direction-stacked W_ih per input stream
        in_specs.append(pl.BlockSpec((None,) + w.shape[1:],
                                     lambda d, i: (d, 0, 0)))
        ins.append(w)
    in_specs.append(pl.BlockSpec((None, 1, G4), lambda d, i: (d, 0, 0)))   # bias
    ins.append(lp["bias"])
    in_specs.append(pl.BlockSpec((None, Hp, G4), lambda d, i: (d, 0, 0)))  # W_hh
    ins.append(lp["whh"])

    return pl.pallas_call(
        _make_bilstm_kernel(S, TB, Bp, Hp, Nc, G4),
        out_shape=jax.ShapeDtypeStruct((2, NT, Hp), jnp.float32),
        grid=(2, Nc),
        in_specs=in_specs,
        out_specs=pl.BlockSpec((None, TBB, Hp), lambda d, i: (d, _tb(d, i), 0)),
        scratch_shapes=[
            pltpu.VMEM((TBB, G4), jnp.float32),     # gate chunk for this grid step
            pltpu.VMEM((2, Bp, Hp), jnp.float32),   # h state (per direction)
            pltpu.VMEM((2, Bp, Hp), jnp.float32),   # c state (per direction)
        ],
        compiler_params=pltpu.CompilerParams(
            dimension_semantics=("parallel", "arbitrary"),
            vmem_limit_bytes=64 * 1024 * 1024),     # re-budget TB/Hp for v7x (64 MiB)
    )(*ins)


# ----------------------- head (linear -> ELU -> classifier) -----------------------

def _head_kernel(xf_ref, xb_ref, w1f_ref, w1b_ref, b1_ref, w2_ref, b2_ref, o_ref):
    h = (jnp.dot(_mx(xf_ref[...]), _mx(w1f_ref[...]), preferred_element_type=jnp.float32)
         + jnp.dot(_mx(xb_ref[...]), _mx(w1b_ref[...]), preferred_element_type=jnp.float32)
         + b1_ref[...])
    # ELU (alpha=1), overflow-safe on the negative branch.
    h = jnp.where(h > 0, h, jnp.expm1(jnp.minimum(h, 0.0)))
    o_ref[...] = (jnp.dot(_mx(h), _mx(w2_ref[...]), preferred_element_type=jnp.float32)
                  + b2_ref[...]).astype(o_ref.dtype)


def head(xf, xb, w1f, w1b, b1, w2, b2):
    N = xf.shape[0]
    Cp = w2.shape[1]
    TILE_N, N_pad = _tile_rows(N)
    if N_pad != N:
        xf = jnp.pad(xf, ((0, N_pad - N), (0, 0)))
        xb = jnp.pad(xb, ((0, N_pad - N), (0, 0)))
    out = pl.pallas_call(
        _head_kernel,
        out_shape=jax.ShapeDtypeStruct((N_pad, Cp), jnp.float32),
        grid=(N_pad // TILE_N,),
        in_specs=[
            pl.BlockSpec((TILE_N, xf.shape[1]), lambda i: (i, 0)),
            pl.BlockSpec((TILE_N, xb.shape[1]), lambda i: (i, 0)),
            pl.BlockSpec(w1f.shape, lambda i: (0, 0)),
            pl.BlockSpec(w1b.shape, lambda i: (0, 0)),
            pl.BlockSpec(b1.shape, lambda i: (0, 0)),
            pl.BlockSpec(w2.shape, lambda i: (0, 0)),
            pl.BlockSpec(b2.shape, lambda i: (0, 0)),
        ],
        out_specs=pl.BlockSpec((TILE_N, Cp), lambda i: (i, 0)),
        compiler_params=pltpu.CompilerParams(
            dimension_semantics=("parallel",),
            vmem_limit_bytes=64 * 1024 * 1024),
    )(xf, xb, w1f, w1b, b1, w2, b2)
    return out[:N]


# ----------------------- parameter preparation -----------------------

def prepare_pallas_params(raw, H, linear_output_dim, num_classes):
    """Pad hidden to Hp=round_up(H,128), head dims to 128; stack per-direction
    weights along a leading axis of 2; split layer>0 / head input weights into
    forward/backward halves (no concatenate anywhere)."""
    Hp = _round_up(H, 128)
    Dp = _round_up(linear_output_dim, 128)
    Cp = _round_up(num_classes, 128)

    def pad_gate_cols(w):  # (R, 4H) -> (R, 4Hp), each gate placed at k*Hp
        out = jnp.zeros((w.shape[0], 4 * Hp), jnp.float32)
        for k in range(4):
            out = out.at[:, k * Hp:k * Hp + H].set(w[:, k * H:(k + 1) * H])
        return out

    def pad_rows(w, rp):
        return jnp.pad(w, ((0, rp - w.shape[0]), (0, 0)))

    def pad2(a, rp, cp):
        return jnp.pad(a, ((0, rp - a.shape[0]), (0, cp - a.shape[1])))

    layers = []
    for li, (wih_f, whh_f, b_f, wih_b, whh_b, b_b) in enumerate(raw["lstm"]):
        lp = {
            "whh": jnp.stack([pad_rows(pad_gate_cols(whh_f), Hp),
                              pad_rows(pad_gate_cols(whh_b), Hp)]),       # (2, Hp, 4Hp)
            "bias": jnp.stack([pad_gate_cols(b_f), pad_gate_cols(b_b)]),  # (2, 1, 4Hp)
        }
        if li == 0:
            lp["w_streams"] = [jnp.stack([pad_gate_cols(wih_f),
                                          pad_gate_cols(wih_b)])]         # [(2, E, 4Hp)]
        else:  # input = (prev_fwd, prev_bwd) streams -> split the 2H rows
            wA = jnp.stack([pad_rows(pad_gate_cols(wih_f[:H]), Hp),
                            pad_rows(pad_gate_cols(wih_b[:H]), Hp)])
            wB = jnp.stack([pad_rows(pad_gate_cols(wih_f[H:]), Hp),
                            pad_rows(pad_gate_cols(wih_b[H:]), Hp)])
            lp["w_streams"] = [wA, wB]                                    # [(2, Hp, 4Hp)]*2
        layers.append(lp)

    w1 = raw["w1"]
    return {
        "embedding": raw["embedding"],
        "lstm": layers,
        "Hp": Hp,
        "C": num_classes,
        "w1f": pad2(w1[:H], Hp, Dp),
        "w1b": pad2(w1[H:], Hp, Dp),
        "b1": pad2(raw["b1"], 1, Dp),
        "w2": pad2(raw["w2"], Dp, Cp),
        "b2": pad2(raw["b2"], 1, Cp),
    }


# ----------------------- full forward -----------------------

def blstm_forward(data, lengths, pparams, TB_cap=32):
    """embedding -> per-layer fused-projection time-chunked BiLSTM -> linear -> ELU
    -> classifier. Returns (B, Tmax, num_classes) logits (batch_first)."""
    # TODO(synk): embedding lookup (nn.Embedding) is a tiny gather; done with plain
    # JAX indexing rather than a Pallas gather kernel.
    emb = pparams["embedding"][data]                    # (B, T, E)
    B, T, E = emb.shape
    Bp = _round_up(B, 8)                                # sublane-aligned batch
    TB = min(TB_cap, _round_up(T, 8))                   # time chunk (sweep {8,16,32})
    T_pad = _round_up(T, TB)
    Nc = T_pad // TB
    Hp = pparams["Hp"]

    x = jnp.transpose(emb, (1, 0, 2))                   # (T, B, E) time-major
    x = jnp.pad(x, ((0, T_pad - T), (0, Bp - B), (0, 0)))
    stream = x.reshape(1, T_pad * Bp, E)                # single input stream, row = t*Bp + b

    lens2d = jnp.zeros((Bp, 1), jnp.int32).at[:B, 0].set(
        jnp.asarray(lengths, jnp.int32).reshape(-1))

    for lp in pparams["lstm"]:
        stream = bilstm_layer(stream, lens2d, lp, TB, Bp, Hp, Nc)  # (2, T_pad*Bp, Hp)

    # pad_packed_sequence truncates to the max length (host-side, like the original).
    Tmax = int(np.max(np.asarray(lengths)))
    xf_head = stream[0, :Tmax * Bp]
    xb_head = stream[1, :Tmax * Bp]

    logits_p = head(xf_head, xb_head, pparams["w1f"], pparams["w1b"],
                    pparams["b1"], pparams["w2"], pparams["b2"])   # (Tmax*Bp, Cp)
    C = pparams["C"]
    logits = logits_p[:, :C].reshape(Tmax, Bp, C)[:, :B]
    return jnp.transpose(logits, (1, 0, 2))             # only the small logits transpose


# ----------------------- pure-JAX reference (for verification) -----------------------

def ref_forward(data, lengths, params):
    emb = params["embedding"][data]                     # (B, T, E)
    x = emb
    lengths = jnp.asarray(lengths)
    B, T, _ = x.shape
    for (wih_f, whh_f, b_f, wih_b, whh_b, b_b) in params["lstm"]:
        H = whh_f.shape[0]

        def run(x_seq, wih, whh, b, reverse):
            h = jnp.zeros((B, H), jnp.float32)
            c = jnp.zeros((B, H), jnp.float32)
            outs = [None] * T
            trange = range(T - 1, -1, -1) if reverse else range(T)
            for t in trange:
                xt = x_seq[:, t]
                gates = xt @ wih + h @ whh + b
                i = jax.nn.sigmoid(gates[:, :H])
                f = jax.nn.sigmoid(gates[:, H:2 * H])
                g = jnp.tanh(gates[:, 2 * H:3 * H])
                o = jax.nn.sigmoid(gates[:, 3 * H:])
                c_new = f * c + i * g
                h_new = o * jnp.tanh(c_new)
                m = (lengths > t)[:, None]
                h = jnp.where(m, h_new, h)
                c = jnp.where(m, c_new, c)
                outs[t] = jnp.where(m, h_new, 0.0)
            return jnp.stack(outs, axis=1)              # (B, T, H)

        of = run(x, wih_f, whh_f, b_f, False)
        ob = run(x, wih_b, whh_b, b_b, True)
        x = jnp.concatenate([of, ob], axis=-1)

    Tmax = int(np.max(np.asarray(lengths)))
    x = x[:, :Tmax]
    h = x @ params["w1"] + params["b1"]
    h = jnp.where(h > 0, h, jnp.exp(h) - 1.0)
    return h @ params["w2"] + params["b2"]


# ----------------------- main -----------------------

if __name__ == "__main__":
    vocab_size = 20
    embedding_dim = 32
    num_lstm_layers = 2
    lstm_hidden_dim = 32
    linear_output_dim = 16
    num_classes = 8
    B, T = 2, 8
    H = lstm_hidden_dim

    key = jax.random.PRNGKey(0)
    ks = iter(jax.random.split(key, 64))

    def rnd(shape, scale=0.1):
        return scale * jax.random.normal(next(ks), shape, jnp.float32)

    # parameters (deterministic, synthetic)
    embedding = rnd((vocab_size, embedding_dim)).at[0].set(0.0)   # padding_idx=0 row
    lstm_params = []
    in_dim = embedding_dim
    for _ in range(num_lstm_layers):
        # PyTorch weight_ih is (4H, in), weight_hh is (4H, H); stored transposed here,
        # with b_ih + b_hh folded into a single (1, 4H) bias per direction.
        wih_f = rnd((in_dim, 4 * H)); whh_f = rnd((H, 4 * H))
        b_f = rnd((1, 4 * H)) + rnd((1, 4 * H))
        wih_b = rnd((in_dim, 4 * H)); whh_b = rnd((H, 4 * H))
        b_b = rnd((1, 4 * H)) + rnd((1, 4 * H))
        lstm_params.append((wih_f, whh_f, b_f, wih_b, whh_b, b_b))
        in_dim = 2 * H

    raw_params = {
        "embedding": embedding,
        "lstm": lstm_params,
        "w1": rnd((2 * H, linear_output_dim)),
        "b1": rnd((1, linear_output_dim)),
        "w2": rnd((linear_output_dim, num_classes)),
        "b2": rnd((1, num_classes)),
    }
    pparams = prepare_pallas_params(raw_params, H, linear_output_dim, num_classes)

    # inputs: padded token ids + per-sequence lengths
    lengths = np.array([8, 5], dtype=np.int32)
    ids = jax.random.randint(next(ks), (B, T), 1, vocab_size, dtype=jnp.int32)
    valid = jnp.arange(T)[None, :] < jnp.asarray(lengths)[:, None]
    data = jnp.where(valid, ids, 0)                     # pad with padding_idx=0

    logits = jax.block_until_ready(blstm_forward(data, lengths, pparams))

    ref = jax.block_until_ready(ref_forward(data, lengths, raw_params))
    np.testing.assert_allclose(np.asarray(logits), np.asarray(ref),
                               rtol=1e-4, atol=1e-4)
    assert logits.shape == (B, int(lengths.max()), num_classes)
    print("KERNEL_OK")
</pallas_src>

<mosaic_0001>
module attributes {stable_mosaic.version = 11 : i64} {
  func.func @kernel(%arg0: i32, %arg1: i32, %arg2: memref<8x1xi32, #tpu.memory_space<vmem>>, %arg3: memref<1x64x32xf32, #tpu.memory_space<vmem>>, %arg4: memref<1x32x512xf32, #tpu.memory_space<vmem>>, %arg5: memref<1x1x512xf32, #tpu.memory_space<vmem>>, %arg6: memref<1x128x512xf32, #tpu.memory_space<vmem>>, %arg7: memref<1x64x128xf32, #tpu.memory_space<vmem>>, %arg8: memref<64x512xf32, #tpu.memory_space<vmem>>, %arg9: memref<2x8x128xf32, #tpu.memory_space<vmem>>, %arg10: memref<2x8x128xf32, #tpu.memory_space<vmem>>) attributes {dimension_semantics = [#tpu.dimension_semantics<parallel>, #tpu.dimension_semantics<arbitrary>], iteration_bounds = array<i64: 2, 1>, scalar_prefetch = 0 : i64, scratch_operands = 3 : i64, tpu.core_type = #tpu.core_type<tc>, window_params = [{pipeline_mode = #tpu.pipeline_mode<synchronous>, transform_indices = @transform_0, window_bounds = array<i64: 8, 1>}, {transform_indices = @transform_1, window_bounds = array<i64: 1, 64, 32>}, {transform_indices = @transform_2, window_bounds = array<i64: 1, 32, 512>}, {transform_indices = @transform_3, window_bounds = array<i64: 1, 1, 512>}, {transform_indices = @transform_4, window_bounds = array<i64: 1, 128, 512>}, {transform_indices = @transform_5, window_bounds = array<i64: 1, 64, 128>}]} {
    %c0_i32 = arith.constant 0 : i32
    %0 = arith.cmpi eq, %arg1, %c0_i32 : i32
    %1 = arith.extui %0 : i1 to i32
    %c0_i32_0 = arith.constant 0 : i32
    %2 = arith.cmpi ne, %1, %c0_i32_0 : i32
    scf.if %2 {
      %cst_16 = arith.constant 0.000000e+00 : f32
      %20 = vector.broadcast %cst_16 : f32 to vector<2x8x128xf32>
      %c0_17 = arith.constant 0 : index
      %c0_18 = arith.constant 0 : index
      %c0_19 = arith.constant 0 : index
      %21 = vector.load %arg9[%c0_17, %c0_18, %c0_19] : memref<2x8x128xf32, #tpu.memory_space<vmem>>, vector<2x8x128xf32>
      tpu.vector_store %arg9[%c0_17, %c0_18, %c0_19], %20 {strides = array<i32>} : memref<2x8x128xf32, #tpu.memory_space<vmem>>, vector<2x8x128xf32>,
      %cst_20 = arith.constant 0.000000e+00 : f32
      %22 = vector.broadcast %cst_20 : f32 to vector<2x8x128xf32>
      %c0_21 = arith.constant 0 : index
      %c0_22 = arith.constant 0 : index
      %c0_23 = arith.constant 0 : index
      %23 = vector.load %arg10[%c0_21, %c0_22, %c0_23] : memref<2x8x128xf32, #tpu.memory_space<vmem>>, vector<2x8x128xf32>
      tpu.vector_store %arg10[%c0_21, %c0_22, %c0_23], %22 {strides = array<i32>} : memref<2x8x128xf32, #tpu.memory_space<vmem>>, vector<2x8x128xf32>,
    } else {
    }
    %c0 = arith.constant 0 : index
    %c0_1 = arith.constant 0 : index
    %c0_2 = arith.constant 0 : index
    %3 = vector.load %arg3[%c0, %c0_1, %c0_2] : memref<1x64x32xf32, #tpu.memory_space<vmem>>, vector<1x64x32xf32>
    %4 = vector.shape_cast %3 : vector<1x64x32xf32> to vector<64x32xf32>
    %c0_3 = arith.constant 0 : index
    %c0_4 = arith.constant 0 : index
    %c0_5 = arith.constant 0 : index
    %5 = vector.load %arg4[%c0_3, %c0_4, %c0_5] : memref<1x32x512xf32, #tpu.memory_space<vmem>>, vector<1x32x512xf32>
    %6 = vector.shape_cast %5 : vector<1x32x512xf32> to vector<32x512xf32>
    %cst = arith.constant dense<0.000000e+00> : vector<64x512xf32>
    %7 = tpu.matmul %4, %6, %cst {dimension_numbers = #tpu.dot_dimension_numbers<[1], [0], [0], [1], [0, 0, 1, 1], [], []>} : vector<64x32xf32>, vector<32x512xf32>, vector<64x512xf32> -> vector<64x512xf32>
    %c0_6 = arith.constant 0 : index
    %c0_7 = arith.constant 0 : index
    %c0_8 = arith.constant 0 : index
    %8 = vector.load %arg5[%c0_6, %c0_7, %c0_8] : memref<1x1x512xf32, #tpu.memory_space<vmem>>, vector<1x1x512xf32>
    %9 = vector.shape_cast %8 : vector<1x1x512xf32> to vector<1x512xf32>
    %10 = vector.broadcast %9 : vector<1x512xf32> to vector<64x512xf32>
    %11 = arith.addf %7, %10 : vector<64x512xf32>
    %c0_9 = arith.constant 0 : index
    %c0_10 = arith.constant 0 : index
    %12 = vector.load %arg8[%c0_9, %c0_10] : memref<64x512xf32, #tpu.memory_space<vmem>>, vector<64x512xf32>
    tpu.vector_store %arg8[%c0_9, %c0_10], %11 {strides = array<i32>} : memref<64x512xf32, #tpu.memory_space<vmem>>, vector<64x512xf32>,
    %c0_11 = arith.constant 0 : index
    %c0_12 = arith.constant 0 : index
    %13 = vector.load %arg2[%c0_11, %c0_12] : memref<8x1xi32, #tpu.memory_space<vmem>>, vector<8x1xi32>
    %c0_i32_13 = arith.constant 0 : i32
    %14 = arith.cmpi eq, %arg0, %c0_i32_13 : i32
    %15 = arith.extui %14 : i1 to i32
    %c0_i32_14 = arith.constant 0 : i32
    %16 = arith.cmpi ne, %15, %c0_i32_14 : i32
    scf.if %16 {
      %c8_i32 = arith.constant 8 : i32
      %20 = arith.muli %arg1, %c8_i32 : i32
      %c0_16 = arith.constant 0 : index
      %c0_17 = arith.constant 0 : index
      %c0_18 = arith.constant 0 : index
      %21 = vector.load %arg9[%c0_16, %c0_17, %c0_18] : memref<2x8x128xf32, #tpu.memory_space<vmem>>, vector<1x8x128xf32>
      %22 = vector.shape_cast %21 : vector<1x8x128xf32> to vector<8x128xf32>
      %c0_19 = arith.constant 0 : index
      %c0_20 = arith.constant 0 : index
      %c0_21 = arith.constant 0 : index
      %23 = vector.load %arg10[%c0_19, %c0_20, %c0_21] : memref<2x8x128xf32, #tpu.memory_space<vmem>>, vector<1x8x128xf32>
      %24 = vector.shape_cast %23 : vector<1x8x128xf32> to vector<8x128xf32>
      %c0_i32_22 = arith.constant 0 : i32
      %25 = arith.addi %20, %c0_i32_22 : i32
      %c8_i32_23 = arith.constant 8 : i32
      %26 = arith.muli %c0_i32_22, %c8_i32_23 : i32
      %27 = tpu.assume_multiple %26, 8 : i32
      %28 = arith.index_cast %27 : i32 to index
      %c0_24 = arith.constant 0 : index
      %29 = vector.load %arg8[%28, %c0_24] : memref<64x512xf32, #tpu.memory_space<vmem>>, vector<8x512xf32>
      %c0_25 = arith.constant 0 : index
      %c0_26 = arith.constant 0 : index
      %c0_27 = arith.constant 0 : index
      %30 = vector.load %arg6[%c0_25, %c0_26, %c0_27] : memref<1x128x512xf32, #tpu.memory_space<vmem>>, vector<1x128x512xf32>
      %31 = vector.shape_cast %30 : vector<1x128x512xf32> to vector<128x512xf32>
      %cst_28 = arith.constant dense<0.000000e+00> : vector<8x512xf32>
      %32 = tpu.matmul %22, %31, %cst_28 {dimension_numbers = #tpu.dot_dimension_numbers<[1], [0], [0], [1], [0, 0, 1, 1], [], []>} : vector<8x128xf32>, vector<128x512xf32>, vector<8x512xf32> -> vector<8x512xf32>
      %33 = arith.addf %29, %32 : vector<8x512xf32>
      %34 = vector.extract_strided_slice %33 {offsets = [0, 0], sizes = [8, 128], strides = [1, 1]} : vector<8x512xf32> to vector<8x128xf32>
      %cst_29 = arith.constant 5.000000e-01 : f32
      %35 = vector.broadcast %cst_29 : f32 to vector<8x128xf32>
      %36 = arith.mulf %35, %34 : vector<8x128xf32>
      %37 = math.tanh %36 : vector<8x128xf32>
      %cst_30 = arith.constant 5.000000e-01 : f32
      %38 = vector.broadcast %cst_30 : f32 to vector<8x128xf32>
      %39 = arith.mulf %38, %37 : vector<8x128xf32>
      %cst_31 = arith.constant 5.000000e-01 : f32
      %40 = vector.broadcast %cst_31 : f32 to vector<8x128xf32>
      %41 = arith.addf %39, %40 : vector<8x128xf32>
      %42 = vector.extract_strided_slice %33 {offsets = [0, 128], sizes = [8, 128], strides = [1, 1]} : vector<8x512xf32> to vector<8x128xf32>
      %cst_32 = arith.constant 5.000000e-01 : f32
      %43 = vector.broadcast %cst_32 : f32 to vector<8x128xf32>
      %44 = arith.mulf %43, %42 : vector<8x128xf32>
      %45 = math.tanh %44 : vector<8x128xf32>
      %cst_33 = arith.constant 5.000000e-01 : f32
      %46 = vector.broadcast %cst_33 : f32 to vector<8x128xf32>
      %47 = arith.mulf %46, %45 : vector<8x128xf32>
      %cst_34 = arith.constant 5.000000e-01 : f32
      %48 = vector.broadcast %cst_34 : f32 to vector<8x128xf32>
      %49 = arith.addf %47, %48 : vector<8x128xf32>
      %50 = vector.extract_strided_slice %33 {offsets = [0, 256], sizes = [8, 128], strides = [1, 1]} : vector<8x512xf32> to vector<8x128xf32>
      %51 = math.tanh %50 : vector<8x128xf32>
      %52 = vector.extract_strided_slice %33 {offsets = [0, 384], sizes = [8, 128], strides = [1, 1]} : vector<8x512xf32> to vector<8x128xf32>
      %cst_35 = arith.constant 5.000000e-01 : f32
      %53 = vector.broadcast %cst_35 : f32 to vector<8x128xf32>
      %54 = arith.mulf %53, %52 : vector<8x128xf32>
      %55 = math.tanh %54 : vector<8x128xf32>
      %cst_36 = arith.constant 5.000000e-01 : f32
      %56 = vector.broadcast %cst_36 : f32 to vector<8x128xf32>
      %57 = arith.mulf %56, %55 : vector<8x128xf32>
      %cst_37 = arith.constant 5.000000e-01 : f32
      %58 = vector.broadcast %cst_37 : f32 to vector<8x128xf32>
      %59 = arith.addf %57, %58 : vector<8x128xf32>
      %60 = arith.mulf %49, %24 : vector<8x128xf32>
      %61 = arith.mulf %41, %51 : vector<8x128xf32>
      %62 = arith.addf %60, %61 : vector<8x128xf32>
      %63 = math.tanh %62 : vector<8x128xf32>
      %64 = arith.mulf %59, %63 : vector<8x128xf32>
      %65 = vector.broadcast %25 : i32 to vector<8x1xi32>
      %66 = arith.cmpi sgt, %13, %65 : vector<8x1xi32>
      %67 = vector.shape_cast %66 : vector<8x1xi1> to vector<8x1xi1>
      %68 = vector.broadcast %67 : vector<8x1xi1> to vector<8x128xi1>
      %69 = arith.select %68, %64, %22 : vector<8x128xi1>, vector<8x128xf32>
      %70 = vector.shape_cast %66 : vector<8x1xi1> to vector<8x1xi1>
      %71 = vector.broadcast %70 : vector<8x1xi1> to vector<8x128xi1>
      %72 = arith.select %71, %62, %24 : vector<8x128xi1>, vector<8x128xf32>
      %cst_38 = arith.constant 0.000000e+00 : f32
      %73 = vector.shape_cast %66 : vector<8x1xi1> to vector<8x1xi1>
      %74 = vector.broadcast %73 : vector<8x1xi1> to vector<8x128xi1>
      %75 = vector.broadcast %cst_38 : f32 to vector<8x128xf32>
      %76 = arith.select %74, %64, %75 : vector<8x128xi1>, vector<8x128xf32>
      %c0_39 = arith.constant 0 : index
      %77 = arith.index_cast %27 : i32 to index
      %c0_40 = arith.constant 0 : index
      %78 = vector.load %arg7[%c0_39, %77, %c0_40] : memref<1x64x128xf32, #tpu.memory_space<vmem>>, vector<1x8x128xf32>
      %79 = vector.shape_cast %78 : vector<1x8x128xf32> to vector<8x128xf32>
      %80 = vector.shape_cast %76 : vector<8x128xf32> to vector<1x8x128xf32>
      tpu.vector_store %arg7[%c0_39, %77, %c0_40], %80 {strides = array<i32>} : memref<1x64x128xf32, #tpu.memory_space<vmem>>, vector<1x8x128xf32>,
      %c1_i32_41 = arith.constant 1 : i32
      %81 = arith.addi %20, %c1_i32_41 : i32
      %c8_i32_42 = arith.constant 8 : i32
      %82 = arith.muli %c1_i32_41, %c8_i32_42 : i32
      %83 = tpu.assume_multiple %82, 8 : i32
      %84 = arith.index_cast %83 : i32 to index
      %c0_43 = arith.constant 0 : index
      %85 = vector.load %arg8[%84, %c0_43] : memref<64x512xf32, #tpu.memory_space<vmem>>, vector<8x512xf32>
      %c0_44 = arith.constant 0 : index
      %c0_45 = arith.constant 0 : index
      %c0_46 = arith.constant 0 : index
      %86 = vector.load %arg6[%c0_44, %c0_45, %c0_46] : memref<1x128x512xf32, #tpu.memory_space<vmem>>, vector<1x128x512xf32>
      %87 = vector.shape_cast %86 : vector<1x128x512xf32> to vector<128x512xf32>
      %cst_47 = arith.constant dense<0.000000e+00> : vector<8x512xf32>
      %88 = tpu.matmul %69, %87, %cst_47 {dimension_numbers = #tpu.dot_dimension_numbers<[1], [0], [0], [1], [0, 0, 1, 1], [], []>} : vector<8x128xf32>, vector<128x512xf32>, vector<8x512xf32> -> vector<8x512xf32>
      %89 = arith.addf %85, %88 : vector<8x512xf32>
      %90 = vector.extract_strided_slice %89 {offsets = [0, 0], sizes = [8, 128], strides = [1, 1]} : vector<8x512xf32> to vector<8x128xf32>
      %cst_48 = arith.constant 5.000000e-01 : f32
      %91 = vector.broadcast %cst_48 : f32 to vector<8x128xf32>
      %92 = arith.mulf %91, %90 : vector<8x128xf32>
      %93 = math.tanh %92 : vector<8x128xf32>
      %cst_49 = arith.constant 5.000000e-01 : f32
      %94 = vector.broadcast %cst_49 : f32 to vector<8x128xf32>
      %95 = arith.mulf %94, %93 : vector<8x128xf32>
      %cst_50 = arith.constant 5.000000e-01 : f32
      %96 = vector.broadcast %cst_50 : f32 to vector<8x128xf32>
      %97 = arith.addf %95, %96 : vector<8x128xf32>
      %98 = vector.extract_strided_slice %89 {offsets = [0, 128], sizes = [8, 128], strides = [1, 1]} : vector<8x512xf32> to vector<8x128xf32>
      %cst_51 = arith.constant 5.000000e-01 : f32
      %99 = vector.broadcast %cst_51 : f32 to vector<8x128xf32>
      %100 = arith.mulf %99, %98 : vector<8x128xf32>
      %101 = math.tanh %100 : vector<8x128xf32>
      %cst_52 = arith.constant 5.000000e-01 : f32
      %102 = vector.broadcast %cst_52 : f32 to vector<8x128xf32>
      %103 = arith.mulf %102, %101 : vector<8x128xf32>
      %cst_53 = arith.constant 5.000000e-01 : f32
      %104 = vector.broadcast %cst_53 : f32 to vector<8x128xf32>
      %105 = arith.addf %103, %104 : vector<8x128xf32>
      %106 = vector.extract_strided_slice %89 {offsets = [0, 256], sizes = [8, 128], strides = [1, 1]} : vector<8x512xf32> to vector<8x128xf32>
      %107 = math.tanh %106 : vector<8x128xf32>
      %108 = vector.extract_strided_slice %89 {offsets = [0, 384], sizes = [8, 128], strides = [1, 1]} : vector<8x512xf32> to vector<8x128xf32>
      %cst_54 = arith.constant 5.000000e-01 : f32
      %109 = vector.broadcast %cst_54 : f32 to vector<8x128xf32>
      %110 = arith.mulf %109, %108 : vector<8x128xf32>
      %111 = math.tanh %110 : vector<8x128xf32>
      %cst_55 = arith.constant 5.000000e-01 : f32
      %112 = vector.broadcast %cst_55 : f32 to vector<8x128xf32>
      %113 = arith.mulf %112, %111 : vector<8x128xf32>
      %cst_56 = arith.constant 5.000000e-01 : f32
      %114 = vector.broadcast %cst_56 : f32 to vector<8x128xf32>
      %115 = arith.addf %113, %114 : vector<8x128xf32>
      %116 = arith.mulf %105, %72 : vector<8x128xf32>
      %117 = arith.mulf %97, %107 : vector<8x128xf32>
      %118 = arith.addf %116, %117 : vector<8x128xf32>
      %119 = math.tanh %118 : vector<8x128xf32>
      %120 = arith.mulf %115, %119 : vector<8x128xf32>
      %121 = vector.broadcast %81 : i32 to vector<8x1xi32>
      %122 = arith.cmpi sgt, %13, %121 : vector<8x1xi32>
      %123 = vector.shape_cast %122 : vector<8x1xi1> to vector<8x1xi1>
      %124 = vector.broadcast %123 : vector<8x1xi1> to vector<8x128xi1>
      %125 = arith.select %124, %120, %69 : vector<8x128xi1>, vector<8x128xf32>
      %126 = vector.shape_cast %122 : vector<8x1xi1> to vector<8x1xi1>
      %127 = vector.broadcast %126 : vector<8x1xi1> to vector<8x128xi1>
      %128 = arith.select %127, %118, %72 : vector<8x128xi1>, vector<8x128xf32>
      %cst_57 = arith.constant 0.000000e+00 : f32
      %129 = vector.shape_cast %122 : vector<8x1xi1> to vector<8x1xi1>
      %130 = vector.broadcast %129 : vector<8x1xi1> to vector<8x128xi1>
      %131 = vector.broadcast %cst_57 : f32 to vector<8x128xf32>
      %132 = arith.select %130, %120, %131 : vector<8x128xi1>, vector<8x128xf32>
      %c0_58 = arith.constant 0 : index
      %133 = arith.index_cast %83 : i32 to index
      %c0_59 = arith.constant 0 : index
      %134 = vector.load %arg7[%c0_58, %133, %c0_59] : memref<1x64x128xf32, #tpu.memory_space<vmem>>, vector<1x8x128xf32>
      %135 = vector.shape_cast %134 : vector<1x8x128xf32> to vector<8x128xf32>
      %136 = vector.shape_cast %132 : vector<8x128xf32> to vector<1x8x128xf32>
      tpu.vector_store %arg7[%c0_58, %133, %c0_59], %136 {strides = array<i32>} : memref<1x64x128xf32, #tpu.memory_space<vmem>>, vector<1x8x128xf32>,
      %c2_i32 = arith.constant 2 : i32
      %137 = arith.addi %20, %c2_i32 : i32
      %c8_i32_60 = arith.constant 8 : i32
      %138 = arith.muli %c2_i32, %c8_i32_60 : i32
      %139 = tpu.assume_multiple %138, 8 : i32
      %140 = arith.index_cast %139 : i32 to index
      %c0_61 = arith.constant 0 : index
      %141 = vector.load %arg8[%140, %c0_61] : memref<64x512xf32, #tpu.memory_space<vmem>>, vector<8x512xf32>
      %c0_62 = arith.constant 0 : index
      %c0_63 = arith.constant 0 : index
      %c0_64 = arith.constant 0 : index
      %142 = vector.load %arg6[%c0_62, %c0_63, %c0_64] : memref<1x128x512xf32, #tpu.memory_space<vmem>>, vector<1x128x512xf32>
      %143 = vector.shape_cast %142 : vector<1x128x512xf32> to vector<128x512xf32>
      %cst_65 = arith.constant dense<0.000000e+00> : vector<8x512xf32>
      %144 = tpu.matmul %125, %143, %cst_65 {dimension_numbers = #tpu.dot_dimension_numbers<[1], [0], [0], [1], [0, 0, 1, 1], [], []>} : vector<8x128xf32>, vector<128x512xf32>, vector<8x512xf32> -> vector<8x512xf32>
      %145 = arith.addf %141, %144 : vector<8x512xf32>
      %146 = vector.extract_strided_slice %145 {offsets = [0, 0], sizes = [8, 128], strides = [1, 1]} : vector<8x512xf32> to vector<8x128xf32>
      %cst_66 = arith.constant 5.000000e-01 : f32
      %147 = vector.broadcast %cst_66 : f32 to vector<8x128xf32>
      %148 = arith.mulf %147, %146 : vector<8x128xf32>
      %149 = math.tanh %148 : vector<8x128xf32>
      %cst_67 = arith.constant 5.000000e-01 : f32
      %150 = vector.broadcast %cst_67 : f32 to vector<8x128xf32>
      %151 = arith.mulf %150, %149 : vector<8x128xf32>
      %cst_68 = arith.constant 5.000000e-01 : f32
      %152 = vector.broadcast %cst_68 : f32 to vector<8x128xf32>
      %153 = arith.addf %151, %152 : vector<8x128xf32>
      %154 = vector.extract_strided_slice %145 {offsets = [0, 128], sizes = [8, 128], strides = [1, 1]} : vector<8x512xf32> to vector<8x128xf32>
      %cst_69 = arith.constant 5.000000e-01 : f32
      %155 = vector.broadcast %cst_69 : f32 to vector<8x128xf32>
      %156 = arith.mulf %155, %154 : vector<8x128xf32>
      %157 = math.tanh %156 : vector<8x128xf32>
      %cst_70 = arith.constant 5.000000e-01 : f32
      %158 = vector.broadcast %cst_70 : f32 to vector<8x128xf32>
      %159 = arith.mulf %158, %157 : vector<8x128xf32>
      %cst_71 = arith.constant 5.000000e-01 : f32
      %160 = vector.broadcast %cst_71 : f32 to vector<8x128xf32>
      %161 = arith.addf %159, %160 : vector<8x128xf32>
      %162 = vector.extract_strided_slice %145 {offsets = [0, 256], sizes = [8, 128], strides = [1, 1]} : vector<8x512xf32> to vector<8x128xf32>
      %163 = math.tanh %162 : vector<8x128xf32>
      %164 = vector.extract_strided_slice %145 {offsets = [0, 384], sizes = [8, 128], strides = [1, 1]} : vector<8x512xf32> to vector<8x128xf32>
      %cst_72 = arith.constant 5.000000e-01 : f32
      %165 = vector.broadcast %cst_72 : f32 to vector<8x128xf32>
      %166 = arith.mulf %165, %164 : vector<8x128xf32>
      %167 = math.tanh %166 : vector<8x128xf32>
      %cst_73 = arith.constant 5.000000e-01 : f32
      %168 = vector.broadcast %cst_73 : f32 to vector<8x128xf32>
      %169 = arith.mulf %168, %167 : vector<8x128xf32>
      %cst_74 = arith.constant 5.000000e-01 : f32
      %170 = vector.broadcast %cst_74 : f32 to vector<8x128xf32>
      %171 = arith.addf %169, %170 : vector<8x128xf32>
      %172 = arith.mulf %161, %128 : vector<8x128xf32>
      %173 = arith.mulf %153, %163 : vector<8x128xf32>
      %174 = arith.addf %172, %173 : vector<8x128xf32>
      %175 = math.tanh %174 : vector<8x128xf32>
      %176 = arith.mulf %171, %175 : vector<8x128xf32>
      %177 = vector.broadcast %137 : i32 to vector<8x1xi32>
      %178 = arith.cmpi sgt, %13, %177 : vector<8x1xi32>
      %179 = vector.shape_cast %178 : vector<8x1xi1> to vector<8x1xi1>
      %180 = vector.broadcast %179 : vector<8x1xi1> to vector<8x128xi1>
      %181 = arith.select %180, %176, %125 : vector<8x128xi1>, vector<8x128xf32>
      %182 = vector.shape_cast %178 : vector<8x1xi1> to vector<8x1xi1>
      %183 = vector.broadcast %182 : vector<8x1xi1> to vector<8x128xi1>
      %184 = arith.select %183, %174, %128 : vector<8x128xi1>, vector<8x128xf32>
      %cst_75 = arith.constant 0.000000e+00 : f32
      %185 = vector.shape_cast %178 : vector<8x1xi1> to vector<8x1xi1>
      %186 = vector.broadcast %185 : vector<8x1xi1> to vector<8x128xi1>
      %187 = vector.broadcast %cst_75 : f32 to vector<8x128xf32>
      %188 = arith.select %186, %176, %187 : vector<8x128xi1>, vector<8x128xf32>
      %c0_76 = arith.constant 0 : index
      %189 = arith.index_cast %139 : i32 to index
      %c0_77 = arith.constant 0 : index
      %190 = vector.load %arg7[%c0_76, %189, %c0_77] : memref<1x64x128xf32, #tpu.memory_space<vmem>>, vector<1x8x128xf32>
      %191 = vector.shape_cast %190 : vector<1x8x128xf32> to vector<8x128xf32>
      %192 = vector.shape_cast %188 : vector<8x128xf32> to vector<1x8x128xf32>
      tpu.vector_store %arg7[%c0_76, %189, %c0_77], %192 {strides = array<i32>} : memref<1x64x128xf32, #tpu.memory_space<vmem>>, vector<1x8x128xf32>,
      %c3_i32 = arith.constant 3 : i32
      %193 = arith.addi %20, %c3_i32 : i32
      %c8_i32_78 = arith.constant 8 : i32
      %194 = arith.muli %c3_i32, %c8_i32_78 : i32
      %195 = tpu.assume_multiple %194, 8 : i32
      %196 = arith.index_cast %195 : i32 to index
      %c0_79 = arith.constant 0 : index
      %197 = vector.load %arg8[%196, %c0_79] : memref<64x512xf32, #tpu.memory_space<vmem>>, vector<8x512xf32>
      %c0_80 = arith.constant 0 : index
      %c0_81 = arith.constant 0 : index
      %c0_82 = arith.constant 0 : index
      %198 = vector.load %arg6[%c0_80, %c0_81, %c0_82] : memref<1x128x512xf32, #tpu.memory_space<vmem>>, vector<1x128x512xf32>
      %199 = vector.shape_cast %198 : vector<1x128x512xf32> to vector<128x512xf32>
      %cst_83 = arith.constant dense<0.000000e+00> : vector<8x512xf32>
      %200 = tpu.matmul %181, %199, %cst_83 {dimension_numbers = #tpu.dot_dimension_numbers<[1], [0], [0], [1], [0, 0, 1, 1], [], []>} : vector<8x128xf32>, vector<128x512xf32>, vector<8x512xf32> -> vector<8x512xf32>
      %201 = arith.addf %197, %200 : vector<8x512xf32>
      %202 = vector.extract_strided_slice %201 {offsets = [0, 0], sizes = [8, 128], strides = [1, 1]} : vector<8x512xf32> to vector<8x128xf32>
      %cst_84 = arith.constant 5.000000e-01 : f32
      %203 = vector.broadcast %cst_84 : f32 to vector<8x128xf32>
      %204 = arith.mulf %203, %202 : vector<8x128xf32>
      %205 = math.tanh %204 : vector<8x128xf32>
      %cst_85 = arith.constant 5.000000e-01 : f32
      %206 = vector.broadcast %cst_85 : f32 to vector<8x128xf32>
      %207 = arith.mulf %206, %205 : vector<8x128xf32>
      %cst_86 = arith.constant 5.000000e-01 : f32
      %208 = vector.broadcast %cst_86 : f32 to vector<8x128xf32>
      %209 = arith.addf %207, %208 : vector<8x128xf32>
      %210 = vector.extract_strided_slice %201 {offsets = [0, 128], sizes = [8, 128], strides = [1, 1]} : vector<8x512xf32> to vector<8x128xf32>
      %cst_87 = arith.constant 5.000000e-01 : f32
      %211 = vector.broadcast %cst_87 : f32 to vector<8x128xf32>
      %212 = arith.mulf %211, %210 : vector<8x128xf32>
      %213 = math.tanh %212 : vector<8x128xf32>
      %cst_88 = arith.constant 5.000000e-01 : f32
      %214 = vector.broadcast %cst_88 : f32 to vector<8x128xf32>
      %215 = arith.mulf %214, %213 : vector<8x128xf32>
      %cst_89 = arith.constant 5.000000e-01 : f32
      %216 = vector.broadcast %cst_89 : f32 to vector<8x128xf32>
      %217 = arith.addf %215, %216 : vector<8x128xf32>
      %218 = vector.extract_strided_slice %201 {offsets = [0, 256], sizes = [8, 128], strides = [1, 1]} : vector<8x512xf32> to vector<8x128xf32>
      %219 = math.tanh %218 : vector<8x128xf32>
      %220 = vector.extract_strided_slice %201 {offsets = [0, 384], sizes = [8, 128], strides = [1, 1]} : vector<8x512xf32> to vector<8x128xf32>
      %cst_90 = arith.constant 5.000000e-01 : f32
      %221 = vector.broadcast %cst_90 : f32 to vector<8x128xf32>
      %222 = arith.mulf %221, %220 : vector<8x128xf32>
      %223 = math.tanh %222 : vector<8x128xf32>
      %cst_91 = arith.constant 5.000000e-01 : f32
      %224 = vector.broadcast %cst_91 : f32 to vector<8x128xf32>
      %225 = arith.mulf %224, %223 : vector<8x128xf32>
      %cst_92 = arith.constant 5.000000e-01 : f32
      %226 = vector.broadcast %cst_92 : f32 to vector<8x128xf32>
      %227 = arith.addf %225, %226 : vector<8x128xf32>
      %228 = arith.mulf %217, %184 : vector<8x128xf32>
      %229 = arith.mulf %209, %219 : vector<8x128xf32>
      %230 = arith.addf %228, %229 : vector<8x128xf32>
      %231 = math.tanh %230 : vector<8x128xf32>
      %232 = arith.mulf %227, %231 : vector<8x128xf32>
      %233 = vector.broadcast %193 : i32 to vector<8x1xi32>
      %234 = arith.cmpi sgt, %13, %233 : vector<8x1xi32>
      %235 = vector.shape_cast %234 : vector<8x1xi1> to vector<8x1xi1>
      %236 = vector.broadcast %235 : vector<8x1xi1> to vector<8x128xi1>
      %237 = arith.select %236, %232, %181 : vector<8x128xi1>, vector<8x128xf32>
      %238 = vector.shape_cast %234 : vector<8x1xi1> to vector<8x1xi1>
      %239 = vector.broadcast %238 : vector<8x1xi1> to vector<8x128xi1>
      %240 = arith.select %239, %230, %184 : vector<8x128xi1>, vector<8x128xf32>
      %cst_93 = arith.constant 0.000000e+00 : f32
      %241 = vector.shape_cast %234 : vector<8x1xi1> to vector<8x1xi1>
      %242 = vector.broadcast %241 : vector<8x1xi1> to vector<8x128xi1>
      %243 = vector.broadcast %cst_93 : f32 to vector<8x128xf32>
      %244 = arith.select %242, %232, %243 : vector<8x128xi1>, vector<8x128xf32>
      %c0_94 = arith.constant 0 : index
      %245 = arith.index_cast %195 : i32 to index
      %c0_95 = arith.constant 0 : index
      %246 = vector.load %arg7[%c0_94, %245, %c0_95] : memref<1x64x128xf32, #tpu.memory_space<vmem>>, vector<1x8x128xf32>
      %247 = vector.shape_cast %246 : vector<1x8x128xf32> to vector<8x128xf32>
      %248 = vector.shape_cast %244 : vector<8x128xf32> to vector<1x8x128xf32>
      tpu.vector_store %arg7[%c0_94, %245, %c0_95], %248 {strides = array<i32>} : memref<1x64x128xf32, #tpu.memory_space<vmem>>, vector<1x8x128xf32>,
      %c4_i32 = arith.constant 4 : i32
      %249 = arith.addi %20, %c4_i32 : i32
      %c8_i32_96 = arith.constant 8 : i32
      %250 = arith.muli %c4_i32, %c8_i32_96 : i32
      %251 = tpu.assume_multiple %250, 8 : i32
      %252 = arith.index_cast %251 : i32 to index
      %c0_97 = arith.constant 0 : index
      %253 = vector.load %arg8[%252, %c0_97] : memref<64x512xf32, #tpu.memory_space<vmem>>, vector<8x512xf32>
      %c0_98 = arith.constant 0 : index
      %c0_99 = arith.constant 0 : index
      %c0_100 = arith.constant 0 : index
      %254 = vector.load %arg6[%c0_98, %c0_99, %c0_100] : memref<1x128x512xf32, #tpu.memory_space<vmem>>, vector<1x128x512xf32>
      %255 = vector.shape_cast %254 : vector<1x128x512xf32> to vector<128x512xf32>
      %cst_101 = arith.constant dense<0.000000e+00> : vector<8x512xf32>
      %256 = tpu.matmul %237, %255, %cst_101 {dimension_numbers = #tpu.dot_dimension_numbers<[1], [0], [0], [1], [0, 0, 1, 1], [], []>} : vector<8x128xf32>, vector<128x512xf32>, vector<8x512xf32> -> vector<8x512xf32>
      %257 = arith.addf %253, %256 : vector<8x512xf32>
      %258 = vector.extract_strided_slice %257 {offsets = [0, 0], sizes = [8, 128], strides = [1, 1]} : vector<8x512xf32> to vector<8x128xf32>
      %cst_102 = arith.constant 5.000000e-01 : f32
      %259 = vector.broadcast %cst_102 : f32 to vector<8x128xf32>
      %260 = arith.mulf %259, %258 : vector<8x128xf32>
      %261 = math.tanh %260 : vector<8x128xf32>
      %cst_103 = arith.constant 5.000000e-01 : f32
      %262 = vector.broadcast %cst_103 : f32 to vector<8x128xf32>
      %263 = arith.mulf %262, %261 : vector<8x128xf32>
      %cst_104 = arith.constant 5.000000e-01 : f32
      %264 = vector.broadcast %cst_104 : f32 to vector<8x128xf32>
      %265 = arith.addf %263, %264 : vector<8x128xf32>
      %266 = vector.extract_strided_slice %257 {offsets = [0, 128], sizes = [8, 128], strides = [1, 1]} : vector<8x512xf32> to vector<8x128xf32>
      %cst_105 = arith.constant 5.000000e-01 : f32
      %267 = vector.broadcast %cst_105 : f32 to vector<8x128xf32>
      %268 = arith.mulf %267, %266 : vector<8x128xf32>
      %269 = math.tanh %268 : vector<8x128xf32>
      %cst_106 = arith.constant 5.000000e-01 : f32
      %270 = vector.broadcast %cst_106 : f32 to vector<8x128xf32>
      %271 = arith.mulf %270, %269 : vector<8x128xf32>
      %cst_107 = arith.constant 5.000000e-01 : f32
      %272 = vector.broadcast %cst_107 : f32 to vector<8x128xf32>
      %273 = arith.addf %271, %272 : vector<8x128xf32>
      %274 = vector.extract_strided_slice %257 {offsets = [0, 256], sizes = [8, 128], strides = [1, 1]} : vector<8x512xf32> to vector<8x128xf32>
      %275 = math.tanh %274 : vector<8x128xf32>
      %276 = vector.extract_strided_slice %257 {offsets = [0, 384], sizes = [8, 128], strides = [1, 1]} : vector<8x512xf32> to vector<8x128xf32>
      %cst_108 = arith.constant 5.000000e-01 : f32
      %277 = vector.broadcast %cst_108 : f32 to vector<8x128xf32>
      %278 = arith.mulf %277, %276 : vector<8x128xf32>
      %279 = math.tanh %278 : vector<8x128xf32>
      %cst_109 = arith.constant 5.000000e-01 : f32
      %280 = vector.broadcast %cst_109 : f32 to vector<8x128xf32>
      %281 = arith.mulf %280, %279 : vector<8x128xf32>
      %cst_110 = arith.constant 5.000000e-01 : f32
      %282 = vector.broadcast %cst_110 : f32 to vector<8x128xf32>
      %283 = arith.addf %281, %282 : vector<8x128xf32>
      %284 = arith.mulf %273, %240 : vector<8x128xf32>
      %285 = arith.mulf %265, %275 : vector<8x128xf32>
      %286 = arith.addf %284, %285 : vector<8x128xf32>
      %287 = math.tanh %286 : vector<8x128xf32>
      %288 = arith.mulf %283, %287 : vector<8x128xf32>
      %289 = vector.broadcast %249 : i32 to vector<8x1xi32>
      %290 = arith.cmpi sgt, %13, %289 : vector<8x1xi32>
      %291 = vector.shape_cast %290 : vector<8x1xi1> to vector<8x1xi1>
      %292 = vector.broadcast %291 : vector<8x1xi1> to vector<8x128xi1>
      %293 = arith.select %292, %288, %237 : vector<8x128xi1>, vector<8x128xf32>
      %294 = vector.shape_cast %290 : vector<8x1xi1> to vector<8x1xi1>
      %295 = vector.broadcast %294 : vector<8x1xi1> to vector<8x128xi1>
      %296 = arith.select %295, %286, %240 : vector<8x128xi1>, vector<8x128xf32>
      %cst_111 = arith.constant 0.000000e+00 : f32
      %297 = vector.shape_cast %290 : vector<8x1xi1> to vector<8x1xi1>
      %298 = vector.broadcast %297 : vector<8x1xi1> to vector<8x128xi1>
      %299 = vector.broadcast %cst_111 : f32 to vector<8x128xf32>
      %300 = arith.select %298, %288, %299 : vector<8x128xi1>, vector<8x128xf32>
      %c0_112 = arith.constant 0 : index
      %301 = arith.index_cast %251 : i32 to index
      %c0_113 = arith.constant 0 : index
      %302 = vector.load %arg7[%c0_112, %301, %c0_113] : memref<1x64x128xf32, #tpu.memory_space<vmem>>, vector<1x8x128xf32>
      %303 = vector.shape_cast %302 : vector<1x8x128xf32> to vector<8x128xf32>
      %304 = vector.shape_cast %300 : vector<8x128xf32> to vector<1x8x128xf32>
      tpu.vector_store %arg7[%c0_112, %301, %c0_113], %304 {strides = array<i32>} : memref<1x64x128xf32, #tpu.memory_space<vmem>>, vector<1x8x128xf32>,
      %c5_i32 = arith.constant 5 : i32
      %305 = arith.addi %20, %c5_i32 : i32
      %c8_i32_114 = arith.constant 8 : i32
      %306 = arith.muli %c5_i32, %c8_i32_114 : i32
      %307 = tpu.assume_multiple %306, 8 : i32
      %308 = arith.index_cast %307 : i32 to index
      %c0_115 = arith.constant 0 : index
      %309 = vector.load %arg8[%308, %c0_115] : memref<64x512xf32, #tpu.memory_space<vmem>>, vector<8x512xf32>
      %c0_116 = arith.constant 0 : index
      %c0_117 = arith.constant 0 : index
      %c0_118 = arith.constant 0 : index
      %310 = vector.load %arg6[%c0_116, %c0_117, %c0_118] : memref<1x128x512xf32, #tpu.memory_space<vmem>>, vector<1x128x512xf32>
      %311 = vector.shape_cast %310 : vector<1x128x512xf32> to vector<128x512xf32>
      %cst_119 = arith.constant dense<0.000000e+00> : vector<8x512xf32>
      %312 = tpu.matmul %293, %311, %cst_119 {dimension_numbers = #tpu.dot_dimension_numbers<[1], [0], [0], [1], [0, 0, 1, 1], [], []>} : vector<8x128xf32>, vector<128x512xf32>, vector<8x512xf32> -> vector<8x512xf32>
      %313 = arith.addf %309, %312 : vector<8x512xf32>
      %314 = vector.extract_strided_slice %313 {offsets = [0, 0], sizes = [8, 128], strides = [1, 1]} : vector<8x512xf32> to vector<8x128xf32>
      %cst_120 = arith.constant 5.000000e-01 : f32
      %315 = vector.broadcast %cst_120 : f32 to vector<8x128xf32>
      %316 = arith.mulf %315, %314 : vector<8x128xf32>
      %317 = math.tanh %316 : vector<8x128xf32>
      %cst_121 = arith.constant 5.000000e-01 : f32
      %318 = vector.broadcast %cst_121 : f32 to vector<8x128xf32>
      %319 = arith.mulf %318, %317 : vector<8x128xf32>
      %cst_122 = arith.constant 5.000000e-01 : f32
      %320 = vector.broadcast %cst_122 : f32 to vector<8x128xf32>
      %321 = arith.addf %319, %320 : vector<8x128xf32>
      %322 = vector.extract_strided_slice %313 {offsets = [0, 128], sizes = [8, 128], strides = [1, 1]} : vector<8x512xf32> to vector<8x128xf32>
      %cst_123 = arith.constant 5.000000e-01 : f32
      %323 = vector.broadcast %cst_123 : f32 to vector<8x128xf32>
      %324 = arith.mulf %323, %322 : vector<8x128xf32>
      %325 = math.tanh %324 : vector<8x128xf32>
      %cst_124 = arith.constant 5.000000e-01 : f32
      %326 = vector.broadcast %cst_124 : f32 to vector<8x128xf32>
      %327 = arith.mulf %326, %325 : vector<8x128xf32>
      %cst_125 = arith.constant 5.000000e-01 : f32
      %328 = vector.broadcast %cst_125 : f32 to vector<8x128xf32>
      %329 = arith.addf %327, %328 : vector<8x128xf32>
      %330 = vector.extract_strided_slice %313 {offsets = [0, 256], sizes = [8, 128], strides = [1, 1]} : vector<8x512xf32> to vector<8x128xf32>
      %331 = math.tanh %330 : vector<8x128xf32>
      %332 = vector.extract_strided_slice %313 {offsets = [0, 384], sizes = [8, 128], strides = [1, 1]} : vector<8x512xf32> to vector<8x128xf32>
      %cst_126 = arith.constant 5.000000e-01 : f32
      %333 = vector.broadcast %cst_126 : f32 to vector<8x128xf32>
      %334 = arith.mulf %333, %332 : vector<8x128xf32>
      %335 = math.tanh %334 : vector<8x128xf32>
      %cst_127 = arith.constant 5.000000e-01 : f32
      %336 = vector.broadcast %cst_127 : f32 to vector<8x128xf32>
      %337 = arith.mulf %336, %335 : vector<8x128xf32>
      %cst_128 = arith.constant 5.000000e-01 : f32
      %338 = vector.broadcast %cst_128 : f32 to vector<8x128xf32>
      %339 = arith.addf %337, %338 : vector<8x128xf32>
      %340 = arith.mulf %329, %296 : vector<8x128xf32>
      %341 = arith.mulf %321, %331 : vector<8x128xf32>
      %342 = arith.addf %340, %341 : vector<8x128xf32>
      %343 = math.tanh %342 : vector<8x128xf32>
      %344 = arith.mulf %339, %343 : vector<8x128xf32>
      %345 = vector.broadcast %305 : i32 to vector<8x1xi32>
      %346 = arith.cmpi sgt, %13, %345 : vector<8x1xi32>
      %347 = vector.shape_cast %346 : vector<8x1xi1> to vector<8x1xi1>
      %348 = vector.broadcast %347 : vector<8x1xi1> to vector<8x128xi1>
      %349 = arith.select %348, %344, %293 : vector<8x128xi1>, vector<8x128xf32>
      %350 = vector.shape_cast %346 : vector<8x1xi1> to vector<8x1xi1>
      %351 = vector.broadcast %350 : vector<8x1xi1> to vector<8x128xi1>
      %352 = arith.select %351, %342, %296 : vector<8x128xi1>, vector<8x128xf32>
      %cst_129 = arith.constant 0.000000e+00 : f32
      %353 = vector.shape_cast %346 : vector<8x1xi1> to vector<8x1xi1>
      %354 = vector.broadcast %353 : vector<8x1xi1> to vector<8x128xi1>
      %355 = vector.broadcast %cst_129 : f32 to vector<8x128xf32>
      %356 = arith.select %354, %344, %355 : vector<8x128xi1>, vector<8x128xf32>
      %c0_130 = arith.constant 0 : index
      %357 = arith.index_cast %307 : i32 to index
      %c0_131 = arith.constant 0 : index
      %358 = vector.load %arg7[%c0_130, %357, %c0_131] : memref<1x64x128xf32, #tpu.memory_space<vmem>>, vector<1x8x128xf32>
      %359 = vector.shape_cast %358 : vector<1x8x128xf32> to vector<8x128xf32>
      %360 = vector.shape_cast %356 : vector<8x128xf32> to vector<1x8x128xf32>
      tpu.vector_store %arg7[%c0_130, %357, %c0_131], %360 {strides = array<i32>} : memref<1x64x128xf32, #tpu.memory_space<vmem>>, vector<1x8x128xf32>,
      %c6_i32 = arith.constant 6 : i32
      %361 = arith.addi %20, %c6_i32 : i32
      %c8_i32_132 = arith.constant 8 : i32
      %362 = arith.muli %c6_i32, %c8_i32_132 : i32
      %363 = tpu.assume_multiple %362, 8 : i32
      %364 = arith.index_cast %363 : i32 to index
      %c0_133 = arith.constant 0 : index
      %365 = vector.load %arg8[%364, %c0_133] : memref<64x512xf32, #tpu.memory_space<vmem>>, vector<8x512xf32>
      %c0_134 = arith.constant 0 : index
      %c0_135 = arith.constant 0 : index
      %c0_136 = arith.constant 0 : index
      %366 = vector.load %arg6[%c0_134, %c0_135, %c0_136] : memref<1x128x512xf32, #tpu.memory_space<vmem>>, vector<1x128x512xf32>
      %367 = vector.shape_cast %366 : vector<1x128x512xf32> to vector<128x512xf32>
      %cst_137 = arith.constant dense<0.000000e+00> : vector<8x512xf32>
      %368 = tpu.matmul %349, %367, %cst_137 {dimension_numbers = #tpu.dot_dimension_numbers<[1], [0], [0], [1], [0, 0, 1, 1], [], []>} : vector<8x128xf32>, vector<128x512xf32>, vector<8x512xf32> -> vector<8x512xf32>
      %369 = arith.addf %365, %368 : vector<8x512xf32>
      %370 = vector.extract_strided_slice %369 {offsets = [0, 0], sizes = [8, 128], strides = [1, 1]} : vector<8x512xf32> to vector<8x128xf32>
      %cst_138 = arith.constant 5.000000e-01 : f32
      %371 = vector.broadcast %cst_138 : f32 to vector<8x128xf32>
      %372 = arith.mulf %371, %370 : vector<8x128xf32>
      %373 = math.tanh %372 : vector<8x128xf32>
      %cst_139 = arith.constant 5.000000e-01 : f32
      %374 = vector.broadcast %cst_139 : f32 to vector<8x128xf32>
      %375 = arith.mulf %374, %373 : vector<8x128xf32>
      %cst_140 = arith.constant 5.000000e-01 : f32
      %376 = vector.broadcast %cst_140 : f32 to vector<8x128xf32>
      %377 = arith.addf %375, %376 : vector<8x128xf32>
      %378 = vector.extract_strided_slice %369 {offsets = [0, 128], sizes = [8, 128], strides = [1, 1]} : vector<8x512xf32> to vector<8x128xf32>
      %cst_141 = arith.constant 5.000000e-01 : f32
      %379 = vector.broadcast %cst_141 : f32 to vector<8x128xf32>
      %380 = arith.mulf %379, %378 : vector<8x128xf32>
      %381 = math.tanh %380 : vector<8x128xf32>
      %cst_142 = arith.constant 5.000000e-01 : f32
      %382 = vector.broadcast %cst_142 : f32 to vector<8x128xf32>
      %383 = arith.mulf %382, %381 : vector<8x128xf32>
      %cst_143 = arith.constant 5.000000e-01 : f32
      %384 = vector.broadcast %cst_143 : f32 to vector<8x128xf32>
      %385 = arith.addf %383, %384 : vector<8x128xf32>
      %386 = vector.extract_strided_slice %369 {offsets = [0, 256], sizes = [8, 128], strides = [1, 1]} : vector<8x512xf32> to vector<8x128xf32>
      %387 = math.tanh %386 : vector<8x128xf32>
      %388 = vector.extract_strided_slice %369 {offsets = [0, 384], sizes = [8, 128], strides = [1, 1]} : vector<8x512xf32> to vector<8x128xf32>
      %cst_144 = arith.constant 5.000000e-01 : f32
      %389 = vector.broadcast %cst_144 : f32 to vector<8x128xf32>
      %390 = arith.mulf %389, %388 : vector<8x128xf32>
      %391 = math.tanh %390 : vector<8x128xf32>
      %cst_145 = arith.constant 5.000000e-01 : f32
      %392 = vector.broadcast %cst_145 : f32 to vector<8x128xf32>
      %393 = arith.mulf %392, %391 : vector<8x128xf32>
      %cst_146 = arith.constant 5.000000e-01 : f32
      %394 = vector.broadcast %cst_146 : f32 to vector<8x128xf32>
      %395 = arith.addf %393, %394 : vector<8x128xf32>
      %396 = arith.mulf %385, %352 : vector<8x128xf32>
      %397 = arith.mulf %377, %387 : vector<8x128xf32>
      %398 = arith.addf %396, %397 : vector<8x128xf32>
      %399 = math.tanh %398 : vector<8x128xf32>
      %400 = arith.mulf %395, %399 : vector<8x128xf32>
      %401 = vector.broadcast %361 : i32 to vector<8x1xi32>
      %402 = arith.cmpi sgt, %13, %401 : vector<8x1xi32>
      %403 = vector.shape_cast %402 : vector<8x1xi1> to vector<8x1xi1>
      %404 = vector.broadcast %403 : vector<8x1xi1> to vector<8x128xi1>
      %405 = arith.select %404, %400, %349 : vector<8x128xi1>, vector<8x128xf32>
      %406 = vector.shape_cast %402 : vector<8x1xi1> to vector<8x1xi1>
      %407 = vector.broadcast %406 : vector<8x1xi1> to vector<8x128xi1>
      %408 = arith.select %407, %398, %352 : vector<8x128xi1>, vector<8x128xf32>
      %cst_147 = arith.constant 0.000000e+00 : f32
      %409 = vector.shape_cast %402 : vector<8x1xi1> to vector<8x1xi1>
      %410 = vector.broadcast %409 : vector<8x1xi1> to vector<8x128xi1>
      %411 = vector.broadcast %cst_147 : f32 to vector<8x128xf32>
      %412 = arith.select %410, %400, %411 : vector<8x128xi1>, vector<8x128xf32>
      %c0_148 = arith.constant 0 : index
      %413 = arith.index_cast %363 : i32 to index
      %c0_149 = arith.constant 0 : index
      %414 = vector.load %arg7[%c0_148, %413, %c0_149] : memref<1x64x128xf32, #tpu.memory_space<vmem>>, vector<1x8x128xf32>
      %415 = vector.shape_cast %414 : vector<1x8x128xf32> to vector<8x128xf32>
      %416 = vector.shape_cast %412 : vector<8x128xf32> to vector<1x8x128xf32>
      tpu.vector_store %arg7[%c0_148, %413, %c0_149], %416 {strides = array<i32>} : memref<1x64x128xf32, #tpu.memory_space<vmem>>, vector<1x8x128xf32>,
      %c7_i32 = arith.constant 7 : i32
      %417 = arith.addi %20, %c7_i32 : i32
      %c8_i32_150 = arith.constant 8 : i32
      %418 = arith.muli %c7_i32, %c8_i32_150 : i32
      %419 = tpu.assume_multiple %418, 8 : i32
      %420 = arith.index_cast %419 : i32 to index
      %c0_151 = arith.constant 0 : index
      %421 = vector.load %arg8[%420, %c0_151] : memref<64x512xf32, #tpu.memory_space<vmem>>, vector<8x512xf32>
      %c0_152 = arith.constant 0 : index
      %c0_153 = arith.constant 0 : index
      %c0_154 = arith.constant 0 : index
      %422 = vector.load %arg6[%c0_152, %c0_153, %c0_154] : memref<1x128x512xf32, #tpu.memory_space<vmem>>, vector<1x128x512xf32>
      %423 = vector.shape_cast %422 : vector<1x128x512xf32> to vector<128x512xf32>
      %cst_155 = arith.constant dense<0.000000e+00> : vector<8x512xf32>
      %424 = tpu.matmul %405, %423, %cst_155 {dimension_numbers = #tpu.dot_dimension_numbers<[1], [0], [0], [1], [0, 0, 1, 1], [], []>} : vector<8x128xf32>, vector<128x512xf32>, vector<8x512xf32> -> vector<8x512xf32>
      %425 = arith.addf %421, %424 : vector<8x512xf32>
      %426 = vector.extract_strided_slice %425 {offsets = [0, 0], sizes = [8, 128], strides = [1, 1]} : vector<8x512xf32> to vector<8x128xf32>
      %cst_156 = arith.constant 5.000000e-01 : f32
      %427 = vector.broadcast %cst_156 : f32 to vector<8x128xf32>
      %428 = arith.mulf %427, %426 : vector<8x128xf32>
      %429 = math.tanh %428 : vector<8x128xf32>
      %cst_157 = arith.constant 5.000000e-01 : f32
      %430 = vector.broadcast %cst_157 : f32 to vector<8x128xf32>
      %431 = arith.mulf %430, %429 : vector<8x128xf32>
      %cst_158 = arith.constant 5.000000e-01 : f32
      %432 = vector.broadcast %cst_158 : f32 to vector<8x128xf32>
      %433 = arith.addf %431, %432 : vector<8x128xf32>
      %434 = vector.extract_strided_slice %425 {offsets = [0, 128], sizes = [8, 128], strides = [1, 1]} : vector<8x512xf32> to vector<8x128xf32>
      %cst_159 = arith.constant 5.000000e-01 : f32
      %435 = vector.broadcast %cst_159 : f32 to vector<8x128xf32>
      %436 = arith.mulf %435, %434 : vector<8x128xf32>
      %437 = math.tanh %436 : vector<8x128xf32>
      %cst_160 = arith.constant 5.000000e-01 : f32
      %438 = vector.broadcast %cst_160 : f32 to vector<8x128xf32>
      %439 = arith.mulf %438, %437 : vector<8x128xf32>
      %cst_161 = arith.constant 5.000000e-01 : f32
      %440 = vector.broadcast %cst_161 : f32 to vector<8x128xf32>
      %441 = arith.addf %439, %440 : vector<8x128xf32>
      %442 = vector.extract_strided_slice %425 {offsets = [0, 256], sizes = [8, 128], strides = [1, 1]} : vector<8x512xf32> to vector<8x128xf32>
      %443 = math.tanh %442 : vector<8x128xf32>
      %444 = vector.extract_strided_slice %425 {offsets = [0, 384], sizes = [8, 128], strides = [1, 1]} : vector<8x512xf32> to vector<8x128xf32>
      %cst_162 = arith.constant 5.000000e-01 : f32
      %445 = vector.broadcast %cst_162 : f32 to vector<8x128xf32>
      %446 = arith.mulf %445, %444 : vector<8x128xf32>
      %447 = math.tanh %446 : vector<8x128xf32>
      %cst_163 = arith.constant 5.000000e-01 : f32
      %448 = vector.broadcast %cst_163 : f32 to vector<8x128xf32>
      %449 = arith.mulf %448, %447 : vector<8x128xf32>
      %cst_164 = arith.constant 5.000000e-01 : f32
      %450 = vector.broadcast %cst_164 : f32 to vector<8x128xf32>
      %451 = arith.addf %449, %450 : vector<8x128xf32>
      %452 = arith.mulf %441, %408 : vector<8x128xf32>
      %453 = arith.mulf %433, %443 : vector<8x128xf32>
      %454 = arith.addf %452, %453 : vector<8x128xf32>
      %455 = math.tanh %454 : vector<8x128xf32>
      %456 = arith.mulf %451, %455 : vector<8x128xf32>
      %457 = vector.broadcast %417 : i32 to vector<8x1xi32>
      %458 = arith.cmpi sgt, %13, %457 : vector<8x1xi32>
      %459 = vector.shape_cast %458 : vector<8x1xi1> to vector<8x1xi1>
      %460 = vector.broadcast %459 : vector<8x1xi1> to vector<8x128xi1>
      %461 = arith.select %460, %456, %405 : vector<8x128xi1>, vector<8x128xf32>
      %462 = vector.shape_cast %458 : vector<8x1xi1> to vector<8x1xi1>
      %463 = vector.broadcast %462 : vector<8x1xi1> to vector<8x128xi1>
      %464 = arith.select %463, %454, %408 : vector<8x128xi1>, vector<8x128xf32>
      %cst_165 = arith.constant 0.000000e+00 : f32
      %465 = vector.shape_cast %458 : vector<8x1xi1> to vector<8x1xi1>
      %466 = vector.broadcast %465 : vector<8x1xi1> to vector<8x128xi1>
      %467 = vector.broadcast %cst_165 : f32 to vector<8x128xf32>
      %468 = arith.select %466, %456, %467 : vector<8x128xi1>, vector<8x128xf32>
      %c0_166 = arith.constant 0 : index
      %469 = arith.index_cast %419 : i32 to index
      %c0_167 = arith.constant 0 : index
      %470 = vector.load %arg7[%c0_166, %469, %c0_167] : memref<1x64x128xf32, #tpu.memory_space<vmem>>, vector<1x8x128xf32>
      %471 = vector.shape_cast %470 : vector<1x8x128xf32> to vector<8x128xf32>
      %472 = vector.shape_cast %468 : vector<8x128xf32> to vector<1x8x128xf32>
      tpu.vector_store %arg7[%c0_166, %469, %c0_167], %472 {strides = array<i32>} : memref<1x64x128xf32, #tpu.memory_space<vmem>>, vector<1x8x128xf32>,
      %c8_i32_168 = arith.constant 8 : i32
      %c0_169 = arith.constant 0 : index
      %c0_170 = arith.constant 0 : index
      %c0_171 = arith.constant 0 : index
      %473 = vector.load %arg9[%c0_169, %c0_170, %c0_171] : memref<2x8x128xf32, #tpu.memory_space<vmem>>, vector<1x8x128xf32>
      %474 = vector.shape_cast %473 : vector<1x8x128xf32> to vector<8x128xf32>
      %475 = vector.shape_cast %461 : vector<8x128xf32> to vector<1x8x128xf32>
      tpu.vector_store %arg9[%c0_169, %c0_170, %c0_171], %475 {strides = array<i32>} : memref<2x8x128xf32, #tpu.memory_space<vmem>>, vector<1x8x128xf32>,
      %c0_172 = arith.constant 0 : index
      %c0_173 = arith.constant 0 : index
      %c0_174 = arith.constant 0 : index
      %476 = vector.load %arg10[%c0_172, %c0_173, %c0_174] : memref<2x8x128xf32, #tpu.memory_space<vmem>>, vector<1x8x128xf32>
      %477 = vector.shape_cast %476 : vector<1x8x128xf32> to vector<8x128xf32>
      %478 = vector.shape_cast %464 : vector<8x128xf32> to vector<1x8x128xf32>
      tpu.vector_store %arg10[%c0_172, %c0_173, %c0_174], %478 {strides = array<i32>} : memref<2x8x128xf32, #tpu.memory_space<vmem>>, vector<1x8x128xf32>,
    } else {
    }
    %c1_i32 = arith.constant 1 : i32
    %17 = arith.cmpi eq, %arg0, %c1_i32 : i32
    %18 = arith.extui %17 : i1 to i32
    %c0_i32_15 = arith.constant 0 : i32
    %19 = arith.cmpi ne, %18, %c0_i32_15 : i32
    scf.if %19 {
      %c0_i32_16 = arith.constant 0 : i32
      %20 = arith.subi %c0_i32_16, %arg1 : i32
      %c8_i32 = arith.constant 8 : i32
      %21 = arith.muli %20, %c8_i32 : i32
      %c1 = arith.constant 1 : index
      %c0_17 = arith.constant 0 : index
      %c0_18 = arith.constant 0 : index
      %22 = vector.load %arg9[%c1, %c0_17, %c0_18] : memref<2x8x128xf32, #tpu.memory_space<vmem>>, vector<1x8x128xf32>
      %23 = vector.shape_cast %22 : vector<1x8x128xf32> to vector<8x128xf32>
      %c1_19 = arith.constant 1 : index
      %c0_20 = arith.constant 0 : index
      %c0_21 = arith.constant 0 : index
      %24 = vector.load %arg10[%c1_19, %c0_20, %c0_21] : memref<2x8x128xf32, #tpu.memory_space<vmem>>, vector<1x8x128xf32>
      %25 = vector.shape_cast %24 : vector<1x8x128xf32> to vector<8x128xf32>
      %c0_i32_22 = arith.constant 0 : i32
      %c7_i32 = arith.constant 7 : i32
      %26 = arith.subi %c7_i32, %c0_i32_22 : i32
      %27 = arith.addi %21, %26 : i32
      %c8_i32_23 = arith.constant 8 : i32
      %28 = arith.muli %26, %c8_i32_23 : i32
      %29 = tpu.assume_multiple %28, 8 : i32
      %30 = arith.index_cast %29 : i32 to index
      %c0_24 = arith.constant 0 : index
      %31 = vector.load %arg8[%30, %c0_24] : memref<64x512xf32, #tpu.memory_space<vmem>>, vector<8x512xf32>
      %c0_25 = arith.constant 0 : index
      %c0_26 = arith.constant 0 : index
      %c0_27 = arith.constant 0 : index
      %32 = vector.load %arg6[%c0_25, %c0_26, %c0_27] : memref<1x128x512xf32, #tpu.memory_space<vmem>>, vector<1x128x512xf32>
      %33 = vector.shape_cast %32 : vector<1x128x512xf32> to vector<128x512xf32>
      %cst_28 = arith.constant dense<0.000000e+00> : vector<8x512xf32>
      %34 = tpu.matmul %23, %33, %cst_28 {dimension_numbers = #tpu.dot_dimension_numbers<[1], [0], [0], [1], [0, 0, 1, 1], [], []>} : vector<8x128xf32>, vector<128x512xf32>, vector<8x512xf32> -> vector<8x512xf32>
      %35 = arith.addf %31, %34 : vector<8x512xf32>
      %36 = vector.extract_strided_slice %35 {offsets = [0, 0], sizes = [8, 128], strides = [1, 1]} : vector<8x512xf32> to vector<8x128xf32>
      %cst_29 = arith.constant 5.000000e-01 : f32
      %37 = vector.broadcast %cst_29 : f32 to vector<8x128xf32>
      %38 = arith.mulf %37, %36 : vector<8x128xf32>
      %39 = math.tanh %38 : vector<8x128xf32>
      %cst_30 = arith.constant 5.000000e-01 : f32
      %40 = vector.broadcast %cst_30 : f32 to vector<8x128xf32>
      %41 = arith.mulf %40, %39 : vector<8x128xf32>
      %cst_31 = arith.constant 5.000000e-01 : f32
      %42 = vector.broadcast %cst_31 : f32 to vector<8x128xf32>
      %43 = arith.addf %41, %42 : vector<8x128xf32>
      %44 = vector.extract_strided_slice %35 {offsets = [0, 128], sizes = [8, 128], strides = [1, 1]} : vector<8x512xf32> to vector<8x128xf32>
      %cst_32 = arith.constant 5.000000e-01 : f32
      %45 = vector.broadcast %cst_32 : f32 to vector<8x128xf32>
      %46 = arith.mulf %45, %44 : vector<8x128xf32>
      %47 = math.tanh %46 : vector<8x128xf32>
      %cst_33 = arith.constant 5.000000e-01 : f32
      %48 = vector.broadcast %cst_33 : f32 to vector<8x128xf32>
      %49 = arith.mulf %48, %47 : vector<8x128xf32>
      %cst_34 = arith.constant 5.000000e-01 : f32
      %50 = vector.broadcast %cst_34 : f32 to vector<8x128xf32>
      %51 = arith.addf %49, %50 : vector<8x128xf32>
      %52 = vector.extract_strided_slice %35 {offsets = [0, 256], sizes = [8, 128], strides = [1, 1]} : vector<8x512xf32> to vector<8x128xf32>
      %53 = math.tanh %52 : vector<8x128xf32>
      %54 = vector.extract_strided_slice %35 {offsets = [0, 384], sizes = [8, 128], strides = [1, 1]} : vector<8x512xf32> to vector<8x128xf32>
      %cst_35 = arith.constant 5.000000e-01 : f32
      %55 = vector.broadcast %cst_35 : f32 to vector<8x128xf32>
      %56 = arith.mulf %55, %54 : vector<8x128xf32>
      %57 = math.tanh %56 : vector<8x128xf32>
      %cst_36 = arith.constant 5.000000e-01 : f32
      %58 = vector.broadcast %cst_36 : f32 to vector<8x128xf32>
      %59 = arith.mulf %58, %57 : vector<8x128xf32>
      %cst_37 = arith.constant 5.000000e-01 : f32
      %60 = vector.broadcast %cst_37 : f32 to vector<8x128xf32>
      %61 = arith.addf %59, %60 : vector<8x128xf32>
      %62 = arith.mulf %51, %25 : vector<8x128xf32>
      %63 = arith.mulf %43, %53 : vector<8x128xf32>
      %64 = arith.addf %62, %63 : vector<8x128xf32>
      %65 = math.tanh %64 : vector<8x128xf32>
      %66 = arith.mulf %61, %65 : vector<8x128xf32>
      %67 = vector.broadcast %27 : i32 to vector<8x1xi32>
      %68 = arith.cmpi sgt, %13, %67 : vector<8x1xi32>
      %69 = vector.shape_cast %68 : vector<8x1xi1> to vector<8x1xi1>
      %70 = vector.broadcast %69 : vector<8x1xi1> to vector<8x128xi1>
      %71 = arith.select %70, %66, %23 : vector<8x128xi1>, vector<8x128xf32>
      %72 = vector.shape_cast %68 : vector<8x1xi1> to vector<8x1xi1>
      %73 = vector.broadcast %72 : vector<8x1xi1> to vector<8x128xi1>
      %74 = arith.select %73, %64, %25 : vector<8x128xi1>, vector<8x128xf32>
      %cst_38 = arith.constant 0.000000e+00 : f32
      %75 = vector.shape_cast %68 : vector<8x1xi1> to vector<8x1xi1>
      %76 = vector.broadcast %75 : vector<8x1xi1> to vector<8x128xi1>
      %77 = vector.broadcast %cst_38 : f32 to vector<8x128xf32>
      %78 = arith.select %76, %66, %77 : vector<8x128xi1>, vector<8x128xf32>
      %c0_39 = arith.constant 0 : index
      %79 = arith.index_cast %29 : i32 to index
      %c0_40 = arith.constant 0 : index
      %80 = vector.load %arg7[%c0_39, %79, %c0_40] : memref<1x64x128xf32, #tpu.memory_space<vmem>>, vector<1x8x128xf32>
      %81 = vector.shape_cast %80 : vector<1x8x128xf32> to vector<8x128xf32>
      %82 = vector.shape_cast %78 : vector<8x128xf32> to vector<1x8x128xf32>
      tpu.vector_store %arg7[%c0_39, %79, %c0_40], %82 {strides = array<i32>} : memref<1x64x128xf32, #tpu.memory_space<vmem>>, vector<1x8x128xf32>,
      %c1_i32_41 = arith.constant 1 : i32
      %c7_i32_42 = arith.constant 7 : i32
      %83 = arith.subi %c7_i32_42, %c1_i32_41 : i32
      %84 = arith.addi %21, %83 : i32
      %c8_i32_43 = arith.constant 8 : i32
      %85 = arith.muli %83, %c8_i32_43 : i32
      %86 = tpu.assume_multiple %85, 8 : i32
      %87 = arith.index_cast %86 : i32 to index
      %c0_44 = arith.constant 0 : index
      %88 = vector.load %arg8[%87, %c0_44] : memref<64x512xf32, #tpu.memory_space<vmem>>, vector<8x512xf32>
      %c0_45 = arith.constant 0 : index
      %c0_46 = arith.constant 0 : index
      %c0_47 = arith.constant 0 : index
      %89 = vector.load %arg6[%c0_45, %c0_46, %c0_47] : memref<1x128x512xf32, #tpu.memory_space<vmem>>, vector<1x128x512xf32>
      %90 = vector.shape_cast %89 : vector<1x128x512xf32> to vector<128x512xf32>
      %cst_48 = arith.constant dense<0.000000e+00> : vector<8x512xf32>
      %91 = tpu.matmul %71, %90, %cst_48 {dimension_numbers = #tpu.dot_dimension_numbers<[1], [0], [0], [1], [0, 0, 1, 1], [], []>} : vector<8x128xf32>, vector<128x512xf32>, vector<8x512xf32> -> vector<8x512xf32>
      %92 = arith.addf %88, %91 : vector<8x512xf32>
      %93 = vector.extract_strided_slice %92 {offsets = [0, 0], sizes = [8, 128], strides = [1, 1]} : vector<8x512xf32> to vector<8x128xf32>
      %cst_49 = arith.constant 5.000000e-01 : f32
      %94 = vector.broadcast %cst_49 : f32 to vector<8x128xf32>
      %95 = arith.mulf %94, %93 : vector<8x128xf32>
      %96 = math.tanh %95 : vector<8x128xf32>
      %cst_50 = arith.constant 5.000000e-01 : f32
      %97 = vector.broadcast %cst_50 : f32 to vector<8x128xf32>
      %98 = arith.mulf %97, %96 : vector<8x128xf32>
      %cst_51 = arith.constant 5.000000e-01 : f32
      %99 = vector.broadcast %cst_51 : f32 to vector<8x128xf32>
      %100 = arith.addf %98, %99 : vector<8x128xf32>
      %101 = vector.extract_strided_slice %92 {offsets = [0, 128], sizes = [8, 128], strides = [1, 1]} : vector<8x512xf32> to vector<8x128xf32>
      %cst_52 = arith.constant 5.000000e-01 : f32
      %102 = vector.broadcast %cst_52 : f32 to vector<8x128xf32>
      %103 = arith.mulf %102, %101 : vector<8x128xf32>
      %104 = math.tanh %103 : vector<8x128xf32>
      %cst_53 = arith.constant 5.000000e-01 : f32
      %105 = vector.broadcast %cst_53 : f32 to vector<8x128xf32>
      %106 = arith.mulf %105, %104 : vector<8x128xf32>
      %cst_54 = arith.constant 5.000000e-01 : f32
      %107 = vector.broadcast %cst_54 : f32 to vector<8x128xf32>
      %108 = arith.addf %106, %107 : vector<8x128xf32>
      %109 = vector.extract_strided_slice %92 {offsets = [0, 256], sizes = [8, 128], strides = [1, 1]} : vector<8x512xf32> to vector<8x128xf32>
      %110 = math.tanh %109 : vector<8x128xf32>
      %111 = vector.extract_strided_slice %92 {offsets = [0, 384], sizes = [8, 128], strides = [1, 1]} : vector<8x512xf32> to vector<8x128xf32>
      %cst_55 = arith.constant 5.000000e-01 : f32
      %112 = vector.broadcast %cst_55 : f32 to vector<8x128xf32>
      %113 = arith.mulf %112, %111 : vector<8x128xf32>
      %114 = math.tanh %113 : vector<8x128xf32>
      %cst_56 = arith.constant 5.000000e-01 : f32
      %115 = vector.broadcast %cst_56 : f32 to vector<8x128xf32>
      %116 = arith.mulf %115, %114 : vector<8x128xf32>
      %cst_57 = arith.constant 5.000000e-01 : f32
      %117 = vector.broadcast %cst_57 : f32 to vector<8x128xf32>
      %118 = arith.addf %116, %117 : vector<8x128xf32>
      %119 = arith.mulf %108, %74 : vector<8x128xf32>
      %120 = arith.mulf %100, %110 : vector<8x128xf32>
      %121 = arith.addf %119, %120 : vector<8x128xf32>
      %122 = math.tanh %121 : vector<8x128xf32>
      %123 = arith.mulf %118, %122 : vector<8x128xf32>
      %124 = vector.broadcast %84 : i32 to vector<8x1xi32>
      %125 = arith.cmpi sgt, %13, %124 : vector<8x1xi32>
      %126 = vector.shape_cast %125 : vector<8x1xi1> to vector<8x1xi1>
      %127 = vector.broadcast %126 : vector<8x1xi1> to vector<8x128xi1>
      %128 = arith.select %127, %123, %71 : vector<8x128xi1>, vector<8x128xf32>
      %129 = vector.shape_cast %125 : vector<8x1xi1> to vector<8x1xi1>
      %130 = vector.broadcast %129 : vector<8x1xi1> to vector<8x128xi1>
      %131 = arith.select %130, %121, %74 : vector<8x128xi1>, vector<8x128xf32>
      %cst_58 = arith.constant 0.000000e+00 : f32
      %132 = vector.shape_cast %125 : vector<8x1xi1> to vector<8x1xi1>
      %133 = vector.broadcast %132 : vector<8x1xi1> to vector<8x128xi1>
      %134 = vector.broadcast %cst_58 : f32 to vector<8x128xf32>
      %135 = arith.select %133, %123, %134 : vector<8x128xi1>, vector<8x128xf32>
      %c0_59 = arith.constant 0 : index
      %136 = arith.index_cast %86 : i32 to index
      %c0_60 = arith.constant 0 : index
      %137 = vector.load %arg7[%c0_59, %136, %c0_60] : memref<1x64x128xf32, #tpu.memory_space<vmem>>, vector<1x8x128xf32>
      %138 = vector.shape_cast %137 : vector<1x8x128xf32> to vector<8x128xf32>
      %139 = vector.shape_cast %135 : vector<8x128xf32> to vector<1x8x128xf32>
      tpu.vector_store %arg7[%c0_59, %136, %c0_60], %139 {strides = array<i32>} : memref<1x64x128xf32, #tpu.memory_space<vmem>>, vector<1x8x128xf32>,
      %c2_i32 = arith.constant 2 : i32
      %c7_i32_61 = arith.constant 7 : i32
      %140 = arith.subi %c7_i32_61, %c2_i32 : i32
      %141 = arith.addi %21, %140 : i32
      %c8_i32_62 = arith.constant 8 : i32
      %142 = arith.muli %140, %c8_i32_62 : i32
      %143 = tpu.assume_multiple %142, 8 : i32
      %144 = arith.index_cast %143 : i32 to index
      %c0_63 = arith.constant 0 : index
      %145 = vector.load %arg8[%144, %c0_63] : memref<64x512xf32, #tpu.memory_space<vmem>>, vector<8x512xf32>
      %c0_64 = arith.constant 0 : index
      %c0_65 = arith.constant 0 : index
      %c0_66 = arith.constant 0 : index
      %146 = vector.load %arg6[%c0_64, %c0_65, %c0_66] : memref<1x128x512xf32, #tpu.memory_space<vmem>>, vector<1x128x512xf32>
      %147 = vector.shape_cast %146 : vector<1x128x512xf32> to vector<128x512xf32>
      %cst_67 = arith.constant dense<0.000000e+00> : vector<8x512xf32>
      %148 = tpu.matmul %128, %147, %cst_67 {dimension_numbers = #tpu.dot_dimension_numbers<[1], [0], [0], [1], [0, 0, 1, 1], [], []>} : vector<8x128xf32>, vector<128x512xf32>, vector<8x512xf32> -> vector<8x512xf32>
      %149 = arith.addf %145, %148 : vector<8x512xf32>
      %150 = vector.extract_strided_slice %149 {offsets = [0, 0], sizes = [8, 128], strides = [1, 1]} : vector<8x512xf32> to vector<8x128xf32>
      %cst_68 = arith.constant 5.000000e-01 : f32
      %151 = vector.broadcast %cst_68 : f32 to vector<8x128xf32>
      %152 = arith.mulf %151, %150 : vector<8x128xf32>
      %153 = math.tanh %152 : vector<8x128xf32>
      %cst_69 = arith.constant 5.000000e-01 : f32
      %154 = vector.broadcast %cst_69 : f32 to vector<8x128xf32>
      %155 = arith.mulf %154, %153 : vector<8x128xf32>
      %cst_70 = arith.constant 5.000000e-01 : f32
      %156 = vector.broadcast %cst_70 : f32 to vector<8x128xf32>
      %157 = arith.addf %155, %156 : vector<8x128xf32>
      %158 = vector.extract_strided_slice %149 {offsets = [0, 128], sizes = [8, 128], strides = [1, 1]} : vector<8x512xf32> to vector<8x128xf32>
      %cst_71 = arith.constant 5.000000e-01 : f32
      %159 = vector.broadcast %cst_71 : f32 to vector<8x128xf32>
      %160 = arith.mulf %159, %158 : vector<8x128xf32>
      %161 = math.tanh %160 : vector<8x128xf32>
      %cst_72 = arith.constant 5.000000e-01 : f32
      %162 = vector.broadcast %cst_72 : f32 to vector<8x128xf32>
      %163 = arith.mulf %162, %161 : vector<8x128xf32>
      %cst_73 = arith.constant 5.000000e-01 : f32
      %164 = vector.broadcast %cst_73 : f32 to vector<8x128xf32>
      %165 = arith.addf %163, %164 : vector<8x128xf32>
      %166 = vector.extract_strided_slice %149 {offsets = [0, 256], sizes = [8, 128], strides = [1, 1]} : vector<8x512xf32> to vector<8x128xf32>
      %167 = math.tanh %166 : vector<8x128xf32>
      %168 = vector.extract_strided_slice %149 {offsets = [0, 384], sizes = [8, 128], strides = [1, 1]} : vector<8x512xf32> to vector<8x128xf32>
      %cst_74 = arith.constant 5.000000e-01 : f32
      %169 = vector.broadcast %cst_74 : f32 to vector<8x128xf32>
      %170 = arith.mulf %169, %168 : vector<8x128xf32>
      %171 = math.tanh %170 : vector<8x128xf32>
      %cst_75 = arith.constant 5.000000e-01 : f32
      %172 = vector.broadcast %cst_75 : f32 to vector<8x128xf32>
      %173 = arith.mulf %172, %171 : vector<8x128xf32>
      %cst_76 = arith.constant 5.000000e-01 : f32
      %174 = vector.broadcast %cst_76 : f32 to vector<8x128xf32>
      %175 = arith.addf %173, %174 : vector<8x128xf32>
      %176 = arith.mulf %165, %131 : vector<8x128xf32>
      %177 = arith.mulf %157, %167 : vector<8x128xf32>
      %178 = arith.addf %176, %177 : vector<8x128xf32>
      %179 = math.tanh %178 : vector<8x128xf32>
      %180 = arith.mulf %175, %179 : vector<8x128xf32>
      %181 = vector.broadcast %141 : i32 to vector<8x1xi32>
      %182 = arith.cmpi sgt, %13, %181 : vector<8x1xi32>
      %183 = vector.shape_cast %182 : vector<8x1xi1> to vector<8x1xi1>
      %184 = vector.broadcast %183 : vector<8x1xi1> to vector<8x128xi1>
      %185 = arith.select %184, %180, %128 : vector<8x128xi1>, vector<8x128xf32>
      %186 = vector.shape_cast %182 : vector<8x1xi1> to vector<8x1xi1>
      %187 = vector.broadcast %186 : vector<8x1xi1> to vector<8x128xi1>
      %188 = arith.select %187, %178, %131 : vector<8x128xi1>, vector<8x128xf32>
      %cst_77 = arith.constant 0.000000e+00 : f32
      %189 = vector.shape_cast %182 : vector<8x1xi1> to vector<8x1xi1>
      %190 = vector.broadcast %189 : vector<8x1xi1> to vector<8x128xi1>
      %191 = vector.broadcast %cst_77 : f32 to vector<8x128xf32>
      %192 = arith.select %190, %180, %191 : vector<8x128xi1>, vector<8x128xf32>
      %c0_78 = arith.constant 0 : index
      %193 = arith.index_cast %143 : i32 to index
      %c0_79 = arith.constant 0 : index
      %194 = vector.load %arg7[%c0_78, %193, %c0_79] : memref<1x64x128xf32, #tpu.memory_space<vmem>>, vector<1x8x128xf32>
      %195 = vector.shape_cast %194 : vector<1x8x128xf32> to vector<8x128xf32>
      %196 = vector.shape_cast %192 : vector<8x128xf32> to vector<1x8x128xf32>
      tpu.vector_store %arg7[%c0_78, %193, %c0_79], %196 {strides = array<i32>} : memref<1x64x128xf32, #tpu.memory_space<vmem>>, vector<1x8x128xf32>,
      %c3_i32 = arith.constant 3 : i32
      %c7_i32_80 = arith.constant 7 : i32
      %197 = arith.subi %c7_i32_80, %c3_i32 : i32
      %198 = arith.addi %21, %197 : i32
      %c8_i32_81 = arith.constant 8 : i32
      %199 = arith.muli %197, %c8_i32_81 : i32
      %200 = tpu.assume_multiple %199, 8 : i32
      %201 = arith.index_cast %200 : i32 to index
      %c0_82 = arith.constant 0 : index
      %202 = vector.load %arg8[%201, %c0_82] : memref<64x512xf32, #tpu.memory_space<vmem>>, vector<8x512xf32>
      %c0_83 = arith.constant 0 : index
      %c0_84 = arith.constant 0 : index
      %c0_85 = arith.constant 0 : index
      %203 = vector.load %arg6[%c0_83, %c0_84, %c0_85] : memref<1x128x512xf32, #tpu.memory_space<vmem>>, vector<1x128x512xf32>
      %204 = vector.shape_cast %203 : vector<1x128x512xf32> to vector<128x512xf32>
      %cst_86 = arith.constant dense<0.000000e+00> : vector<8x512xf32>
      %205 = tpu.matmul %185, %204, %cst_86 {dimension_numbers = #tpu.dot_dimension_numbers<[1], [0], [0], [1], [0, 0, 1, 1], [], []>} : vector<8x128xf32>, vector<128x512xf32>, vector<8x512xf32> -> vector<8x512xf32>
      %206 = arith.addf %202, %205 : vector<8x512xf32>
      %207 = vector.extract_strided_slice %206 {offsets = [0, 0], sizes = [8, 128], strides = [1, 1]} : vector<8x512xf32> to vector<8x128xf32>
      %cst_87 = arith.constant 5.000000e-01 : f32
      %208 = vector.broadcast %cst_87 : f32 to vector<8x128xf32>
      %209 = arith.mulf %208, %207 : vector<8x128xf32>
      %210 = math.tanh %209 : vector<8x128xf32>
      %cst_88 = arith.constant 5.000000e-01 : f32
      %211 = vector.broadcast %cst_88 : f32 to vector<8x128xf32>
      %212 = arith.mulf %211, %210 : vector<8x128xf32>
      %cst_89 = arith.constant 5.000000e-01 : f32
      %213 = vector.broadcast %cst_89 : f32 to vector<8x128xf32>
      %214 = arith.addf %212, %213 : vector<8x128xf32>
      %215 = vector.extract_strided_slice %206 {offsets = [0, 128], sizes = [8, 128], strides = [1, 1]} : vector<8x512xf32> to vector<8x128xf32>
      %cst_90 = arith.constant 5.000000e-01 : f32
      %216 = vector.broadcast %cst_90 : f32 to vector<8x128xf32>
      %217 = arith.mulf %216, %215 : vector<8x128xf32>
      %218 = math.tanh %217 : vector<8x128xf32>
      %cst_91 = arith.constant 5.000000e-01 : f32
      %219 = vector.broadcast %cst_91 : f32 to vector<8x128xf32>
      %220 = arith.mulf %219, %218 : vector<8x128xf32>
      %cst_92 = arith.constant 5.000000e-01 : f32
      %221 = vector.broadcast %cst_92 : f32 to vector<8x128xf32>
      %222 = arith.addf %220, %221 : vector<8x128xf32>
      %223 = vector.extract_strided_slice %206 {offsets = [0, 256], sizes = [8, 128], strides = [1, 1]} : vector<8x512xf32> to vector<8x128xf32>
      %224 = math.tanh %223 : vector<8x128xf32>
      %225 = vector.extract_strided_slice %206 {offsets = [0, 384], sizes = [8, 128], strides = [1, 1]} : vector<8x512xf32> to vector<8x128xf32>
      %cst_93 = arith.constant 5.000000e-01 : f32
      %226 = vector.broadcast %cst_93 : f32 to vector<8x128xf32>
      %227 = arith.mulf %226, %225 : vector<8x128xf32>
      %228 = math.tanh %227 : vector<8x128xf32>
      %cst_94 = arith.constant 5.000000e-01 : f32
      %229 = vector.broadcast %cst_94 : f32 to vector<8x128xf32>
      %230 = arith.mulf %229, %228 : vector<8x128xf32>
      %cst_95 = arith.constant 5.000000e-01 : f32
      %231 = vector.broadcast %cst_95 : f32 to vector<8x128xf32>
      %232 = arith.addf %230, %231 : vector<8x128xf32>
      %233 = arith.mulf %222, %188 : vector<8x128xf32>
      %234 = arith.mulf %214, %224 : vector<8x128xf32>
      %235 = arith.addf %233, %234 : vector<8x128xf32>
      %236 = math.tanh %235 : vector<8x128xf32>
      %237 = arith.mulf %232, %236 : vector<8x128xf32>
      %238 = vector.broadcast %198 : i32 to vector<8x1xi32>
      %239 = arith.cmpi sgt, %13, %238 : vector<8x1xi32>
      %240 = vector.shape_cast %239 : vector<8x1xi1> to vector<8x1xi1>
      %241 = vector.broadcast %240 : vector<8x1xi1> to vector<8x128xi1>
      %242 = arith.select %241, %237, %185 : vector<8x128xi1>, vector<8x128xf32>
      %243 = vector.shape_cast %239 : vector<8x1xi1> to vector<8x1xi1>
      %244 = vector.broadcast %243 : vector<8x1xi1> to vector<8x128xi1>
      %245 = arith.select %244, %235, %188 : vector<8x128xi1>, vector<8x128xf32>
      %cst_96 = arith.constant 0.000000e+00 : f32
      %246 = vector.shape_cast %239 : vector<8x1xi1> to vector<8x1xi1>
      %247 = vector.broadcast %246 : vector<8x1xi1> to vector<8x128xi1>
      %248 = vector.broadcast %cst_96 : f32 to vector<8x128xf32>
      %249 = arith.select %247, %237, %248 : vector<8x128xi1>, vector<8x128xf32>
      %c0_97 = arith.constant 0 : index
      %250 = arith.index_cast %200 : i32 to index
      %c0_98 = arith.constant 0 : index
      %251 = vector.load %arg7[%c0_97, %250, %c0_98] : memref<1x64x128xf32, #tpu.memory_space<vmem>>, vector<1x8x128xf32>
      %252 = vector.shape_cast %251 : vector<1x8x128xf32> to vector<8x128xf32>
      %253 = vector.shape_cast %249 : vector<8x128xf32> to vector<1x8x128xf32>
      tpu.vector_store %arg7[%c0_97, %250, %c0_98], %253 {strides = array<i32>} : memref<1x64x128xf32, #tpu.memory_space<vmem>>, vector<1x8x128xf32>,
      %c4_i32 = arith.constant 4 : i32
      %c7_i32_99 = arith.constant 7 : i32
      %254 = arith.subi %c7_i32_99, %c4_i32 : i32
      %255 = arith.addi %21, %254 : i32
      %c8_i32_100 = arith.constant 8 : i32
      %256 = arith.muli %254, %c8_i32_100 : i32
      %257 = tpu.assume_multiple %256, 8 : i32
      %258 = arith.index_cast %257 : i32 to index
      %c0_101 = arith.constant 0 : index
      %259 = vector.load %arg8[%258, %c0_101] : memref<64x512xf32, #tpu.memory_space<vmem>>, vector<8x512xf32>
      %c0_102 = arith.constant 0 : index
      %c0_103 = arith.constant 0 : index
      %c0_104 = arith.constant 0 : index
      %260 = vector.load %arg6[%c0_102, %c0_103, %c0_104] : memref<1x128x512xf32, #tpu.memory_space<vmem>>, vector<1x128x512xf32>
      %261 = vector.shape_cast %260 : vector<1x128x512xf32> to vector<128x512xf32>
      %cst_105 = arith.constant dense<0.000000e+00> : vector<8x512xf32>
      %262 = tpu.matmul %242, %261, %cst_105 {dimension_numbers = #tpu.dot_dimension_numbers<[1], [0], [0], [1], [0, 0, 1, 1], [], []>} : vector<8x128xf32>, vector<128x512xf32>, vector<8x512xf32> -> vector<8x512xf32>
      %263 = arith.addf %259, %262 : vector<8x512xf32>
      %264 = vector.extract_strided_slice %263 {offsets = [0, 0], sizes = [8, 128], strides = [1, 1]} : vector<8x512xf32> to vector<8x128xf32>
      %cst_106 = arith.constant 5.000000e-01 : f32
      %265 = vector.broadcast %cst_106 : f32 to vector<8x128xf32>
      %266 = arith.mulf %265, %264 : vector<8x128xf32>
      %267 = math.tanh %266 : vector<8x128xf32>
      %cst_107 = arith.constant 5.000000e-01 : f32
      %268 = vector.broadcast %cst_107 : f32 to vector<8x128xf32>
      %269 = arith.mulf %268, %267 : vector<8x128xf32>
      %cst_108 = arith.constant 5.000000e-01 : f32
      %270 = vector.broadcast %cst_108 : f32 to vector<8x128xf32>
      %271 = arith.addf %269, %270 : vector<8x128xf32>
      %272 = vector.extract_strided_slice %263 {offsets = [0, 128], sizes = [8, 128], strides = [1, 1]} : vector<8x512xf32> to vector<8x128xf32>
      %cst_109 = arith.constant 5.000000e-01 : f32
      %273 = vector.broadcast %cst_109 : f32 to vector<8x128xf32>
      %274 = arith.mulf %273, %272 : vector<8x128xf32>
      %275 = math.tanh %274 : vector<8x128xf32>
      %cst_110 = arith.constant 5.000000e-01 : f32
      %276 = vector.broadcast %cst_110 : f32 to vector<8x128xf32>
      %277 = arith.mulf %276, %275 : vector<8x128xf32>
      %cst_111 = arith.constant 5.000000e-01 : f32
      %278 = vector.broadcast %cst_111 : f32 to vector<8x128xf32>
      %279 = arith.addf %277, %278 : vector<8x128xf32>
      %280 = vector.extract_strided_slice %263 {offsets = [0, 256], sizes = [8, 128], strides = [1, 1]} : vector<8x512xf32> to vector<8x128xf32>
      %281 = math.tanh %280 : vector<8x128xf32>
      %282 = vector.extract_strided_slice %263 {offsets = [0, 384], sizes = [8, 128], strides = [1, 1]} : vector<8x512xf32> to vector<8x128xf32>
      %cst_112 = arith.constant 5.000000e-01 : f32
      %283 = vector.broadcast %cst_112 : f32 to vector<8x128xf32>
      %284 = arith.mulf %283, %282 : vector<8x128xf32>
      %285 = math.tanh %284 : vector<8x128xf32>
      %cst_113 = arith.constant 5.000000e-01 : f32
      %286 = vector.broadcast %cst_113 : f32 to vector<8x128xf32>
      %287 = arith.mulf %286, %285 : vector<8x128xf32>
      %cst_114 = arith.constant 5.000000e-01 : f32
      %288 = vector.broadcast %cst_114 : f32 to vector<8x128xf32>
      %289 = arith.addf %287, %288 : vector<8x128xf32>
      %290 = arith.mulf %279, %245 : vector<8x128xf32>
      %291 = arith.mulf %271, %281 : vector<8x128xf32>
      %292 = arith.addf %290, %291 : vector<8x128xf32>
      %293 = math.tanh %292 : vector<8x128xf32>
      %294 = arith.mulf %289, %293 : vector<8x128xf32>
      %295 = vector.broadcast %255 : i32 to vector<8x1xi32>
      %296 = arith.cmpi sgt, %13, %295 : vector<8x1xi32>
      %297 = vector.shape_cast %296 : vector<8x1xi1> to vector<8x1xi1>
      %298 = vector.broadcast %297 : vector<8x1xi1> to vector<8x128xi1>
      %299 = arith.select %298, %294, %242 : vector<8x128xi1>, vector<8x128xf32>
      %300 = vector.shape_cast %296 : vector<8x1xi1> to vector<8x1xi1>
      %301 = vector.broadcast %300 : vector<8x1xi1> to vector<8x128xi1>
      %302 = arith.select %301, %292, %245 : vector<8x128xi1>, vector<8x128xf32>
      %cst_115 = arith.constant 0.000000e+00 : f32
      %303 = vector.shape_cast %296 : vector<8x1xi1> to vector<8x1xi1>
      %304 = vector.broadcast %303 : vector<8x1xi1> to vector<8x128xi1>
      %305 = vector.broadcast %cst_115 : f32 to vector<8x128xf32>
      %306 = arith.select %304, %294, %305 : vector<8x128xi1>, vector<8x128xf32>
      %c0_116 = arith.constant 0 : index
      %307 = arith.index_cast %257 : i32 to index
      %c0_117 = arith.constant 0 : index
      %308 = vector.load %arg7[%c0_116, %307, %c0_117] : memref<1x64x128xf32, #tpu.memory_space<vmem>>, vector<1x8x128xf32>
      %309 = vector.shape_cast %308 : vector<1x8x128xf32> to vector<8x128xf32>
      %310 = vector.shape_cast %306 : vector<8x128xf32> to vector<1x8x128xf32>
      tpu.vector_store %arg7[%c0_116, %307, %c0_117], %310 {strides = array<i32>} : memref<1x64x128xf32, #tpu.memory_space<vmem>>, vector<1x8x128xf32>,
      %c5_i32 = arith.constant 5 : i32
      %c7_i32_118 = arith.constant 7 : i32
      %311 = arith.subi %c7_i32_118, %c5_i32 : i32
      %312 = arith.addi %21, %311 : i32
      %c8_i32_119 = arith.constant 8 : i32
      %313 = arith.muli %311, %c8_i32_119 : i32
      %314 = tpu.assume_multiple %313, 8 : i32
      %315 = arith.index_cast %314 : i32 to index
      %c0_120 = arith.constant 0 : index
      %316 = vector.load %arg8[%315, %c0_120] : memref<64x512xf32, #tpu.memory_space<vmem>>, vector<8x512xf32>
      %c0_121 = arith.constant 0 : index
      %c0_122 = arith.constant 0 : index
      %c0_123 = arith.constant 0 : index
      %317 = vector.load %arg6[%c0_121, %c0_122, %c0_123] : memref<1x128x512xf32, #tpu.memory_space<vmem>>, vector<1x128x512xf32>
      %318 = vector.shape_cast %317 : vector<1x128x512xf32> to vector<128x512xf32>
      %cst_124 = arith.constant dense<0.000000e+00> : vector<8x512xf32>
      %319 = tpu.matmul %299, %318, %cst_124 {dimension_numbers = #tpu.dot_dimension_numbers<[1], [0], [0], [1], [0, 0, 1, 1], [], []>} : vector<8x128xf32>, vector<128x512xf32>, vector<8x512xf32> -> vector<8x512xf32>
      %320 = arith.addf %316, %319 : vector<8x512xf32>
      %321 = vector.extract_strided_slice %320 {offsets = [0, 0], sizes = [8, 128], strides = [1, 1]} : vector<8x512xf32> to vector<8x128xf32>
      %cst_125 = arith.constant 5.000000e-01 : f32
      %322 = vector.broadcast %cst_125 : f32 to vector<8x128xf32>
      %323 = arith.mulf %322, %321 : vector<8x128xf32>
      %324 = math.tanh %323 : vector<8x128xf32>
      %cst_126 = arith.constant 5.000000e-01 : f32
      %325 = vector.broadcast %cst_126 : f32 to vector<8x128xf32>
      %326 = arith.mulf %325, %324 : vector<8x128xf32>
      %cst_127 = arith.constant 5.000000e-01 : f32
      %327 = vector.broadcast %cst_127 : f32 to vector<8x128xf32>
      %328 = arith.addf %326, %327 : vector<8x128xf32>
      %329 = vector.extract_strided_slice %320 {offsets = [0, 128], sizes = [8, 128], strides = [1, 1]} : vector<8x512xf32> to vector<8x128xf32>
      %cst_128 = arith.constant 5.000000e-01 : f32
      %330 = vector.broadcast %cst_128 : f32 to vector<8x128xf32>
      %331 = arith.mulf %330, %329 : vector<8x128xf32>
      %332 = math.tanh %331 : vector<8x128xf32>
      %cst_129 = arith.constant 5.000000e-01 : f32
      %333 = vector.broadcast %cst_129 : f32 to vector<8x128xf32>
      %334 = arith.mulf %333, %332 : vector<8x128xf32>
      %cst_130 = arith.constant 5.000000e-01 : f32
      %335 = vector.broadcast %cst_130 : f32 to vector<8x128xf32>
      %336 = arith.addf %334, %335 : vector<8x128xf32>
      %337 = vector.extract_strided_slice %320 {offsets = [0, 256], sizes = [8, 128], strides = [1, 1]} : vector<8x512xf32> to vector<8x128xf32>
      %338 = math.tanh %337 : vector<8x128xf32>
      %339 = vector.extract_strided_slice %320 {offsets = [0, 384], sizes = [8, 128], strides = [1, 1]} : vector<8x512xf32> to vector<8x128xf32>
      %cst_131 = arith.constant 5.000000e-01 : f32
      %340 = vector.broadcast %cst_131 : f32 to vector<8x128xf32>
      %341 = arith.mulf %340, %339 : vector<8x128xf32>
      %342 = math.tanh %341 : vector<8x128xf32>
      %cst_132 = arith.constant 5.000000e-01 : f32
      %343 = vector.broadcast %cst_132 : f32 to vector<8x128xf32>
      %344 = arith.mulf %343, %342 : vector<8x128xf32>
      %cst_133 = arith.constant 5.000000e-01 : f32
      %345 = vector.broadcast %cst_133 : f32 to vector<8x128xf32>
      %346 = arith.addf %344, %345 : vector<8x128xf32>
      %347 = arith.mulf %336, %302 : vector<8x128xf32>
      %348 = arith.mulf %328, %338 : vector<8x128xf32>
      %349 = arith.addf %347, %348 : vector<8x128xf32>
      %350 = math.tanh %349 : vector<8x128xf32>
      %351 = arith.mulf %346, %350 : vector<8x128xf32>
      %352 = vector.broadcast %312 : i32 to vector<8x1xi32>
      %353 = arith.cmpi sgt, %13, %352 : vector<8x1xi32>
      %354 = vector.shape_cast %353 : vector<8x1xi1> to vector<8x1xi1>
      %355 = vector.broadcast %354 : vector<8x1xi1> to vector<8x128xi1>
      %356 = arith.select %355, %351, %299 : vector<8x128xi1>, vector<8x128xf32>
      %357 = vector.shape_cast %353 : vector<8x1xi1> to vector<8x1xi1>
      %358 = vector.broadcast %357 : vector<8x1xi1> to vector<8x128xi1>
      %359 = arith.select %358, %349, %302 : vector<8x128xi1>, vector<8x128xf32>
      %cst_134 = arith.constant 0.000000e+00 : f32
      %360 = vector.shape_cast %353 : vector<8x1xi1> to vector<8x1xi1>
      %361 = vector.broadcast %360 : vector<8x1xi1> to vector<8x128xi1>
      %362 = vector.broadcast %cst_134 : f32 to vector<8x128xf32>
      %363 = arith.select %361, %351, %362 : vector<8x128xi1>, vector<8x128xf32>
      %c0_135 = arith.constant 0 : index
      %364 = arith.index_cast %314 : i32 to index
      %c0_136 = arith.constant 0 : index
      %365 = vector.load %arg7[%c0_135, %364, %c0_136] : memref<1x64x128xf32, #tpu.memory_space<vmem>>, vector<1x8x128xf32>
      %366 = vector.shape_cast %365 : vector<1x8x128xf32> to vector<8x128xf32>
      %367 = vector.shape_cast %363 : vector<8x128xf32> to vector<1x8x128xf32>
      tpu.vector_store %arg7[%c0_135, %364, %c0_136], %367 {strides = array<i32>} : memref<1x64x128xf32, #tpu.memory_space<vmem>>, vector<1x8x128xf32>,
      %c6_i32 = arith.constant 6 : i32
      %c7_i32_137 = arith.constant 7 : i32
      %368 = arith.subi %c7_i32_137, %c6_i32 : i32
      %369 = arith.addi %21, %368 : i32
      %c8_i32_138 = arith.constant 8 : i32
      %370 = arith.muli %368, %c8_i32_138 : i32
      %371 = tpu.assume_multiple %370, 8 : i32
      %372 = arith.index_cast %371 : i32 to index
      %c0_139 = arith.constant 0 : index
      %373 = vector.load %arg8[%372, %c0_139] : memref<64x512xf32, #tpu.memory_space<vmem>>, vector<8x512xf32>
      %c0_140 = arith.constant 0 : index
      %c0_141 = arith.constant 0 : index
      %c0_142 = arith.constant 0 : index
      %374 = vector.load %arg6[%c0_140, %c0_141, %c0_142] : memref<1x128x512xf32, #tpu.memory_space<vmem>>, vector<1x128x512xf32>
      %375 = vector.shape_cast %374 : vector<1x128x512xf32> to vector<128x512xf32>
      %cst_143 = arith.constant dense<0.000000e+00> : vector<8x512xf32>
      %376 = tpu.matmul %356, %375, %cst_143 {dimension_numbers = #tpu.dot_dimension_numbers<[1], [0], [0], [1], [0, 0, 1, 1], [], []>} : vector<8x128xf32>, vector<128x512xf32>, vector<8x512xf32> -> vector<8x512xf32>
      %377 = arith.addf %373, %376 : vector<8x512xf32>
      %378 = vector.extract_strided_slice %377 {offsets = [0, 0], sizes = [8, 128], strides = [1, 1]} : vector<8x512xf32> to vector<8x128xf32>
      %cst_144 = arith.constant 5.000000e-01 : f32
      %379 = vector.broadcast %cst_144 : f32 to vector<8x128xf32>
      %380 = arith.mulf %379, %378 : vector<8x128xf32>
      %381 = math.tanh %380 : vector<8x128xf32>
      %cst_145 = arith.constant 5.000000e-01 : f32
      %382 = vector.broadcast %cst_145 : f32 to vector<8x128xf32>
      %383 = arith.mulf %382, %381 : vector<8x128xf32>
      %cst_146 = arith.constant 5.000000e-01 : f32
      %384 = vector.broadcast %cst_146 : f32 to vector<8x128xf32>
      %385 = arith.addf %383, %384 : vector<8x128xf32>
      %386 = vector.extract_strided_slice %377 {offsets = [0, 128], sizes = [8, 128], strides = [1, 1]} : vector<8x512xf32> to vector<8x128xf32>
      %cst_147 = arith.constant 5.000000e-01 : f32
      %387 = vector.broadcast %cst_147 : f32 to vector<8x128xf32>
      %388 = arith.mulf %387, %386 : vector<8x128xf32>
      %389 = math.tanh %388 : vector<8x128xf32>
      %cst_148 = arith.constant 5.000000e-01 : f32
      %390 = vector.broadcast %cst_148 : f32 to vector<8x128xf32>
      %391 = arith.mulf %390, %389 : vector<8x128xf32>
      %cst_149 = arith.constant 5.000000e-01 : f32
      %392 = vector.broadcast %cst_149 : f32 to vector<8x128xf32>
      %393 = arith.addf %391, %392 : vector<8x128xf32>
      %394 = vector.extract_strided_slice %377 {offsets = [0, 256], sizes = [8, 128], strides = [1, 1]} : vector<8x512xf32> to vector<8x128xf32>
      %395 = math.tanh %394 : vector<8x128xf32>
      %396 = vector.extract_strided_slice %377 {offsets = [0, 384], sizes = [8, 128], strides = [1, 1]} : vector<8x512xf32> to vector<8x128xf32>
      %cst_150 = arith.constant 5.000000e-01 : f32
      %397 = vector.broadcast %cst_150 : f32 to vector<8x128xf32>
      %398 = arith.mulf %397, %396 : vector<8x128xf32>
      %399 = math.tanh %398 : vector<8x128xf32>
      %cst_151 = arith.constant 5.000000e-01 : f32
      %400 = vector.broadcast %cst_151 : f32 to vector<8x128xf32>
      %401 = arith.mulf %400, %399 : vector<8x128xf32>
      %cst_152 = arith.constant 5.000000e-01 : f32
      %402 = vector.broadcast %cst_152 : f32 to vector<8x128xf32>
      %403 = arith.addf %401, %402 : vector<8x128xf32>
      %404 = arith.mulf %393, %359 : vector<8x128xf32>
      %405 = arith.mulf %385, %395 : vector<8x128xf32>
      %406 = arith.addf %404, %405 : vector<8x128xf32>
      %407 = math.tanh %406 : vector<8x128xf32>
      %408 = arith.mulf %403, %407 : vector<8x128xf32>
      %409 = vector.broadcast %369 : i32 to vector<8x1xi32>
      %410 = arith.cmpi sgt, %13, %409 : vector<8x1xi32>
      %411 = vector.shape_cast %410 : vector<8x1xi1> to vector<8x1xi1>
      %412 = vector.broadcast %411 : vector<8x1xi1> to vector<8x128xi1>
      %413 = arith.select %412, %408, %356 : vector<8x128xi1>, vector<8x128xf32>
      %414 = vector.shape_cast %410 : vector<8x1xi1> to vector<8x1xi1>
      %415 = vector.broadcast %414 : vector<8x1xi1> to vector<8x128xi1>
      %416 = arith.select %415, %406, %359 : vector<8x128xi1>, vector<8x128xf32>
      %cst_153 = arith.constant 0.000000e+00 : f32
      %417 = vector.shape_cast %410 : vector<8x1xi1> to vector<8x1xi1>
      %418 = vector.broadcast %417 : vector<8x1xi1> to vector<8x128xi1>
      %419 = vector.broadcast %cst_153 : f32 to vector<8x128xf32>
      %420 = arith.select %418, %408, %419 : vector<8x128xi1>, vector<8x128xf32>
      %c0_154 = arith.constant 0 : index
      %421 = arith.index_cast %371 : i32 to index
      %c0_155 = arith.constant 0 : index
      %422 = vector.load %arg7[%c0_154, %421, %c0_155] : memref<1x64x128xf32, #tpu.memory_space<vmem>>, vector<1x8x128xf32>
      %423 = vector.shape_cast %422 : vector<1x8x128xf32> to vector<8x128xf32>
      %424 = vector.shape_cast %420 : vector<8x128xf32> to vector<1x8x128xf32>
      tpu.vector_store %arg7[%c0_154, %421, %c0_155], %424 {strides = array<i32>} : memref<1x64x128xf32, #tpu.memory_space<vmem>>, vector<1x8x128xf32>,
      %c7_i32_156 = arith.constant 7 : i32
      %c7_i32_157 = arith.constant 7 : i32
      %425 = arith.subi %c7_i32_157, %c7_i32_156 : i32
      %426 = arith.addi %21, %425 : i32
      %c8_i32_158 = arith.constant 8 : i32
      %427 = arith.muli %425, %c8_i32_158 : i32
      %428 = tpu.assume_multiple %427, 8 : i32
      %429 = arith.index_cast %428 : i32 to index
      %c0_159 = arith.constant 0 : index
      %430 = vector.load %arg8[%429, %c0_159] : memref<64x512xf32, #tpu.memory_space<vmem>>, vector<8x512xf32>
      %c0_160 = arith.constant 0 : index
      %c0_161 = arith.constant 0 : index
      %c0_162 = arith.constant 0 : index
      %431 = vector.load %arg6[%c0_160, %c0_161, %c0_162] : memref<1x128x512xf32, #tpu.memory_space<vmem>>, vector<1x128x512xf32>
      %432 = vector.shape_cast %431 : vector<1x128x512xf32> to vector<128x512xf32>
      %cst_163 = arith.constant dense<0.000000e+00> : vector<8x512xf32>
      %433 = tpu.matmul %413, %432, %cst_163 {dimension_numbers = #tpu.dot_dimension_numbers<[1], [0], [0], [1], [0, 0, 1, 1], [], []>} : vector<8x128xf32>, vector<128x512xf32>, vector<8x512xf32> -> vector<8x512xf32>
      %434 = arith.addf %430, %433 : vector<8x512xf32>
      %435 = vector.extract_strided_slice %434 {offsets = [0, 0], sizes = [8, 128], strides = [1, 1]} : vector<8x512xf32> to vector<8x128xf32>
      %cst_164 = arith.constant 5.000000e-01 : f32
      %436 = vector.broadcast %cst_164 : f32 to vector<8x128xf32>
      %437 = arith.mulf %436, %435 : vector<8x128xf32>
      %438 = math.tanh %437 : vector<8x128xf32>
      %cst_165 = arith.constant 5.000000e-01 : f32
      %439 = vector.broadcast %cst_165 : f32 to vector<8x128xf32>
      %440 = arith.mulf %439, %438 : vector<8x128xf32>
      %cst_166 = arith.constant 5.000000e-01 : f32
      %441 = vector.broadcast %cst_166 : f32 to vector<8x128xf32>
      %442 = arith.addf %440, %441 : vector<8x128xf32>
      %443 = vector.extract_strided_slice %434 {offsets = [0, 128], sizes = [8, 128], strides = [1, 1]} : vector<8x512xf32> to vector<8x128xf32>
      %cst_167 = arith.constant 5.000000e-01 : f32
      %444 = vector.broadcast %cst_167 : f32 to vector<8x128xf32>
      %445 = arith.mulf %444, %443 : vector<8x128xf32>
      %446 = math.tanh %445 : vector<8x128xf32>
      %cst_168 = arith.constant 5.000000e-01 : f32
      %447 = vector.broadcast %cst_168 : f32 to vector<8x128xf32>
      %448 = arith.mulf %447, %446 : vector<8x128xf32>
      %cst_169 = arith.constant 5.000000e-01 : f32
      %449 = vector.broadcast %cst_169 : f32 to vector<8x128xf32>
      %450 = arith.addf %448, %449 : vector<8x128xf32>
      %451 = vector.extract_strided_slice %434 {offsets = [0, 256], sizes = [8, 128], strides = [1, 1]} : vector<8x512xf32> to vector<8x128xf32>
      %452 = math.tanh %451 : vector<8x128xf32>
      %453 = vector.extract_strided_slice %434 {offsets = [0, 384], sizes = [8, 128], strides = [1, 1]} : vector<8x512xf32> to vector<8x128xf32>
      %cst_170 = arith.constant 5.000000e-01 : f32
      %454 = vector.broadcast %cst_170 : f32 to vector<8x128xf32>
      %455 = arith.mulf %454, %453 : vector<8x128xf32>
      %456 = math.tanh %455 : vector<8x128xf32>
      %cst_171 = arith.constant 5.000000e-01 : f32
      %457 = vector.broadcast %cst_171 : f32 to vector<8x128xf32>
      %458 = arith.mulf %457, %456 : vector<8x128xf32>
      %cst_172 = arith.constant 5.000000e-01 : f32
      %459 = vector.broadcast %cst_172 : f32 to vector<8x128xf32>
      %460 = arith.addf %458, %459 : vector<8x128xf32>
      %461 = arith.mulf %450, %416 : vector<8x128xf32>
      %462 = arith.mulf %442, %452 : vector<8x128xf32>
      %463 = arith.addf %461, %462 : vector<8x128xf32>
      %464 = math.tanh %463 : vector<8x128xf32>
      %465 = arith.mulf %460, %464 : vector<8x128xf32>
      %466 = vector.broadcast %426 : i32 to vector<8x1xi32>
      %467 = arith.cmpi sgt, %13, %466 : vector<8x1xi32>
      %468 = vector.shape_cast %467 : vector<8x1xi1> to vector<8x1xi1>
      %469 = vector.broadcast %468 : vector<8x1xi1> to vector<8x128xi1>
      %470 = arith.select %469, %465, %413 : vector<8x128xi1>, vector<8x128xf32>
      %471 = vector.shape_cast %467 : vector<8x1xi1> to vector<8x1xi1>
      %472 = vector.broadcast %471 : vector<8x1xi1> to vector<8x128xi1>
      %473 = arith.select %472, %463, %416 : vector<8x128xi1>, vector<8x128xf32>
      %cst_173 = arith.constant 0.000000e+00 : f32
      %474 = vector.shape_cast %467 : vector<8x1xi1> to vector<8x1xi1>
      %475 = vector.broadcast %474 : vector<8x1xi1> to vector<8x128xi1>
      %476 = vector.broadcast %cst_173 : f32 to vector<8x128xf32>
      %477 = arith.select %475, %465, %476 : vector<8x128xi1>, vector<8x128xf32>
      %c0_174 = arith.constant 0 : index
      %478 = arith.index_cast %428 : i32 to index
      %c0_175 = arith.constant 0 : index
      %479 = vector.load %arg7[%c0_174, %478, %c0_175] : memref<1x64x128xf32, #tpu.memory_space<vmem>>, vector<1x8x128xf32>
      %480 = vector.shape_cast %479 : vector<1x8x128xf32> to vector<8x128xf32>
      %481 = vector.shape_cast %477 : vector<8x128xf32> to vector<1x8x128xf32>
      tpu.vector_store %arg7[%c0_174, %478, %c0_175], %481 {strides = array<i32>} : memref<1x64x128xf32, #tpu.memory_space<vmem>>, vector<1x8x128xf32>,
      %c8_i32_176 = arith.constant 8 : i32
      %c1_177 = arith.constant 1 : index
      %c0_178 = arith.constant 0 : index
      %c0_179 = arith.constant 0 : index
      %482 = vector.load %arg9[%c1_177, %c0_178, %c0_179] : memref<2x8x128xf32, #tpu.memory_space<vmem>>, vector<1x8x128xf32>
      %483 = vector.shape_cast %482 : vector<1x8x128xf32> to vector<8x128xf32>
      %484 = vector.shape_cast %470 : vector<8x128xf32> to vector<1x8x128xf32>
      tpu.vector_store %arg9[%c1_177, %c0_178, %c0_179], %484 {strides = array<i32>} : memref<2x8x128xf32, #tpu.memory_space<vmem>>, vector<1x8x128xf32>,
      %c1_180 = arith.constant 1 : index
      %c0_181 = arith.constant 0 : index
      %c0_182 = arith.constant 0 : index
      %485 = vector.load %arg10[%c1_180, %c0_181, %c0_182] : memref<2x8x128xf32, #tpu.memory_space<vmem>>, vector<1x8x128xf32>
      %486 = vector.shape_cast %485 : vector<1x8x128xf32> to vector<8x128xf32>
      %487 = vector.shape_cast %473 : vector<8x128xf32> to vector<1x8x128xf32>
      tpu.vector_store %arg10[%c1_180, %c0_181, %c0_182], %487 {strides = array<i32>} : memref<2x8x128xf32, #tpu.memory_space<vmem>>, vector<1x8x128xf32>,
    } else {
    }
    return
  }
  func.func @transform_0(%arg0: i32, %arg1: i32) -> (i32, i32) {
    %c0_i32 = arith.constant 0 : i32
    %c0_i32_0 = arith.constant 0 : i32
    %c0_i32_1 = arith.constant 0 : i32
    return %c0_i32, %c0_i32_0 : i32, i32
  }
  func.func @transform_1(%arg0: i32, %arg1: i32) -> (i32, i32, i32) {
    %c2_i32 = arith.constant 2 : i32
    %0 = arith.muli %c2_i32, %arg1 : i32
    %c0_i32 = arith.constant 0 : i32
    %1 = arith.subi %c0_i32, %0 : i32
    %2 = arith.muli %arg0, %1 : i32
    %3 = arith.addi %arg1, %2 : i32
    %c0_i32_0 = arith.constant 0 : i32
    %c0_i32_1 = arith.constant 0 : i32
    %c0_i32_2 = arith.constant 0 : i32
    return %c0_i32_0, %3, %c0_i32_1 : i32, i32, i32
  }
  func.func @transform_2(%arg0: i32, %arg1: i32) -> (i32, i32, i32) {
    %c0_i32 = arith.constant 0 : i32
    %c0_i32_0 = arith.constant 0 : i32
    %c0_i32_1 = arith.constant 0 : i32
    return %arg0, %c0_i32, %c0_i32_0 : i32, i32, i32
  }
  func.func @transform_3(%arg0: i32, %arg1: i32) -> (i32, i32, i32) {
    %c0_i32 = arith.constant 0 : i32
    %c0_i32_0 = arith.constant 0 : i32
    %c0_i32_1 = arith.constant 0 : i32
    return %arg0, %c0_i32, %c0_i32_0 : i32, i32, i32
  }
  func.func @transform_4(%arg0: i32, %arg1: i32) -> (i32, i32, i32) {
    %c0_i32 = arith.constant 0 : i32
    %c0_i32_0 = arith.constant 0 : i32
    %c0_i32_1 = arith.constant 0 : i32
    return %arg0, %c0_i32, %c0_i32_0 : i32, i32, i32
  }
  func.func @transform_5(%arg0: i32, %arg1: i32) -> (i32, i32, i32) {
    %c2_i32 = arith.constant 2 : i32
    %0 = arith.muli %c2_i32, %arg1 : i32
    %c0_i32 = arith.constant 0 : i32
    %1 = arith.subi %c0_i32, %0 : i32
    %2 = arith.muli %arg0, %1 : i32
    %3 = arith.addi %arg1, %2 : i32
    %c0_i32_0 = arith.constant 0 : i32
    %c0_i32_1 = arith.constant 0 : i32
    return %arg0, %3, %c0_i32_0 : i32, i32, i32
  }
}

</mosaic_0001>

<llo_original>
// kernel: tpu_custom_call.1
$region0: #{tpu_custom_call.1}
  #allocation0 [shape = 'u32[]', space=smem, size = 0x4, offset = 0x4, fixed_abs, tag = 'smem constant byte address 0x4 - core index']
  #allocation1 [shape = 'u32[144,128]{1,0:T(1,128)}', space=vmem, size = 0x12000, scoped, tag = 'internal scratch']
  #allocation2 [shape = 'f32[64,512]{1,0:T(8,128)}', space=vmem, size = 0x20000, scoped, tag = 'scratch operand']
  #allocation3 [shape = 'f32[2,8,128]{2,1,0:T(8,128)}', space=vmem, size = 0x2000, scoped, tag = 'scratch operand']
  #allocation4 [shape = 'f32[2,8,128]{2,1,0:T(8,128)}', space=vmem, size = 0x2000, scoped, tag = 'scratch operand']
  %s0 = inlined_call_operand.hbm [shape: s32[8,1], index: 0, kind: input, shape index: {}]
  %s1 = inlined_call_operand.hbm [shape: f32[1,64,32], index: 1, kind: input, shape index: {}]
  %s2 = inlined_call_operand.hbm [shape: f32[2,32,512], index: 2, kind: input, shape index: {}]
  %s3 = inlined_call_operand.hbm [shape: f32[2,1,512], index: 3, kind: input, shape index: {}]
  %s4 = inlined_call_operand.hbm [shape: f32[2,128,512], index: 4, kind: input, shape index: {}]
  %s5 = inlined_call_operand.hbm [shape: f32[2,64,128], index: 5, kind: output, shape index: {}]
  %s6 = sld [smem:[#allocation0]]
  $region85: #{tpu_custom_call.1} parent=0
    _
  %s8 = ssub.s32 1, %s6
  %s9 = scalar_select 0, %s8, %s6
  $region1: #{tpu_custom_call.1} parent=0
    #allocation5 [shape = 'u8[4096]{0}', space=vmem, size = 0x1000, scoped, tag = 'input window, operand 0, single buffered']
    #allocation6 [shape = 's32[2]{0}', space=sflag, size = 0x8, scoped, tag = 'scoped memory for tpu_custom_call.1']
    #allocation7 [shape = 's32[2]{0}', space=sflag, size = 0x8, scoped, tag = 'scoped memory for tpu_custom_call.1']
    #allocation8 [shape = 'u8[65536]{0}', space=vmem, size = 0x10000, scoped, tag = 'input window, operand 1']
    #allocation9 [shape = 's32[2]{0}', space=sflag, size = 0x8, scoped, tag = 'scoped memory for tpu_custom_call.1']
    #allocation10 [shape = 'u8[131072]{0}', space=vmem, size = 0x20000, scoped, tag = 'input window, operand 2']
    #allocation11 [shape = 'u8[4096]{0}', space=vmem, size = 0x1000, scoped, tag = 'input window, operand 3']
    #allocation12 [shape = 's32[2]{0}', space=sflag, size = 0x8, scoped, tag = 'scoped memory for tpu_custom_call.1']
    #allocation13 [shape = 'u8[524288]{0}', space=vmem, size = 0x80000, scoped, tag = 'input window, operand 4']
    #allocation14 [shape = 'u8[65536]{0}', space=vmem, size = 0x10000, scoped, tag = 'output window, operand 0']
    %10 = vsyncpa [#allocation6], 0
    %11 = vsyncpa [#allocation9], 0
    %s12 = scalar_lea.sflag [#allocation9], 1
    %13 = vsyncpa %s12, 0
    %14 = vsyncpa [#allocation12], 0
    %s15 = scalar_lea.sflag [#allocation12], 1
    %16 = vsyncpa %s15, 0
    %17 = vsyncpa [#allocation7], 0
    %s18 = scalar_lea.sflag [#allocation7], 1
    %19 = vsyncpa %s18, 0
    loop: start=0, step=1, limit=4
    $region2: #{tpu_custom_call.1} parent=1 // loop_pre_header
      _
    $region3: #{tpu_custom_call.1} parent=1 // loop_header
      %s21 = sphi 0, %s25
      %p22 = scmp.ge.s32.totalorder %s21, 4
      %s28 = sphi 0, %s40
      %s29 = sphi 0, %s36
      %s30 = sphi 0, %s28
      %s31 = sphi 0, %s29
      %s32 = sphi 0, %s30
      %s33 = sphi 0, %s31
      %s41 = sphi 0, %s41
      %s43 = sphi 0, %s41
      %s44 = sphi 0, %s43
      %s58 = sphi 0, %s44
      %s72 = sphi 0, %s74
      %s75 = sphi 0, %s72
      %s76 = sphi 0, %s75
      %s92 = sphi 0, %s76
      %s98 = sphi 0, %s100
      %s101 = sphi 0, %s98
      %s102 = sphi 0, %s101
      %s118 = sphi 0, %s102
      %s124 = sphi 0, %s126
      %s127 = sphi 0, %s124
      %s128 = sphi 0, %s127
      %s144 = sphi 0, %s128
      %s150 = sphi 0, %s152
      %s153 = sphi 0, %s150
      %s154 = sphi 0, %s153
      %s170 = sphi 0, %s154
      %s186 = sphi 0, %s188
      %s189 = sphi 0, %s186
      %s190 = sphi 0, %s189
      %s206 = sphi 0, %s190
    $region4: #{tpu_custom_call.1} parent=1 // loop_header_branch
      %24 = sbr.rel (%p22) target = $region8
    $region5: #{tpu_custom_call.1} parent=1 // loop_body
      %s26 = ssub.s32 %s21, 1
      %s27 = ssub.s32 %s21, 2
      %s34 = sadd.s32 1, %s29
      %p35 = scmp.ge.s32.totalorder %s34, 1
      %s36 = scalar_select %p35, 0, %s34
      %s37 = sadd.s32 1, %s28
      %s38 = scalar_select %p35, %s37, %s28
      %p39 = scmp.ge.s32.totalorder %s38, 2
      %s40 = scalar_select %p39, 0, %s38
      %s42 = sadd.s32 %s41, 1
      %p45 = scmp.eq.s32.totalorder %s21, 1
      %p46 = scmp.ne.s32.totalorder %s41, %s43
      %p47 = scmp.eq.s32.totalorder %s21, 0
      %p48 = por %p46, %p47
      %p49 = scmp.ne.s32.totalorder %s41, %s43
      %p50 = scmp.eq.s32.totalorder %s26, 1
      %p51 = por %p49, %p50
      %p52 = scmp.ne.s32.totalorder %s43, %s44
      %p53 = scmp.eq.s32.totalorder %s26, 0
      %p54 = por %p52, %p53
      %p55 = scmp.ne.s32.totalorder %s43, %s44
      %p56 = scmp.eq.s32.totalorder %s27, 1
      %p57 = por %p55, %p56
      %p59 = scmp.ne.s32.totalorder %s44, %s58
      %p60 = scmp.eq.s32.totalorder %s27, 0
      %p61 = por %p59, %p60
      %s62 = smul.u32 %s29, 2
      %s63 = ssub.s32 0, %s62
      %s64 = smul.u32 %s28, %s63
      %s65 = sadd.s32 %s29, %s64
      %s66 = smul.u32 %s36, 2
      %s67 = ssub.s32 0, %s66
      %s68 = smul.u32 %s40, %s67
      %s69 = sadd.s32 %s36, %s68
      %s70 = ssub.s32 %s65, %s69
      %p71 = scmp.eq.s32.totalorder %s70, 0
      %s73 = sadd.s32 %s72, 1
      %s74 = scalar_select %p71, %s72, %s73
      %p77 = pneg %p71
      %p78 = scmp.eq.s32.totalorder %s21, 1
      %p79 = por %p77, %p78
      %p80 = scmp.ne.s32.totalorder %s72, %s75
      %p81 = scmp.eq.s32.totalorder %s21, 0
      %p82 = por %p80, %p81
      %p83 = scmp.ne.s32.totalorder %s72, %s75
      %p84 = scmp.eq.s32.totalorder %s26, 1
      %p85 = por %p83, %p84
      %p86 = scmp.ne.s32.totalorder %s75, %s76
      %p87 = scmp.eq.s32.totalorder %s26, 0
      %p88 = por %p86, %p87
      %p89 = scmp.ne.s32.totalorder %s75, %s76
      %p90 = scmp.eq.s32.totalorder %s27, 1
      %p91 = por %p89, %p90
      %p93 = scmp.ne.s32.totalorder %s76, %s92
      %p94 = scmp.eq.s32.totalorder %s27, 0
      %p95 = por %p93, %p94
      %s96 = ssub.s32 %s28, %s40
      %p97 = scmp.eq.s32.totalorder %s96, 0
      %s99 = sadd.s32 %s98, 1
      %s100 = scalar_select %p97, %s98, %s99
      %p103 = pneg %p97
      %p104 = scmp.eq.s32.totalorder %s21, 1
      %p105 = por %p103, %p104
      %p106 = scmp.ne.s32.totalorder %s98, %s101
      %p107 = scmp.eq.s32.totalorder %s21, 0
      %p108 = por %p106, %p107
      %p109 = scmp.ne.s32.totalorder %s98, %s101
      %p110 = scmp.eq.s32.totalorder %s26, 1
      %p111 = por %p109, %p110
      %p112 = scmp.ne.s32.totalorder %s101, %s102
      %p113 = scmp.eq.s32.totalorder %s26, 0
      %p114 = por %p112, %p113
      %p115 = scmp.ne.s32.totalorder %s101, %s102
      %p116 = scmp.eq.s32.totalorder %s27, 1
      %p117 = por %p115, %p116
      %p119 = scmp.ne.s32.totalorder %s102, %s118
      %p120 = scmp.eq.s32.totalorder %s27, 0
      %p121 = por %p119, %p120
      %s122 = ssub.s32 %s28, %s40
      %p123 = scmp.eq.s32.totalorder %s122, 0
      %s125 = sadd.s32 %s124, 1
      %s126 = scalar_select %p123, %s124, %s125
      %p129 = pneg %p123
      %p130 = scmp.eq.s32.totalorder %s21, 1
      %p131 = por %p129, %p130
      %p132 = scmp.ne.s32.totalorder %s124, %s127
      %p133 = scmp.eq.s32.totalorder %s21, 0
      %p134 = por %p132, %p133
      %p135 = scmp.ne.s32.totalorder %s124, %s127
      %p136 = scmp.eq.s32.totalorder %s26, 1
      %p137 = por %p135, %p136
      %p138 = scmp.ne.s32.totalorder %s127, %s128
      %p139 = scmp.eq.s32.totalorder %s26, 0
      %p140 = por %p138, %p139
      %p141 = scmp.ne.s32.totalorder %s127, %s128
      %p142 = scmp.eq.s32.totalorder %s27, 1
      %p143 = por %p141, %p142
      %p145 = scmp.ne.s32.totalorder %s128, %s144
      %p146 = scmp.eq.s32.totalorder %s27, 0
      %p147 = por %p145, %p146
      %s148 = ssub.s32 %s28, %s40
      %p149 = scmp.eq.s32.totalorder %s148, 0
      %s151 = sadd.s32 %s150, 1
      %s152 = scalar_select %p149, %s150, %s151
      %p155 = pneg %p149
      %p156 = scmp.eq.s32.totalorder %s21, 1
      %p157 = por %p155, %p156
      %p158 = scmp.ne.s32.totalorder %s150, %s153
      %p159 = scmp.eq.s32.totalorder %s21, 0
      %p160 = por %p158, %p159
      %p161 = scmp.ne.s32.totalorder %s150, %s153
      %p162 = scmp.eq.s32.totalorder %s26, 1
      %p163 = por %p161, %p162
      %p164 = scmp.ne.s32.totalorder %s153, %s154
      %p165 = scmp.eq.s32.totalorder %s26, 0
      %p166 = por %p164, %p165
      %p167 = scmp.ne.s32.totalorder %s153, %s154
      %p168 = scmp.eq.s32.totalorder %s27, 1
      %p169 = por %p167, %p168
      %p171 = scmp.ne.s32.totalorder %s154, %s170
      %p172 = scmp.eq.s32.totalorder %s27, 0
      %p173 = por %p171, %p172
      %s174 = smul.u32 %s29, 2
      %s175 = ssub.s32 0, %s174
      %s176 = smul.u32 %s28, %s175
      %s177 = sadd.s32 %s29, %s176
      %s178 = smul.u32 %s36, 2
      %s179 = ssub.s32 0, %s178
      %s180 = smul.u32 %s40, %s179
      %s181 = sadd.s32 %s36, %s180
      %s182 = ssub.s32 %s28, %s40
      %s183 = ssub.s32 %s177, %s181
      %s184 = sor.u32 %s182, %s183
      %p185 = scmp.eq.s32.totalorder %s184, 0
      %s187 = sadd.s32 %s186, 1
      %s188 = scalar_select %p185, %s186, %s187
      %p191 = pneg %p185
      %p192 = scmp.eq.s32.totalorder %s21, 1
      %p193 = por %p191, %p192
      %p194 = scmp.ne.s32.totalorder %s186, %s189
      %p195 = scmp.eq.s32.totalorder %s21, 0
      %p196 = por %p194, %p195
      %p197 = scmp.ne.s32.totalorder %s186, %s189
      %p198 = scmp.eq.s32.totalorder %s26, 1
      %p199 = por %p197, %p198
      %p200 = scmp.ne.s32.totalorder %s189, %s190
      %p201 = scmp.eq.s32.totalorder %s26, 0
      %p202 = por %p200, %p201
      %p203 = scmp.ne.s32.totalorder %s189, %s190
      %p204 = scmp.eq.s32.totalorder %s27, 1
      %p205 = por %p203, %p204
      %p207 = scmp.ne.s32.totalorder %s190, %s206
      %p208 = scmp.eq.s32.totalorder %s27, 0
      %p209 = por %p207, %p208
      %p210 = scmp.le.s32.totalorder 1, %s21
      %p211 = scmp.lt.s32.totalorder %s21, 3
      %p212 = pnand %p210, %p211
      %p213 = pneg %p212
      // Predicated region
      $region9: #{tpu_custom_call.1} parent=5 // pred_check
        _
      $region10: #{tpu_custom_call.1} parent=5 // pred_check_branch
        %215 = sbr.rel (%p212) target = $region12
      $region11: #{tpu_custom_call.1} parent=5 // pred_region
        %s216 = ssub.s32 %s21, 1
        // Predicated region
        $region13: #{tpu_custom_call.1} parent=11 // pred_check
          %p217 = pneg %p54
        $region14: #{tpu_custom_call.1} parent=11 // pred_check_branch
          %219 = sbr.rel (%p217) target = $region16
        $region15: #{tpu_custom_call.1} parent=11 // pred_region
          %s221 = ssub.s32 128, 128
          %222 = vsyncadd [#allocation6], %s221
          %s224 = sshll.u32 [#allocation5], 4
          %s225 = int_to_ptr.vmem [resolvable:$true] %s224
          %227 = dma.hbm_to_vmem [thread:$0]  %s0, 128, %s225, [#allocation6]
        $region16: #{tpu_custom_call.1} parent=11 // pred_fallthru
          _
      $region12: #{tpu_custom_call.1} parent=5 // pred_fallthru
        _
      %p228 = scmp.lt.s32.totalorder %s21, 2
      // Predicated region
      $region17: #{tpu_custom_call.1} parent=5 // pred_check
        %p229 = pneg %p228
      $region18: #{tpu_custom_call.1} parent=5 // pred_check_branch
        %231 = sbr.rel (%p229) target = $region20
      $region19: #{tpu_custom_call.1} parent=5 // pred_region
        // Predicated region
        $region21: #{tpu_custom_call.1} parent=19 // pred_check
          %p232 = pneg %p82
        $region22: #{tpu_custom_call.1} parent=19 // pred_check_branch
          %234 = sbr.rel (%p232) target = $region24
        $region23: #{tpu_custom_call.1} parent=19 // pred_region
          %s235 = sand.u32 %s21, 1
          %s236 = scalar_lea.sflag [#allocation9], %s235
          %s237 = sand.u32 %s72, 1
          %s238 = smul.addr %s237, 64
          %s239 = scalar_lea.vmem [#allocation8], %s238
          %s240 = smul.u32 %s29, 2
          %s241 = ssub.s32 0, %s240
          %s242 = smul.u32 %s28, %s241
          %s243 = sadd.s32 %s29, %s242
          %s244 = smul.u32 8, %s243
          %s246 = ssub.s32 1024, 1024
          %247 = vsyncadd %s236, %s246
          %s248 = smul.addr %s244, 128
          %s249 = scalar_lea.hbm %s1, %s248
          %s250 = sshll.u32 %s239, 4
          %s251 = int_to_ptr.vmem [resolvable:$true] %s250
          %256 = dma.hbm_to_vmem [thread:$0]  %s249, 1024, %s251, %s236, 128, 128, 8
        $region24: #{tpu_custom_call.1} parent=19 // pred_fallthru
          _
        // Predicated region
        $region25: #{tpu_custom_call.1} parent=19 // pred_check
          %p257 = pneg %p108
        $region26: #{tpu_custom_call.1} parent=19 // pred_check_branch
          %259 = sbr.rel (%p257) target = $region28
        $region27: #{tpu_custom_call.1} parent=19 // pred_region
          %s260 = sand.u32 %s21, 1
          %s261 = scalar_lea.sflag [#allocation9], %s260
          %s262 = sand.u32 %s98, 1
          %s263 = smul.addr %s262, 128
          %s264 = scalar_lea.vmem [#allocation10], %s263
          %s266 = ssub.s32 2048, 2048
          %267 = vsyncadd %s261, %s266
          %s268 = smul.addr %s28, 16
          %s269 = smul.addr %s268, 128
          %s270 = scalar_lea.hbm %s2, %s269
          %s271 = sshll.u32 %s264, 4
          %s272 = int_to_ptr.vmem [resolvable:$true] %s271
          %277 = dma.hbm_to_vmem [thread:$0]  %s270, 2048, %s272, %s261, 512, 512, 32
        $region28: #{tpu_custom_call.1} parent=19 // pred_fallthru
          _
        // Predicated region
        $region29: #{tpu_custom_call.1} parent=19 // pred_check
          %p278 = pneg %p134
        $region30: #{tpu_custom_call.1} parent=19 // pred_check_branch
          %280 = sbr.rel (%p278) target = $region32
        $region31: #{tpu_custom_call.1} parent=19 // pred_region
          %s281 = sand.u32 %s21, 1
          %s282 = scalar_lea.sflag [#allocation12], %s281
          %s283 = sand.u32 %s124, 1
          %s284 = smul.addr %s283, 4
          %s285 = scalar_lea.vmem [#allocation11], %s284
          %s287 = ssub.s32 64, 64
          %288 = vsyncadd %s282, %s287
          %s289 = smul.addr %s28, 4
          %s290 = smul.addr %s289, 16
          %s291 = scalar_lea.hbm %s3, %s290
          %s293 = sshll.u32 %s285, 4
          %s294 = int_to_ptr.vmem [resolvable:$true] %s293
          %296 = dma.hbm_to_vmem [thread:$0]  %s291, 64, %s294, %s282
        $region32: #{tpu_custom_call.1} parent=19 // pred_fallthru
          _
        // Predicated region
        $region33: #{tpu_custom_call.1} parent=19 // pred_check
          %p297 = pneg %p160
        $region34: #{tpu_custom_call.1} parent=19 // pred_check_branch
          %299 = sbr.rel (%p297) target = $region36
        $region35: #{tpu_custom_call.1} parent=19 // pred_region
          %s300 = sand.u32 %s21, 1
          %s301 = scalar_lea.sflag [#allocation12], %s300
          %s302 = sand.u32 %s150, 1
          %s303 = smul.addr %s302, 512
          %s304 = scalar_lea.vmem [#allocation13], %s303
          %s306 = ssub.s32 8192, 8192
          %307 = vsyncadd %s301, %s306
          %s308 = smul.addr %s28, 64
          %s309 = smul.addr %s308, 128
          %s310 = scalar_lea.hbm %s4, %s309
          %s311 = sshll.u32 %s304, 4
          %s312 = int_to_ptr.vmem [resolvable:$true] %s311
          %317 = dma.hbm_to_vmem [thread:$0]  %s310, 8192, %s312, %s301, 512, 512, 32
        $region36: #{tpu_custom_call.1} parent=19 // pred_fallthru
          _
      $region20: #{tpu_custom_call.1} parent=5 // pred_fallthru
        _
      %p318 = scmp.le.s32.totalorder 1, %s21
      %p319 = scmp.lt.s32.totalorder %s21, 3
      %p320 = pnand %p318, %p319
      %p321 = pneg %p320
      // Predicated region
      $region37: #{tpu_custom_call.1} parent=5 // pred_check
        _
      $region38: #{tpu_custom_call.1} parent=5 // pred_check_branch
        %323 = sbr.rel (%p320) target = $region40
      $region39: #{tpu_custom_call.1} parent=5 // pred_region
        %s324 = ssub.s32 %s21, 1
        // Predicated region
        $region41: #{tpu_custom_call.1} parent=39 // pred_check
          %p325 = pneg %p54
        $region42: #{tpu_custom_call.1} parent=39 // pred_check_branch
          %327 = sbr.rel (%p325) target = $region44
        $region43: #{tpu_custom_call.1} parent=39 // pred_region
          %328 = dma.done [#allocation6], 128
        $region44: #{tpu_custom_call.1} parent=39 // pred_fallthru
          _
        %s329 = sand.u32 %s26, 1
        %s330 = scalar_lea.sflag [#allocation9], %s329
        %s331 = sand.u32 %s75, 1
        %s332 = smul.addr %s331, 64
        %s333 = scalar_lea.vmem [#allocation8], %s332
        // Predicated region
        $region45: #{tpu_custom_call.1} parent=39 // pred_check
          %p334 = pneg %p88
        $region46: #{tpu_custom_call.1} parent=39 // pred_check_branch
          %336 = sbr.rel (%p334) target = $region48
        $region47: #{tpu_custom_call.1} parent=39 // pred_region
          %337 = dma.done %s330, 1024
        $region48: #{tpu_custom_call.1} parent=39 // pred_fallthru
          _
        %s338 = sand.u32 %s26, 1
        %s339 = scalar_lea.sflag [#allocation9], %s338
        %s340 = sand.u32 %s101, 1
        %s341 = smul.addr %s340, 128
        %s342 = scalar_lea.vmem [#allocation10], %s341
        // Predicated region
        $region49: #{tpu_custom_call.1} parent=39 // pred_check
          %p343 = pneg %p114
        $region50: #{tpu_custom_call.1} parent=39 // pred_check_branch
          %345 = sbr.rel (%p343) target = $region52
        $region51: #{tpu_custom_call.1} parent=39 // pred_region
          %346 = dma.done %s339, 2048
        $region52: #{tpu_custom_call.1} parent=39 // pred_fallthru
          _
        %s347 = sand.u32 %s26, 1
        %s348 = scalar_lea.sflag [#allocation12], %s347
        %s349 = sand.u32 %s127, 1
        %s350 = smul.addr %s349, 4
        %s351 = scalar_lea.vmem [#allocation11], %s350
        // Predicated region
        $region53: #{tpu_custom_call.1} parent=39 // pred_check
          %p352 = pneg %p140
        $region54: #{tpu_custom_call.1} parent=39 // pred_check_branch
          %354 = sbr.rel (%p352) target = $region56
        $region55: #{tpu_custom_call.1} parent=39 // pred_region
          %355 = dma.done %s348, 64
        $region56: #{tpu_custom_call.1} parent=39 // pred_fallthru
          _
        %s356 = sand.u32 %s26, 1
        %s357 = scalar_lea.sflag [#allocation12], %s356
        %s358 = sand.u32 %s153, 1
        %s359 = smul.addr %s358, 512
        %s360 = scalar_lea.vmem [#allocation13], %s359
        // Predicated region
        $region57: #{tpu_custom_call.1} parent=39 // pred_check
          %p361 = pneg %p166
        $region58: #{tpu_custom_call.1} parent=39 // pred_check_branch
          %363 = sbr.rel (%p361) target = $region60
        $region59: #{tpu_custom_call.1} parent=39 // pred_region
          %364 = dma.done %s357, 8192
        $region60: #{tpu_custom_call.1} parent=39 // pred_fallthru
          _
        %p365 = pneg %p54
        %p366 = pneg %p51
        %s367 = sand.u32 %s26, 1
        %s368 = scalar_lea.sflag [#allocation9], %s367
        %s369 = sand.u32 %s75, 1
        %s370 = smul.addr %s369, 64
        %s371 = scalar_lea.vmem [#allocation8], %s370
        %p372 = pneg %p88
        %p373 = pneg %p85
        %s374 = sand.u32 %s26, 1
        %s375 = scalar_lea.sflag [#allocation9], %s374
        %s376 = sand.u32 %s101, 1
        %s377 = smul.addr %s376, 128
        %s378 = scalar_lea.vmem [#allocation10], %s377
        %p379 = pneg %p114
        %p380 = pneg %p111
        %s381 = sand.u32 %s26, 1
        %s382 = scalar_lea.sflag [#allocation12], %s381
        %s383 = sand.u32 %s127, 1
        %s384 = smul.addr %s383, 4
        %s385 = scalar_lea.vmem [#allocation11], %s384
        %p386 = pneg %p140
        %p387 = pneg %p137
        %s388 = sand.u32 %s26, 1
        %s389 = scalar_lea.sflag [#allocation12], %s388
        %s390 = sand.u32 %s153, 1
        %s391 = smul.addr %s390, 512
        %s392 = scalar_lea.vmem [#allocation13], %s391
        %p393 = pneg %p166
        %p394 = pneg %p163
        %p395 = pneg %p202
        %p396 = pneg %p199
        %s397 = sand.u32 %s189, 1
        %s398 = scalar_lea.sflag [#allocation7], %s397
        %s399 = sand.u32 %s189, 1
        %s400 = smul.addr %s399, 64
        %s401 = scalar_lea.vmem [#allocation14], %s400
        %s402 = smul.u32 %s31, 2
        %s403 = ssub.s32 0, %s402
        %s404 = smul.u32 %s30, %s403
        %s405 = sadd.s32 %s31, %s404
        %s406 = smul.u32 8, %s405
        %s407 = smul.u32 %s31, 2
        %s408 = ssub.s32 0, %s407
        %s409 = smul.u32 %s30, %s408
        %s410 = sadd.s32 %s31, %s409
        %s411 = smul.u32 8, %s410
        %p412 = scmp.eq.s32.totalorder %s31, 0
        // Predicated region
        $region61: #{tpu_custom_call.1} parent=39 // pred_check
          %p413 = pneg %p412
        $region62: #{tpu_custom_call.1} parent=39 // pred_check_branch
          %415 = sbr.rel (%p413) target = $region64
        $region63: #{tpu_custom_call.1} parent=39 // pred_region
          %416 = vst [vmem:[#allocation3] sm:$0xff] 0.0
          %417 = vst [vmem:[#allocation3 + $0x8] sm:$0xff] 0.0
          %418 = vst [vmem:[#allocation4] sm:$0xff] 0.0
          %419 = vst [vmem:[#allocation4 + $0x8] sm:$0xff] 0.0
        $region64: #{tpu_custom_call.1} parent=39 // pred_fallthru
          _
        %v420 = vld [vmem:[%s333] sm:$0xff]
        %v421 = vld [vmem:[%s333 + $0x8] sm:$0xff]
        %v422 = vld [vmem:[%s333 + $0x10] sm:$0xff]
        %v423 = vld [vmem:[%s333 + $0x18] sm:$0xff]
        %v424 = vld [vmem:[%s333 + $0x20] sm:$0xff]
        %v425 = vld [vmem:[%s333 + $0x28] sm:$0xff]
        %v426 = vld [vmem:[%s333 + $0x30] sm:$0xff]
        %v427 = vld [vmem:[%s333 + $0x38] sm:$0xff]
        %v428 = vld [vmem:[%s342] sm:$0xff]
        %v429 = vld [vmem:[%s342 + $0x8] sm:$0xff]
        %v430 = vld [vmem:[%s342 + $0x10] sm:$0xff]
        %v431 = vld [vmem:[%s342 + $0x18] sm:$0xff]
        %v432 = vld [vmem:[%s342 + $0x20] sm:$0xff]
        %v433 = vld [vmem:[%s342 + $0x28] sm:$0xff]
        %v434 = vld [vmem:[%s342 + $0x30] sm:$0xff]
        %v435 = vld [vmem:[%s342 + $0x38] sm:$0xff]
        %v436 = vld [vmem:[%s342 + $0x40] sm:$0xff]
        %v437 = vld [vmem:[%s342 + $0x48] sm:$0xff]
        %v438 = vld [vmem:[%s342 + $0x50] sm:$0xff]
        %v439 = vld [vmem:[%s342 + $0x58] sm:$0xff]
        %v440 = vld [vmem:[%s342 + $0x60] sm:$0xff]
        %v441 = vld [vmem:[%s342 + $0x68] sm:$0xff]
        %v442 = vld [vmem:[%s342 + $0x70] sm:$0xff]
        %v443 = vld [vmem:[%s342 + $0x78] sm:$0xff]
        %v444 = vld [vmem:[%s351] sm:$0xf]
        %v446 = vlaneseq
        %v447 = vshrl.u32 %v446, 7
        %v448 = vsub.s32 0, %v447
        %v449 = vrot.slane %v444, %v448
        %v450 = vlaneseq
        %v451 = vshrl.u32 %v450, 7
        %v452 = vsub.s32 1, %v451
        %v453 = vrot.slane %v444, %v452
        %v454 = vlaneseq
        %v455 = vshrl.u32 %v454, 7
        %v456 = vsub.s32 2, %v455
        %v457 = vrot.slane %v444, %v456
        %v458 = vlaneseq
        %v459 = vshrl.u32 %v458, 7
        %v460 = vsub.s32 3, %v459
        %v461 = vrot.slane %v444, %v460
        %vm466 = vcmask 261120
        %v468 = vsel %vm466, %v420, 0
        %v471 = vsel %vm466, %v421, 0
        %v474 = vsel %vm466, %v422, 0
        %v477 = vsel %vm466, %v423, 0
        %v480 = vsel %vm466, %v424, 0
        %v483 = vsel %vm466, %v425, 0
        %v486 = vsel %vm466, %v426, 0
        %v489 = vsel %vm466, %v427, 0
        %491 = vmatprep.subr.mxu0 %v429
        %492 = vmatpush1.msra.mxu0 %v428
        %493 = vmatprep.subr.mxu0 %v433
        %494 = vmatpush1.msra.mxu0 %v432
        %495 = vmatprep.subr.mxu0 %v437
        %496 = vmatpush1.msra.mxu0 %v436
        %497 = vmatprep.subr.mxu0 %v441
        %498 = vmatpush1.msra.mxu0 %v440
        %499 = vmatprep.subr.mxu0 0.0
        %500 = vmatpush1.msra.mxu0 0.0
        %501 = vmatprep.subr.mxu0 0.0
        %502 = vmatpush1.msra.mxu0 0.0
        %503 = vmatprep.subr.mxu0 0.0
        %504 = vmatpush1.msra.mxu0 0.0
        %505 = vmatprep.subr.mxu0 0.0
        %506 = vmatpush1.msra.mxu0 0.0
        %507 = vmatprep.subr.mxu0 0.0
        %508 = vmatpush1.msra.mxu0 0.0
        %509 = vmatprep.subr.mxu0 0.0
        %510 = vmatpush1.msra.mxu0 0.0
        %511 = vmatprep.subr.mxu0 0.0
        %512 = vmatpush1.msra.mxu0 0.0
        %513 = vmatprep.subr.mxu0 0.0
        %514 = vmatpush1.msra.mxu0 0.0
        %515 = vmatprep.subr.mxu0 0.0
        %516 = vmatpush1.msra.mxu0 0.0
        %517 = vmatprep.subr.mxu0 0.0
        %518 = vmatpush1.msra.mxu0 0.0
        %519 = vmatprep.subr.mxu0 0.0
        %520 = vmatpush1.msra.mxu0 0.0
        %521 = vmatprep.subr.mxu0 0.0
        %522 = vmatpush1.msra.mxu0 0.0
        %523 = vmatprep.subr.mxu0 0.0
        %524 = vmatpush1.msra.mxu0 0.0
        %525 = vmatprep.subr.mxu0 0.0
        %526 = vmatpush1.msra.mxu0 0.0
        %527 = vmatprep.subr.mxu0 0.0
        %528 = vmatpush1.msra.mxu0 0.0
        %529 = vmatprep.subr.mxu0 0.0
        %530 = vmatpush1.msra.mxu0 0.0
        %531 = vmatprep.subr.mxu0 0.0
        %532 = vmatpush1.msra.mxu0 0.0
        %533 = vmatprep.subr.mxu0 0.0
        %534 = vmatpush1.msra.mxu0 0.0
        %535 = vmatprep.subr.mxu0 0.0
        %536 = vmatpush1.msra.mxu0 0.0
        %537 = vmatprep.subr.mxu0 0.0
        %538 = vmatpush1.msra.mxu0 0.0
        %539 = vmatprep.subr.mxu0 0.0
        %540 = vmatpush1.msra.mxu0 0.0
        %541 = vmatprep.subr.mxu0 0.0
        %542 = vmatpush1.msra.mxu0 0.0
        %543 = vmatprep.subr.mxu0 0.0
        %544 = vmatpush1.msra.mxu0 0.0
        %545 = vmatprep.subr.mxu0 0.0
        %546 = vmatpush1.msra.mxu0 0.0
        %547 = vmatprep.subr.mxu0 0.0
        %548 = vmatpush1.msra.mxu0 0.0
        %549 = vmatprep.subr.mxu0 0.0
        %550 = vmatpush1.msra.mxu0 0.0
        %551 = vmatprep.subr.mxu0 0.0
        %552 = vmatpush1.msra.mxu0 0.0
        %553 = vmatprep.subr.mxu0 0.0
        %554 = vmatpush1.msra.mxu0 0.0
        %555 = vmatprep.mubr.f32.mxu0 0.0
        %556 = vmatmul.mubr.f32.gmra.mrb[0].mxu0 %v468
        %v557 = vpop.f32.mrb[0].mxu0
        %v558 = vadd.f32 %v449, %v557
        %v559 = vpop.f32.mrb[0].mxu0
        %v560 = vadd.f32 %v453, %v559
        %561 = vmatprep.mubr.f32.mxu0 0.0
        %562 = vmatmul.mubr.f32.gmra.mrb[0].mxu0 %v471
        %v563 = vpop.f32.mrb[0].mxu0
        %v564 = vadd.f32 %v449, %v563
        %v565 = vpop.f32.mrb[0].mxu0
        %v566 = vadd.f32 %v453, %v565
        %567 = vmatprep.mubr.f32.mxu0 0.0
        %568 = vmatmul.mubr.f32.gmra.mrb[0].mxu0 %v474
        %v569 = vpop.f32.mrb[0].mxu0
        %v570 = vadd.f32 %v449, %v569
        %v571 = vpop.f32.mrb[0].mxu0
        %v572 = vadd.f32 %v453, %v571
        %573 = vmatprep.mubr.f32.mxu0 0.0
        %574 = vmatmul.mubr.f32.gmra.mrb[0].mxu0 %v477
        %v575 = vpop.f32.mrb[0].mxu0
        %v576 = vadd.f32 %v449, %v575
        %v577 = vpop.f32.mrb[0].mxu0
        %v578 = vadd.f32 %v453, %v577
        %579 = vmatprep.mubr.f32.mxu0 0.0
        %580 = vmatmul.mubr.f32.gmra.mrb[0].mxu0 %v480
        %v581 = vpop.f32.mrb[0].mxu0
        %v582 = vadd.f32 %v449, %v581
        %v583 = vpop.f32.mrb[0].mxu0
        %v584 = vadd.f32 %v453, %v583
        %585 = vmatprep.mubr.f32.mxu0 0.0
        %586 = vmatmul.mubr.f32.gmra.mrb[0].mxu0 %v483
        %v587 = vpop.f32.mrb[0].mxu0
        %v588 = vadd.f32 %v449, %v587
        %v589 = vpop.f32.mrb[0].mxu0
        %v590 = vadd.f32 %v453, %v589
        %591 = vmatprep.mubr.f32.mxu0 0.0
        %592 = vmatmul.mubr.f32.gmra.mrb[0].mxu0 %v486
        %v593 = vpop.f32.mrb[0].mxu0
        %v594 = vadd.f32 %v449, %v593
        %v595 = vpop.f32.mrb[0].mxu0
        %v596 = vadd.f32 %v453, %v595
        %597 = vmatprep.mubr.f32.mxu0 0.0
        %598 = vmatmul.mubr.f32.gmra.mrb[0].mxu0 %v489
        %v599 = vpop.f32.mrb[0].mxu0
        %v600 = vadd.f32 %v449, %v599
        %v601 = vpop.f32.mrb[0].mxu0
        %v602 = vadd.f32 %v453, %v601
        %603 = vdwg.mxu0
        %604 = vmatprep.subr.mxu0 %v431
        %605 = vmatpush1.msra.mxu0 %v430
        %606 = vmatprep.subr.mxu0 %v435
        %607 = vmatpush1.msra.mxu0 %v434
        %608 = vmatprep.subr.mxu0 %v439
        %609 = vmatpush1.msra.mxu0 %v438
        %610 = vmatprep.subr.mxu0 %v443
        %611 = vmatpush1.msra.mxu0 %v442
        %612 = vmatprep.subr.mxu0 0.0
        %613 = vmatpush1.msra.mxu0 0.0
        %614 = vmatprep.subr.mxu0 0.0
        %615 = vmatpush1.msra.mxu0 0.0
        %616 = vmatprep.subr.mxu0 0.0
        %617 = vmatpush1.msra.mxu0 0.0
        %618 = vmatprep.subr.mxu0 0.0
        %619 = vmatpush1.msra.mxu0 0.0
        %620 = vmatprep.subr.mxu0 0.0
        %621 = vmatpush1.msra.mxu0 0.0
        %622 = vmatprep.subr.mxu0 0.0
        %623 = vmatpush1.msra.mxu0 0.0
        %624 = vmatprep.subr.mxu0 0.0
        %625 = vmatpush1.msra.mxu0 0.0
        %626 = vmatprep.subr.mxu0 0.0
        %627 = vmatpush1.msra.mxu0 0.0
        %628 = vmatprep.subr.mxu0 0.0
        %629 = vmatpush1.msra.mxu0 0.0
        %630 = vmatprep.subr.mxu0 0.0
        %631 = vmatpush1.msra.mxu0 0.0
        %632 = vmatprep.subr.mxu0 0.0
        %633 = vmatpush1.msra.mxu0 0.0
        %634 = vmatprep.subr.mxu0 0.0
        %635 = vmatpush1.msra.mxu0 0.0
        %636 = vmatprep.subr.mxu0 0.0
        %637 = vmatpush1.msra.mxu0 0.0
        %638 = vmatprep.subr.mxu0 0.0
        %639 = vmatpush1.msra.mxu0 0.0
        %640 = vmatprep.subr.mxu0 0.0
        %641 = vmatpush1.msra.mxu0 0.0
        %642 = vmatprep.subr.mxu0 0.0
        %643 = vmatpush1.msra.mxu0 0.0
        %644 = vmatprep.subr.mxu0 0.0
        %645 = vmatpush1.msra.mxu0 0.0
        %646 = vmatprep.subr.mxu0 0.0
        %647 = vmatpush1.msra.mxu0 0.0
        %648 = vmatprep.subr.mxu0 0.0
        %649 = vmatpush1.msra.mxu0 0.0
        %650 = vmatprep.subr.mxu0 0.0
        %651 = vmatpush1.msra.mxu0 0.0
        %652 = vmatprep.subr.mxu0 0.0
        %653 = vmatpush1.msra.mxu0 0.0
        %654 = vmatprep.subr.mxu0 0.0
        %655 = vmatpush1.msra.mxu0 0.0
        %656 = vmatprep.subr.mxu0 0.0
        %657 = vmatpush1.msra.mxu0 0.0
        %658 = vmatprep.subr.mxu0 0.0
        %659 = vmatpush1.msra.mxu0 0.0
        %660 = vmatprep.subr.mxu0 0.0
        %661 = vmatpush1.msra.mxu0 0.0
        %662 = vmatprep.subr.mxu0 0.0
        %663 = vmatpush1.msra.mxu0 0.0
        %664 = vmatprep.subr.mxu0 0.0
        %665 = vmatpush1.msra.mxu0 0.0
        %666 = vmatprep.subr.mxu0 0.0
        %667 = vmatpush1.msra.mxu0 0.0
        %668 = vmatprep.mubr.f32.mxu0 0.0
        %669 = vmatmul.mubr.f32.gmra.mrb[0].mxu0 %v468
        %v670 = vpop.f32.mrb[0].mxu0
        %v671 = vadd.f32 %v457, %v670
        %v672 = vpop.f32.mrb[0].mxu0
        %v673 = vadd.f32 %v461, %v672
        %674 = vmatprep.mubr.f32.mxu0 0.0
        %675 = vmatmul.mubr.f32.gmra.mrb[0].mxu0 %v471
        %v676 = vpop.f32.mrb[0].mxu0
        %v677 = vadd.f32 %v457, %v676
        %v678 = vpop.f32.mrb[0].mxu0
        %v679 = vadd.f32 %v461, %v678
        %680 = vmatprep.mubr.f32.mxu0 0.0
        %681 = vmatmul.mubr.f32.gmra.mrb[0].mxu0 %v474
        %v682 = vpop.f32.mrb[0].mxu0
        %v683 = vadd.f32 %v457, %v682
        %v684 = vpop.f32.mrb[0].mxu0
        %v685 = vadd.f32 %v461, %v684
        %686 = vmatprep.mubr.f32.mxu0 0.0
        %687 = vmatmul.mubr.f32.gmra.mrb[0].mxu0 %v477
        %v688 = vpop.f32.mrb[0].mxu0
        %v689 = vadd.f32 %v457, %v688
        %v690 = vpop.f32.mrb[0].mxu0
        %v691 = vadd.f32 %v461, %v690
        %692 = vmatprep.mubr.f32.mxu0 0.0
        %693 = vmatmul.mubr.f32.gmra.mrb[0].mxu0 %v480
        %v694 = vpop.f32.mrb[0].mxu0
        %v695 = vadd.f32 %v457, %v694
        %v696 = vpop.f32.mrb[0].mxu0
        %v697 = vadd.f32 %v461, %v696
        %698 = vmatprep.mubr.f32.mxu0 0.0
        %699 = vmatmul.mubr.f32.gmra.mrb[0].mxu0 %v483
        %v700 = vpop.f32.mrb[0].mxu0
        %v701 = vadd.f32 %v457, %v700
        %v702 = vpop.f32.mrb[0].mxu0
        %v703 = vadd.f32 %v461, %v702
        %704 = vmatprep.mubr.f32.mxu0 0.0
        %705 = vmatmul.mubr.f32.gmra.mrb[0].mxu0 %v486
        %v706 = vpop.f32.mrb[0].mxu0
        %v707 = vadd.f32 %v457, %v706
        %v708 = vpop.f32.mrb[0].mxu0
        %v709 = vadd.f32 %v461, %v708
        %710 = vmatprep.mubr.f32.mxu0 0.0
        %711 = vmatmul.mubr.f32.gmra.mrb[0].mxu0 %v489
        %v712 = vpop.f32.mrb[0].mxu0
        %v713 = vadd.f32 %v457, %v712
        %v714 = vpop.f32.mrb[0].mxu0
        %v715 = vadd.f32 %v461, %v714
        %716 = vdwg.mxu0
        %717 = vst [vmem:[#allocation2] sm:$0xff] %v558
        %718 = vst [vmem:[#allocation2 + $0x8] sm:$0xff] %v560
        %719 = vst [vmem:[#allocation2 + $0x10] sm:$0xff] %v671
        %720 = vst [vmem:[#allocation2 + $0x18] sm:$0xff] %v673
        %721 = vst [vmem:[#allocation2 + $0x20] sm:$0xff] %v564
        %722 = vst [vmem:[#allocation2 + $0x28] sm:$0xff] %v566
        %723 = vst [vmem:[#allocation2 + $0x30] sm:$0xff] %v677
        %724 = vst [vmem:[#allocation2 + $0x38] sm:$0xff] %v679
        %725 = vst [vmem:[#allocation2 + $0x40] sm:$0xff] %v570
        %726 = vst [vmem:[#allocation2 + $0x48] sm:$0xff] %v572
        %727 = vst [vmem:[#allocation2 + $0x50] sm:$0xff] %v683
        %728 = vst [vmem:[#allocation2 + $0x58] sm:$0xff] %v685
        %729 = vst [vmem:[#allocation2 + $0x60] sm:$0xff] %v576
        %730 = vst [vmem:[#allocation2 + $0x68] sm:$0xff] %v578
        %731 = vst [vmem:[#allocation2 + $0x70] sm:$0xff] %v689
        %732 = vst [vmem:[#allocation2 + $0x78] sm:$0xff] %v691
        %733 = vst [vmem:[#allocation2 + $0x80] sm:$0xff] %v582
        %734 = vst [vmem:[#allocation2 + $0x88] sm:$0xff] %v584
        %735 = vst [vmem:[#allocation2 + $0x90] sm:$0xff] %v695
        %736 = vst [vmem:[#allocation2 + $0x98] sm:$0xff] %v697
        %737 = vst [vmem:[#allocation2 + $0xa0] sm:$0xff] %v588
        %738 = vst [vmem:[#allocation2 + $0xa8] sm:$0xff] %v590
        %739 = vst [vmem:[#allocation2 + $0xb0] sm:$0xff] %v701
        %740 = vst [vmem:[#allocation2 + $0xb8] sm:$0xff] %v703
        %741 = vst [vmem:[#allocation2 + $0xc0] sm:$0xff] %v594
        %742 = vst [vmem:[#allocation2 + $0xc8] sm:$0xff] %v596
        %743 = vst [vmem:[#allocation2 + $0xd0] sm:$0xff] %v707
        %744 = vst [vmem:[#allocation2 + $0xd8] sm:$0xff] %v709
        %745 = vst [vmem:[#allocation2 + $0xe0] sm:$0xff] %v600
        %746 = vst [vmem:[#allocation2 + $0xe8] sm:$0xff] %v602
        %747 = vst [vmem:[#allocation2 + $0xf0] sm:$0xff] %v713
        %748 = vst [vmem:[#allocation2 + $0xf8] sm:$0xff] %v715
        %v749 = vld [vmem:[#allocation5] sm:$0xff]
        %p750 = scmp.eq.s32.totalorder %s30, 0
        // Predicated region
        $region65: #{tpu_custom_call.1} parent=39 // pred_check
          %p751 = pneg %p750
        $region66: #{tpu_custom_call.1} parent=39 // pred_check_branch
          %753 = sbr.rel (%p751) target = $region68
        $region67: #{tpu_custom_call.1} parent=39 // pred_region
          %s754 = smul.u32 %s31, 8
          %v755 = vld [vmem:[#allocation3] sm:$0xff]
          %v756 = vld [vmem:[#allocation4] sm:$0xff]
          %s757 = smul.u32 0, 4
          %s758 = smul.addr %s757, 8
          %s759 = scalar_lea.vmem [#allocation2], %s758
          %v760 = vld [vmem:[%s759] sm:$0xff]
          %v761 = vld [vmem:[%s759 + $0x8] sm:$0xff]
          %v762 = vld [vmem:[%s759 + $0x10] sm:$0xff]
          %v763 = vld [vmem:[%s759 + $0x18] sm:$0xff]
          %v764 = vld [vmem:[%s360] sm:$0xff]
          %v765 = vld [vmem:[%s360 + $0x8] sm:$0xff]
          %v766 = vld [vmem:[%s360 + $0x10] sm:$0xff]
          %v767 = vld [vmem:[%s360 + $0x18] sm:$0xff]
          %v768 = vld [vmem:[%s360 + $0x20] sm:$0xff]
          %v769 = vld [vmem:[%s360 + $0x28] sm:$0xff]
          %v770 = vld [vmem:[%s360 + $0x30] sm:$0xff]
          %v771 = vld [vmem:[%s360 + $0x38] sm:$0xff]
          %v772 = vld [vmem:[%s360 + $0x40] sm:$0xff]
          %v773 = vld [vmem:[%s360 + $0x48] sm:$0xff]
          %v774 = vld [vmem:[%s360 + $0x50] sm:$0xff]
          %v775 = vld [vmem:[%s360 + $0x58] sm:$0xff]
          %v776 = vld [vmem:[%s360 + $0x60] sm:$0xff]
          %v777 = vld [vmem:[%s360 + $0x68] sm:$0xff]
          %v778 = vld [vmem:[%s360 + $0x70] sm:$0xff]
          %v779 = vld [vmem:[%s360 + $0x78] sm:$0xff]
          %v780 = vld [vmem:[%s360 + $0x80] sm:$0xff]
          %v781 = vld [vmem:[%s360 + $0x88] sm:$0xff]
          %v782 = vld [vmem:[%s360 + $0x90] sm:$0xff]
          %v783 = vld [vmem:[%s360 + $0x98] sm:$0xff]
          %v784 = vld [vmem:[%s360 + $0xa0] sm:$0xff]
          %v785 = vld [vmem:[%s360 + $0xa8] sm:$0xff]
          %v786 = vld [vmem:[%s360 + $0xb0] sm:$0xff]
          %v787 = vld [vmem:[%s360 + $0xb8] sm:$0xff]
          %v788 = vld [vmem:[%s360 + $0xc0] sm:$0xff]
          %v789 = vld [vmem:[%s360 + $0xc8] sm:$0xff]
          %v790 = vld [vmem:[%s360 + $0xd0] sm:$0xff]
          %v791 = vld [vmem:[%s360 + $0xd8] sm:$0xff]
          %v792 = vld [vmem:[%s360 + $0xe0] sm:$0xff]
          %v793 = vld [vmem:[%s360 + $0xe8] sm:$0xff]
          %v794 = vld [vmem:[%s360 + $0xf0] sm:$0xff]
          %v795 = vld [vmem:[%s360 + $0xf8] sm:$0xff]
          %v796 = vld [vmem:[%s360 + $0x100] sm:$0xff]
          %v797 = vld [vmem:[%s360 + $0x108] sm:$0xff]
          %v798 = vld [vmem:[%s360 + $0x110] sm:$0xff]
          %v799 = vld [vmem:[%s360 + $0x118] sm:$0xff]
          %v800 = vld [vmem:[%s360 + $0x120] sm:$0xff]
          %v801 = vld [vmem:[%s360 + $0x128] sm:$0xff]
          %v802 = vld [vmem:[%s360 + $0x130] sm:$0xff]
          %v803 = vld [vmem:[%s360 + $0x138] sm:$0xff]
          %v804 = vld [vmem:[%s360 + $0x140] sm:$0xff]
          %v805 = vld [vmem:[%s360 + $0x148] sm:$0xff]
          %v806 = vld [vmem:[%s360 + $0x150] sm:$0xff]
          %v807 = vld [vmem:[%s360 + $0x158] sm:$0xff]
          %v808 = vld [vmem:[%s360 + $0x160] sm:$0xff]
          %v809 = vld [vmem:[%s360 + $0x168] sm:$0xff]
          %v810 = vld [vmem:[%s360 + $0x170] sm:$0xff]
          %v811 = vld [vmem:[%s360 + $0x178] sm:$0xff]
          %v812 = vld [vmem:[%s360 + $0x180] sm:$0xff]
          %v813 = vld [vmem:[%s360 + $0x188] sm:$0xff]
          %v814 = vld [vmem:[%s360 + $0x190] sm:$0xff]
          %v815 = vld [vmem:[%s360 + $0x198] sm:$0xff]
          %v816 = vld [vmem:[%s360 + $0x1a0] sm:$0xff]
          %v817 = vld [vmem:[%s360 + $0x1a8] sm:$0xff]
          %v818 = vld [vmem:[%s360 + $0x1b0] sm:$0xff]
          %v819 = vld [vmem:[%s360 + $0x1b8] sm:$0xff]
          %v820 = vld [vmem:[%s360 + $0x1c0] sm:$0xff]
          %v821 = vld [vmem:[%s360 + $0x1c8] sm:$0xff]
          %v822 = vld [vmem:[%s360 + $0x1d0] sm:$0xff]
          %v823 = vld [vmem:[%s360 + $0x1d8] sm:$0xff]
          %v824 = vld [vmem:[%s360 + $0x1e0] sm:$0xff]
          %v825 = vld [vmem:[%s360 + $0x1e8] sm:$0xff]
          %v826 = vld [vmem:[%s360 + $0x1f0] sm:$0xff]
          %v827 = vld [vmem:[%s360 + $0x1f8] sm:$0xff]
          %828 = vmatprep.subr.mxu0 %v765
          %829 = vmatpush1.msra.mxu0 %v764
          %830 = vmatprep.subr.mxu0 %v769
          %831 = vmatpush1.msra.mxu0 %v768
          %832 = vmatprep.subr.mxu0 %v773
          %833 = vmatpush1.msra.mxu0 %v772
          %834 = vmatprep.subr.mxu0 %v777
          %835 = vmatpush1.msra.mxu0 %v776
          %836 = vmatprep.subr.mxu0 %v781
          %837 = vmatpush1.msra.mxu0 %v780
          %838 = vmatprep.subr.mxu0 %v785
          %839 = vmatpush1.msra.mxu0 %v784
          %840 = vmatprep.subr.mxu0 %v789
          %841 = vmatpush1.msra.mxu0 %v788
          %842 = vmatprep.subr.mxu0 %v793
          %843 = vmatpush1.msra.mxu0 %v792
          %844 = vmatprep.subr.mxu0 %v797
          %845 = vmatpush1.msra.mxu0 %v796
          %846 = vmatprep.subr.mxu0 %v801
          %847 = vmatpush1.msra.mxu0 %v800
          %848 = vmatprep.subr.mxu0 %v805
          %849 = vmatpush1.msra.mxu0 %v804
          %850 = vmatprep.subr.mxu0 %v809
          %851 = vmatpush1.msra.mxu0 %v808
          %852 = vmatprep.subr.mxu0 %v813
          %853 = vmatpush1.msra.mxu0 %v812
          %854 = vmatprep.subr.mxu0 %v817
          %855 = vmatpush1.msra.mxu0 %v816
          %856 = vmatprep.subr.mxu0 %v821
          %857 = vmatpush1.msra.mxu0 %v820
          %858 = vmatprep.subr.mxu0 %v825
          %859 = vmatpush1.msra.mxu0 %v824
          %860 = vmatprep.subr.mxu0 0.0
          %861 = vmatpush1.msra.mxu0 0.0
          %862 = vmatprep.subr.mxu0 0.0
          %863 = vmatpush1.msra.mxu0 0.0
          %864 = vmatprep.subr.mxu0 0.0
          %865 = vmatpush1.msra.mxu0 0.0
          %866 = vmatprep.subr.mxu0 0.0
          %867 = vmatpush1.msra.mxu0 0.0
          %868 = vmatprep.subr.mxu0 0.0
          %869 = vmatpush1.msra.mxu0 0.0
          %870 = vmatprep.subr.mxu0 0.0
          %871 = vmatpush1.msra.mxu0 0.0
          %872 = vmatprep.subr.mxu0 0.0
          %873 = vmatpush1.msra.mxu0 0.0
          %874 = vmatprep.subr.mxu0 0.0
          %875 = vmatpush1.msra.mxu0 0.0
          %876 = vmatprep.subr.mxu0 0.0
          %877 = vmatpush1.msra.mxu0 0.0
          %878 = vmatprep.subr.mxu0 0.0
          %879 = vmatpush1.msra.mxu0 0.0
          %880 = vmatprep.subr.mxu0 0.0
          %881 = vmatpush1.msra.mxu0 0.0
          %882 = vmatprep.subr.mxu0 0.0
          %883 = vmatpush1.msra.mxu0 0.0
          %884 = vmatprep.subr.mxu0 0.0
          %885 = vmatpush1.msra.mxu0 0.0
          %886 = vmatprep.subr.mxu0 0.0
          %887 = vmatpush1.msra.mxu0 0.0
          %888 = vmatprep.subr.mxu0 0.0
          %889 = vmatpush1.msra.mxu0 0.0
          %890 = vmatprep.subr.mxu0 0.0
          %891 = vmatpush1.msra.mxu0 0.0
          %892 = vmatprep.mubr.f32.mxu0 0.0
          %893 = vmatmul.mubr.f32.gmra.mrb[0].mxu0 %v755
          %v894 = vpop.f32.mrb[0].mxu0
          %v895 = vadd.f32 0.0, %v894
          %v896 = vpop.f32.mrb[0].mxu0
          %v897 = vadd.f32 0.0, %v896
          %898 = vdwg.mxu0
          %899 = vmatprep.subr.mxu0 %v767
          %900 = vmatpush1.msra.mxu0 %v766
          %901 = vmatprep.subr.mxu0 %v771
          %902 = vmatpush1.msra.mxu0 %v770
          %903 = vmatprep.subr.mxu0 %v775
          %904 = vmatpush1.msra.mxu0 %v774
          %905 = vmatprep.subr.mxu0 %v779
          %906 = vmatpush1.msra.mxu0 %v778
          %907 = vmatprep.subr.mxu0 %v783
          %908 = vmatpush1.msra.mxu0 %v782
          %909 = vmatprep.subr.mxu0 %v787
          %910 = vmatpush1.msra.mxu0 %v786
          %911 = vmatprep.subr.mxu0 %v791
          %912 = vmatpush1.msra.mxu0 %v790
          %913 = vmatprep.subr.mxu0 %v795
          %914 = vmatpush1.msra.mxu0 %v794
          %915 = vmatprep.subr.mxu0 %v799
          %916 = vmatpush1.msra.mxu0 %v798
          %917 = vmatprep.subr.mxu0 %v803
          %918 = vmatpush1.msra.mxu0 %v802
          %919 = vmatprep.subr.mxu0 %v807
          %920 = vmatpush1.msra.mxu0 %v806
          %921 = vmatprep.subr.mxu0 %v811
          %922 = vmatpush1.msra.mxu0 %v810
          %923 = vmatprep.subr.mxu0 %v815
          %924 = vmatpush1.msra.mxu0 %v814
          %925 = vmatprep.subr.mxu0 %v819
          %926 = vmatpush1.msra.mxu0 %v818
          %927 = vmatprep.subr.mxu0 %v823
          %928 = vmatpush1.msra.mxu0 %v822
          %929 = vmatprep.subr.mxu0 %v827
          %930 = vmatpush1.msra.mxu0 %v826
          %931 = vmatprep.subr.mxu0 0.0
          %932 = vmatpush1.msra.mxu0 0.0
          %933 = vmatprep.subr.mxu0 0.0
          %934 = vmatpush1.msra.mxu0 0.0
          %935 = vmatprep.subr.mxu0 0.0
          %936 = vmatpush1.msra.mxu0 0.0
          %937 = vmatprep.subr.mxu0 0.0
          %938 = vmatpush1.msra.mxu0 0.0
          %939 = vmatprep.subr.mxu0 0.0
          %940 = vmatpush1.msra.mxu0 0.0
          %941 = vmatprep.subr.mxu0 0.0
          %942 = vmatpush1.msra.mxu0 0.0
          %943 = vmatprep.subr.mxu0 0.0
          %944 = vmatpush1.msra.mxu0 0.0
          %945 = vmatprep.subr.mxu0 0.0
          %946 = vmatpush1.msra.mxu0 0.0
          %947 = vmatprep.subr.mxu0 0.0
          %948 = vmatpush1.msra.mxu0 0.0
          %949 = vmatprep.subr.mxu0 0.0
          %950 = vmatpush1.msra.mxu0 0.0
          %951 = vmatprep.subr.mxu0 0.0
          %952 = vmatpush1.msra.mxu0 0.0
          %953 = vmatprep.subr.mxu0 0.0
          %954 = vmatpush1.msra.mxu0 0.0
          %955 = vmatprep.subr.mxu0 0.0
          %956 = vmatpush1.msra.mxu0 0.0
          %957 = vmatprep.subr.mxu0 0.0
          %958 = vmatpush1.msra.mxu0 0.0
          %959 = vmatprep.subr.mxu0 0.0
          %960 = vmatpush1.msra.mxu0 0.0
          %961 = vmatprep.subr.mxu0 0.0
          %962 = vmatpush1.msra.mxu0 0.0
          %963 = vmatprep.mubr.f32.mxu0 0.0
          %964 = vmatmul.mubr.f32.gmra.mrb[0].mxu0 %v755
          %v965 = vpop.f32.mrb[0].mxu0
          %v966 = vadd.f32 0.0, %v965
          %v967 = vpop.f32.mrb[0].mxu0
          %v968 = vadd.f32 0.0, %v967
          %969 = vdwg.mxu0
          %v970 = vadd.f32 %v760, %v895
          %v971 = vadd.f32 %v761, %v897
          %v972 = vadd.f32 %v762, %v966
          %v973 = vadd.f32 %v763, %v968
          %v974 = vmul.f32 %v970, 0.5
          %v975 = vtanh.pop %v974
          %v976 = vmul.f32 %v975, 0.5
          %v977 = vadd.f32 %v976, 0.5
          %v978 = vmul.f32 %v971, 0.5
          %v979 = vtanh.pop %v978
          %v980 = vmul.f32 %v979, 0.5
          %v981 = vadd.f32 %v980, 0.5
          %v982 = vtanh.pop %v972
          %v983 = vmul.f32 %v973, 0.5
          %v984 = vtanh.pop %v983
          %v985 = vmul.f32 %v984, 0.5
          %v986 = vadd.f32 %v985, 0.5
          %v987 = vmul.f32 %v981, %v756
          %v988 = vmul.f32 %v977, %v982
          %v989 = vadd.f32 %v987, %v988
          %v990 = vtanh.pop %v989
          %v991 = vmul.f32 %v986, %v990
          %v992 = vstv %s754
          %vm993 = vcmp.gt.s32.totalorder %v749, %v992
          %v994 = vsel %vm993, 1, 0
          %995 = vset.pattern.permute.xlu0 0
          %996 = vperm.xlu0 %995, %v994
          %v997 = vpop.permute.xlu0 %996
          %vm998 = vcmp.eq.s32.totalorder %v997, 1
          %v999 = vsel %vm998, %v991, %v755
          %v1000 = vsel %vm998, %v989, %v756
          %v1001 = vsel %vm998, %v991, 0.0
          %1002 = vst [vmem:[%s401] sm:$0xff] %v1001
          %s1003 = sadd.s32 %s754, 1
          %s1004 = smul.u32 1, 4
          %s1005 = smul.addr %s1004, 8
          %s1006 = scalar_lea.vmem [#allocation2], %s1005
          %v1007 = vld [vmem:[%s1006] sm:$0xff]
          %v1008 = vld [vmem:[%s1006 + $0x8] sm:$0xff]
          %v1009 = vld [vmem:[%s1006 + $0x10] sm:$0xff]
          %v1010 = vld [vmem:[%s1006 + $0x18] sm:$0xff]
          %v1011 = vld [vmem:[%s360] sm:$0xff]
          %v1012 = vld [vmem:[%s360 + $0x8] sm:$0xff]
          %v1013 = vld [vmem:[%s360 + $0x10] sm:$0xff]
          %v1014 = vld [vmem:[%s360 + $0x18] sm:$0xff]
          %v1015 = vld [vmem:[%s360 + $0x20] sm:$0xff]
          %v1016 = vld [vmem:[%s360 + $0x28] sm:$0xff]
          %v1017 = vld [vmem:[%s360 + $0x30] sm:$0xff]
          %v1018 = vld [vmem:[%s360 + $0x38] sm:$0xff]
          %v1019 = vld [vmem:[%s360 + $0x40] sm:$0xff]
          %v1020 = vld [vmem:[%s360 + $0x48] sm:$0xff]
          %v1021 = vld [vmem:[%s360 + $0x50] sm:$0xff]
          %v1022 = vld [vmem:[%s360 + $0x58] sm:$0xff]
          %v1023 = vld [vmem:[%s360 + $0x60] sm:$0xff]
          %v1024 = vld [vmem:[%s360 + $0x68] sm:$0xff]
          %v1025 = vld [vmem:[%s360 + $0x70] sm:$0xff]
          %v1026 = vld [vmem:[%s360 + $0x78] sm:$0xff]
          %v1027 = vld [vmem:[%s360 + $0x80] sm:$0xff]
          %v1028 = vld [vmem:[%s360 + $0x88] sm:$0xff]
          %v1029 = vld [vmem:[%s360 + $0x90] sm:$0xff]
          %v1030 = vld [vmem:[%s360 + $0x98] sm:$0xff]
          %v1031 = vld [vmem:[%s360 + $0xa0] sm:$0xff]
          %v1032 = vld [vmem:[%s360 + $0xa8] sm:$0xff]
          %v1033 = vld [vmem:[%s360 + $0xb0] sm:$0xff]
          %v1034 = vld [vmem:[%s360 + $0xb8] sm:$0xff]
          %v1035 = vld [vmem:[%s360 + $0xc0] sm:$0xff]
          %v1036 = vld [vmem:[%s360 + $0xc8] sm:$0xff]
          %v1037 = vld [vmem:[%s360 + $0xd0] sm:$0xff]
          %v1038 = vld [vmem:[%s360 + $0xd8] sm:$0xff]
          %v1039 = vld [vmem:[%s360 + $0xe0] sm:$0xff]
          %v1040 = vld [vmem:[%s360 + $0xe8] sm:$0xff]
          %v1041 = vld [vmem:[%s360 + $0xf0] sm:$0xff]
          %v1042 = vld [vmem:[%s360 + $0xf8] sm:$0xff]
          %v1043 = vld [vmem:[%s360 + $0x100] sm:$0xff]
          %v1044 = vld [vmem:[%s360 + $0x108] sm:$0xff]
          %v1045 = vld [vmem:[%s360 + $0x110] sm:$0xff]
          %v1046 = vld [vmem:[%s360 + $0x118] sm:$0xff]
          %v1047 = vld [vmem:[%s360 + $0x120] sm:$0xff]
          %v1048 = vld [vmem:[%s360 + $0x128] sm:$0xff]
          %v1049 = vld [vmem:[%s360 + $0x130] sm:$0xff]
          %v1050 = vld [vmem:[%s360 + $0x138] sm:$0xff]
          %v1051 = vld [vmem:[%s360 + $0x140] sm:$0xff]
          %v1052 = vld [vmem:[%s360 + $0x148] sm:$0xff]
          %v1053 = vld [vmem:[%s360 + $0x150] sm:$0xff]
          %v1054 = vld [vmem:[%s360 + $0x158] sm:$0xff]
          %v1055 = vld [vmem:[%s360 + $0x160] sm:$0xff]
          %v1056 = vld [vmem:[%s360 + $0x168] sm:$0xff]
          %v1057 = vld [vmem:[%s360 + $0x170] sm:$0xff]
          %v1058 = vld [vmem:[%s360 + $0x178] sm:$0xff]
          %v1059 = vld [vmem:[%s360 + $0x180] sm:$0xff]
          %v1060 = vld [vmem:[%s360 + $0x188] sm:$0xff]
          %v1061 = vld [vmem:[%s360 + $0x190] sm:$0xff]
          %v1062 = vld [vmem:[%s360 + $0x198] sm:$0xff]
          %v1063 = vld [vmem:[%s360 + $0x1a0] sm:$0xff]
          %v1064 = vld [vmem:[%s360 + $0x1a8] sm:$0xff]
          %v1065 = vld [vmem:[%s360 + $0x1b0] sm:$0xff]
          %v1066 = vld [vmem:[%s360 + $0x1b8] sm:$0xff]
          %v1067 = vld [vmem:[%s360 + $0x1c0] sm:$0xff]
          %v1068 = vld [vmem:[%s360 + $0x1c8] sm:$0xff]
          %v1069 = vld [vmem:[%s360 + $0x1d0] sm:$0xff]
          %v1070 = vld [vmem:[%s360 + $0x1d8] sm:$0xff]
          %v1071 = vld [vmem:[%s360 + $0x1e0] sm:$0xff]
          %v1072 = vld [vmem:[%s360 + $0x1e8] sm:$0xff]
          %v1073 = vld [vmem:[%s360 + $0x1f0] sm:$0xff]
          %v1074 = vld [vmem:[%s360 + $0x1f8] sm:$0xff]
          %1075 = vmatprep.subr.mxu0 %v1012
          %1076 = vmatpush1.msra.mxu0 %v1011
          %1077 = vmatprep.subr.mxu0 %v1016
          %1078 = vmatpush1.msra.mxu0 %v1015
          %1079 = vmatprep.subr.mxu0 %v1020
          %1080 = vmatpush1.msra.mxu0 %v1019
          %1081 = vmatprep.subr.mxu0 %v1024
          %1082 = vmatpush1.msra.mxu0 %v1023
          %1083 = vmatprep.subr.mxu0 %v1028
          %1084 = vmatpush1.msra.mxu0 %v1027
          %1085 = vmatprep.subr.mxu0 %v1032
          %1086 = vmatpush1.msra.mxu0 %v1031
          %1087 = vmatprep.subr.mxu0 %v1036
          %1088 = vmatpush1.msra.mxu0 %v1035
          %1089 = vmatprep.subr.mxu0 %v1040
          %1090 = vmatpush1.msra.mxu0 %v1039
          %1091 = vmatprep.subr.mxu0 %v1044
          %1092 = vmatpush1.msra.mxu0 %v1043
          %1093 = vmatprep.subr.mxu0 %v1048
          %1094 = vmatpush1.msra.mxu0 %v1047
          %1095 = vmatprep.subr.mxu0 %v1052
          %1096 = vmatpush1.msra.mxu0 %v1051
          %1097 = vmatprep.subr.mxu0 %v1056
          %1098 = vmatpush1.msra.mxu0 %v1055
          %1099 = vmatprep.subr.mxu0 %v1060
          %1100 = vmatpush1.msra.mxu0 %v1059
          %1101 = vmatprep.subr.mxu0 %v1064
          %1102 = vmatpush1.msra.mxu0 %v1063
          %1103 = vmatprep.subr.mxu0 %v1068
          %1104 = vmatpush1.msra.mxu0 %v1067
          %1105 = vmatprep.subr.mxu0 %v1072
          %1106 = vmatpush1.msra.mxu0 %v1071
          %1107 = vmatprep.subr.mxu0 0.0
          %1108 = vmatpush1.msra.mxu0 0.0
          %1109 = vmatprep.subr.mxu0 0.0
          %1110 = vmatpush1.msra.mxu0 0.0
          %1111 = vmatprep.subr.mxu0 0.0
          %1112 = vmatpush1.msra.mxu0 0.0
          %1113 = vmatprep.subr.mxu0 0.0
          %1114 = vmatpush1.msra.mxu0 0.0
          %1115 = vmatprep.subr.mxu0 0.0
          %1116 = vmatpush1.msra.mxu0 0.0
          %1117 = vmatprep.subr.mxu0 0.0
          %1118 = vmatpush1.msra.mxu0 0.0
          %1119 = vmatprep.subr.mxu0 0.0
          %1120 = vmatpush1.msra.mxu0 0.0
          %1121 = vmatprep.subr.mxu0 0.0
          %1122 = vmatpush1.msra.mxu0 0.0
          %1123 = vmatprep.subr.mxu0 0.0
          %1124 = vmatpush1.msra.mxu0 0.0
          %1125 = vmatprep.subr.mxu0 0.0
          %1126 = vmatpush1.msra.mxu0 0.0
          %1127 = vmatprep.subr.mxu0 0.0
          %1128 = vmatpush1.msra.mxu0 0.0
          %1129 = vmatprep.subr.mxu0 0.0
          %1130 = vmatpush1.msra.mxu0 0.0
          %1131 = vmatprep.subr.mxu0 0.0
          %1132 = vmatpush1.msra.mxu0 0.0
          %1133 = vmatprep.subr.mxu0 0.0
          %1134 = vmatpush1.msra.mxu0 0.0
          %1135 = vmatprep.subr.mxu0 0.0
          %1136 = vmatpush1.msra.mxu0 0.0
          %1137 = vmatprep.subr.mxu0 0.0
          %1138 = vmatpush1.msra.mxu0 0.0
          %1139 = vmatprep.mubr.f32.mxu0 0.0
          %1140 = vmatmul.mubr.f32.gmra.mrb[0].mxu0 %v999
          %v1141 = vpop.f32.mrb[0].mxu0
          %v1142 = vadd.f32 0.0, %v1141
          %v1143 = vpop.f32.mrb[0].mxu0
          %v1144 = vadd.f32 0.0, %v1143
          %1145 = vdwg.mxu0
          %1146 = vmatprep.subr.mxu0 %v1014
          %1147 = vmatpush1.msra.mxu0 %v1013
          %1148 = vmatprep.subr.mxu0 %v1018
          %1149 = vmatpush1.msra.mxu0 %v1017
          %1150 = vmatprep.subr.mxu0 %v1022
          %1151 = vmatpush1.msra.mxu0 %v1021
          %1152 = vmatprep.subr.mxu0 %v1026
          %1153 = vmatpush1.msra.mxu0 %v1025
          %1154 = vmatprep.subr.mxu0 %v1030
          %1155 = vmatpush1.msra.mxu0 %v1029
          %1156 = vmatprep.subr.mxu0 %v1034
          %1157 = vmatpush1.msra.mxu0 %v1033
          %1158 = vmatprep.subr.mxu0 %v1038
          %1159 = vmatpush1.msra.mxu0 %v1037
          %1160 = vmatprep.subr.mxu0 %v1042
          %1161 = vmatpush1.msra.mxu0 %v1041
          %1162 = vmatprep.subr.mxu0 %v1046
          %1163 = vmatpush1.msra.mxu0 %v1045
          %1164 = vmatprep.subr.mxu0 %v1050
          %1165 = vmatpush1.msra.mxu0 %v1049
          %1166 = vmatprep.subr.mxu0 %v1054
          %1167 = vmatpush1.msra.mxu0 %v1053
          %1168 = vmatprep.subr.mxu0 %v1058
          %1169 = vmatpush1.msra.mxu0 %v1057
          %1170 = vmatprep.subr.mxu0 %v1062
          %1171 = vmatpush1.msra.mxu0 %v1061
          %1172 = vmatprep.subr.mxu0 %v1066
          %1173 = vmatpush1.msra.mxu0 %v1065
          %1174 = vmatprep.subr.mxu0 %v1070
          %1175 = vmatpush1.msra.mxu0 %v1069
          %1176 = vmatprep.subr.mxu0 %v1074
          %1177 = vmatpush1.msra.mxu0 %v1073
          %1178 = vmatprep.subr.mxu0 0.0
          %1179 = vmatpush1.msra.mxu0 0.0
          %1180 = vmatprep.subr.mxu0 0.0
          %1181 = vmatpush1.msra.mxu0 0.0
          %1182 = vmatprep.subr.mxu0 0.0
          %1183 = vmatpush1.msra.mxu0 0.0
          %1184 = vmatprep.subr.mxu0 0.0
          %1185 = vmatpush1.msra.mxu0 0.0
          %1186 = vmatprep.subr.mxu0 0.0
          %1187 = vmatpush1.msra.mxu0 0.0
          %1188 = vmatprep.subr.mxu0 0.0
          %1189 = vmatpush1.msra.mxu0 0.0
          %1190 = vmatprep.subr.mxu0 0.0
          %1191 = vmatpush1.msra.mxu0 0.0
          %1192 = vmatprep.subr.mxu0 0.0
          %1193 = vmatpush1.msra.mxu0 0.0
          %1194 = vmatprep.subr.mxu0 0.0
          %1195 = vmatpush1.msra.mxu0 0.0
          %1196 = vmatprep.subr.mxu0 0.0
          %1197 = vmatpush1.msra.mxu0 0.0
          %1198 = vmatprep.subr.mxu0 0.0
          %1199 = vmatpush1.msra.mxu0 0.0
          %1200 = vmatprep.subr.mxu0 0.0
          %1201 = vmatpush1.msra.mxu0 0.0
          %1202 = vmatprep.subr.mxu0 0.0
          %1203 = vmatpush1.msra.mxu0 0.0
          %1204 = vmatprep.subr.mxu0 0.0
          %1205 = vmatpush1.msra.mxu0 0.0
          %1206 = vmatprep.subr.mxu0 0.0
          %1207 = vmatpush1.msra.mxu0 0.0
          %1208 = vmatprep.subr.mxu0 0.0
          %1209 = vmatpush1.msra.mxu0 0.0
          %1210 = vmatprep.mubr.f32.mxu0 0.0
          %1211 = vmatmul.mubr.f32.gmra.mrb[0].mxu0 %v999
          %v1212 = vpop.f32.mrb[0].mxu0
          %v1213 = vadd.f32 0.0, %v1212
          %v1214 = vpop.f32.mrb[0].mxu0
          %v1215 = vadd.f32 0.0, %v1214
          %1216 = vdwg.mxu0
          %v1217 = vadd.f32 %v1007, %v1142
          %v1218 = vadd.f32 %v1008, %v1144
          %v1219 = vadd.f32 %v1009, %v1213
          %v1220 = vadd.f32 %v1010, %v1215
          %v1221 = vmul.f32 %v1217, 0.5
          %v1222 = vtanh.pop %v1221
          %v1223 = vmul.f32 %v1222, 0.5
          %v1224 = vadd.f32 %v1223, 0.5
          %v1225 = vmul.f32 %v1218, 0.5
          %v1226 = vtanh.pop %v1225
          %v1227 = vmul.f32 %v1226, 0.5
          %v1228 = vadd.f32 %v1227, 0.5
          %v1229 = vtanh.pop %v1219
          %v1230 = vmul.f32 %v1220, 0.5
          %v1231 = vtanh.pop %v1230
          %v1232 = vmul.f32 %v1231, 0.5
          %v1233 = vadd.f32 %v1232, 0.5
          %v1234 = vmul.f32 %v1228, %v1000
          %v1235 = vmul.f32 %v1224, %v1229
          %v1236 = vadd.f32 %v1234, %v1235
          %v1237 = vtanh.pop %v1236
          %v1238 = vmul.f32 %v1233, %v1237
          %v1239 = vstv %s1003
          %vm1240 = vcmp.gt.s32.totalorder %v749, %v1239
          %v1241 = vsel %vm1240, 1, 0
          %1242 = vset.pattern.permute.xlu0 0
          %1243 = vperm.xlu0 %1242, %v1241
          %v1244 = vpop.permute.xlu0 %1243
          %vm1245 = vcmp.eq.s32.totalorder %v1244, 1
          %v1246 = vsel %vm1245, %v1238, %v999
          %v1247 = vsel %vm1245, %v1236, %v1000
          %v1248 = vsel %vm1245, %v1238, 0.0
          %s1249 = scalar_lea.vmem %s401, 8 [#allocation14]
          %1250 = vst [vmem:[%s1249] sm:$0xff] %v1248
          %s1251 = sadd.s32 %s754, 2
          %s1252 = smul.u32 2, 4
          %s1253 = smul.addr %s1252, 8
          %s1254 = scalar_lea.vmem [#allocation2], %s1253
          %v1255 = vld [vmem:[%s1254] sm:$0xff]
          %v1256 = vld [vmem:[%s1254 + $0x8] sm:$0xff]
          %v1257 = vld [vmem:[%s1254 + $0x10] sm:$0xff]
          %v1258 = vld [vmem:[%s1254 + $0x18] sm:$0xff]
          %v1259 = vld [vmem:[%s360] sm:$0xff]
          %v1260 = vld [vmem:[%s360 + $0x8] sm:$0xff]
          %v1261 = vld [vmem:[%s360 + $0x10] sm:$0xff]
          %v1262 = vld [vmem:[%s360 + $0x18] sm:$0xff]
          %v1263 = vld [vmem:[%s360 + $0x20] sm:$0xff]
          %v1264 = vld [vmem:[%s360 + $0x28] sm:$0xff]
          %v1265 = vld [vmem:[%s360 + $0x30] sm:$0xff]
          %v1266 = vld [vmem:[%s360 + $0x38] sm:$0xff]
          %v1267 = vld [vmem:[%s360 + $0x40] sm:$0xff]
          %v1268 = vld [vmem:[%s360 + $0x48] sm:$0xff]
          %v1269 = vld [vmem:[%s360 + $0x50] sm:$0xff]
          %v1270 = vld [vmem:[%s360 + $0x58] sm:$0xff]
          %v1271 = vld [vmem:[%s360 + $0x60] sm:$0xff]
          %v1272 = vld [vmem:[%s360 + $0x68] sm:$0xff]
          %v1273 = vld [vmem:[%s360 + $0x70] sm:$0xff]
          %v1274 = vld [vmem:[%s360 + $0x78] sm:$0xff]
          %v1275 = vld [vmem:[%s360 + $0x80] sm:$0xff]
          %v1276 = vld [vmem:[%s360 + $0x88] sm:$0xff]
          %v1277 = vld [vmem:[%s360 + $0x90] sm:$0xff]
          %v1278 = vld [vmem:[%s360 + $0x98] sm:$0xff]
          %v1279 = vld [vmem:[%s360 + $0xa0] sm:$0xff]
          %v1280 = vld [vmem:[%s360 + $0xa8] sm:$0xff]
          %v1281 = vld [vmem:[%s360 + $0xb0] sm:$0xff]
          %v1282 = vld [vmem:[%s360 + $0xb8] sm:$0xff]
          %v1283 = vld [vmem:[%s360 + $0xc0] sm:$0xff]
          %v1284 = vld [vmem:[%s360 + $0xc8] sm:$0xff]
          %v1285 = vld [vmem:[%s360 + $0xd0] sm:$0xff]
          %v1286 = vld [vmem:[%s360 + $0xd8] sm:$0xff]
          %v1287 = vld [vmem:[%s360 + $0xe0] sm:$0xff]
          %v1288 = vld [vmem:[%s360 + $0xe8] sm:$0xff]
          %v1289 = vld [vmem:[%s360 + $0xf0] sm:$0xff]
          %v1290 = vld [vmem:[%s360 + $0xf8] sm:$0xff]
          %v1291 = vld [vmem:[%s360 + $0x100] sm:$0xff]
          %v1292 = vld [vmem:[%s360 + $0x108] sm:$0xff]
          %v1293 = vld [vmem:[%s360 + $0x110] sm:$0xff]
          %v1294 = vld [vmem:[%s360 + $0x118] sm:$0xff]
          %v1295 = vld [vmem:[%s360 + $0x120] sm:$0xff]
          %v1296 = vld [vmem:[%s360 + $0x128] sm:$0xff]
          %v1297 = vld [vmem:[%s360 + $0x130] sm:$0xff]
          %v1298 = vld [vmem:[%s360 + $0x138] sm:$0xff]
          %v1299 = vld [vmem:[%s360 + $0x140] sm:$0xff]
          %v1300 = vld [vmem:[%s360 + $0x148] sm:$0xff]
          %v1301 = vld [vmem:[%s360 + $0x150] sm:$0xff]
          %v1302 = vld [vmem:[%s360 + $0x158] sm:$0xff]
          %v1303 = vld [vmem:[%s360 + $0x160] sm:$0xff]
          %v1304 = vld [vmem:[%s360 + $0x168] sm:$0xff]
          %v1305 = vld [vmem:[%s360 + $0x170] sm:$0xff]
          %v1306 = vld [vmem:[%s360 + $0x178] sm:$0xff]
          %v1307 = vld [vmem:[%s360 + $0x180] sm:$0xff]
          %v1308 = vld [vmem:[%s360 + $0x188] sm:$0xff]
          %v1309 = vld [vmem:[%s360 + $0x190] sm:$0xff]
          %v1310 = vld [vmem:[%s360 + $0x198] sm:$0xff]
          %v1311 = vld [vmem:[%s360 + $0x1a0] sm:$0xff]
          %v1312 = vld [vmem:[%s360 + $0x1a8] sm:$0xff]
          %v1313 = vld [vmem:[%s360 + $0x1b0] sm:$0xff]
          %v1314 = vld [vmem:[%s360 + $0x1b8] sm:$0xff]
          %v1315 = vld [vmem:[%s360 + $0x1c0] sm:$0xff]
          %v1316 = vld [vmem:[%s360 + $0x1c8] sm:$0xff]
          %v1317 = vld [vmem:[%s360 + $0x1d0] sm:$0xff]
          %v1318 = vld [vmem:[%s360 + $0x1d8] sm:$0xff]
          %v1319 = vld [vmem:[%s360 + $0x1e0] sm:$0xff]
          %v1320 = vld [vmem:[%s360 + $0x1e8] sm:$0xff]
          %v1321 = vld [vmem:[%s360 + $0x1f0] sm:$0xff]
          %v1322 = vld [vmem:[%s360 + $0x1f8] sm:$0xff]
          %1323 = vmatprep.subr.mxu0 %v1260
          %1324 = vmatpush1.msra.mxu0 %v1259
          %1325 = vmatprep.subr.mxu0 %v1264
          %1326 = vmatpush1.msra.mxu0 %v1263
          %1327 = vmatprep.subr.mxu0 %v1268
          %1328 = vmatpush1.msra.mxu0 %v1267
          %1329 = vmatprep.subr.mxu0 %v1272
          %1330 = vmatpush1.msra.mxu0 %v1271
          %1331 = vmatprep.subr.mxu0 %v1276
          %1332 = vmatpush1.msra.mxu0 %v1275
          %1333 = vmatprep.subr.mxu0 %v1280
          %1334 = vmatpush1.msra.mxu0 %v1279
          %1335 = vmatprep.subr.mxu0 %v1284
          %1336 = vmatpush1.msra.mxu0 %v1283
          %1337 = vmatprep.subr.mxu0 %v1288
          %1338 = vmatpush1.msra.mxu0 %v1287
          %1339 = vmatprep.subr.mxu0 %v1292
          %1340 = vmatpush1.msra.mxu0 %v1291
          %1341 = vmatprep.subr.mxu0 %v1296
          %1342 = vmatpush1.msra.mxu0 %v1295
          %1343 = vmatprep.subr.mxu0 %v1300
          %1344 = vmatpush1.msra.mxu0 %v1299
          %1345 = vmatprep.subr.mxu0 %v1304
          %1346 = vmatpush1.msra.mxu0 %v1303
          %1347 = vmatprep.subr.mxu0 %v1308
          %1348 = vmatpush1.msra.mxu0 %v1307
          %1349 = vmatprep.subr.mxu0 %v1312
          %1350 = vmatpush1.msra.mxu0 %v1311
          %1351 = vmatprep.subr.mxu0 %v1316
          %1352 = vmatpush1.msra.mxu0 %v1315
          %1353 = vmatprep.subr.mxu0 %v1320
          %1354 = vmatpush1.msra.mxu0 %v1319
          %1355 = vmatprep.subr.mxu0 0.0
          %1356 = vmatpush1.msra.mxu0 0.0
          %1357 = vmatprep.subr.mxu0 0.0
          %1358 = vmatpush1.msra.mxu0 0.0
          %1359 = vmatprep.subr.mxu0 0.0
          %1360 = vmatpush1.msra.mxu0 0.0
          %1361 = vmatprep.subr.mxu0 0.0
          %1362 = vmatpush1.msra.mxu0 0.0
          %1363 = vmatprep.subr.mxu0 0.0
          %1364 = vmatpush1.msra.mxu0 0.0
          %1365 = vmatprep.subr.mxu0 0.0
          %1366 = vmatpush1.msra.mxu0 0.0
          %1367 = vmatprep.subr.mxu0 0.0
          %1368 = vmatpush1.msra.mxu0 0.0
          %1369 = vmatprep.subr.mxu0 0.0
          %1370 = vmatpush1.msra.mxu0 0.0
          %1371 = vmatprep.subr.mxu0 0.0
          %1372 = vmatpush1.msra.mxu0 0.0
          %1373 = vmatprep.subr.mxu0 0.0
          %1374 = vmatpush1.msra.mxu0 0.0
          %1375 = vmatprep.subr.mxu0 0.0
          %1376 = vmatpush1.msra.mxu0 0.0
          %1377 = vmatprep.subr.mxu0 0.0
          %1378 = vmatpush1.msra.mxu0 0.0
          %1379 = vmatprep.subr.mxu0 0.0
          %1380 = vmatpush1.msra.mxu0 0.0
          %1381 = vmatprep.subr.mxu0 0.0
          %1382 = vmatpush1.msra.mxu0 0.0
          %1383 = vmatprep.subr.mxu0 0.0
          %1384 = vmatpush1.msra.mxu0 0.0
          %1385 = vmatprep.subr.mxu0 0.0
          %1386 = vmatpush1.msra.mxu0 0.0
          %1387 = vmatprep.mubr.f32.mxu0 0.0
          %1388 = vmatmul.mubr.f32.gmra.mrb[0].mxu0 %v1246
          %v1389 = vpop.f32.mrb[0].mxu0
          %v1390 = vadd.f32 0.0, %v1389
          %v1391 = vpop.f32.mrb[0].mxu0
          %v1392 = vadd.f32 0.0, %v1391
          %1393 = vdwg.mxu0
          %1394 = vmatprep.subr.mxu0 %v1262
          %1395 = vmatpush1.msra.mxu0 %v1261
          %1396 = vmatprep.subr.mxu0 %v1266
          %1397 = vmatpush1.msra.mxu0 %v1265
          %1398 = vmatprep.subr.mxu0 %v1270
          %1399 = vmatpush1.msra.mxu0 %v1269
          %1400 = vmatprep.subr.mxu0 %v1274
          %1401 = vmatpush1.msra.mxu0 %v1273
          %1402 = vmatprep.subr.mxu0 %v1278
          %1403 = vmatpush1.msra.mxu0 %v1277
          %1404 = vmatprep.subr.mxu0 %v1282
          %1405 = vmatpush1.msra.mxu0 %v1281
          %1406 = vmatprep.subr.mxu0 %v1286
          %1407 = vmatpush1.msra.mxu0 %v1285
          %1408 = vmatprep.subr.mxu0 %v1290
          %1409 = vmatpush1.msra.mxu0 %v1289
          %1410 = vmatprep.subr.mxu0 %v1294
          %1411 = vmatpush1.msra.mxu0 %v1293
          %1412 = vmatprep.subr.mxu0 %v1298
          %1413 = vmatpush1.msra.mxu0 %v1297
          %1414 = vmatprep.subr.mxu0 %v1302
          %1415 = vmatpush1.msra.mxu0 %v1301
          %1416 = vmatprep.subr.mxu0 %v1306
          %1417 = vmatpush1.msra.mxu0 %v1305
          %1418 = vmatprep.subr.mxu0 %v1310
          %1419 = vmatpush1.msra.mxu0 %v1309
          %1420 = vmatprep.subr.mxu0 %v1314
          %1421 = vmatpush1.msra.mxu0 %v1313
          %1422 = vmatprep.subr.mxu0 %v1318
          %1423 = vmatpush1.msra.mxu0 %v1317
          %1424 = vmatprep.subr.mxu0 %v1322
          %1425 = vmatpush1.msra.mxu0 %v1321
          %1426 = vmatprep.subr.mxu0 0.0
          %1427 = vmatpush1.msra.mxu0 0.0
          %1428 = vmatprep.subr.mxu0 0.0
          %1429 = vmatpush1.msra.mxu0 0.0
          %1430 = vmatprep.subr.mxu0 0.0
          %1431 = vmatpush1.msra.mxu0 0.0
          %1432 = vmatprep.subr.mxu0 0.0
          %1433 = vmatpush1.msra.mxu0 0.0
          %1434 = vmatprep.subr.mxu0 0.0
          %1435 = vmatpush1.msra.mxu0 0.0
          %1436 = vmatprep.subr.mxu0 0.0
          %1437 = vmatpush1.msra.mxu0 0.0
          %1438 = vmatprep.subr.mxu0 0.0
          %1439 = vmatpush1.msra.mxu0 0.0
          %1440 = vmatprep.subr.mxu0 0.0
          %1441 = vmatpush1.msra.mxu0 0.0
          %1442 = vmatprep.subr.mxu0 0.0
          %1443 = vmatpush1.msra.mxu0 0.0
          %1444 = vmatprep.subr.mxu0 0.0
          %1445 = vmatpush1.msra.mxu0 0.0
          %1446 = vmatprep.subr.mxu0 0.0
          %1447 = vmatpush1.msra.mxu0 0.0
          %1448 = vmatprep.subr.mxu0 0.0
          %1449 = vmatpush1.msra.mxu0 0.0
          %1450 = vmatprep.subr.mxu0 0.0
          %1451 = vmatpush1.msra.mxu0 0.0
          %1452 = vmatprep.subr.mxu0 0.0
          %1453 = vmatpush1.msra.mxu0 0.0
          %1454 = vmatprep.subr.mxu0 0.0
          %1455 = vmatpush1.msra.mxu0 0.0
          %1456 = vmatprep.subr.mxu0 0.0
          %1457 = vmatpush1.msra.mxu0 0.0
          %1458 = vmatprep.mubr.f32.mxu0 0.0
          %1459 = vmatmul.mubr.f32.gmra.mrb[0].mxu0 %v1246
          %v1460 = vpop.f32.mrb[0].mxu0
          %v1461 = vadd.f32 0.0, %v1460
          %v1462 = vpop.f32.mrb[0].mxu0
          %v1463 = vadd.f32 0.0, %v1462
          %1464 = vdwg.mxu0
          %v1465 = vadd.f32 %v1255, %v1390
          %v1466 = vadd.f32 %v1256, %v1392
          %v1467 = vadd.f32 %v1257, %v1461
          %v1468 = vadd.f32 %v1258, %v1463
          %v1469 = vmul.f32 %v1465, 0.5
          %v1470 = vtanh.pop %v1469
          %v1471 = vmul.f32 %v1470, 0.5
          %v1472 = vadd.f32 %v1471, 0.5
          %v1473 = vmul.f32 %v1466, 0.5
          %v1474 = vtanh.pop %v1473
          %v1475 = vmul.f32 %v1474, 0.5
          %v1476 = vadd.f32 %v1475, 0.5
          %v1477 = vtanh.pop %v1467
          %v1478 = vmul.f32 %v1468, 0.5
          %v1479 = vtanh.pop %v1478
          %v1480 = vmul.f32 %v1479, 0.5
          %v1481 = vadd.f32 %v1480, 0.5
          %v1482 = vmul.f32 %v1476, %v1247
          %v1483 = vmul.f32 %v1472, %v1477
          %v1484 = vadd.f32 %v1482, %v1483
          %v1485 = vtanh.pop %v1484
          %v1486 = vmul.f32 %v1481, %v1485
          %v1487 = vstv %s1251
          %vm1488 = vcmp.gt.s32.totalorder %v749, %v1487
          %v1489 = vsel %vm1488, 1, 0
          %1490 = vset.pattern.permute.xlu0 0
          %1491 = vperm.xlu0 %1490, %v1489
          %v1492 = vpop.permute.xlu0 %1491
          %vm1493 = vcmp.eq.s32.totalorder %v1492, 1
          %v1494 = vsel %vm1493, %v1486, %v1246
          %v1495 = vsel %vm1493, %v1484, %v1247
          %v1496 = vsel %vm1493, %v1486, 0.0
          %s1497 = scalar_lea.vmem %s401, 16 [#allocation14]
          %1498 = vst [vmem:[%s1497] sm:$0xff] %v1496
          %s1499 = sadd.s32 %s754, 3
          %s1500 = smul.u32 3, 4
          %s1501 = smul.addr %s1500, 8
          %s1502 = scalar_lea.vmem [#allocation2], %s1501
          %v1503 = vld [vmem:[%s1502] sm:$0xff]
          %v1504 = vld [vmem:[%s1502 + $0x8] sm:$0xff]
          %v1505 = vld [vmem:[%s1502 + $0x10] sm:$0xff]
          %v1506 = vld [vmem:[%s1502 + $0x18] sm:$0xff]
          %v1507 = vld [vmem:[%s360] sm:$0xff]
          %v1508 = vld [vmem:[%s360 + $0x8] sm:$0xff]
          %v1509 = vld [vmem:[%s360 + $0x10] sm:$0xff]
          %v1510 = vld [vmem:[%s360 + $0x18] sm:$0xff]
          %v1511 = vld [vmem:[%s360 + $0x20] sm:$0xff]
          %v1512 = vld [vmem:[%s360 + $0x28] sm:$0xff]
          %v1513 = vld [vmem:[%s360 + $0x30] sm:$0xff]
          %v1514 = vld [vmem:[%s360 + $0x38] sm:$0xff]
          %v1515 = vld [vmem:[%s360 + $0x40] sm:$0xff]
          %v1516 = vld [vmem:[%s360 + $0x48] sm:$0xff]
          %v1517 = vld [vmem:[%s360 + $0x50] sm:$0xff]
          %v1518 = vld [vmem:[%s360 + $0x58] sm:$0xff]
          %v1519 = vld [vmem:[%s360 + $0x60] sm:$0xff]
          %v1520 = vld [vmem:[%s360 + $0x68] sm:$0xff]
          %v1521 = vld [vmem:[%s360 + $0x70] sm:$0xff]
          %v1522 = vld [vmem:[%s360 + $0x78] sm:$0xff]
          %v1523 = vld [vmem:[%s360 + $0x80] sm:$0xff]
          %v1524 = vld [vmem:[%s360 + $0x88] sm:$0xff]
          %v1525 = vld [vmem:[%s360 + $0x90] sm:$0xff]
          %v1526 = vld [vmem:[%s360 + $0x98] sm:$0xff]
          %v1527 = vld [vmem:[%s360 + $0xa0] sm:$0xff]
          %v1528 = vld [vmem:[%s360 + $0xa8] sm:$0xff]
          %v1529 = vld [vmem:[%s360 + $0xb0] sm:$0xff]
          %v1530 = vld [vmem:[%s360 + $0xb8] sm:$0xff]
          %v1531 = vld [vmem:[%s360 + $0xc0] sm:$0xff]
          %v1532 = vld [vmem:[%s360 + $0xc8] sm:$0xff]
          %v1533 = vld [vmem:[%s360 + $0xd0] sm:$0xff]
          %v1534 = vld [vmem:[%s360 + $0xd8] sm:$0xff]
          %v1535 = vld [vmem:[%s360 + $0xe0] sm:$0xff]
          %v1536 = vld [vmem:[%s360 + $0xe8] sm:$0xff]
          %v1537 = vld [vmem:[%s360 + $0xf0] sm:$0xff]
          %v1538 = vld [vmem:[%s360 + $0xf8] sm:$0xff]
          %v1539 = vld [vmem:[%s360 + $0x100] sm:$0xff]
          %v1540 = vld [vmem:[%s360 + $0x108] sm:$0xff]
          %v1541 = vld [vmem:[%s360 + $0x110] sm:$0xff]
          %v1542 = vld [vmem:[%s360 + $0x118] sm:$0xff]
          %v1543 = vld [vmem:[%s360 + $0x120] sm:$0xff]
          %v1544 = vld [vmem:[%s360 + $0x128] sm:$0xff]
          %v1545 = vld [vmem:[%s360 + $0x130] sm:$0xff]
          %v1546 = vld [vmem:[%s360 + $0x138] sm:$0xff]
          %v1547 = vld [vmem:[%s360 + $0x140] sm:$0xff]
          %v1548 = vld [vmem:[%s360 + $0x148] sm:$0xff]
          %v1549 = vld [vmem:[%s360 + $0x150] sm:$0xff]
          %v1550 = vld [vmem:[%s360 + $0x158] sm:$0xff]
          %v1551 = vld [vmem:[%s360 + $0x160] sm:$0xff]
          %v1552 = vld [vmem:[%s360 + $0x168] sm:$0xff]
          %v1553 = vld [vmem:[%s360 + $0x170] sm:$0xff]
          %v1554 = vld [vmem:[%s360 + $0x178] sm:$0xff]
          %v1555 = vld [vmem:[%s360 + $0x180] sm:$0xff]
          %v1556 = vld [vmem:[%s360 + $0x188] sm:$0xff]
          %v1557 = vld [vmem:[%s360 + $0x190] sm:$0xff]
          %v1558 = vld [vmem:[%s360 + $0x198] sm:$0xff]
          %v1559 = vld [vmem:[%s360 + $0x1a0] sm:$0xff]
          %v1560 = vld [vmem:[%s360 + $0x1a8] sm:$0xff]
          %v1561 = vld [vmem:[%s360 + $0x1b0] sm:$0xff]
          %v1562 = vld [vmem:[%s360 + $0x1b8] sm:$0xff]
          %v1563 = vld [vmem:[%s360 + $0x1c0] sm:$0xff]
          %v1564 = vld [vmem:[%s360 + $0x1c8] sm:$0xff]
          %v1565 = vld [vmem:[%s360 + $0x1d0] sm:$0xff]
          %v1566 = vld [vmem:[%s360 + $0x1d8] sm:$0xff]
          %v1567 = vld [vmem:[%s360 + $0x1e0] sm:$0xff]
          %v1568 = vld [vmem:[%s360 + $0x1e8] sm:$0xff]
          %v1569 = vld [vmem:[%s360 + $0x1f0] sm:$0xff]
          %v1570 = vld [vmem:[%s360 + $0x1f8] sm:$0xff]
          %1571 = vmatprep.subr.mxu0 %v1508
          %1572 = vmatpush1.msra.mxu0 %v1507
          %1573 = vmatprep.subr.mxu0 %v1512
          %1574 = vmatpush1.msra.mxu0 %v1511
          %1575 = vmatprep.subr.mxu0 %v1516
          %1576 = vmatpush1.msra.mxu0 %v1515
          %1577 = vmatprep.subr.mxu0 %v1520
          %1578 = vmatpush1.msra.mxu0 %v1519
          %1579 = vmatprep.subr.mxu0 %v1524
          %1580 = vmatpush1.msra.mxu0 %v1523
          %1581 = vmatprep.subr.mxu0 %v1528
          %1582 = vmatpush1.msra.mxu0 %v1527
          %1583 = vmatprep.subr.mxu0 %v1532
          %1584 = vmatpush1.msra.mxu0 %v1531
          %1585 = vmatprep.subr.mxu0 %v1536
          %1586 = vmatpush1.msra.mxu0 %v1535
          %1587 = vmatprep.subr.mxu0 %v1540
          %1588 = vmatpush1.msra.mxu0 %v1539
          %1589 = vmatprep.subr.mxu0 %v1544
          %1590 = vmatpush1.msra.mxu0 %v1543
          %1591 = vmatprep.subr.mxu0 %v1548
          %1592 = vmatpush1.msra.mxu0 %v1547
          %1593 = vmatprep.subr.mxu0 %v1552
          %1594 = vmatpush1.msra.mxu0 %v1551
          %1595 = vmatprep.subr.mxu0 %v1556
          %1596 = vmatpush1.msra.mxu0 %v1555
          %1597 = vmatprep.subr.mxu0 %v1560
          %1598 = vmatpush1.msra.mxu0 %v1559
          %1599 = vmatprep.subr.mxu0 %v1564
          %1600 = vmatpush1.msra.mxu0 %v1563
          %1601 = vmatprep.subr.mxu0 %v1568
          %1602 = vmatpush1.msra.mxu0 %v1567
          %1603 = vmatprep.subr.mxu0 0.0
          %1604 = vmatpush1.msra.mxu0 0.0
          %1605 = vmatprep.subr.mxu0 0.0
          %1606 = vmatpush1.msra.mxu0 0.0
          %1607 = vmatprep.subr.mxu0 0.0
          %1608 = vmatpush1.msra.mxu0 0.0
          %1609 = vmatprep.subr.mxu0 0.0
          %1610 = vmatpush1.msra.mxu0 0.0
          %1611 = vmatprep.subr.mxu0 0.0
          %1612 = vmatpush1.msra.mxu0 0.0
          %1613 = vmatprep.subr.mxu0 0.0
          %1614 = vmatpush1.msra.mxu0 0.0
          %1615 = vmatprep.subr.mxu0 0.0
          %1616 = vmatpush1.msra.mxu0 0.0
          %1617 = vmatprep.subr.mxu0 0.0
          %1618 = vmatpush1.msra.mxu0 0.0
          %1619 = vmatprep.subr.mxu0 0.0
          %1620 = vmatpush1.msra.mxu0 0.0
          %1621 = vmatprep.subr.mxu0 0.0
          %1622 = vmatpush1.msra.mxu0 0.0
          %1623 = vmatprep.subr.mxu0 0.0
          %1624 = vmatpush1.msra.mxu0 0.0
          %1625 = vmatprep.subr.mxu0 0.0
          %1626 = vmatpush1.msra.mxu0 0.0
          %1627 = vmatprep.subr.mxu0 0.0
          %1628 = vmatpush1.msra.mxu0 0.0
          %1629 = vmatprep.subr.mxu0 0.0
          %1630 = vmatpush1.msra.mxu0 0.0
          %1631 = vmatprep.subr.mxu0 0.0
          %1632 = vmatpush1.msra.mxu0 0.0
          %1633 = vmatprep.subr.mxu0 0.0
          %1634 = vmatpush1.msra.mxu0 0.0
          %1635 = vmatprep.mubr.f32.mxu0 0.0
          %1636 = vmatmul.mubr.f32.gmra.mrb[0].mxu0 %v1494
          %v1637 = vpop.f32.mrb[0].mxu0
          %v1638 = vadd.f32 0.0, %v1637
          %v1639 = vpop.f32.mrb[0].mxu0
          %v1640 = vadd.f32 0.0, %v1639
          %1641 = vdwg.mxu0
          %1642 = vmatprep.subr.mxu0 %v1510
          %1643 = vmatpush1.msra.mxu0 %v1509
          %1644 = vmatprep.subr.mxu0 %v1514
          %1645 = vmatpush1.msra.mxu0 %v1513
          %1646 = vmatprep.subr.mxu0 %v1518
          %1647 = vmatpush1.msra.mxu0 %v1517
          %1648 = vmatprep.subr.mxu0 %v1522
          %1649 = vmatpush1.msra.mxu0 %v1521
          %1650 = vmatprep.subr.mxu0 %v1526
          %1651 = vmatpush1.msra.mxu0 %v1525
          %1652 = vmatprep.subr.mxu0 %v1530
          %1653 = vmatpush1.msra.mxu0 %v1529
          %1654 = vmatprep.subr.mxu0 %v1534
          %1655 = vmatpush1.msra.mxu0 %v1533
          %1656 = vmatprep.subr.mxu0 %v1538
          %1657 = vmatpush1.msra.mxu0 %v1537
          %1658 = vmatprep.subr.mxu0 %v1542
          %1659 = vmatpush1.msra.mxu0 %v1541
          %1660 = vmatprep.subr.mxu0 %v1546
          %1661 = vmatpush1.msra.mxu0 %v1545
          %1662 = vmatprep.subr.mxu0 %v1550
          %1663 = vmatpush1.msra.mxu0 %v1549
          %1664 = vmatprep.subr.mxu0 %v1554
          %1665 = vmatpush1.msra.mxu0 %v1553
          %1666 = vmatprep.subr.mxu0 %v1558
          %1667 = vmatpush1.msra.mxu0 %v1557
          %1668 = vmatprep.subr.mxu0 %v1562
          %1669 = vmatpush1.msra.mxu0 %v1561
          %1670 = vmatprep.subr.mxu0 %v1566
          %1671 = vmatpush1.msra.mxu0 %v1565
          %1672 = vmatprep.subr.mxu0 %v1570
          %1673 = vmatpush1.msra.mxu0 %v1569
          %1674 = vmatprep.subr.mxu0 0.0
          %1675 = vmatpush1.msra.mxu0 0.0
          %1676 = vmatprep.subr.mxu0 0.0
          %1677 = vmatpush1.msra.mxu0 0.0
          %1678 = vmatprep.subr.mxu0 0.0
          %1679 = vmatpush1.msra.mxu0 0.0
          %1680 = vmatprep.subr.mxu0 0.0
          %1681 = vmatpush1.msra.mxu0 0.0
          %1682 = vmatprep.subr.mxu0 0.0
          %1683 = vmatpush1.msra.mxu0 0.0
          %1684 = vmatprep.subr.mxu0 0.0
          %1685 = vmatpush1.msra.mxu0 0.0
          %1686 = vmatprep.subr.mxu0 0.0
          %1687 = vmatpush1.msra.mxu0 0.0
          %1688 = vmatprep.subr.mxu0 0.0
          %1689 = vmatpush1.msra.mxu0 0.0
          %1690 = vmatprep.subr.mxu0 0.0
          %1691 = vmatpush1.msra.mxu0 0.0
          %1692 = vmatprep.subr.mxu0 0.0
          %1693 = vmatpush1.msra.mxu0 0.0
          %1694 = vmatprep.subr.mxu0 0.0
          %1695 = vmatpush1.msra.mxu0 0.0
          %1696 = vmatprep.subr.mxu0 0.0
          %1697 = vmatpush1.msra.mxu0 0.0
          %1698 = vmatprep.subr.mxu0 0.0
          %1699 = vmatpush1.msra.mxu0 0.0
          %1700 = vmatprep.subr.mxu0 0.0
          %1701 = vmatpush1.msra.mxu0 0.0
          %1702 = vmatprep.subr.mxu0 0.0
          %1703 = vmatpush1.msra.mxu0 0.0
          %1704 = vmatprep.subr.mxu0 0.0
          %1705 = vmatpush1.msra.mxu0 0.0
          %1706 = vmatprep.mubr.f32.mxu0 0.0
          %1707 = vmatmul.mubr.f32.gmra.mrb[0].mxu0 %v1494
          %v1708 = vpop.f32.mrb[0].mxu0
          %v1709 = vadd.f32 0.0, %v1708
          %v1710 = vpop.f32.mrb[0].mxu0
          %v1711 = vadd.f32 0.0, %v1710
          %1712 = vdwg.mxu0
          %v1713 = vadd.f32 %v1503, %v1638
          %v1714 = vadd.f32 %v1504, %v1640
          %v1715 = vadd.f32 %v1505, %v1709
          %v1716 = vadd.f32 %v1506, %v1711
          %v1717 = vmul.f32 %v1713, 0.5
          %v1718 = vtanh.pop %v1717
          %v1719 = vmul.f32 %v1718, 0.5
          %v1720 = vadd.f32 %v1719, 0.5
          %v1721 = vmul.f32 %v1714, 0.5
          %v1722 = vtanh.pop %v1721
          %v1723 = vmul.f32 %v1722, 0.5
          %v1724 = vadd.f32 %v1723, 0.5
          %v1725 = vtanh.pop %v1715
          %v1726 = vmul.f32 %v1716, 0.5
          %v1727 = vtanh.pop %v1726
          %v1728 = vmul.f32 %v1727, 0.5
          %v1729 = vadd.f32 %v1728, 0.5
          %v1730 = vmul.f32 %v1724, %v1495
          %v1731 = vmul.f32 %v1720, %v1725
          %v1732 = vadd.f32 %v1730, %v1731
          %v1733 = vtanh.pop %v1732
          %v1734 = vmul.f32 %v1729, %v1733
          %v1735 = vstv %s1499
          %vm1736 = vcmp.gt.s32.totalorder %v749, %v1735
          %v1737 = vsel %vm1736, 1, 0
          %1738 = vset.pattern.permute.xlu0 0
          %1739 = vperm.xlu0 %1738, %v1737
          %v1740 = vpop.permute.xlu0 %1739
          %vm1741 = vcmp.eq.s32.totalorder %v1740, 1
          %v1742 = vsel %vm1741, %v1734, %v1494
          %v1743 = vsel %vm1741, %v1732, %v1495
          %v1744 = vsel %vm1741, %v1734, 0.0
          %s1745 = scalar_lea.vmem %s401, 24 [#allocation14]
          %1746 = vst [vmem:[%s1745] sm:$0xff] %v1744
          %s1747 = sadd.s32 %s754, 4
          %s1748 = smul.u32 4, 4
          %s1749 = smul.addr %s1748, 8
          %s1750 = scalar_lea.vmem [#allocation2], %s1749
          %v1751 = vld [vmem:[%s1750] sm:$0xff]
          %v1752 = vld [vmem:[%s1750 + $0x8] sm:$0xff]
          %v1753 = vld [vmem:[%s1750 + $0x10] sm:$0xff]
          %v1754 = vld [vmem:[%s1750 + $0x18] sm:$0xff]
          %v1755 = vld [vmem:[%s360] sm:$0xff]
          %v1756 = vld [vmem:[%s360 + $0x8] sm:$0xff]
          %v1757 = vld [vmem:[%s360 + $0x10] sm:$0xff]
          %v1758 = vld [vmem:[%s360 + $0x18] sm:$0xff]
          %v1759 = vld [vmem:[%s360 + $0x20] sm:$0xff]
          %v1760 = vld [vmem:[%s360 + $0x28] sm:$0xff]
          %v1761 = vld [vmem:[%s360 + $0x30] sm:$0xff]
          %v1762 = vld [vmem:[%s360 + $0x38] sm:$0xff]
          %v1763 = vld [vmem:[%s360 + $0x40] sm:$0xff]
          %v1764 = vld [vmem:[%s360 + $0x48] sm:$0xff]
          %v1765 = vld [vmem:[%s360 + $0x50] sm:$0xff]
          %v1766 = vld [vmem:[%s360 + $0x58] sm:$0xff]
          %v1767 = vld [vmem:[%s360 + $0x60] sm:$0xff]
          %v1768 = vld [vmem:[%s360 + $0x68] sm:$0xff]
          %v1769 = vld [vmem:[%s360 + $0x70] sm:$0xff]
          %v1770 = vld [vmem:[%s360 + $0x78] sm:$0xff]
          %v1771 = vld [vmem:[%s360 + $0x80] sm:$0xff]
          %v1772 = vld [vmem:[%s360 + $0x88] sm:$0xff]
          %v1773 = vld [vmem:[%s360 + $0x90] sm:$0xff]
          %v1774 = vld [vmem:[%s360 + $0x98] sm:$0xff]
          %v1775 = vld [vmem:[%s360 + $0xa0] sm:$0xff]
          %v1776 = vld [vmem:[%s360 + $0xa8] sm:$0xff]
          %v1777 = vld [vmem:[%s360 + $0xb0] sm:$0xff]
          %v1778 = vld [vmem:[%s360 + $0xb8] sm:$0xff]
          %v1779 = vld [vmem:[%s360 + $0xc0] sm:$0xff]
          %v1780 = vld [vmem:[%s360 + $0xc8] sm:$0xff]
          %v1781 = vld [vmem:[%s360 + $0xd0] sm:$0xff]
          %v1782 = vld [vmem:[%s360 + $0xd8] sm:$0xff]
          %v1783 = vld [vmem:[%s360 + $0xe0] sm:$0xff]
          %v1784 = vld [vmem:[%s360 + $0xe8] sm:$0xff]
          %v1785 = vld [vmem:[%s360 + $0xf0] sm:$0xff]
          %v1786 = vld [vmem:[%s360 + $0xf8] sm:$0xff]
          %v1787 = vld [vmem:[%s360 + $0x100] sm:$0xff]
          %v1788 = vld [vmem:[%s360 + $0x108] sm:$0xff]
          %v1789 = vld [vmem:[%s360 + $0x110] sm:$0xff]
          %v1790 = vld [vmem:[%s360 + $0x118] sm:$0xff]
          %v1791 = vld [vmem:[%s360 + $0x120] sm:$0xff]
          %v1792 = vld [vmem:[%s360 + $0x128] sm:$0xff]
          %v1793 = vld [vmem:[%s360 + $0x130] sm:$0xff]
          %v1794 = vld [vmem:[%s360 + $0x138] sm:$0xff]
          %v1795 = vld [vmem:[%s360 + $0x140] sm:$0xff]
          %v1796 = vld [vmem:[%s360 + $0x148] sm:$0xff]
          %v1797 = vld [vmem:[%s360 + $0x150] sm:$0xff]
          %v1798 = vld [vmem:[%s360 + $0x158] sm:$0xff]
          %v1799 = vld [vmem:[%s360 + $0x160] sm:$0xff]
          %v1800 = vld [vmem:[%s360 + $0x168] sm:$0xff]
          %v1801 = vld [vmem:[%s360 + $0x170] sm:$0xff]
          %v1802 = vld [vmem:[%s360 + $0x178] sm:$0xff]
          %v1803 = vld [vmem:[%s360 + $0x180] sm:$0xff]
          %v1804 = vld [vmem:[%s360 + $0x188] sm:$0xff]
          %v1805 = vld [vmem:[%s360 + $0x190] sm:$0xff]
          %v1806 = vld [vmem:[%s360 + $0x198] sm:$0xff]
          %v1807 = vld [vmem:[%s360 + $0x1a0] sm:$0xff]
          %v1808 = vld [vmem:[%s360 + $0x1a8] sm:$0xff]
          %v1809 = vld [vmem:[%s360 + $0x1b0] sm:$0xff]
          %v1810 = vld [vmem:[%s360 + $0x1b8] sm:$0xff]
          %v1811 = vld [vmem:[%s360 + $0x1c0] sm:$0xff]
          %v1812 = vld [vmem:[%s360 + $0x1c8] sm:$0xff]
          %v1813 = vld [vmem:[%s360 + $0x1d0] sm:$0xff]
          %v1814 = vld [vmem:[%s360 + $0x1d8] sm:$0xff]
          %v1815 = vld [vmem:[%s360 + $0x1e0] sm:$0xff]
          %v1816 = vld [vmem:[%s360 + $0x1e8] sm:$0xff]
          %v1817 = vld [vmem:[%s360 + $0x1f0] sm:$0xff]
          %v1818 = vld [vmem:[%s360 + $0x1f8] sm:$0xff]
          %1819 = vmatprep.subr.mxu0 %v1756
          %1820 = vmatpush1.msra.mxu0 %v1755
          %1821 = vmatprep.subr.mxu0 %v1760
          %1822 = vmatpush1.msra.mxu0 %v1759
          %1823 = vmatprep.subr.mxu0 %v1764
          %1824 = vmatpush1.msra.mxu0 %v1763
          %1825 = vmatprep.subr.mxu0 %v1768
          %1826 = vmatpush1.msra.mxu0 %v1767
          %1827 = vmatprep.subr.mxu0 %v1772
          %1828 = vmatpush1.msra.mxu0 %v1771
          %1829 = vmatprep.subr.mxu0 %v1776
          %1830 = vmatpush1.msra.mxu0 %v1775
          %1831 = vmatprep.subr.mxu0 %v1780
          %1832 = vmatpush1.msra.mxu0 %v1779
          %1833 = vmatprep.subr.mxu0 %v1784
          %1834 = vmatpush1.msra.mxu0 %v1783
          %1835 = vmatprep.subr.mxu0 %v1788
          %1836 = vmatpush1.msra.mxu0 %v1787
          %1837 = vmatprep.subr.mxu0 %v1792
          %1838 = vmatpush1.msra.mxu0 %v1791
          %1839 = vmatprep.subr.mxu0 %v1796
          %1840 = vmatpush1.msra.mxu0 %v1795
          %1841 = vmatprep.subr.mxu0 %v1800
          %1842 = vmatpush1.msra.mxu0 %v1799
          %1843 = vmatprep.subr.mxu0 %v1804
          %1844 = vmatpush1.msra.mxu0 %v1803
          %1845 = vmatprep.subr.mxu0 %v1808
          %1846 = vmatpush1.msra.mxu0 %v1807
          %1847 = vmatprep.subr.mxu0 %v1812
          %1848 = vmatpush1.msra.mxu0 %v1811
          %1849 = vmatprep.subr.mxu0 %v1816
          %1850 = vmatpush1.msra.mxu0 %v1815
          %1851 = vmatprep.subr.mxu0 0.0
          %1852 = vmatpush1.msra.mxu0 0.0
          %1853 = vmatprep.subr.mxu0 0.0
          %1854 = vmatpush1.msra.mxu0 0.0
          %1855 = vmatprep.subr.mxu0 0.0
          %1856 = vmatpush1.msra.mxu0 0.0
          %1857 = vmatprep.subr.mxu0 0.0
          %1858 = vmatpush1.msra.mxu0 0.0
          %1859 = vmatprep.subr.mxu0 0.0
          %1860 = vmatpush1.msra.mxu0 0.0
          %1861 = vmatprep.subr.mxu0 0.0
          %1862 = vmatpush1.msra.mxu0 0.0
          %1863 = vmatprep.subr.mxu0 0.0
          %1864 = vmatpush1.msra.mxu0 0.0
          %1865 = vmatprep.subr.mxu0 0.0
          %1866 = vmatpush1.msra.mxu0 0.0
          %1867 = vmatprep.subr.mxu0 0.0
          %1868 = vmatpush1.msra.mxu0 0.0
          %1869 = vmatprep.subr.mxu0 0.0
          %1870 = vmatpush1.msra.mxu0 0.0
          %1871 = vmatprep.subr.mxu0 0.0
          %1872 = vmatpush1.msra.mxu0 0.0
          %1873 = vmatprep.subr.mxu0 0.0
          %1874 = vmatpush1.msra.mxu0 0.0
          %1875 = vmatprep.subr.mxu0 0.0
          %1876 = vmatpush1.msra.mxu0 0.0
          %1877 = vmatprep.subr.mxu0 0.0
          %1878 = vmatpush1.msra.mxu0 0.0
          %1879 = vmatprep.subr.mxu0 0.0
          %1880 = vmatpush1.msra.mxu0 0.0
          %1881 = vmatprep.subr.mxu0 0.0
          %1882 = vmatpush1.msra.mxu0 0.0
          %1883 = vmatprep.mubr.f32.mxu0 0.0
          %1884 = vmatmul.mubr.f32.gmra.mrb[0].mxu0 %v1742
          %v1885 = vpop.f32.mrb[0].mxu0
          %v1886 = vadd.f32 0.0, %v1885
          %v1887 = vpop.f32.mrb[0].mxu0
          %v1888 = vadd.f32 0.0, %v1887
          %1889 = vdwg.mxu0
          %1890 = vmatprep.subr.mxu0 %v1758
          %1891 = vmatpush1.msra.mxu0 %v1757
          %1892 = vmatprep.subr.mxu0 %v1762
          %1893 = vmatpush1.msra.mxu0 %v1761
          %1894 = vmatprep.subr.mxu0 %v1766
          %1895 = vmatpush1.msra.mxu0 %v1765
          %1896 = vmatprep.subr.mxu0 %v1770
          %1897 = vmatpush1.msra.mxu0 %v1769
          %1898 = vmatprep.subr.mxu0 %v1774
          %1899 = vmatpush1.msra.mxu0 %v1773
          %1900 = vmatprep.subr.mxu0 %v1778
          %1901 = vmatpush1.msra.mxu0 %v1777
          %1902 = vmatprep.subr.mxu0 %v1782
          %1903 = vmatpush1.msra.mxu0 %v1781
          %1904 = vmatprep.subr.mxu0 %v1786
          %1905 = vmatpush1.msra.mxu0 %v1785
          %1906 = vmatprep.subr.mxu0 %v1790
          %1907 = vmatpush1.msra.mxu0 %v1789
          %1908 = vmatprep.subr.mxu0 %v1794
          %1909 = vmatpush1.msra.mxu0 %v1793
          %1910 = vmatprep.subr.mxu0 %v1798
          %1911 = vmatpush1.msra.mxu0 %v1797
          %1912 = vmatprep.subr.mxu0 %v1802
          %1913 = vmatpush1.msra.mxu0 %v1801
          %1914 = vmatprep.subr.mxu0 %v1806
          %1915 = vmatpush1.msra.mxu0 %v1805
          %1916 = vmatprep.subr.mxu0 %v1810
          %1917 = vmatpush1.msra.mxu0 %v1809
          %1918 = vmatprep.subr.mxu0 %v1814
          %1919 = vmatpush1.msra.mxu0 %v1813
          %1920 = vmatprep.subr.mxu0 %v1818
          %1921 = vmatpush1.msra.mxu0 %v1817
          %1922 = vmatprep.subr.mxu0 0.0
          %1923 = vmatpush1.msra.mxu0 0.0
          %1924 = vmatprep.subr.mxu0 0.0
          %1925 = vmatpush1.msra.mxu0 0.0
          %1926 = vmatprep.subr.mxu0 0.0
          %1927 = vmatpush1.msra.mxu0 0.0
          %1928 = vmatprep.subr.mxu0 0.0
          %1929 = vmatpush1.msra.mxu0 0.0
          %1930 = vmatprep.subr.mxu0 0.0
          %1931 = vmatpush1.msra.mxu0 0.0
          %1932 = vmatprep.subr.mxu0 0.0
          %1933 = vmatpush1.msra.mxu0 0.0
          %1934 = vmatprep.subr.mxu0 0.0
          %1935 = vmatpush1.msra.mxu0 0.0
          %1936 = vmatprep.subr.mxu0 0.0
          %1937 = vmatpush1.msra.mxu0 0.0
          %1938 = vmatprep.subr.mxu0 0.0
          %1939 = vmatpush1.msra.mxu0 0.0
          %1940 = vmatprep.subr.mxu0 0.0
          %1941 = vmatpush1.msra.mxu0 0.0
          %1942 = vmatprep.subr.mxu0 0.0
          %1943 = vmatpush1.msra.mxu0 0.0
          %1944 = vmatprep.subr.mxu0 0.0
          %1945 = vmatpush1.msra.mxu0 0.0
          %1946 = vmatprep.subr.mxu0 0.0
          %1947 = vmatpush1.msra.mxu0 0.0
          %1948 = vmatprep.subr.mxu0 0.0
          %1949 = vmatpush1.msra.mxu0 0.0
          %1950 = vmatprep.subr.mxu0 0.0
          %1951 = vmatpush1.msra.mxu0 0.0
          %1952 = vmatprep.subr.mxu0 0.0
          %1953 = vmatpush1.msra.mxu0 0.0
          %1954 = vmatprep.mubr.f32.mxu0 0.0
          %1955 = vmatmul.mubr.f32.gmra.mrb[0].mxu0 %v1742
          %v1956 = vpop.f32.mrb[0].mxu0
          %v1957 = vadd.f32 0.0, %v1956
          %v1958 = vpop.f32.mrb[0].mxu0
          %v1959 = vadd.f32 0.0, %v1958
          %1960 = vdwg.mxu0
          %v1961 = vadd.f32 %v1751, %v1886
          %v1962 = vadd.f32 %v1752, %v1888
          %v1963 = vadd.f32 %v1753, %v1957
          %v1964 = vadd.f32 %v1754, %v1959
          %v1965 = vmul.f32 %v1961, 0.5
          %v1966 = vtanh.pop %v1965
          %v1967 = vmul.f32 %v1966, 0.5
          %v1968 = vadd.f32 %v1967, 0.5
          %v1969 = vmul.f32 %v1962, 0.5
          %v1970 = vtanh.pop %v1969
          %v1971 = vmul.f32 %v1970, 0.5
          %v1972 = vadd.f32 %v1971, 0.5
          %v1973 = vtanh.pop %v1963
          %v1974 = vmul.f32 %v1964, 0.5
          %v1975 = vtanh.pop %v1974
          %v1976 = vmul.f32 %v1975, 0.5
          %v1977 = vadd.f32 %v1976, 0.5
          %v1978 = vmul.f32 %v1972, %v1743
          %v1979 = vmul.f32 %v1968, %v1973
          %v1980 = vadd.f32 %v1978, %v1979
          %v1981 = vtanh.pop %v1980
          %v1982 = vmul.f32 %v1977, %v1981
          %v1983 = vstv %s1747
          %vm1984 = vcmp.gt.s32.totalorder %v749, %v1983
          %v1985 = vsel %vm1984, 1, 0
          %1986 = vset.pattern.permute.xlu0 0
          %1987 = vperm.xlu0 %1986, %v1985
          %v1988 = vpop.permute.xlu0 %1987
          %vm1989 = vcmp.eq.s32.totalorder %v1988, 1
          %v1990 = vsel %vm1989, %v1982, %v1742
          %v1991 = vsel %vm1989, %v1980, %v1743
          %v1992 = vsel %vm1989, %v1982, 0.0
          %s1993 = scalar_lea.vmem %s401, 32 [#allocation14]
          %1994 = vst [vmem:[%s1993] sm:$0xff] %v1992
          %s1995 = sadd.s32 %s754, 5
          %s1996 = smul.u32 5, 4
          %s1997 = smul.addr %s1996, 8
          %s1998 = scalar_lea.vmem [#allocation2], %s1997
          %v1999 = vld [vmem:[%s1998] sm:$0xff]
          %v2000 = vld [vmem:[%s1998 + $0x8] sm:$0xff]
          %v2001 = vld [vmem:[%s1998 + $0x10] sm:$0xff]
          %v2002 = vld [vmem:[%s1998 + $0x18] sm:$0xff]
          %v2003 = vld [vmem:[%s360] sm:$0xff]
          %v2004 = vld [vmem:[%s360 + $0x8] sm:$0xff]
          %v2005 = vld [vmem:[%s360 + $0x10] sm:$0xff]
          %v2006 = vld [vmem:[%s360 + $0x18] sm:$0xff]
          %v2007 = vld [vmem:[%s360 + $0x20] sm:$0xff]
          %v2008 = vld [vmem:[%s360 + $0x28] sm:$0xff]
          %v2009 = vld [vmem:[%s360 + $0x30] sm:$0xff]
          %v2010 = vld [vmem:[%s360 + $0x38] sm:$0xff]
          %v2011 = vld [vmem:[%s360 + $0x40] sm:$0xff]
          %v2012 = vld [vmem:[%s360 + $0x48] sm:$0xff]
          %v2013 = vld [vmem:[%s360 + $0x50] sm:$0xff]
          %v2014 = vld [vmem:[%s360 + $0x58] sm:$0xff]
          %v2015 = vld [vmem:[%s360 + $0x60] sm:$0xff]
          %v2016 = vld [vmem:[%s360 + $0x68] sm:$0xff]
          %v2017 = vld [vmem:[%s360 + $0x70] sm:$0xff]
          %v2018 = vld [vmem:[%s360 + $0x78] sm:$0xff]
          %v2019 = vld [vmem:[%s360 + $0x80] sm:$0xff]
          %v2020 = vld [vmem:[%s360 + $0x88] sm:$0xff]
          %v2021 = vld [vmem:[%s360 + $0x90] sm:$0xff]
          %v2022 = vld [vmem:[%s360 + $0x98] sm:$0xff]
          %v2023 = vld [vmem:[%s360 + $0xa0] sm:$0xff]
          %v2024 = vld [vmem:[%s360 + $0xa8] sm:$0xff]
          %v2025 = vld [vmem:[%s360 + $0xb0] sm:$0xff]
          %v2026 = vld [vmem:[%s360 + $0xb8] sm:$0xff]
          %v2027 = vld [vmem:[%s360 + $0xc0] sm:$0xff]
          %v2028 = vld [vmem:[%s360 + $0xc8] sm:$0xff]
          %v2029 = vld [vmem:[%s360 + $0xd0] sm:$0xff]
          %v2030 = vld [vmem:[%s360 + $0xd8] sm:$0xff]
          %v2031 = vld [vmem:[%s360 + $0xe0] sm:$0xff]
          %v2032 = vld [vmem:[%s360 + $0xe8] sm:$0xff]
          %v2033 = vld [vmem:[%s360 + $0xf0] sm:$0xff]
          %v2034 = vld [vmem:[%s360 + $0xf8] sm:$0xff]
          %v2035 = vld [vmem:[%s360 + $0x100] sm:$0xff]
          %v2036 = vld [vmem:[%s360 + $0x108] sm:$0xff]
          %v2037 = vld [vmem:[%s360 + $0x110] sm:$0xff]
          %v2038 = vld [vmem:[%s360 + $0x118] sm:$0xff]
          %v2039 = vld [vmem:[%s360 + $0x120] sm:$0xff]
          %v2040 = vld [vmem:[%s360 + $0x128] sm:$0xff]
          %v2041 = vld [vmem:[%s360 + $0x130] sm:$0xff]
          %v2042 = vld [vmem:[%s360 + $0x138] sm:$0xff]
          %v2043 = vld [vmem:[%s360 + $0x140] sm:$0xff]
          %v2044 = vld [vmem:[%s360 + $0x148] sm:$0xff]
          %v2045 = vld [vmem:[%s360 + $0x150] sm:$0xff]
          %v2046 = vld [vmem:[%s360 + $0x158] sm:$0xff]
          %v2047 = vld [vmem:[%s360 + $0x160] sm:$0xff]
          %v2048 = vld [vmem:[%s360 + $0x168] sm:$0xff]
          %v2049 = vld [vmem:[%s360 + $0x170] sm:$0xff]
          %v2050 = vld [vmem:[%s360 + $0x178] sm:$0xff]
          %v2051 = vld [vmem:[%s360 + $0x180] sm:$0xff]
          %v2052 = vld [vmem:[%s360 + $0x188] sm:$0xff]
          %v2053 = vld [vmem:[%s360 + $0x190] sm:$0xff]
          %v2054 = vld [vmem:[%s360 + $0x198] sm:$0xff]
          %v2055 = vld [vmem:[%s360 + $0x1a0] sm:$0xff]
          %v2056 = vld [vmem:[%s360 + $0x1a8] sm:$0xff]
          %v2057 = vld [vmem:[%s360 + $0x1b0] sm:$0xff]
          %v2058 = vld [vmem:[%s360 + $0x1b8] sm:$0xff]
          %v2059 = vld [vmem:[%s360 + $0x1c0] sm:$0xff]
          %v2060 = vld [vmem:[%s360 + $0x1c8] sm:$0xff]
          %v2061 = vld [vmem:[%s360 + $0x1d0] sm:$0xff]
          %v2062 = vld [vmem:[%s360 + $0x1d8] sm:$0xff]
          %v2063 = vld [vmem:[%s360 + $0x1e0] sm:$0xff]
          %v2064 = vld [vmem:[%s360 + $0x1e8] sm:$0xff]
          %v2065 = vld [vmem:[%s360 + $0x1f0] sm:$0xff]
          %v2066 = vld [vmem:[%s360 + $0x1f8] sm:$0xff]
          %2067 = vmatprep.subr.mxu0 %v2004
          %2068 = vmatpush1.msra.mxu0 %v2003
          %2069 = vmatprep.subr.mxu0 %v2008
          %2070 = vmatpush1.msra.mxu0 %v2007
          %2071 = vmatprep.subr.mxu0 %v2012
          %2072 = vmatpush1.msra.mxu0 %v2011
          %2073 = vmatprep.subr.mxu0 %v2016
          %2074 = vmatpush1.msra.mxu0 %v2015
          %2075 = vmatprep.subr.mxu0 %v2020
          %2076 = vmatpush1.msra.mxu0 %v2019
          %2077 = vmatprep.subr.mxu0 %v2024
          %2078 = vmatpush1.msra.mxu0 %v2023
          %2079 = vmatprep.subr.mxu0 %v2028
          %2080 = vmatpush1.msra.mxu0 %v2027
          %2081 = vmatprep.subr.mxu0 %v2032
          %2082 = vmatpush1.msra.mxu0 %v2031
          %2083 = vmatprep.subr.mxu0 %v2036
          %2084 = vmatpush1.msra.mxu0 %v2035
          %2085 = vmatprep.subr.mxu0 %v2040
          %2086 = vmatpush1.msra.mxu0 %v2039
          %2087 = vmatprep.subr.mxu0 %v2044
          %2088 = vmatpush1.msra.mxu0 %v2043
          %2089 = vmatprep.subr.mxu0 %v2048
          %2090 = vmatpush1.msra.mxu0 %v2047
          %2091 = vmatprep.subr.mxu0 %v2052
          %2092 = vmatpush1.msra.mxu0 %v2051
          %2093 = vmatprep.subr.mxu0 %v2056
          %2094 = vmatpush1.msra.mxu0 %v2055
          %2095 = vmatprep.subr.mxu0 %v2060
          %2096 = vmatpush1.msra.mxu0 %v2059
          %2097 = vmatprep.subr.mxu0 %v2064
          %2098 = vmatpush1.msra.mxu0 %v2063
          %2099 = vmatprep.subr.mxu0 0.0
          %2100 = vmatpush1.msra.mxu0 0.0
          %2101 = vmatprep.subr.mxu0 0.0
          %2102 = vmatpush1.msra.mxu0 0.0
          %2103 = vmatprep.subr.mxu0 0.0
          %2104 = vmatpush1.msra.mxu0 0.0
          %2105 = vmatprep.subr.mxu0 0.0
          %2106 = vmatpush1.msra.mxu0 0.0
          %2107 = vmatprep.subr.mxu0 0.0
          %2108 = vmatpush1.msra.mxu0 0.0
          %2109 = vmatprep.subr.mxu0 0.0
          %2110 = vmatpush1.msra.mxu0 0.0
          %2111 = vmatprep.subr.mxu0 0.0
          %2112 = vmatpush1.msra.mxu0 0.0
          %2113 = vmatprep.subr.mxu0 0.0
          %2114 = vmatpush1.msra.mxu0 0.0
          %2115 = vmatprep.subr.mxu0 0.0
          %2116 = vmatpush1.msra.mxu0 0.0
          %2117 = vmatprep.subr.mxu0 0.0
          %2118 = vmatpush1.msra.mxu0 0.0
          %2119 = vmatprep.subr.mxu0 0.0
          %2120 = vmatpush1.msra.mxu0 0.0
          %2121 = vmatprep.subr.mxu0 0.0
          %2122 = vmatpush1.msra.mxu0 0.0
          %2123 = vmatprep.subr.mxu0 0.0
          %2124 = vmatpush1.msra.mxu0 0.0
          %2125 = vmatprep.subr.mxu0 0.0
          %2126 = vmatpush1.msra.mxu0 0.0
          %2127 = vmatprep.subr.mxu0 0.0
          %2128 = vmatpush1.msra.mxu0 0.0
          %2129 = vmatprep.subr.mxu0 0.0
          %2130 = vmatpush1.msra.mxu0 0.0
          %2131 = vmatprep.mubr.f32.mxu0 0.0
          %2132 = vmatmul.mubr.f32.gmra.mrb[0].mxu0 %v1990
          %v2133 = vpop.f32.mrb[0].mxu0
          %v2134 = vadd.f32 0.0, %v2133
          %v2135 = vpop.f32.mrb[0].mxu0
          %v2136 = vadd.f32 0.0, %v2135
          %2137 = vdwg.mxu0
          %2138 = vmatprep.subr.mxu0 %v2006
          %2139 = vmatpush1.msra.mxu0 %v2005
          %2140 = vmatprep.subr.mxu0 %v2010
          %2141 = vmatpush1.msra.mxu0 %v2009
          %2142 = vmatprep.subr.mxu0 %v2014
          %2143 = vmatpush1.msra.mxu0 %v2013
          %2144 = vmatprep.subr.mxu0 %v2018
          %2145 = vmatpush1.msra.mxu0 %v2017
          %2146 = vmatprep.subr.mxu0 %v2022
          %2147 = vmatpush1.msra.mxu0 %v2021
          %2148 = vmatprep.subr.mxu0 %v2026
          %2149 = vmatpush1.msra.mxu0 %v2025
          %2150 = vmatprep.subr.mxu0 %v2030
          %2151 = vmatpush1.msra.mxu0 %v2029
          %2152 = vmatprep.subr.mxu0 %v2034
          %2153 = vmatpush1.msra.mxu0 %v2033
          %2154 = vmatprep.subr.mxu0 %v2038
          %2155 = vmatpush1.msra.mxu0 %v2037
          %2156 = vmatprep.subr.mxu0 %v2042
          %2157 = vmatpush1.msra.mxu0 %v2041
          %2158 = vmatprep.subr.mxu0 %v2046
          %2159 = vmatpush1.msra.mxu0 %v2045
          %2160 = vmatprep.subr.mxu0 %v2050
          %2161 = vmatpush1.msra.mxu0 %v2049
          %2162 = vmatprep.subr.mxu0 %v2054
          %2163 = vmatpush1.msra.mxu0 %v2053
          %2164 = vmatprep.subr.mxu0 %v2058
          %2165 = vmatpush1.msra.mxu0 %v2057
          %2166 = vmatprep.subr.mxu0 %v2062
          %2167 = vmatpush1.msra.mxu0 %v2061
          %2168 = vmatprep.subr.mxu0 %v2066
          %2169 = vmatpush1.msra.mxu0 %v2065
          %2170 = vmatprep.subr.mxu0 0.0
          %2171 = vmatpush1.msra.mxu0 0.0
          %2172 = vmatprep.subr.mxu0 0.0
          %2173 = vmatpush1.msra.mxu0 0.0
          %2174 = vmatprep.subr.mxu0 0.0
          %2175 = vmatpush1.msra.mxu0 0.0
          %2176 = vmatprep.subr.mxu0 0.0
          %2177 = vmatpush1.msra.mxu0 0.0
          %2178 = vmatprep.subr.mxu0 0.0
          %2179 = vmatpush1.msra.mxu0 0.0
          %2180 = vmatprep.subr.mxu0 0.0
          %2181 = vmatpush1.msra.mxu0 0.0
          %2182 = vmatprep.subr.mxu0 0.0
          %2183 = vmatpush1.msra.mxu0 0.0
          %2184 = vmatprep.subr.mxu0 0.0
          %2185 = vmatpush1.msra.mxu0 0.0
          %2186 = vmatprep.subr.mxu0 0.0
          %2187 = vmatpush1.msra.mxu0 0.0
          %2188 = vmatprep.subr.mxu0 0.0
          %2189 = vmatpush1.msra.mxu0 0.0
          %2190 = vmatprep.subr.mxu0 0.0
          %2191 = vmatpush1.msra.mxu0 0.0
          %2192 = vmatprep.subr.mxu0 0.0
          %2193 = vmatpush1.msra.mxu0 0.0
          %2194 = vmatprep.subr.mxu0 0.0
          %2195 = vmatpush1.msra.mxu0 0.0
          %2196 = vmatprep.subr.mxu0 0.0
          %2197 = vmatpush1.msra.mxu0 0.0
          %2198 = vmatprep.subr.mxu0 0.0
          %2199 = vmatpush1.msra.mxu0 0.0
          %2200 = vmatprep.subr.mxu0 0.0
          %2201 = vmatpush1.msra.mxu0 0.0
          %2202 = vmatprep.mubr.f32.mxu0 0.0
          %2203 = vmatmul.mubr.f32.gmra.mrb[0].mxu0 %v1990
          %v2204 = vpop.f32.mrb[0].mxu0
          %v2205 = vadd.f32 0.0, %v2204
          %v2206 = vpop.f32.mrb[0].mxu0
          %v2207 = vadd.f32 0.0, %v2206
          %2208 = vdwg.mxu0
          %v2209 = vadd.f32 %v1999, %v2134
          %v2210 = vadd.f32 %v2000, %v2136
          %v2211 = vadd.f32 %v2001, %v2205
          %v2212 = vadd.f32 %v2002, %v2207
          %v2213 = vmul.f32 %v2209, 0.5
          %v2214 = vtanh.pop %v2213
          %v2215 = vmul.f32 %v2214, 0.5
          %v2216 = vadd.f32 %v2215, 0.5
          %v2217 = vmul.f32 %v2210, 0.5
          %v2218 = vtanh.pop %v2217
          %v2219 = vmul.f32 %v2218, 0.5
          %v2220 = vadd.f32 %v2219, 0.5
          %v2221 = vtanh.pop %v2211
          %v2222 = vmul.f32 %v2212, 0.5
          %v2223 = vtanh.pop %v2222
          %v2224 = vmul.f32 %v2223, 0.5
          %v2225 = vadd.f32 %v2224, 0.5
          %v2226 = vmul.f32 %v2220, %v1991
          %v2227 = vmul.f32 %v2216, %v2221
          %v2228 = vadd.f32 %v2226, %v2227
          %v2229 = vtanh.pop %v2228
          %v2230 = vmul.f32 %v2225, %v2229
          %v2231 = vstv %s1995
          %vm2232 = vcmp.gt.s32.totalorder %v749, %v2231
          %v2233 = vsel %vm2232, 1, 0
          %2234 = vset.pattern.permute.xlu0 0
          %2235 = vperm.xlu0 %2234, %v2233
          %v2236 = vpop.permute.xlu0 %2235
          %vm2237 = vcmp.eq.s32.totalorder %v2236, 1
          %v2238 = vsel %vm2237, %v2230, %v1990
          %v2239 = vsel %vm2237, %v2228, %v1991
          %v2240 = vsel %vm2237, %v2230, 0.0
          %s2241 = scalar_lea.vmem %s401, 40 [#allocation14]
          %2242 = vst [vmem:[%s2241] sm:$0xff] %v2240
          %s2243 = sadd.s32 %s754, 6
          %s2244 = smul.u32 6, 4
          %s2245 = smul.addr %s2244, 8
          %s2246 = scalar_lea.vmem [#allocation2], %s2245
          %v2247 = vld [vmem:[%s2246] sm:$0xff]
          %v2248 = vld [vmem:[%s2246 + $0x8] sm:$0xff]
          %v2249 = vld [vmem:[%s2246 + $0x10] sm:$0xff]
          %v2250 = vld [vmem:[%s2246 + $0x18] sm:$0xff]
          %v2251 = vld [vmem:[%s360] sm:$0xff]
          %v2252 = vld [vmem:[%s360 + $0x8] sm:$0xff]
          %v2253 = vld [vmem:[%s360 + $0x10] sm:$0xff]
          %v2254 = vld [vmem:[%s360 + $0x18] sm:$0xff]
          %v2255 = vld [vmem:[%s360 + $0x20] sm:$0xff]
          %v2256 = vld [vmem:[%s360 + $0x28] sm:$0xff]
          %v2257 = vld [vmem:[%s360 + $0x30] sm:$0xff]
          %v2258 = vld [vmem:[%s360 + $0x38] sm:$0xff]
          %v2259 = vld [vmem:[%s360 + $0x40] sm:$0xff]
          %v2260 = vld [vmem:[%s360 + $0x48] sm:$0xff]
          %v2261 = vld [vmem:[%s360 + $0x50] sm:$0xff]
          %v2262 = vld [vmem:[%s360 + $0x58] sm:$0xff]
          %v2263 = vld [vmem:[%s360 + $0x60] sm:$0xff]
          %v2264 = vld [vmem:[%s360 + $0x68] sm:$0xff]
          %v2265 = vld [vmem:[%s360 + $0x70] sm:$0xff]
          %v2266 = vld [vmem:[%s360 + $0x78] sm:$0xff]
          %v2267 = vld [vmem:[%s360 + $0x80] sm:$0xff]
          %v2268 = vld [vmem:[%s360 + $0x88] sm:$0xff]
          %v2269 = vld [vmem:[%s360 + $0x90] sm:$0xff]
          %v2270 = vld [vmem:[%s360 + $0x98] sm:$0xff]
          %v2271 = vld [vmem:[%s360 + $0xa0] sm:$0xff]
          %v2272 = vld [vmem:[%s360 + $0xa8] sm:$0xff]
          %v2273 = vld [vmem:[%s360 + $0xb0] sm:$0xff]
          %v2274 = vld [vmem:[%s360 + $0xb8] sm:$0xff]
          %v2275 = vld [vmem:[%s360 + $0xc0] sm:$0xff]
          %v2276 = vld [vmem:[%s360 + $0xc8] sm:$0xff]
          %v2277 = vld [vmem:[%s360 + $0xd0] sm:$0xff]
          %v2278 = vld [vmem:[%s360 + $0xd8] sm:$0xff]
          %v2279 = vld [vmem:[%s360 + $0xe0] sm:$0xff]
          %v2280 = vld [vmem:[%s360 + $0xe8] sm:$0xff]
          %v2281 = vld [vmem:[%s360 + $0xf0] sm:$0xff]
          %v2282 = vld [vmem:[%s360 + $0xf8] sm:$0xff]
          %v2283 = vld [vmem:[%s360 + $0x100] sm:$0xff]
          %v2284 = vld [vmem:[%s360 + $0x108] sm:$0xff]
          %v2285 = vld [vmem:[%s360 + $0x110] sm:$0xff]
          %v2286 = vld [vmem:[%s360 + $0x118] sm:$0xff]
          %v2287 = vld [vmem:[%s360 + $0x120] sm:$0xff]
          %v2288 = vld [vmem:[%s360 + $0x128] sm:$0xff]
          %v2289 = vld [vmem:[%s360 + $0x130] sm:$0xff]
          %v2290 = vld [vmem:[%s360 + $0x138] sm:$0xff]
          %v2291 = vld [vmem:[%s360 + $0x140] sm:$0xff]
          %v2292 = vld [vmem:[%s360 + $0x148] sm:$0xff]
          %v2293 = vld [vmem:[%s360 + $0x150] sm:$0xff]
          %v2294 = vld [vmem:[%s360 + $0x158] sm:$0xff]
          %v2295 = vld [vmem:[%s360 + $0x160] sm:$0xff]
          %v2296 = vld [vmem:[%s360 + $0x168] sm:$0xff]
          %v2297 = vld [vmem:[%s360 + $0x170] sm:$0xff]
          %v2298 = vld [vmem:[%s360 + $0x178] sm:$0xff]
          %v2299 = vld [vmem:[%s360 + $0x180] sm:$0xff]
          %v2300 = vld [vmem:[%s360 + $0x188] sm:$0xff]
          %v2301 = vld [vmem:[%s360 + $0x190] sm:$0xff]
          %v2302 = vld [vmem:[%s360 + $0x198] sm:$0xff]
          %v2303 = vld [vmem:[%s360 + $0x1a0] sm:$0xff]
          %v2304 = vld [vmem:[%s360 + $0x1a8] sm:$0xff]
          %v2305 = vld [vmem:[%s360 + $0x1b0] sm:$0xff]
          %v2306 = vld [vmem:[%s360 + $0x1b8] sm:$0xff]
          %v2307 = vld [vmem:[%s360 + $0x1c0] sm:$0xff]
          %v2308 = vld [vmem:[%s360 + $0x1c8] sm:$0xff]
          %v2309 = vld [vmem:[%s360 + $0x1d0] sm:$0xff]
          %v2310 = vld [vmem:[%s360 + $0x1d8] sm:$0xff]
          %v2311 = vld [vmem:[%s360 + $0x1e0] sm:$0xff]
          %v2312 = vld [vmem:[%s360 + $0x1e8] sm:$0xff]
          %v2313 = vld [vmem:[%s360 + $0x1f0] sm:$0xff]
          %v2314 = vld [vmem:[%s360 + $0x1f8] sm:$0xff]
          %2315 = vmatprep.subr.mxu0 %v2252
          %2316 = vmatpush1.msra.mxu0 %v2251
          %2317 = vmatprep.subr.mxu0 %v2256
          %2318 = vmatpush1.msra.mxu0 %v2255
          %2319 = vmatprep.subr.mxu0 %v2260
          %2320 = vmatpush1.msra.mxu0 %v2259
          %2321 = vmatprep.subr.mxu0 %v2264
          %2322 = vmatpush1.msra.mxu0 %v2263
          %2323 = vmatprep.subr.mxu0 %v2268
          %2324 = vmatpush1.msra.mxu0 %v2267
          %2325 = vmatprep.subr.mxu0 %v2272
          %2326 = vmatpush1.msra.mxu0 %v2271
          %2327 = vmatprep.subr.mxu0 %v2276
          %2328 = vmatpush1.msra.mxu0 %v2275
          %2329 = vmatprep.subr.mxu0 %v2280
          %2330 = vmatpush1.msra.mxu0 %v2279
          %2331 = vmatprep.subr.mxu0 %v2284
          %2332 = vmatpush1.msra.mxu0 %v2283
          %2333 = vmatprep.subr.mxu0 %v2288
          %2334 = vmatpush1.msra.mxu0 %v2287
          %2335 = vmatprep.subr.mxu0 %v2292
          %2336 = vmatpush1.msra.mxu0 %v2291
          %2337 = vmatprep.subr.mxu0 %v2296
          %2338 = vmatpush1.msra.mxu0 %v2295
          %2339 = vmatprep.subr.mxu0 %v2300
          %2340 = vmatpush1.msra.mxu0 %v2299
          %2341 = vmatprep.subr.mxu0 %v2304
          %2342 = vmatpush1.msra.mxu0 %v2303
          %2343 = vmatprep.subr.mxu0 %v2308
          %2344 = vmatpush1.msra.mxu0 %v2307
          %2345 = vmatprep.subr.mxu0 %v2312
          %2346 = vmatpush1.msra.mxu0 %v2311
          %2347 = vmatprep.subr.mxu0 0.0
          %2348 = vmatpush1.msra.mxu0 0.0
          %2349 = vmatprep.subr.mxu0 0.0
          %2350 = vmatpush1.msra.mxu0 0.0
          %2351 = vmatprep.subr.mxu0 0.0
          %2352 = vmatpush1.msra.mxu0 0.0
          %2353 = vmatprep.subr.mxu0 0.0
          %2354 = vmatpush1.msra.mxu0 0.0
          %2355 = vmatprep.subr.mxu0 0.0
          %2356 = vmatpush1.msra.mxu0 0.0
          %2357 = vmatprep.subr.mxu0 0.0
          %2358 = vmatpush1.msra.mxu0 0.0
          %2359 = vmatprep.subr.mxu0 0.0
          %2360 = vmatpush1.msra.mxu0 0.0
          %2361 = vmatprep.subr.mxu0 0.0
          %2362 = vmatpush1.msra.mxu0 0.0
          %2363 = vmatprep.subr.mxu0 0.0
          %2364 = vmatpush1.msra.mxu0 0.0
          %2365 = vmatprep.subr.mxu0 0.0
          %2366 = vmatpush1.msra.mxu0 0.0
          %2367 = vmatprep.subr.mxu0 0.0
          %2368 = vmatpush1.msra.mxu0 0.0
          %2369 = vmatprep.subr.mxu0 0.0
          %2370 = vmatpush1.msra.mxu0 0.0
          %2371 = vmatprep.subr.mxu0 0.0
          %2372 = vmatpush1.msra.mxu0 0.0
          %2373 = vmatprep.subr.mxu0 0.0
          %2374 = vmatpush1.msra.mxu0 0.0
          %2375 = vmatprep.subr.mxu0 0.0
          %2376 = vmatpush1.msra.mxu0 0.0
          %2377 = vmatprep.subr.mxu0 0.0
          %2378 = vmatpush1.msra.mxu0 0.0
          %2379 = vmatprep.mubr.f32.mxu0 0.0
          %2380 = vmatmul.mubr.f32.gmra.mrb[0].mxu0 %v2238
          %v2381 = vpop.f32.mrb[0].mxu0
          %v2382 = vadd.f32 0.0, %v2381
          %v2383 = vpop.f32.mrb[0].mxu0
          %v2384 = vadd.f32 0.0, %v2383
          %2385 = vdwg.mxu0
          %2386 = vmatprep.subr.mxu0 %v2254
          %2387 = vmatpush1.msra.mxu0 %v2253
          %2388 = vmatprep.subr.mxu0 %v2258
          %2389 = vmatpush1.msra.mxu0 %v2257
          %2390 = vmatprep.subr.mxu0 %v2262
          %2391 = vmatpush1.msra.mxu0 %v2261
          %2392 = vmatprep.subr.mxu0 %v2266
          %2393 = vmatpush1.msra.mxu0 %v2265
          %2394 = vmatprep.subr.mxu0 %v2270
          %2395 = vmatpush1.msra.mxu0 %v2269
          %2396 = vmatprep.subr.mxu0 %v2274
          %2397 = vmatpush1.msra.mxu0 %v2273
          %2398 = vmatprep.subr.mxu0 %v2278
          %2399 = vmatpush1.msra.mxu0 %v2277
          %2400 = vmatprep.subr.mxu0 %v2282
          %2401 = vmatpush1.msra.mxu0 %v2281
          %2402 = vmatprep.subr.mxu0 %v2286
          %2403 = vmatpush1.msra.mxu0 %v2285
          %2404 = vmatprep.subr.mxu0 %v2290
          %2405 = vmatpush1.msra.mxu0 %v2289
          %2406 = vmatprep.subr.mxu0 %v2294
          %2407 = vmatpush1.msra.mxu0 %v2293
          %2408 = vmatprep.subr.mxu0 %v2298
          %2409 = vmatpush1.msra.mxu0 %v2297
          %2410 = vmatprep.subr.mxu0 %v2302
          %2411 = vmatpush1.msra.mxu0 %v2301
          %2412 = vmatprep.subr.mxu0 %v2306
          %2413 = vmatpush1.msra.mxu0 %v2305
          %2414 = vmatprep.subr.mxu0 %v2310
          %2415 = vmatpush1.msra.mxu0 %v2309
          %2416 = vmatprep.subr.mxu0 %v2314
          %2417 = vmatpush1.msra.mxu0 %v2313
          %2418 = vmatprep.subr.mxu0 0.0
          %2419 = vmatpush1.msra.mxu0 0.0
          %2420 = vmatprep.subr.mxu0 0.0
          %2421 = vmatpush1.msra.mxu0 0.0
          %2422 = vmatprep.subr.mxu0 0.0
          %2423 = vmatpush1.msra.mxu0 0.0
          %2424 = vmatprep.subr.mxu0 0.0
          %2425 = vmatpush1.msra.mxu0 0.0
          %2426 = vmatprep.subr.mxu0 0.0
          %2427 = vmatpush1.msra.mxu0 0.0
          %2428 = vmatprep.subr.mxu0 0.0
          %2429 = vmatpush1.msra.mxu0 0.0
          %2430 = vmatprep.subr.mxu0 0.0
          %2431 = vmatpush1.msra.mxu0 0.0
          %2432 = vmatprep.subr.mxu0 0.0
          %2433 = vmatpush1.msra.mxu0 0.0
          %2434 = vmatprep.subr.mxu0 0.0
          %2435 = vmatpush1.msra.mxu0 0.0
          %2436 = vmatprep.subr.mxu0 0.0
          %2437 = vmatpush1.msra.mxu0 0.0
          %2438 = vmatprep.subr.mxu0 0.0
          %2439 = vmatpush1.msra.mxu0 0.0
          %2440 = vmatprep.subr.mxu0 0.0
          %2441 = vmatpush1.msra.mxu0 0.0
          %2442 = vmatprep.subr.mxu0 0.0
          %2443 = vmatpush1.msra.mxu0 0.0
          %2444 = vmatprep.subr.mxu0 0.0
          %2445 = vmatpush1.msra.mxu0 0.0
          %2446 = vmatprep.subr.mxu0 0.0
          %2447 = vmatpush1.msra.mxu0 0.0
          %2448 = vmatprep.subr.mxu0 0.0
          %2449 = vmatpush1.msra.mxu0 0.0
          %2450 = vmatprep.mubr.f32.mxu0 0.0
          %2451 = vmatmul.mubr.f32.gmra.mrb[0].mxu0 %v2238
          %v2452 = vpop.f32.mrb[0].mxu0
          %v2453 = vadd.f32 0.0, %v2452
          %v2454 = vpop.f32.mrb[0].mxu0
          %v2455 = vadd.f32 0.0, %v2454
          %2456 = vdwg.mxu0
          %v2457 = vadd.f32 %v2247, %v2382
          %v2458 = vadd.f32 %v2248, %v2384
          %v2459 = vadd.f32 %v2249, %v2453
          %v2460 = vadd.f32 %v2250, %v2455
          %v2461 = vmul.f32 %v2457, 0.5
          %v2462 = vtanh.pop %v2461
          %v2463 = vmul.f32 %v2462, 0.5
          %v2464 = vadd.f32 %v2463, 0.5
          %v2465 = vmul.f32 %v2458, 0.5
          %v2466 = vtanh.pop %v2465
          %v2467 = vmul.f32 %v2466, 0.5
          %v2468 = vadd.f32 %v2467, 0.5
          %v2469 = vtanh.pop %v2459
          %v2470 = vmul.f32 %v2460, 0.5
          %v2471 = vtanh.pop %v2470
          %v2472 = vmul.f32 %v2471, 0.5
          %v2473 = vadd.f32 %v2472, 0.5
          %v2474 = vmul.f32 %v2468, %v2239
          %v2475 = vmul.f32 %v2464, %v2469
          %v2476 = vadd.f32 %v2474, %v2475
          %v2477 = vtanh.pop %v2476
          %v2478 = vmul.f32 %v2473, %v2477
          %v2479 = vstv %s2243
          %vm2480 = vcmp.gt.s32.totalorder %v749, %v2479
          %v2481 = vsel %vm2480, 1, 0
          %2482 = vset.pattern.permute.xlu0 0
          %2483 = vperm.xlu0 %2482, %v2481
          %v2484 = vpop.permute.xlu0 %2483
          %vm2485 = vcmp.eq.s32.totalorder %v2484, 1
          %v2486 = vsel %vm2485, %v2478, %v2238
          %v2487 = vsel %vm2485, %v2476, %v2239
          %v2488 = vsel %vm2485, %v2478, 0.0
          %s2489 = scalar_lea.vmem %s401, 48 [#allocation14]
          %2490 = vst [vmem:[%s2489] sm:$0xff] %v2488
          %s2491 = sadd.s32 %s754, 7
          %s2492 = smul.u32 7, 4
          %s2493 = smul.addr %s2492, 8
          %s2494 = scalar_lea.vmem [#allocation2], %s2493
          %v2495 = vld [vmem:[%s2494] sm:$0xff]
          %v2496 = vld [vmem:[%s2494 + $0x8] sm:$0xff]
          %v2497 = vld [vmem:[%s2494 + $0x10] sm:$0xff]
          %v2498 = vld [vmem:[%s2494 + $0x18] sm:$0xff]
          %v2499 = vld [vmem:[%s360] sm:$0xff]
          %v2500 = vld [vmem:[%s360 + $0x8] sm:$0xff]
          %v2501 = vld [vmem:[%s360 + $0x10] sm:$0xff]
          %v2502 = vld [vmem:[%s360 + $0x18] sm:$0xff]
          %v2503 = vld [vmem:[%s360 + $0x20] sm:$0xff]
          %v2504 = vld [vmem:[%s360 + $0x28] sm:$0xff]
          %v2505 = vld [vmem:[%s360 + $0x30] sm:$0xff]
          %v2506 = vld [vmem:[%s360 + $0x38] sm:$0xff]
          %v2507 = vld [vmem:[%s360 + $0x40] sm:$0xff]
          %v2508 = vld [vmem:[%s360 + $0x48] sm:$0xff]
          %v2509 = vld [vmem:[%s360 + $0x50] sm:$0xff]
          %v2510 = vld [vmem:[%s360 + $0x58] sm:$0xff]
          %v2511 = vld [vmem:[%s360 + $0x60] sm:$0xff]
          %v2512 = vld [vmem:[%s360 + $0x68] sm:$0xff]
          %v2513 = vld [vmem:[%s360 + $0x70] sm:$0xff]
          %v2514 = vld [vmem:[%s360 + $0x78] sm:$0xff]
          %v2515 = vld [vmem:[%s360 + $0x80] sm:$0xff]
          %v2516 = vld [vmem:[%s360 + $0x88] sm:$0xff]
          %v2517 = vld [vmem:[%s360 + $0x90] sm:$0xff]
          %v2518 = vld [vmem:[%s360 + $0x98] sm:$0xff]
          %v2519 = vld [vmem:[%s360 + $0xa0] sm:$0xff]
          %v2520 = vld [vmem:[%s360 + $0xa8] sm:$0xff]
          %v2521 = vld [vmem:[%s360 + $0xb0] sm:$0xff]
          %v2522 = vld [vmem:[%s360 + $0xb8] sm:$0xff]
          %v2523 = vld [vmem:[%s360 + $0xc0] sm:$0xff]
          %v2524 = vld [vmem:[%s360 + $0xc8] sm:$0xff]
          %v2525 = vld [vmem:[%s360 + $0xd0] sm:$0xff]
          %v2526 = vld [vmem:[%s360 + $0xd8] sm:$0xff]
          %v2527 = vld [vmem:[%s360 + $0xe0] sm:$0xff]
          %v2528 = vld [vmem:[%s360 + $0xe8] sm:$0xff]
          %v2529 = vld [vmem:[%s360 + $0xf0] sm:$0xff]
          %v2530 = vld [vmem:[%s360 + $0xf8] sm:$0xff]
          %v2531 = vld [vmem:[%s360 + $0x100] sm:$0xff]
          %v2532 = vld [vmem:[%s360 + $0x108] sm:$0xff]
          %v2533 = vld [vmem:[%s360 + $0x110] sm:$0xff]
          %v2534 = vld [vmem:[%s360 + $0x118] sm:$0xff]
          %v2535 = vld [vmem:[%s360 + $0x120] sm:$0xff]
          %v2536 = vld [vmem:[%s360 + $0x128] sm:$0xff]
          %v2537 = vld [vmem:[%s360 + $0x130] sm:$0xff]
          %v2538 = vld [vmem:[%s360 + $0x138] sm:$0xff]
          %v2539 = vld [vmem:[%s360 + $0x140] sm:$0xff]
          %v2540 = vld [vmem:[%s360 + $0x148] sm:$0xff]
          %v2541 = vld [vmem:[%s360 + $0x150] sm:$0xff]
          %v2542 = vld [vmem:[%s360 + $0x158] sm:$0xff]
          %v2543 = vld [vmem:[%s360 + $0x160] sm:$0xff]
          %v2544 = vld [vmem:[%s360 + $0x168] sm:$0xff]
          %v2545 = vld [vmem:[%s360 + $0x170] sm:$0xff]
          %v2546 = vld [vmem:[%s360 + $0x178] sm:$0xff]
          %v2547 = vld [vmem:[%s360 + $0x180] sm:$0xff]
          %v2548 = vld [vmem:[%s360 + $0x188] sm:$0xff]
          %v2549 = vld [vmem:[%s360 + $0x190] sm:$0xff]
          %v2550 = vld [vmem:[%s360 + $0x198] sm:$0xff]
          %v2551 = vld [vmem:[%s360 + $0x1a0] sm:$0xff]
          %v2552 = vld [vmem:[%s360 + $0x1a8] sm:$0xff]
          %v2553 = vld [vmem:[%s360 + $0x1b0] sm:$0xff]
          %v2554 = vld [vmem:[%s360 + $0x1b8] sm:$0xff]
          %v2555 = vld [vmem:[%s360 + $0x1c0] sm:$0xff]
          %v2556 = vld [vmem:[%s360 + $0x1c8] sm:$0xff]
          %v2557 = vld [vmem:[%s360 + $0x1d0] sm:$0xff]
          %v2558 = vld [vmem:[%s360 + $0x1d8] sm:$0xff]
          %v2559 = vld [vmem:[%s360 + $0x1e0] sm:$0xff]
          %v2560 = vld [vmem:[%s360 + $0x1e8] sm:$0xff]
          %v2561 = vld [vmem:[%s360 + $0x1f0] sm:$0xff]
          %v2562 = vld [vmem:[%s360 + $0x1f8] sm:$0xff]
          %2563 = vmatprep.subr.mxu0 %v2500
          %2564 = vmatpush1.msra.mxu0 %v2499
          %2565 = vmatprep.subr.mxu0 %v2504
          %2566 = vmatpush1.msra.mxu0 %v2503
          %2567 = vmatprep.subr.mxu0 %v2508
          %2568 = vmatpush1.msra.mxu0 %v2507
          %2569 = vmatprep.subr.mxu0 %v2512
          %2570 = vmatpush1.msra.mxu0 %v2511
          %2571 = vmatprep.subr.mxu0 %v2516
          %2572 = vmatpush1.msra.mxu0 %v2515
          %2573 = vmatprep.subr.mxu0 %v2520
          %2574 = vmatpush1.msra.mxu0 %v2519
          %2575 = vmatprep.subr.mxu0 %v2524
          %2576 = vmatpush1.msra.mxu0 %v2523
          %2577 = vmatprep.subr.mxu0 %v2528
          %2578 = vmatpush1.msra.mxu0 %v2527
          %2579 = vmatprep.subr.mxu0 %v2532
          %2580 = vmatpush1.msra.mxu0 %v2531
          %2581 = vmatprep.subr.mxu0 %v2536
          %2582 = vmatpush1.msra.mxu0 %v2535
          %2583 = vmatprep.subr.mxu0 %v2540
          %2584 = vmatpush1.msra.mxu0 %v2539
          %2585 = vmatprep.subr.mxu0 %v2544
          %2586 = vmatpush1.msra.mxu0 %v2543
          %2587 = vmatprep.subr.mxu0 %v2548
          %2588 = vmatpush1.msra.mxu0 %v2547
          %2589 = vmatprep.subr.mxu0 %v2552
          %2590 = vmatpush1.msra.mxu0 %v2551
          %2591 = vmatprep.subr.mxu0 %v2556
          %2592 = vmatpush1.msra.mxu0 %v2555
          %2593 = vmatprep.subr.mxu0 %v2560
          %2594 = vmatpush1.msra.mxu0 %v2559
          %2595 = vmatprep.subr.mxu0 0.0
          %2596 = vmatpush1.msra.mxu0 0.0
          %2597 = vmatprep.subr.mxu0 0.0
          %2598 = vmatpush1.msra.mxu0 0.0
          %2599 = vmatprep.subr.mxu0 0.0
          %2600 = vmatpush1.msra.mxu0 0.0
          %2601 = vmatprep.subr.mxu0 0.0
          %2602 = vmatpush1.msra.mxu0 0.0
          %2603 = vmatprep.subr.mxu0 0.0
          %2604 = vmatpush1.msra.mxu0 0.0
          %2605 = vmatprep.subr.mxu0 0.0
          %2606 = vmatpush1.msra.mxu0 0.0
          %2607 = vmatprep.subr.mxu0 0.0
          %2608 = vmatpush1.msra.mxu0 0.0
          %2609 = vmatprep.subr.mxu0 0.0
          %2610 = vmatpush1.msra.mxu0 0.0
          %2611 = vmatprep.subr.mxu0 0.0
          %2612 = vmatpush1.msra.mxu0 0.0
          %2613 = vmatprep.subr.mxu0 0.0
          %2614 = vmatpush1.msra.mxu0 0.0
          %2615 = vmatprep.subr.mxu0 0.0
          %2616 = vmatpush1.msra.mxu0 0.0
          %2617 = vmatprep.subr.mxu0 0.0
          %2618 = vmatpush1.msra.mxu0 0.0
          %2619 = vmatprep.subr.mxu0 0.0
          %2620 = vmatpush1.msra.mxu0 0.0
          %2621 = vmatprep.subr.mxu0 0.0
          %2622 = vmatpush1.msra.mxu0 0.0
          %2623 = vmatprep.subr.mxu0 0.0
          %2624 = vmatpush1.msra.mxu0 0.0
          %2625 = vmatprep.subr.mxu0 0.0
          %2626 = vmatpush1.msra.mxu0 0.0
          %2627 = vmatprep.mubr.f32.mxu0 0.0
          %2628 = vmatmul.mubr.f32.gmra.mrb[0].mxu0 %v2486
          %v2629 = vpop.f32.mrb[0].mxu0
          %v2630 = vadd.f32 0.0, %v2629
          %v2631 = vpop.f32.mrb[0].mxu0
          %v2632 = vadd.f32 0.0, %v2631
          %2633 = vdwg.mxu0
          %2634 = vmatprep.subr.mxu0 %v2502
          %2635 = vmatpush1.msra.mxu0 %v2501
          %2636 = vmatprep.subr.mxu0 %v2506
          %2637 = vmatpush1.msra.mxu0 %v2505
          %2638 = vmatprep.subr.mxu0 %v2510
          %2639 = vmatpush1.msra.mxu0 %v2509
          %2640 = vmatprep.subr.mxu0 %v2514
          %2641 = vmatpush1.msra.mxu0 %v2513
          %2642 = vmatprep.subr.mxu0 %v2518
          %2643 = vmatpush1.msra.mxu0 %v2517
          %2644 = vmatprep.subr.mxu0 %v2522
          %2645 = vmatpush1.msra.mxu0 %v2521
          %2646 = vmatprep.subr.mxu0 %v2526
          %2647 = vmatpush1.msra.mxu0 %v2525
          %2648 = vmatprep.subr.mxu0 %v2530
          %2649 = vmatpush1.msra.mxu0 %v2529
          %2650 = vmatprep.subr.mxu0 %v2534
          %2651 = vmatpush1.msra.mxu0 %v2533
          %2652 = vmatprep.subr.mxu0 %v2538
          %2653 = vmatpush1.msra.mxu0 %v2537
          %2654 = vmatprep.subr.mxu0 %v2542
          %2655 = vmatpush1.msra.mxu0 %v2541
          %2656 = vmatprep.subr.mxu0 %v2546
          %2657 = vmatpush1.msra.mxu0 %v2545
          %2658 = vmatprep.subr.mxu0 %v2550
          %2659 = vmatpush1.msra.mxu0 %v2549
          %2660 = vmatprep.subr.mxu0 %v2554
          %2661 = vmatpush1.msra.mxu0 %v2553
          %2662 = vmatprep.subr.mxu0 %v2558
          %2663 = vmatpush1.msra.mxu0 %v2557
          %2664 = vmatprep.subr.mxu0 %v2562
          %2665 = vmatpush1.msra.mxu0 %v2561
          %2666 = vmatprep.subr.mxu0 0.0
          %2667 = vmatpush1.msra.mxu0 0.0
          %2668 = vmatprep.subr.mxu0 0.0
          %2669 = vmatpush1.msra.mxu0 0.0
          %2670 = vmatprep.subr.mxu0 0.0
          %2671 = vmatpush1.msra.mxu0 0.0
          %2672 = vmatprep.subr.mxu0 0.0
          %2673 = vmatpush1.msra.mxu0 0.0
          %2674 = vmatprep.subr.mxu0 0.0
          %2675 = vmatpush1.msra.mxu0 0.0
          %2676 = vmatprep.subr.mxu0 0.0
          %2677 = vmatpush1.msra.mxu0 0.0
          %2678 = vmatprep.subr.mxu0 0.0
          %2679 = vmatpush1.msra.mxu0 0.0
          %2680 = vmatprep.subr.mxu0 0.0
          %2681 = vmatpush1.msra.mxu0 0.0
          %2682 = vmatprep.subr.mxu0 0.0
          %2683 = vmatpush1.msra.mxu0 0.0
          %2684 = vmatprep.subr.mxu0 0.0
          %2685 = vmatpush1.msra.mxu0 0.0
          %2686 = vmatprep.subr.mxu0 0.0
          %2687 = vmatpush1.msra.mxu0 0.0
          %2688 = vmatprep.subr.mxu0 0.0
          %2689 = vmatpush1.msra.mxu0 0.0
          %2690 = vmatprep.subr.mxu0 0.0
          %2691 = vmatpush1.msra.mxu0 0.0
          %2692 = vmatprep.subr.mxu0 0.0
          %2693 = vmatpush1.msra.mxu0 0.0
          %2694 = vmatprep.subr.mxu0 0.0
          %2695 = vmatpush1.msra.mxu0 0.0
          %2696 = vmatprep.subr.mxu0 0.0
          %2697 = vmatpush1.msra.mxu0 0.0
          %2698 = vmatprep.mubr.f32.mxu0 0.0
          %2699 = vmatmul.mubr.f32.gmra.mrb[0].mxu0 %v2486
          %v2700 = vpop.f32.mrb[0].mxu0
          %v2701 = vadd.f32 0.0, %v2700
          %v2702 = vpop.f32.mrb[0].mxu0
          %v2703 = vadd.f32 0.0, %v2702
          %2704 = vdwg.mxu0
          %v2705 = vadd.f32 %v2495, %v2630
          %v2706 = vadd.f32 %v2496, %v2632
          %v2707 = vadd.f32 %v2497, %v2701
          %v2708 = vadd.f32 %v2498, %v2703
          %v2709 = vmul.f32 %v2705, 0.5
          %v2710 = vtanh.pop %v2709
          %v2711 = vmul.f32 %v2710, 0.5
          %v2712 = vadd.f32 %v2711, 0.5
          %v2713 = vmul.f32 %v2706, 0.5
          %v2714 = vtanh.pop %v2713
          %v2715 = vmul.f32 %v2714, 0.5
          %v2716 = vadd.f32 %v2715, 0.5
          %v2717 = vtanh.pop %v2707
          %v2718 = vmul.f32 %v2708, 0.5
          %v2719 = vtanh.pop %v2718
          %v2720 = vmul.f32 %v2719, 0.5
          %v2721 = vadd.f32 %v2720, 0.5
          %v2722 = vmul.f32 %v2716, %v2487
          %v2723 = vmul.f32 %v2712, %v2717
          %v2724 = vadd.f32 %v2722, %v2723
          %v2725 = vtanh.pop %v2724
          %v2726 = vmul.f32 %v2721, %v2725
          %v2727 = vstv %s2491
          %vm2728 = vcmp.gt.s32.totalorder %v749, %v2727
          %v2729 = vsel %vm2728, 1, 0
          %2730 = vset.pattern.permute.xlu0 0
          %2731 = vperm.xlu0 %2730, %v2729
          %v2732 = vpop.permute.xlu0 %2731
          %vm2733 = vcmp.eq.s32.totalorder %v2732, 1
          %v2734 = vsel %vm2733, %v2726, %v2486
          %v2735 = vsel %vm2733, %v2724, %v2487
          %v2736 = vsel %vm2733, %v2726, 0.0
          %s2737 = scalar_lea.vmem %s401, 56 [#allocation14]
          %2738 = vst [vmem:[%s2737] sm:$0xff] %v2736
          %2739 = vst [vmem:[#allocation3] sm:$0xff] %v2734
          %2740 = vst [vmem:[#allocation4] sm:$0xff] %v2735
        $region68: #{tpu_custom_call.1} parent=39 // pred_fallthru
          _
        %p2741 = scmp.eq.s32.totalorder %s30, 1
        // Predicated region
        $region69: #{tpu_custom_call.1} parent=39 // pred_check
          %p2742 = pneg %p2741
        $region70: #{tpu_custom_call.1} parent=39 // pred_check_branch
          %2744 = sbr.rel (%p2742) target = $region72
        $region71: #{tpu_custom_call.1} parent=39 // pred_region
          %s2745 = ssub.s32 0, %s31
          %s2746 = smul.u32 %s2745, 8
          %s2747 = scalar_lea.vmem [#allocation3], 8
          %v2748 = vld [vmem:[%s2747] sm:$0xff]
          %s2749 = scalar_lea.vmem [#allocation4], 8
          %v2750 = vld [vmem:[%s2749] sm:$0xff]
          %s2751 = sadd.s32 %s2746, 7
          %s2752 = smul.u32 7, 4
          %s2753 = smul.addr %s2752, 8
          %s2754 = scalar_lea.vmem [#allocation2], %s2753
          %v2755 = vld [vmem:[%s2754] sm:$0xff]
          %v2756 = vld [vmem:[%s2754 + $0x8] sm:$0xff]
          %v2757 = vld [vmem:[%s2754 + $0x10] sm:$0xff]
          %v2758 = vld [vmem:[%s2754 + $0x18] sm:$0xff]
          %v2759 = vld [vmem:[%s360] sm:$0xff]
          %v2760 = vld [vmem:[%s360 + $0x8] sm:$0xff]
          %v2761 = vld [vmem:[%s360 + $0x10] sm:$0xff]
          %v2762 = vld [vmem:[%s360 + $0x18] sm:$0xff]
          %v2763 = vld [vmem:[%s360 + $0x20] sm:$0xff]
          %v2764 = vld [vmem:[%s360 + $0x28] sm:$0xff]
          %v2765 = vld [vmem:[%s360 + $0x30] sm:$0xff]
          %v2766 = vld [vmem:[%s360 + $0x38] sm:$0xff]
          %v2767 = vld [vmem:[%s360 + $0x40] sm:$0xff]
          %v2768 = vld [vmem:[%s360 + $0x48] sm:$0xff]
          %v2769 = vld [vmem:[%s360 + $0x50] sm:$0xff]
          %v2770 = vld [vmem:[%s360 + $0x58] sm:$0xff]
          %v2771 = vld [vmem:[%s360 + $0x60] sm:$0xff]
          %v2772 = vld [vmem:[%s360 + $0x68] sm:$0xff]
          %v2773 = vld [vmem:[%s360 + $0x70] sm:$0xff]
          %v2774 = vld [vmem:[%s360 + $0x78] sm:$0xff]
          %v2775 = vld [vmem:[%s360 + $0x80] sm:$0xff]
          %v2776 = vld [vmem:[%s360 + $0x88] sm:$0xff]
          %v2777 = vld [vmem:[%s360 + $0x90] sm:$0xff]
          %v2778 = vld [vmem:[%s360 + $0x98] sm:$0xff]
          %v2779 = vld [vmem:[%s360 + $0xa0] sm:$0xff]
          %v2780 = vld [vmem:[%s360 + $0xa8] sm:$0xff]
          %v2781 = vld [vmem:[%s360 + $0xb0] sm:$0xff]
          %v2782 = vld [vmem:[%s360 + $0xb8] sm:$0xff]
          %v2783 = vld [vmem:[%s360 + $0xc0] sm:$0xff]
          %v2784 = vld [vmem:[%s360 + $0xc8] sm:$0xff]
          %v2785 = vld [vmem:[%s360 + $0xd0] sm:$0xff]
          %v2786 = vld [vmem:[%s360 + $0xd8] sm:$0xff]
          %v2787 = vld [vmem:[%s360 + $0xe0] sm:$0xff]
          %v2788 = vld [vmem:[%s360 + $0xe8] sm:$0xff]
          %v2789 = vld [vmem:[%s360 + $0xf0] sm:$0xff]
          %v2790 = vld [vmem:[%s360 + $0xf8] sm:$0xff]
          %v2791 = vld [vmem:[%s360 + $0x100] sm:$0xff]
          %v2792 = vld [vmem:[%s360 + $0x108] sm:$0xff]
          %v2793 = vld [vmem:[%s360 + $0x110] sm:$0xff]
          %v2794 = vld [vmem:[%s360 + $0x118] sm:$0xff]
          %v2795 = vld [vmem:[%s360 + $0x120] sm:$0xff]
          %v2796 = vld [vmem:[%s360 + $0x128] sm:$0xff]
          %v2797 = vld [vmem:[%s360 + $0x130] sm:$0xff]
          %v2798 = vld [vmem:[%s360 + $0x138] sm:$0xff]
          %v2799 = vld [vmem:[%s360 + $0x140] sm:$0xff]
          %v2800 = vld [vmem:[%s360 + $0x148] sm:$0xff]
          %v2801 = vld [vmem:[%s360 + $0x150] sm:$0xff]
          %v2802 = vld [vmem:[%s360 + $0x158] sm:$0xff]
          %v2803 = vld [vmem:[%s360 + $0x160] sm:$0xff]
          %v2804 = vld [vmem:[%s360 + $0x168] sm:$0xff]
          %v2805 = vld [vmem:[%s360 + $0x170] sm:$0xff]
          %v2806 = vld [vmem:[%s360 + $0x178] sm:$0xff]
          %v2807 = vld [vmem:[%s360 + $0x180] sm:$0xff]
          %v2808 = vld [vmem:[%s360 + $0x188] sm:$0xff]
          %v2809 = vld [vmem:[%s360 + $0x190] sm:$0xff]
          %v2810 = vld [vmem:[%s360 + $0x198] sm:$0xff]
          %v2811 = vld [vmem:[%s360 + $0x1a0] sm:$0xff]
          %v2812 = vld [vmem:[%s360 + $0x1a8] sm:$0xff]
          %v2813 = vld [vmem:[%s360 + $0x1b0] sm:$0xff]
          %v2814 = vld [vmem:[%s360 + $0x1b8] sm:$0xff]
          %v2815 = vld [vmem:[%s360 + $0x1c0] sm:$0xff]
          %v2816 = vld [vmem:[%s360 + $0x1c8] sm:$0xff]
          %v2817 = vld [vmem:[%s360 + $0x1d0] sm:$0xff]
          %v2818 = vld [vmem:[%s360 + $0x1d8] sm:$0xff]
          %v2819 = vld [vmem:[%s360 + $0x1e0] sm:$0xff]
          %v2820 = vld [vmem:[%s360 + $0x1e8] sm:$0xff]
          %v2821 = vld [vmem:[%s360 + $0x1f0] sm:$0xff]
          %v2822 = vld [vmem:[%s360 + $0x1f8] sm:$0xff]
          %2823 = vmatprep.subr.mxu0 %v2760
          %2824 = vmatpush1.msra.mxu0 %v2759
          %2825 = vmatprep.subr.mxu0 %v2764
          %2826 = vmatpush1.msra.mxu0 %v2763
          %2827 = vmatprep.subr.mxu0 %v2768
          %2828 = vmatpush1.msra.mxu0 %v2767
          %2829 = vmatprep.subr.mxu0 %v2772
          %2830 = vmatpush1.msra.mxu0 %v2771
          %2831 = vmatprep.subr.mxu0 %v2776
          %2832 = vmatpush1.msra.mxu0 %v2775
          %2833 = vmatprep.subr.mxu0 %v2780
          %2834 = vmatpush1.msra.mxu0 %v2779
          %2835 = vmatprep.subr.mxu0 %v2784
          %2836 = vmatpush1.msra.mxu0 %v2783
          %2837 = vmatprep.subr.mxu0 %v2788
          %2838 = vmatpush1.msra.mxu0 %v2787
          %2839 = vmatprep.subr.mxu0 %v2792
          %2840 = vmatpush1.msra.mxu0 %v2791
          %2841 = vmatprep.subr.mxu0 %v2796
          %2842 = vmatpush1.msra.mxu0 %v2795
          %2843 = vmatprep.subr.mxu0 %v2800
          %2844 = vmatpush1.msra.mxu0 %v2799
          %2845 = vmatprep.subr.mxu0 %v2804
          %2846 = vmatpush1.msra.mxu0 %v2803
          %2847 = vmatprep.subr.mxu0 %v2808
          %2848 = vmatpush1.msra.mxu0 %v2807
          %2849 = vmatprep.subr.mxu0 %v2812
          %2850 = vmatpush1.msra.mxu0 %v2811
          %2851 = vmatprep.subr.mxu0 %v2816
          %2852 = vmatpush1.msra.mxu0 %v2815
          %2853 = vmatprep.subr.mxu0 %v2820
          %2854 = vmatpush1.msra.mxu0 %v2819
          %2855 = vmatprep.subr.mxu0 0.0
          %2856 = vmatpush1.msra.mxu0 0.0
          %2857 = vmatprep.subr.mxu0 0.0
          %2858 = vmatpush1.msra.mxu0 0.0
          %2859 = vmatprep.subr.mxu0 0.0
          %2860 = vmatpush1.msra.mxu0 0.0
          %2861 = vmatprep.subr.mxu0 0.0
          %2862 = vmatpush1.msra.mxu0 0.0
          %2863 = vmatprep.subr.mxu0 0.0
          %2864 = vmatpush1.msra.mxu0 0.0
          %2865 = vmatprep.subr.mxu0 0.0
          %2866 = vmatpush1.msra.mxu0 0.0
          %2867 = vmatprep.subr.mxu0 0.0
          %2868 = vmatpush1.msra.mxu0 0.0
          %2869 = vmatprep.subr.mxu0 0.0
          %2870 = vmatpush1.msra.mxu0 0.0
          %2871 = vmatprep.subr.mxu0 0.0
          %2872 = vmatpush1.msra.mxu0 0.0
          %2873 = vmatprep.subr.mxu0 0.0
          %2874 = vmatpush1.msra.mxu0 0.0
          %2875 = vmatprep.subr.mxu0 0.0
          %2876 = vmatpush1.msra.mxu0 0.0
          %2877 = vmatprep.subr.mxu0 0.0
          %2878 = vmatpush1.msra.mxu0 0.0
          %2879 = vmatprep.subr.mxu0 0.0
          %2880 = vmatpush1.msra.mxu0 0.0
          %2881 = vmatprep.subr.mxu0 0.0
          %2882 = vmatpush1.msra.mxu0 0.0
          %2883 = vmatprep.subr.mxu0 0.0
          %2884 = vmatpush1.msra.mxu0 0.0
          %2885 = vmatprep.subr.mxu0 0.0
          %2886 = vmatpush1.msra.mxu0 0.0
          %2887 = vmatprep.mubr.f32.mxu0 0.0
          %2888 = vmatmul.mubr.f32.gmra.mrb[0].mxu0 %v2748
          %v2889 = vpop.f32.mrb[0].mxu0
          %v2890 = vadd.f32 0.0, %v2889
          %v2891 = vpop.f32.mrb[0].mxu0
          %v2892 = vadd.f32 0.0, %v2891
          %2893 = vdwg.mxu0
          %2894 = vmatprep.subr.mxu0 %v2762
          %2895 = vmatpush1.msra.mxu0 %v2761
          %2896 = vmatprep.subr.mxu0 %v2766
          %2897 = vmatpush1.msra.mxu0 %v2765
          %2898 = vmatprep.subr.mxu0 %v2770
          %2899 = vmatpush1.msra.mxu0 %v2769
          %2900 = vmatprep.subr.mxu0 %v2774
          %2901 = vmatpush1.msra.mxu0 %v2773
          %2902 = vmatprep.subr.mxu0 %v2778
          %2903 = vmatpush1.msra.mxu0 %v2777
          %2904 = vmatprep.subr.mxu0 %v2782
          %2905 = vmatpush1.msra.mxu0 %v2781
          %2906 = vmatprep.subr.mxu0 %v2786
          %2907 = vmatpush1.msra.mxu0 %v2785
          %2908 = vmatprep.subr.mxu0 %v2790
          %2909 = vmatpush1.msra.mxu0 %v2789
          %2910 = vmatprep.subr.mxu0 %v2794
          %2911 = vmatpush1.msra.mxu0 %v2793
          %2912 = vmatprep.subr.mxu0 %v2798
          %2913 = vmatpush1.msra.mxu0 %v2797
          %2914 = vmatprep.subr.mxu0 %v2802
          %2915 = vmatpush1.msra.mxu0 %v2801
          %2916 = vmatprep.subr.mxu0 %v2806
          %2917 = vmatpush1.msra.mxu0 %v2805
          %2918 = vmatprep.subr.mxu0 %v2810
          %2919 = vmatpush1.msra.mxu0 %v2809
          %2920 = vmatprep.subr.mxu0 %v2814
          %2921 = vmatpush1.msra.mxu0 %v2813
          %2922 = vmatprep.subr.mxu0 %v2818
          %2923 = vmatpush1.msra.mxu0 %v2817
          %2924 = vmatprep.subr.mxu0 %v2822
          %2925 = vmatpush1.msra.mxu0 %v2821
          %2926 = vmatprep.subr.mxu0 0.0
          %2927 = vmatpush1.msra.mxu0 0.0
          %2928 = vmatprep.subr.mxu0 0.0
          %2929 = vmatpush1.msra.mxu0 0.0
          %2930 = vmatprep.subr.mxu0 0.0
          %2931 = vmatpush1.msra.mxu0 0.0
          %2932 = vmatprep.subr.mxu0 0.0
          %2933 = vmatpush1.msra.mxu0 0.0
          %2934 = vmatprep.subr.mxu0 0.0
          %2935 = vmatpush1.msra.mxu0 0.0
          %2936 = vmatprep.subr.mxu0 0.0
          %2937 = vmatpush1.msra.mxu0 0.0
          %2938 = vmatprep.subr.mxu0 0.0
          %2939 = vmatpush1.msra.mxu0 0.0
          %2940 = vmatprep.subr.mxu0 0.0
          %2941 = vmatpush1.msra.mxu0 0.0
          %2942 = vmatprep.subr.mxu0 0.0
          %2943 = vmatpush1.msra.mxu0 0.0
          %2944 = vmatprep.subr.mxu0 0.0
          %2945 = vmatpush1.msra.mxu0 0.0
          %2946 = vmatprep.subr.mxu0 0.0
          %2947 = vmatpush1.msra.mxu0 0.0
          %2948 = vmatprep.subr.mxu0 0.0
          %2949 = vmatpush1.msra.mxu0 0.0
          %2950 = vmatprep.subr.mxu0 0.0
          %2951 = vmatpush1.msra.mxu0 0.0
          %2952 = vmatprep.subr.mxu0 0.0
          %2953 = vmatpush1.msra.mxu0 0.0
          %2954 = vmatprep.subr.mxu0 0.0
          %2955 = vmatpush1.msra.mxu0 0.0
          %2956 = vmatprep.subr.mxu0 0.0
          %2957 = vmatpush1.msra.mxu0 0.0
          %2958 = vmatprep.mubr.f32.mxu0 0.0
          %2959 = vmatmul.mubr.f32.gmra.mrb[0].mxu0 %v2748
          %v2960 = vpop.f32.mrb[0].mxu0
          %v2961 = vadd.f32 0.0, %v2960
          %v2962 = vpop.f32.mrb[0].mxu0
          %v2963 = vadd.f32 0.0, %v2962
          %2964 = vdwg.mxu0
          %v2965 = vadd.f32 %v2755, %v2890
          %v2966 = vadd.f32 %v2756, %v2892
          %v2967 = vadd.f32 %v2757, %v2961
          %v2968 = vadd.f32 %v2758, %v2963
          %v2969 = vmul.f32 %v2965, 0.5
          %v2970 = vtanh.pop %v2969
          %v2971 = vmul.f32 %v2970, 0.5
          %v2972 = vadd.f32 %v2971, 0.5
          %v2973 = vmul.f32 %v2966, 0.5
          %v2974 = vtanh.pop %v2973
          %v2975 = vmul.f32 %v2974, 0.5
          %v2976 = vadd.f32 %v2975, 0.5
          %v2977 = vtanh.pop %v2967
          %v2978 = vmul.f32 %v2968, 0.5
          %v2979 = vtanh.pop %v2978
          %v2980 = vmul.f32 %v2979, 0.5
          %v2981 = vadd.f32 %v2980, 0.5
          %v2982 = vmul.f32 %v2976, %v2750
          %v2983 = vmul.f32 %v2972, %v2977
          %v2984 = vadd.f32 %v2982, %v2983
          %v2985 = vtanh.pop %v2984
          %v2986 = vmul.f32 %v2981, %v2985
          %v2987 = vstv %s2751
          %vm2988 = vcmp.gt.s32.totalorder %v749, %v2987
          %v2989 = vsel %vm2988, 1, 0
          %2990 = vset.pattern.permute.xlu0 0
          %2991 = vperm.xlu0 %2990, %v2989
          %v2992 = vpop.permute.xlu0 %2991
          %vm2993 = vcmp.eq.s32.totalorder %v2992, 1
          %v2994 = vsel %vm2993, %v2986, %v2748
          %v2995 = vsel %vm2993, %v2984, %v2750
          %v2996 = vsel %vm2993, %v2986, 0.0
          %s2997 = scalar_lea.vmem %s401, 56 [#allocation14]
          %2998 = vst [vmem:[%s2997] sm:$0xff] %v2996
          %s2999 = sadd.s32 %s2746, 6
          %s3000 = smul.u32 6, 4
          %s3001 = smul.addr %s3000, 8
          %s3002 = scalar_lea.vmem [#allocation2], %s3001
          %v3003 = vld [vmem:[%s3002] sm:$0xff]
          %v3004 = vld [vmem:[%s3002 + $0x8] sm:$0xff]
          %v3005 = vld [vmem:[%s3002 + $0x10] sm:$0xff]
          %v3006 = vld [vmem:[%s3002 + $0x18] sm:$0xff]
          %v3007 = vld [vmem:[%s360] sm:$0xff]
          %v3008 = vld [vmem:[%s360 + $0x8] sm:$0xff]
          %v3009 = vld [vmem:[%s360 + $0x10] sm:$0xff]
          %v3010 = vld [vmem:[%s360 + $0x18] sm:$0xff]
          %v3011 = vld [vmem:[%s360 + $0x20] sm:$0xff]
          %v3012 = vld [vmem:[%s360 + $0x28] sm:$0xff]
          %v3013 = vld [vmem:[%s360 + $0x30] sm:$0xff]
          %v3014 = vld [vmem:[%s360 + $0x38] sm:$0xff]
          %v3015 = vld [vmem:[%s360 + $0x40] sm:$0xff]
          %v3016 = vld [vmem:[%s360 + $0x48] sm:$0xff]
          %v3017 = vld [vmem:[%s360 + $0x50] sm:$0xff]
          %v3018 = vld [vmem:[%s360 + $0x58] sm:$0xff]
          %v3019 = vld [vmem:[%s360 + $0x60] sm:$0xff]
          %v3020 = vld [vmem:[%s360 + $0x68] sm:$0xff]
          %v3021 = vld [vmem:[%s360 + $0x70] sm:$0xff]
          %v3022 = vld [vmem:[%s360 + $0x78] sm:$0xff]
          %v3023 = vld [vmem:[%s360 + $0x80] sm:$0xff]
          %v3024 = vld [vmem:[%s360 + $0x88] sm:$0xff]
          %v3025 = vld [vmem:[%s360 + $0x90] sm:$0xff]
          %v3026 = vld [vmem:[%s360 + $0x98] sm:$0xff]
          %v3027 = vld [vmem:[%s360 + $0xa0] sm:$0xff]
          %v3028 = vld [vmem:[%s360 + $0xa8] sm:$0xff]
          %v3029 = vld [vmem:[%s360 + $0xb0] sm:$0xff]
          %v3030 = vld [vmem:[%s360 + $0xb8] sm:$0xff]
          %v3031 = vld [vmem:[%s360 + $0xc0] sm:$0xff]
          %v3032 = vld [vmem:[%s360 + $0xc8] sm:$0xff]
          %v3033 = vld [vmem:[%s360 + $0xd0] sm:$0xff]
          %v3034 = vld [vmem:[%s360 + $0xd8] sm:$0xff]
          %v3035 = vld [vmem:[%s360 + $0xe0] sm:$0xff]
          %v3036 = vld [vmem:[%s360 + $0xe8] sm:$0xff]
          %v3037 = vld [vmem:[%s360 + $0xf0] sm:$0xff]
          %v3038 = vld [vmem:[%s360 + $0xf8] sm:$0xff]
          %v3039 = vld [vmem:[%s360 + $0x100] sm:$0xff]
          %v3040 = vld [vmem:[%s360 + $0x108] sm:$0xff]
          %v3041 = vld [vmem:[%s360 + $0x110] sm:$0xff]
          %v3042 = vld [vmem:[%s360 + $0x118] sm:$0xff]
          %v3043 = vld [vmem:[%s360 + $0x120] sm:$0xff]
          %v3044 = vld [vmem:[%s360 + $0x128] sm:$0xff]
          %v3045 = vld [vmem:[%s360 + $0x130] sm:$0xff]
          %v3046 = vld [vmem:[%s360 + $0x138] sm:$0xff]
          %v3047 = vld [vmem:[%s360 + $0x140] sm:$0xff]
          %v3048 = vld [vmem:[%s360 + $0x148] sm:$0xff]
          %v3049 = vld [vmem:[%s360 + $0x150] sm:$0xff]
          %v3050 = vld [vmem:[%s360 + $0x158] sm:$0xff]
          %v3051 = vld [vmem:[%s360 + $0x160] sm:$0xff]
          %v3052 = vld [vmem:[%s360 + $0x168] sm:$0xff]
          %v3053 = vld [vmem:[%s360 + $0x170] sm:$0xff]
          %v3054 = vld [vmem:[%s360 + $0x178] sm:$0xff]
          %v3055 = vld [vmem:[%s360 + $0x180] sm:$0xff]
          %v3056 = vld [vmem:[%s360 + $0x188] sm:$0xff]
          %v3057 = vld [vmem:[%s360 + $0x190] sm:$0xff]
          %v3058 = vld [vmem:[%s360 + $0x198] sm:$0xff]
          %v3059 = vld [vmem:[%s360 + $0x1a0] sm:$0xff]
          %v3060 = vld [vmem:[%s360 + $0x1a8] sm:$0xff]
          %v3061 = vld [vmem:[%s360 + $0x1b0] sm:$0xff]
          %v3062 = vld [vmem:[%s360 + $0x1b8] sm:$0xff]
          %v3063 = vld [vmem:[%s360 + $0x1c0] sm:$0xff]
          %v3064 = vld [vmem:[%s360 + $0x1c8] sm:$0xff]
          %v3065 = vld [vmem:[%s360 + $0x1d0] sm:$0xff]
          %v3066 = vld [vmem:[%s360 + $0x1d8] sm:$0xff]
          %v3067 = vld [vmem:[%s360 + $0x1e0] sm:$0xff]
          %v3068 = vld [vmem:[%s360 + $0x1e8] sm:$0xff]
          %v3069 = vld [vmem:[%s360 + $0x1f0] sm:$0xff]
          %v3070 = vld [vmem:[%s360 + $0x1f8] sm:$0xff]
          %3071 = vmatprep.subr.mxu0 %v3008
          %3072 = vmatpush1.msra.mxu0 %v3007
          %3073 = vmatprep.subr.mxu0 %v3012
          %3074 = vmatpush1.msra.mxu0 %v3011
          %3075 = vmatprep.subr.mxu0 %v3016
          %3076 = vmatpush1.msra.mxu0 %v3015
          %3077 = vmatprep.subr.mxu0 %v3020
          %3078 = vmatpush1.msra.mxu0 %v3019
          %3079 = vmatprep.subr.mxu0 %v3024
          %3080 = vmatpush1.msra.mxu0 %v3023
          %3081 = vmatprep.subr.mxu0 %v3028
          %3082 = vmatpush1.msra.mxu0 %v3027
          %3083 = vmatprep.subr.mxu0 %v3032
          %3084 = vmatpush1.msra.mxu0 %v3031
          %3085 = vmatprep.subr.mxu0 %v3036
          %3086 = vmatpush1.msra.mxu0 %v3035
          %3087 = vmatprep.subr.mxu0 %v3040
          %3088 = vmatpush1.msra.mxu0 %v3039
          %3089 = vmatprep.subr.mxu0 %v3044
          %3090 = vmatpush1.msra.mxu0 %v3043
          %3091 = vmatprep.subr.mxu0 %v3048
          %3092 = vmatpush1.msra.mxu0 %v3047
          %3093 = vmatprep.subr.mxu0 %v3052
          %3094 = vmatpush1.msra.mxu0 %v3051
          %3095 = vmatprep.subr.mxu0 %v3056
          %3096 = vmatpush1.msra.mxu0 %v3055
          %3097 = vmatprep.subr.mxu0 %v3060
          %3098 = vmatpush1.msra.mxu0 %v3059
          %3099 = vmatprep.subr.mxu0 %v3064
          %3100 = vmatpush1.msra.mxu0 %v3063
          %3101 = vmatprep.subr.mxu0 %v3068
          %3102 = vmatpush1.msra.mxu0 %v3067
          %3103 = vmatprep.subr.mxu0 0.0
          %3104 = vmatpush1.msra.mxu0 0.0
          %3105 = vmatprep.subr.mxu0 0.0
          %3106 = vmatpush1.msra.mxu0 0.0
          %3107 = vmatprep.subr.mxu0 0.0
          %3108 = vmatpush1.msra.mxu0 0.0
          %3109 = vmatprep.subr.mxu0 0.0
          %3110 = vmatpush1.msra.mxu0 0.0
          %3111 = vmatprep.subr.mxu0 0.0
          %3112 = vmatpush1.msra.mxu0 0.0
          %3113 = vmatprep.subr.mxu0 0.0
          %3114 = vmatpush1.msra.mxu0 0.0
          %3115 = vmatprep.subr.mxu0 0.0
          %3116 = vmatpush1.msra.mxu0 0.0
          %3117 = vmatprep.subr.mxu0 0.0
          %3118 = vmatpush1.msra.mxu0 0.0
          %3119 = vmatprep.subr.mxu0 0.0
          %3120 = vmatpush1.msra.mxu0 0.0
          %3121 = vmatprep.subr.mxu0 0.0
          %3122 = vmatpush1.msra.mxu0 0.0
          %3123 = vmatprep.subr.mxu0 0.0
          %3124 = vmatpush1.msra.mxu0 0.0
          %3125 = vmatprep.subr.mxu0 0.0
          %3126 = vmatpush1.msra.mxu0 0.0
          %3127 = vmatprep.subr.mxu0 0.0
          %3128 = vmatpush1.msra.mxu0 0.0
          %3129 = vmatprep.subr.mxu0 0.0
          %3130 = vmatpush1.msra.mxu0 0.0
          %3131 = vmatprep.subr.mxu0 0.0
          %3132 = vmatpush1.msra.mxu0 0.0
          %3133 = vmatprep.subr.mxu0 0.0
          %3134 = vmatpush1.msra.mxu0 0.0
          %3135 = vmatprep.mubr.f32.mxu0 0.0
          %3136 = vmatmul.mubr.f32.gmra.mrb[0].mxu0 %v2994
          %v3137 = vpop.f32.mrb[0].mxu0
          %v3138 = vadd.f32 0.0, %v3137
          %v3139 = vpop.f32.mrb[0].mxu0
          %v3140 = vadd.f32 0.0, %v3139
          %3141 = vdwg.mxu0
          %3142 = vmatprep.subr.mxu0 %v3010
          %3143 = vmatpush1.msra.mxu0 %v3009
          %3144 = vmatprep.subr.mxu0 %v3014
          %3145 = vmatpush1.msra.mxu0 %v3013
          %3146 = vmatprep.subr.mxu0 %v3018
          %3147 = vmatpush1.msra.mxu0 %v3017
          %3148 = vmatprep.subr.mxu0 %v3022
          %3149 = vmatpush1.msra.mxu0 %v3021
          %3150 = vmatprep.subr.mxu0 %v3026
          %3151 = vmatpush1.msra.mxu0 %v3025
          %3152 = vmatprep.subr.mxu0 %v3030
          %3153 = vmatpush1.msra.mxu0 %v3029
          %3154 = vmatprep.subr.mxu0 %v3034
          %3155 = vmatpush1.msra.mxu0 %v3033
          %3156 = vmatprep.subr.mxu0 %v3038
          %3157 = vmatpush1.msra.mxu0 %v3037
          %3158 = vmatprep.subr.mxu0 %v3042
          %3159 = vmatpush1.msra.mxu0 %v3041
          %3160 = vmatprep.subr.mxu0 %v3046
          %3161 = vmatpush1.msra.mxu0 %v3045
          %3162 = vmatprep.subr.mxu0 %v3050
          %3163 = vmatpush1.msra.mxu0 %v3049
          %3164 = vmatprep.subr.mxu0 %v3054
          %3165 = vmatpush1.msra.mxu0 %v3053
          %3166 = vmatprep.subr.mxu0 %v3058
          %3167 = vmatpush1.msra.mxu0 %v3057
          %3168 = vmatprep.subr.mxu0 %v3062
          %3169 = vmatpush1.msra.mxu0 %v3061
          %3170 = vmatprep.subr.mxu0 %v3066
          %3171 = vmatpush1.msra.mxu0 %v3065
          %3172 = vmatprep.subr.mxu0 %v3070
          %3173 = vmatpush1.msra.mxu0 %v3069
          %3174 = vmatprep.subr.mxu0 0.0
          %3175 = vmatpush1.msra.mxu0 0.0
          %3176 = vmatprep.subr.mxu0 0.0
          %3177 = vmatpush1.msra.mxu0 0.0
          %3178 = vmatprep.subr.mxu0 0.0
          %3179 = vmatpush1.msra.mxu0 0.0
          %3180 = vmatprep.subr.mxu0 0.0
          %3181 = vmatpush1.msra.mxu0 0.0
          %3182 = vmatprep.subr.mxu0 0.0
          %3183 = vmatpush1.msra.mxu0 0.0
          %3184 = vmatprep.subr.mxu0 0.0
          %3185 = vmatpush1.msra.mxu0 0.0
          %3186 = vmatprep.subr.mxu0 0.0
          %3187 = vmatpush1.msra.mxu0 0.0
          %3188 = vmatprep.subr.mxu0 0.0
          %3189 = vmatpush1.msra.mxu0 0.0
          %3190 = vmatprep.subr.mxu0 0.0
          %3191 = vmatpush1.msra.mxu0 0.0
          %3192 = vmatprep.subr.mxu0 0.0
          %3193 = vmatpush1.msra.mxu0 0.0
          %3194 = vmatprep.subr.mxu0 0.0
          %3195 = vmatpush1.msra.mxu0 0.0
          %3196 = vmatprep.subr.mxu0 0.0
          %3197 = vmatpush1.msra.mxu0 0.0
          %3198 = vmatprep.subr.mxu0 0.0
          %3199 = vmatpush1.msra.mxu0 0.0
          %3200 = vmatprep.subr.mxu0 0.0
          %3201 = vmatpush1.msra.mxu0 0.0
          %3202 = vmatprep.subr.mxu0 0.0
          %3203 = vmatpush1.msra.mxu0 0.0
          %3204 = vmatprep.subr.mxu0 0.0
          %3205 = vmatpush1.msra.mxu0 0.0
          %3206 = vmatprep.mubr.f32.mxu0 0.0
          %3207 = vmatmul.mubr.f32.gmra.mrb[0].mxu0 %v2994
          %v3208 = vpop.f32.mrb[0].mxu0
          %v3209 = vadd.f32 0.0, %v3208
          %v3210 = vpop.f32.mrb[0].mxu0
          %v3211 = vadd.f32 0.0, %v3210
          %3212 = vdwg.mxu0
          %v3213 = vadd.f32 %v3003, %v3138
          %v3214 = vadd.f32 %v3004, %v3140
          %v3215 = vadd.f32 %v3005, %v3209
          %v3216 = vadd.f32 %v3006, %v3211
          %v3217 = vmul.f32 %v3213, 0.5
          %v3218 = vtanh.pop %v3217
          %v3219 = vmul.f32 %v3218, 0.5
          %v3220 = vadd.f32 %v3219, 0.5
          %v3221 = vmul.f32 %v3214, 0.5
          %v3222 = vtanh.pop %v3221
          %v3223 = vmul.f32 %v3222, 0.5
          %v3224 = vadd.f32 %v3223, 0.5
          %v3225 = vtanh.pop %v3215
          %v3226 = vmul.f32 %v3216, 0.5
          %v3227 = vtanh.pop %v3226
          %v3228 = vmul.f32 %v3227, 0.5
          %v3229 = vadd.f32 %v3228, 0.5
          %v3230 = vmul.f32 %v3224, %v2995
          %v3231 = vmul.f32 %v3220, %v3225
          %v3232 = vadd.f32 %v3230, %v3231
          %v3233 = vtanh.pop %v3232
          %v3234 = vmul.f32 %v3229, %v3233
          %v3235 = vstv %s2999
          %vm3236 = vcmp.gt.s32.totalorder %v749, %v3235
          %v3237 = vsel %vm3236, 1, 0
          %3238 = vset.pattern.permute.xlu0 0
          %3239 = vperm.xlu0 %3238, %v3237
          %v3240 = vpop.permute.xlu0 %3239
          %vm3241 = vcmp.eq.s32.totalorder %v3240, 1
          %v3242 = vsel %vm3241, %v3234, %v2994
          %v3243 = vsel %vm3241, %v3232, %v2995
          %v3244 = vsel %vm3241, %v3234, 0.0
          %s3245 = scalar_lea.vmem %s401, 48 [#allocation14]
          %3246 = vst [vmem:[%s3245] sm:$0xff] %v3244
          %s3247 = sadd.s32 %s2746, 5
          %s3248 = smul.u32 5, 4
          %s3249 = smul.addr %s3248, 8
          %s3250 = scalar_lea.vmem [#allocation2], %s3249
          %v3251 = vld [vmem:[%s3250] sm:$0xff]
          %v3252 = vld [vmem:[%s3250 + $0x8] sm:$0xff]
          %v3253 = vld [vmem:[%s3250 + $0x10] sm:$0xff]
          %v3254 = vld [vmem:[%s3250 + $0x18] sm:$0xff]
          %v3255 = vld [vmem:[%s360] sm:$0xff]
          %v3256 = vld [vmem:[%s360 + $0x8] sm:$0xff]
          %v3257 = vld [vmem:[%s360 + $0x10] sm:$0xff]
          %v3258 = vld [vmem:[%s360 + $0x18] sm:$0xff]
          %v3259 = vld [vmem:[%s360 + $0x20] sm:$0xff]
          %v3260 = vld [vmem:[%s360 + $0x28] sm:$0xff]
          %v3261 = vld [vmem:[%s360 + $0x30] sm:$0xff]
          %v3262 = vld [vmem:[%s360 + $0x38] sm:$0xff]
          %v3263 = vld [vmem:[%s360 + $0x40] sm:$0xff]
          %v3264 = vld [vmem:[%s360 + $0x48] sm:$0xff]
          %v3265 = vld [vmem:[%s360 + $0x50] sm:$0xff]
          %v3266 = vld [vmem:[%s360 + $0x58] sm:$0xff]
          %v3267 = vld [vmem:[%s360 + $0x60] sm:$0xff]
          %v3268 = vld [vmem:[%s360 + $0x68] sm:$0xff]
          %v3269 = vld [vmem:[%s360 + $0x70] sm:$0xff]
          %v3270 = vld [vmem:[%s360 + $0x78] sm:$0xff]
          %v3271 = vld [vmem:[%s360 + $0x80] sm:$0xff]
          %v3272 = vld [vmem:[%s360 + $0x88] sm:$0xff]
          %v3273 = vld [vmem:[%s360 + $0x90] sm:$0xff]
          %v3274 = vld [vmem:[%s360 + $0x98] sm:$0xff]
          %v3275 = vld [vmem:[%s360 + $0xa0] sm:$0xff]
          %v3276 = vld [vmem:[%s360 + $0xa8] sm:$0xff]
          %v3277 = vld [vmem:[%s360 + $0xb0] sm:$0xff]
          %v3278 = vld [vmem:[%s360 + $0xb8] sm:$0xff]
          %v3279 = vld [vmem:[%s360 + $0xc0] sm:$0xff]
          %v3280 = vld [vmem:[%s360 + $0xc8] sm:$0xff]
          %v3281 = vld [vmem:[%s360 + $0xd0] sm:$0xff]
          %v3282 = vld [vmem:[%s360 + $0xd8] sm:$0xff]
          %v3283 = vld [vmem:[%s360 + $0xe0] sm:$0xff]
          %v3284 = vld [vmem:[%s360 + $0xe8] sm:$0xff]
          %v3285 = vld [vmem:[%s360 + $0xf0] sm:$0xff]
          %v3286 = vld [vmem:[%s360 + $0xf8] sm:$0xff]
          %v3287 = vld [vmem:[%s360 + $0x100] sm:$0xff]
          %v3288 = vld [vmem:[%s360 + $0x108] sm:$0xff]
          %v3289 = vld [vmem:[%s360 + $0x110] sm:$0xff]
          %v3290 = vld [vmem:[%s360 + $0x118] sm:$0xff]
          %v3291 = vld [vmem:[%s360 + $0x120] sm:$0xff]
          %v3292 = vld [vmem:[%s360 + $0x128] sm:$0xff]
          %v3293 = vld [vmem:[%s360 + $0x130] sm:$0xff]
          %v3294 = vld [vmem:[%s360 + $0x138] sm:$0xff]
          %v3295 = vld [vmem:[%s360 + $0x140] sm:$0xff]
          %v3296 = vld [vmem:[%s360 + $0x148] sm:$0xff]
          %v3297 = vld [vmem:[%s360 + $0x150] sm:$0xff]
          %v3298 = vld [vmem:[%s360 + $0x158] sm:$0xff]
          %v3299 = vld [vmem:[%s360 + $0x160] sm:$0xff]
          %v3300 = vld [vmem:[%s360 + $0x168] sm:$0xff]
          %v3301 = vld [vmem:[%s360 + $0x170] sm:$0xff]
          %v3302 = vld [vmem:[%s360 + $0x178] sm:$0xff]
          %v3303 = vld [vmem:[%s360 + $0x180] sm:$0xff]
          %v3304 = vld [vmem:[%s360 + $0x188] sm:$0xff]
          %v3305 = vld [vmem:[%s360 + $0x190] sm:$0xff]
          %v3306 = vld [vmem:[%s360 + $0x198] sm:$0xff]
          %v3307 = vld [vmem:[%s360 + $0x1a0] sm:$0xff]
          %v3308 = vld [vmem:[%s360 + $0x1a8] sm:$0xff]
          %v3309 = vld [vmem:[%s360 + $0x1b0] sm:$0xff]
          %v3310 = vld [vmem:[%s360 + $0x1b8] sm:$0xff]
          %v3311 = vld [vmem:[%s360 + $0x1c0] sm:$0xff]
          %v3312 = vld [vmem:[%s360 + $0x1c8] sm:$0xff]
          %v3313 = vld [vmem:[%s360 + $0x1d0] sm:$0xff]
          %v3314 = vld [vmem:[%s360 + $0x1d8] sm:$0xff]
          %v3315 = vld [vmem:[%s360 + $0x1e0] sm:$0xff]
          %v3316 = vld [vmem:[%s360 + $0x1e8] sm:$0xff]
          %v3317 = vld [vmem:[%s360 + $0x1f0] sm:$0xff]
          %v3318 = vld [vmem:[%s360 + $0x1f8] sm:$0xff]
          %3319 = vmatprep.subr.mxu0 %v3256
          %3320 = vmatpush1.msra.mxu0 %v3255
          %3321 = vmatprep.subr.mxu0 %v3260
          %3322 = vmatpush1.msra.mxu0 %v3259
          %3323 = vmatprep.subr.mxu0 %v3264
          %3324 = vmatpush1.msra.mxu0 %v3263
          %3325 = vmatprep.subr.mxu0 %v3268
          %3326 = vmatpush1.msra.mxu0 %v3267
          %3327 = vmatprep.subr.mxu0 %v3272
          %3328 = vmatpush1.msra.mxu0 %v3271
          %3329 = vmatprep.subr.mxu0 %v3276
          %3330 = vmatpush1.msra.mxu0 %v3275
          %3331 = vmatprep.subr.mxu0 %v3280
          %3332 = vmatpush1.msra.mxu0 %v3279
          %3333 = vmatprep.subr.mxu0 %v3284
          %3334 = vmatpush1.msra.mxu0 %v3283
          %3335 = vmatprep.subr.mxu0 %v3288
          %3336 = vmatpush1.msra.mxu0 %v3287
          %3337 = vmatprep.subr.mxu0 %v3292
          %3338 = vmatpush1.msra.mxu0 %v3291
          %3339 = vmatprep.subr.mxu0 %v3296
          %3340 = vmatpush1.msra.mxu0 %v3295
          %3341 = vmatprep.subr.mxu0 %v3300
          %3342 = vmatpush1.msra.mxu0 %v3299
          %3343 = vmatprep.subr.mxu0 %v3304
          %3344 = vmatpush1.msra.mxu0 %v3303
          %3345 = vmatprep.subr.mxu0 %v3308
          %3346 = vmatpush1.msra.mxu0 %v3307
          %3347 = vmatprep.subr.mxu0 %v3312
          %3348 = vmatpush1.msra.mxu0 %v3311
          %3349 = vmatprep.subr.mxu0 %v3316
          %3350 = vmatpush1.msra.mxu0 %v3315
          %3351 = vmatprep.subr.mxu0 0.0
          %3352 = vmatpush1.msra.mxu0 0.0
          %3353 = vmatprep.subr.mxu0 0.0
          %3354 = vmatpush1.msra.mxu0 0.0
          %3355 = vmatprep.subr.mxu0 0.0
          %3356 = vmatpush1.msra.mxu0 0.0
          %3357 = vmatprep.subr.mxu0 0.0
          %3358 = vmatpush1.msra.mxu0 0.0
          %3359 = vmatprep.subr.mxu0 0.0
          %3360 = vmatpush1.msra.mxu0 0.0
          %3361 = vmatprep.subr.mxu0 0.0
          %3362 = vmatpush1.msra.mxu0 0.0
          %3363 = vmatprep.subr.mxu0 0.0
          %3364 = vmatpush1.msra.mxu0 0.0
          %3365 = vmatprep.subr.mxu0 0.0
          %3366 = vmatpush1.msra.mxu0 0.0
          %3367 = vmatprep.subr.mxu0 0.0
          %3368 = vmatpush1.msra.mxu0 0.0
          %3369 = vmatprep.subr.mxu0 0.0
          %3370 = vmatpush1.msra.mxu0 0.0
          %3371 = vmatprep.subr.mxu0 0.0
          %3372 = vmatpush1.msra.mxu0 0.0
          %3373 = vmatprep.subr.mxu0 0.0
          %3374 = vmatpush1.msra.mxu0 0.0
          %3375 = vmatprep.subr.mxu0 0.0
          %3376 = vmatpush1.msra.mxu0 0.0
          %3377 = vmatprep.subr.mxu0 0.0
          %3378 = vmatpush1.msra.mxu0 0.0
          %3379 = vmatprep.subr.mxu0 0.0
          %3380 = vmatpush1.msra.mxu0 0.0
          %3381 = vmatprep.subr.mxu0 0.0
          %3382 = vmatpush1.msra.mxu0 0.0
          %3383 = vmatprep.mubr.f32.mxu0 0.0
          %3384 = vmatmul.mubr.f32.gmra.mrb[0].mxu0 %v3242
          %v3385 = vpop.f32.mrb[0].mxu0
          %v3386 = vadd.f32 0.0, %v3385
          %v3387 = vpop.f32.mrb[0].mxu0
          %v3388 = vadd.f32 0.0, %v3387
          %3389 = vdwg.mxu0
          %3390 = vmatprep.subr.mxu0 %v3258
          %3391 = vmatpush1.msra.mxu0 %v3257
          %3392 = vmatprep.subr.mxu0 %v3262
          %3393 = vmatpush1.msra.mxu0 %v3261
          %3394 = vmatprep.subr.mxu0 %v3266
          %3395 = vmatpush1.msra.mxu0 %v3265
          %3396 = vmatprep.subr.mxu0 %v3270
          %3397 = vmatpush1.msra.mxu0 %v3269
          %3398 = vmatprep.subr.mxu0 %v3274
          %3399 = vmatpush1.msra.mxu0 %v3273
          %3400 = vmatprep.subr.mxu0 %v3278
          %3401 = vmatpush1.msra.mxu0 %v3277
          %3402 = vmatprep.subr.mxu0 %v3282
          %3403 = vmatpush1.msra.mxu0 %v3281
          %3404 = vmatprep.subr.mxu0 %v3286
          %3405 = vmatpush1.msra.mxu0 %v3285
          %3406 = vmatprep.subr.mxu0 %v3290
          %3407 = vmatpush1.msra.mxu0 %v3289
          %3408 = vmatprep.subr.mxu0 %v3294
          %3409 = vmatpush1.msra.mxu0 %v3293
          %3410 = vmatprep.subr.mxu0 %v3298
          %3411 = vmatpush1.msra.mxu0 %v3297
          %3412 = vmatprep.subr.mxu0 %v3302
          %3413 = vmatpush1.msra.mxu0 %v3301
          %3414 = vmatprep.subr.mxu0 %v3306
          %3415 = vmatpush1.msra.mxu0 %v3305
          %3416 = vmatprep.subr.mxu0 %v3310
          %3417 = vmatpush1.msra.mxu0 %v3309
          %3418 = vmatprep.subr.mxu0 %v3314
          %3419 = vmatpush1.msra.mxu0 %v3313
          %3420 = vmatprep.subr.mxu0 %v3318
          %3421 = vmatpush1.msra.mxu0 %v3317
          %3422 = vmatprep.subr.mxu0 0.0
          %3423 = vmatpush1.msra.mxu0 0.0
          %3424 = vmatprep.subr.mxu0 0.0
          %3425 = vmatpush1.msra.mxu0 0.0
          %3426 = vmatprep.subr.mxu0 0.0
          %3427 = vmatpush1.msra.mxu0 0.0
          %3428 = vmatprep.subr.mxu0 0.0
          %3429 = vmatpush1.msra.mxu0 0.0
          %3430 = vmatprep.subr.mxu0 0.0
          %3431 = vmatpush1.msra.mxu0 0.0
          %3432 = vmatprep.subr.mxu0 0.0
          %3433 = vmatpush1.msra.mxu0 0.0
          %3434 = vmatprep.subr.mxu0 0.0
          %3435 = vmatpush1.msra.mxu0 0.0
          %3436 = vmatprep.subr.mxu0 0.0
          %3437 = vmatpush1.msra.mxu0 0.0
          %3438 = vmatprep.subr.mxu0 0.0
          %3439 = vmatpush1.msra.mxu0 0.0
          %3440 = vmatprep.subr.mxu0 0.0
          %3441 = vmatpush1.msra.mxu0 0.0
          %3442 = vmatprep.subr.mxu0 0.0
          %3443 = vmatpush1.msra.mxu0 0.0
          %3444 = vmatprep.subr.mxu0 0.0
          %3445 = vmatpush1.msra.mxu0 0.0
          %3446 = vmatprep.subr.mxu0 0.0
          %3447 = vmatpush1.msra.mxu0 0.0
          %3448 = vmatprep.subr.mxu0 0.0
          %3449 = vmatpush1.msra.mxu0 0.0
          %3450 = vmatprep.subr.mxu0 0.0
          %3451 = vmatpush1.msra.mxu0 0.0
          %3452 = vmatprep.subr.mxu0 0.0
          %3453 = vmatpush1.msra.mxu0 0.0
          %3454 = vmatprep.mubr.f32.mxu0 0.0
          %3455 = vmatmul.mubr.f32.gmra.mrb[0].mxu0 %v3242
          %v3456 = vpop.f32.mrb[0].mxu0
          %v3457 = vadd.f32 0.0, %v3456
          %v3458 = vpop.f32.mrb[0].mxu0
          %v3459 = vadd.f32 0.0, %v3458
          %3460 = vdwg.mxu0
          %v3461 = vadd.f32 %v3251, %v3386
          %v3462 = vadd.f32 %v3252, %v3388
          %v3463 = vadd.f32 %v3253, %v3457
          %v3464 = vadd.f32 %v3254, %v3459
          %v3465 = vmul.f32 %v3461, 0.5
          %v3466 = vtanh.pop %v3465
          %v3467 = vmul.f32 %v3466, 0.5
          %v3468 = vadd.f32 %v3467, 0.5
          %v3469 = vmul.f32 %v3462, 0.5
          %v3470 = vtanh.pop %v3469
          %v3471 = vmul.f32 %v3470, 0.5
          %v3472 = vadd.f32 %v3471, 0.5
          %v3473 = vtanh.pop %v3463
          %v3474 = vmul.f32 %v3464, 0.5
          %v3475 = vtanh.pop %v3474
          %v3476 = vmul.f32 %v3475, 0.5
          %v3477 = vadd.f32 %v3476, 0.5
          %v3478 = vmul.f32 %v3472, %v3243
          %v3479 = vmul.f32 %v3468, %v3473
          %v3480 = vadd.f32 %v3478, %v3479
          %v3481 = vtanh.pop %v3480
          %v3482 = vmul.f32 %v3477, %v3481
          %v3483 = vstv %s3247
          %vm3484 = vcmp.gt.s32.totalorder %v749, %v3483
          %v3485 = vsel %vm3484, 1, 0
          %3486 = vset.pattern.permute.xlu0 0
          %3487 = vperm.xlu0 %3486, %v3485
          %v3488 = vpop.permute.xlu0 %3487
          %vm3489 = vcmp.eq.s32.totalorder %v3488, 1
          %v3490 = vsel %vm3489, %v3482, %v3242
          %v3491 = vsel %vm3489, %v3480, %v3243
          %v3492 = vsel %vm3489, %v3482, 0.0
          %s3493 = scalar_lea.vmem %s401, 40 [#allocation14]
          %3494 = vst [vmem:[%s3493] sm:$0xff] %v3492
          %s3495 = sadd.s32 %s2746, 4
          %s3496 = smul.u32 4, 4
          %s3497 = smul.addr %s3496, 8
          %s3498 = scalar_lea.vmem [#allocation2], %s3497
          %v3499 = vld [vmem:[%s3498] sm:$0xff]
          %v3500 = vld [vmem:[%s3498 + $0x8] sm:$0xff]
          %v3501 = vld [vmem:[%s3498 + $0x10] sm:$0xff]
          %v3502 = vld [vmem:[%s3498 + $0x18] sm:$0xff]
          %v3503 = vld [vmem:[%s360] sm:$0xff]
          %v3504 = vld [vmem:[%s360 + $0x8] sm:$0xff]
          %v3505 = vld [vmem:[%s360 + $0x10] sm:$0xff]
          %v3506 = vld [vmem:[%s360 + $0x18] sm:$0xff]
          %v3507 = vld [vmem:[%s360 + $0x20] sm:$0xff]
          %v3508 = vld [vmem:[%s360 + $0x28] sm:$0xff]
          %v3509 = vld [vmem:[%s360 + $0x30] sm:$0xff]
          %v3510 = vld [vmem:[%s360 + $0x38] sm:$0xff]
          %v3511 = vld [vmem:[%s360 + $0x40] sm:$0xff]
          %v3512 = vld [vmem:[%s360 + $0x48] sm:$0xff]
          %v3513 = vld [vmem:[%s360 + $0x50] sm:$0xff]
          %v3514 = vld [vmem:[%s360 + $0x58] sm:$0xff]
          %v3515 = vld [vmem:[%s360 + $0x60] sm:$0xff]
          %v3516 = vld [vmem:[%s360 + $0x68] sm:$0xff]
          %v3517 = vld [vmem:[%s360 + $0x70] sm:$0xff]
          %v3518 = vld [vmem:[%s360 + $0x78] sm:$0xff]
          %v3519 = vld [vmem:[%s360 + $0x80] sm:$0xff]
          %v3520 = vld [vmem:[%s360 + $0x88] sm:$0xff]
          %v3521 = vld [vmem:[%s360 + $0x90] sm:$0xff]
          %v3522 = vld [vmem:[%s360 + $0x98] sm:$0xff]
          %v3523 = vld [vmem:[%s360 + $0xa0] sm:$0xff]
          %v3524 = vld [vmem:[%s360 + $0xa8] sm:$0xff]
          %v3525 = vld [vmem:[%s360 + $0xb0] sm:$0xff]
          %v3526 = vld [vmem:[%s360 + $0xb8] sm:$0xff]
          %v3527 = vld [vmem:[%s360 + $0xc0] sm:$0xff]
          %v3528 = vld [vmem:[%s360 + $0xc8] sm:$0xff]
          %v3529 = vld [vmem:[%s360 + $0xd0] sm:$0xff]
          %v3530 = vld [vmem:[%s360 + $0xd8] sm:$0xff]
          %v3531 = vld [vmem:[%s360 + $0xe0] sm:$0xff]
          %v3532 = vld [vmem:[%s360 + $0xe8] sm:$0xff]
          %v3533 = vld [vmem:[%s360 + $0xf0] sm:$0xff]
          %v3534 = vld [vmem:[%s360 + $0xf8] sm:$0xff]
          %v3535 = vld [vmem:[%s360 + $0x100] sm:$0xff]
          %v3536 = vld [vmem:[%s360 + $0x108] sm:$0xff]
          %v3537 = vld [vmem:[%s360 + $0x110] sm:$0xff]
          %v3538 = vld [vmem:[%s360 + $0x118] sm:$0xff]
          %v3539 = vld [vmem:[%s360 + $0x120] sm:$0xff]
          %v3540 = vld [vmem:[%s360 + $0x128] sm:$0xff]
          %v3541 = vld [vmem:[%s360 + $0x130] sm:$0xff]
          %v3542 = vld [vmem:[%s360 + $0x138] sm:$0xff]
          %v3543 = vld [vmem:[%s360 + $0x140] sm:$0xff]
          %v3544 = vld [vmem:[%s360 + $0x148] sm:$0xff]
          %v3545 = vld [vmem:[%s360 + $0x150] sm:$0xff]
          %v3546 = vld [vmem:[%s360 + $0x158] sm:$0xff]
          %v3547 = vld [vmem:[%s360 + $0x160] sm:$0xff]
          %v3548 = vld [vmem:[%s360 + $0x168] sm:$0xff]
          %v3549 = vld [vmem:[%s360 + $0x170] sm:$0xff]
          %v3550 = vld [vmem:[%s360 + $0x178] sm:$0xff]
          %v3551 = vld [vmem:[%s360 + $0x180] sm:$0xff]
          %v3552 = vld [vmem:[%s360 + $0x188] sm:$0xff]
          %v3553 = vld [vmem:[%s360 + $0x190] sm:$0xff]
          %v3554 = vld [vmem:[%s360 + $0x198] sm:$0xff]
          %v3555 = vld [vmem:[%s360 + $0x1a0] sm:$0xff]
          %v3556 = vld [vmem:[%s360 + $0x1a8] sm:$0xff]
          %v3557 = vld [vmem:[%s360 + $0x1b0] sm:$0xff]
          %v3558 = vld [vmem:[%s360 + $0x1b8] sm:$0xff]
          %v3559 = vld [vmem:[%s360 + $0x1c0] sm:$0xff]
          %v3560 = vld [vmem:[%s360 + $0x1c8] sm:$0xff]
          %v3561 = vld [vmem:[%s360 + $0x1d0] sm:$0xff]
          %v3562 = vld [vmem:[%s360 + $0x1d8] sm:$0xff]
          %v3563 = vld [vmem:[%s360 + $0x1e0] sm:$0xff]
          %v3564 = vld [vmem:[%s360 + $0x1e8] sm:$0xff]
          %v3565 = vld [vmem:[%s360 + $0x1f0] sm:$0xff]
          %v3566 = vld [vmem:[%s360 + $0x1f8] sm:$0xff]
          %3567 = vmatprep.subr.mxu0 %v3504
          %3568 = vmatpush1.msra.mxu0 %v3503
          %3569 = vmatprep.subr.mxu0 %v3508
          %3570 = vmatpush1.msra.mxu0 %v3507
          %3571 = vmatprep.subr.mxu0 %v3512
          %3572 = vmatpush1.msra.mxu0 %v3511
          %3573 = vmatprep.subr.mxu0 %v3516
          %3574 = vmatpush1.msra.mxu0 %v3515
          %3575 = vmatprep.subr.mxu0 %v3520
          %3576 = vmatpush1.msra.mxu0 %v3519
          %3577 = vmatprep.subr.mxu0 %v3524
          %3578 = vmatpush1.msra.mxu0 %v3523
          %3579 = vmatprep.subr.mxu0 %v3528
          %3580 = vmatpush1.msra.mxu0 %v3527
          %3581 = vmatprep.subr.mxu0 %v3532
          %3582 = vmatpush1.msra.mxu0 %v3531
          %3583 = vmatprep.subr.mxu0 %v3536
          %3584 = vmatpush1.msra.mxu0 %v3535
          %3585 = vmatprep.subr.mxu0 %v3540
          %3586 = vmatpush1.msra.mxu0 %v3539
          %3587 = vmatprep.subr.mxu0 %v3544
          %3588 = vmatpush1.msra.mxu0 %v3543
          %3589 = vmatprep.subr.mxu0 %v3548
          %3590 = vmatpush1.msra.mxu0 %v3547
          %3591 = vmatprep.subr.mxu0 %v3552
          %3592 = vmatpush1.msra.mxu0 %v3551
          %3593 = vmatprep.subr.mxu0 %v3556
          %3594 = vmatpush1.msra.mxu0 %v3555
          %3595 = vmatprep.subr.mxu0 %v3560
          %3596 = vmatpush1.msra.mxu0 %v3559
          %3597 = vmatprep.subr.mxu0 %v3564
          %3598 = vmatpush1.msra.mxu0 %v3563
          %3599 = vmatprep.subr.mxu0 0.0
          %3600 = vmatpush1.msra.mxu0 0.0
          %3601 = vmatprep.subr.mxu0 0.0
          %3602 = vmatpush1.msra.mxu0 0.0
          %3603 = vmatprep.subr.mxu0 0.0
          %3604 = vmatpush1.msra.mxu0 0.0
          %3605 = vmatprep.subr.mxu0 0.0
          %3606 = vmatpush1.msra.mxu0 0.0
          %3607 = vmatprep.subr.mxu0 0.0
          %3608 = vmatpush1.msra.mxu0 0.0
          %3609 = vmatprep.subr.mxu0 0.0
          %3610 = vmatpush1.msra.mxu0 0.0
          %3611 = vmatprep.subr.mxu0 0.0
          %3612 = vmatpush1.msra.mxu0 0.0
          %3613 = vmatprep.subr.mxu0 0.0
          %3614 = vmatpush1.msra.mxu0 0.0
          %3615 = vmatprep.subr.mxu0 0.0
          %3616 = vmatpush1.msra.mxu0 0.0
          %3617 = vmatprep.subr.mxu0 0.0
          %3618 = vmatpush1.msra.mxu0 0.0
          %3619 = vmatprep.subr.mxu0 0.0
          %3620 = vmatpush1.msra.mxu0 0.0
          %3621 = vmatprep.subr.mxu0 0.0
          %3622 = vmatpush1.msra.mxu0 0.0
          %3623 = vmatprep.subr.mxu0 0.0
          %3624 = vmatpush1.msra.mxu0 0.0
          %3625 = vmatprep.subr.mxu0 0.0
          %3626 = vmatpush1.msra.mxu0 0.0
          %3627 = vmatprep.subr.mxu0 0.0
          %3628 = vmatpush1.msra.mxu0 0.0
          %3629 = vmatprep.subr.mxu0 0.0
          %3630 = vmatpush1.msra.mxu0 0.0
          %3631 = vmatprep.mubr.f32.mxu0 0.0
          %3632 = vmatmul.mubr.f32.gmra.mrb[0].mxu0 %v3490
          %v3633 = vpop.f32.mrb[0].mxu0
          %v3634 = vadd.f32 0.0, %v3633
          %v3635 = vpop.f32.mrb[0].mxu0
          %v3636 = vadd.f32 0.0, %v3635
          %3637 = vdwg.mxu0
          %3638 = vmatprep.subr.mxu0 %v3506
          %3639 = vmatpush1.msra.mxu0 %v3505
          %3640 = vmatprep.subr.mxu0 %v3510
          %3641 = vmatpush1.msra.mxu0 %v3509
          %3642 = vmatprep.subr.mxu0 %v3514
          %3643 = vmatpush1.msra.mxu0 %v3513
          %3644 = vmatprep.subr.mxu0 %v3518
          %3645 = vmatpush1.msra.mxu0 %v3517
          %3646 = vmatprep.subr.mxu0 %v3522
          %3647 = vmatpush1.msra.mxu0 %v3521
          %3648 = vmatprep.subr.mxu0 %v3526
          %3649 = vmatpush1.msra.mxu0 %v3525
          %3650 = vmatprep.subr.mxu0 %v3530
          %3651 = vmatpush1.msra.mxu0 %v3529
          %3652 = vmatprep.subr.mxu0 %v3534
          %3653 = vmatpush1.msra.mxu0 %v3533
          %3654 = vmatprep.subr.mxu0 %v3538
          %3655 = vmatpush1.msra.mxu0 %v3537
          %3656 = vmatprep.subr.mxu0 %v3542
          %3657 = vmatpush1.msra.mxu0 %v3541
          %3658 = vmatprep.subr.mxu0 %v3546
          %3659 = vmatpush1.msra.mxu0 %v3545
          %3660 = vmatprep.subr.mxu0 %v3550
          %3661 = vmatpush1.msra.mxu0 %v3549
          %3662 = vmatprep.subr.mxu0 %v3554
          %3663 = vmatpush1.msra.mxu0 %v3553
          %3664 = vmatprep.subr.mxu0 %v3558
          %3665 = vmatpush1.msra.mxu0 %v3557
          %3666 = vmatprep.subr.mxu0 %v3562
          %3667 = vmatpush1.msra.mxu0 %v3561
          %3668 = vmatprep.subr.mxu0 %v3566
          %3669 = vmatpush1.msra.mxu0 %v3565
          %3670 = vmatprep.subr.mxu0 0.0
          %3671 = vmatpush1.msra.mxu0 0.0
          %3672 = vmatprep.subr.mxu0 0.0
          %3673 = vmatpush1.msra.mxu0 0.0
          %3674 = vmatprep.subr.mxu0 0.0
          %3675 = vmatpush1.msra.mxu0 0.0
          %3676 = vmatprep.subr.mxu0 0.0
          %3677 = vmatpush1.msra.mxu0 0.0
          %3678 = vmatprep.subr.mxu0 0.0
          %3679 = vmatpush1.msra.mxu0 0.0
          %3680 = vmatprep.subr.mxu0 0.0
          %3681 = vmatpush1.msra.mxu0 0.0
          %3682 = vmatprep.subr.mxu0 0.0
          %3683 = vmatpush1.msra.mxu0 0.0
          %3684 = vmatprep.subr.mxu0 0.0
          %3685 = vmatpush1.msra.mxu0 0.0
          %3686 = vmatprep.subr.mxu0 0.0
          %3687 = vmatpush1.msra.mxu0 0.0
          %3688 = vmatprep.subr.mxu0 0.0
          %3689 = vmatpush1.msra.mxu0 0.0
          %3690 = vmatprep.subr.mxu0 0.0
          %3691 = vmatpush1.msra.mxu0 0.0
          %3692 = vmatprep.subr.mxu0 0.0
          %3693 = vmatpush1.msra.mxu0 0.0
          %3694 = vmatprep.subr.mxu0 0.0
          %3695 = vmatpush1.msra.mxu0 0.0
          %3696 = vmatprep.subr.mxu0 0.0
          %3697 = vmatpush1.msra.mxu0 0.0
          %3698 = vmatprep.subr.mxu0 0.0
          %3699 = vmatpush1.msra.mxu0 0.0
          %3700 = vmatprep.subr.mxu0 0.0
          %3701 = vmatpush1.msra.mxu0 0.0
          %3702 = vmatprep.mubr.f32.mxu0 0.0
          %3703 = vmatmul.mubr.f32.gmra.mrb[0].mxu0 %v3490
          %v3704 = vpop.f32.mrb[0].mxu0
          %v3705 = vadd.f32 0.0, %v3704
          %v3706 = vpop.f32.mrb[0].mxu0
          %v3707 = vadd.f32 0.0, %v3706
          %3708 = vdwg.mxu0
          %v3709 = vadd.f32 %v3499, %v3634
          %v3710 = vadd.f32 %v3500, %v3636
          %v3711 = vadd.f32 %v3501, %v3705
          %v3712 = vadd.f32 %v3502, %v3707
          %v3713 = vmul.f32 %v3709, 0.5
          %v3714 = vtanh.pop %v3713
          %v3715 = vmul.f32 %v3714, 0.5
          %v3716 = vadd.f32 %v3715, 0.5
          %v3717 = vmul.f32 %v3710, 0.5
          %v3718 = vtanh.pop %v3717
          %v3719 = vmul.f32 %v3718, 0.5
          %v3720 = vadd.f32 %v3719, 0.5
          %v3721 = vtanh.pop %v3711
          %v3722 = vmul.f32 %v3712, 0.5
          %v3723 = vtanh.pop %v3722
          %v3724 = vmul.f32 %v3723, 0.5
          %v3725 = vadd.f32 %v3724, 0.5
          %v3726 = vmul.f32 %v3720, %v3491
          %v3727 = vmul.f32 %v3716, %v3721
          %v3728 = vadd.f32 %v3726, %v3727
          %v3729 = vtanh.pop %v3728
          %v3730 = vmul.f32 %v3725, %v3729
          %v3731 = vstv %s3495
          %vm3732 = vcmp.gt.s32.totalorder %v749, %v3731
          %v3733 = vsel %vm3732, 1, 0
          %3734 = vset.pattern.permute.xlu0 0
          %3735 = vperm.xlu0 %3734, %v3733
          %v3736 = vpop.permute.xlu0 %3735
          %vm3737 = vcmp.eq.s32.totalorder %v3736, 1
          %v3738 = vsel %vm3737, %v3730, %v3490
          %v3739 = vsel %vm3737, %v3728, %v3491
          %v3740 = vsel %vm3737, %v3730, 0.0
          %s3741 = scalar_lea.vmem %s401, 32 [#allocation14]
          %3742 = vst [vmem:[%s3741] sm:$0xff] %v3740
          %s3743 = sadd.s32 %s2746, 3
          %s3744 = smul.u32 3, 4
          %s3745 = smul.addr %s3744, 8
          %s3746 = scalar_lea.vmem [#allocation2], %s3745
          %v3747 = vld [vmem:[%s3746] sm:$0xff]
          %v3748 = vld [vmem:[%s3746 + $0x8] sm:$0xff]
          %v3749 = vld [vmem:[%s3746 + $0x10] sm:$0xff]
          %v3750 = vld [vmem:[%s3746 + $0x18] sm:$0xff]
          %v3751 = vld [vmem:[%s360] sm:$0xff]
          %v3752 = vld [vmem:[%s360 + $0x8] sm:$0xff]
          %v3753 = vld [vmem:[%s360 + $0x10] sm:$0xff]
          %v3754 = vld [vmem:[%s360 + $0x18] sm:$0xff]
          %v3755 = vld [vmem:[%s360 + $0x20] sm:$0xff]
          %v3756 = vld [vmem:[%s360 + $0x28] sm:$0xff]
          %v3757 = vld [vmem:[%s360 + $0x30] sm:$0xff]
          %v3758 = vld [vmem:[%s360 + $0x38] sm:$0xff]
          %v3759 = vld [vmem:[%s360 + $0x40] sm:$0xff]
          %v3760 = vld [vmem:[%s360 + $0x48] sm:$0xff]
          %v3761 = vld [vmem:[%s360 + $0x50] sm:$0xff]
          %v3762 = vld [vmem:[%s360 + $0x58] sm:$0xff]
          %v3763 = vld [vmem:[%s360 + $0x60] sm:$0xff]
          %v3764 = vld [vmem:[%s360 + $0x68] sm:$0xff]
          %v3765 = vld [vmem:[%s360 + $0x70] sm:$0xff]
          %v3766 = vld [vmem:[%s360 + $0x78] sm:$0xff]
          %v3767 = vld [vmem:[%s360 + $0x80] sm:$0xff]
          %v3768 = vld [vmem:[%s360 + $0x88] sm:$0xff]
          %v3769 = vld [vmem:[%s360 + $0x90] sm:$0xff]
          %v3770 = vld [vmem:[%s360 + $0x98] sm:$0xff]
          %v3771 = vld [vmem:[%s360 + $0xa0] sm:$0xff]
          %v3772 = vld [vmem:[%s360 + $0xa8] sm:$0xff]
          %v3773 = vld [vmem:[%s360 + $0xb0] sm:$0xff]
          %v3774 = vld [vmem:[%s360 + $0xb8] sm:$0xff]
          %v3775 = vld [vmem:[%s360 + $0xc0] sm:$0xff]
          %v3776 = vld [vmem:[%s360 + $0xc8] sm:$0xff]
          %v3777 = vld [vmem:[%s360 + $0xd0] sm:$0xff]
          %v3778 = vld [vmem:[%s360 + $0xd8] sm:$0xff]
          %v3779 = vld [vmem:[%s360 + $0xe0] sm:$0xff]
          %v3780 = vld [vmem:[%s360 + $0xe8] sm:$0xff]
          %v3781 = vld [vmem:[%s360 + $0xf0] sm:$0xff]
          %v3782 = vld [vmem:[%s360 + $0xf8] sm:$0xff]
          %v3783 = vld [vmem:[%s360 + $0x100] sm:$0xff]
          %v3784 = vld [vmem:[%s360 + $0x108] sm:$0xff]
          %v3785 = vld [vmem:[%s360 + $0x110] sm:$0xff]
          %v3786 = vld [vmem:[%s360 + $0x118] sm:$0xff]
          %v3787 = vld [vmem:[%s360 + $0x120] sm:$0xff]
          %v3788 = vld [vmem:[%s360 + $0x128] sm:$0xff]
          %v3789 = vld [vmem:[%s360 + $0x130] sm:$0xff]
          %v3790 = vld [vmem:[%s360 + $0x138] sm:$0xff]
          %v3791 = vld [vmem:[%s360 + $0x140] sm:$0xff]
          %v3792 = vld [vmem:[%s360 + $0x148] sm:$0xff]
          %v3793 = vld [vmem:[%s360 + $0x150] sm:$0xff]
          %v3794 = vld [vmem:[%s360 + $0x158] sm:$0xff]
          %v3795 = vld [vmem:[%s360 + $0x160] sm:$0xff]
          %v3796 = vld [vmem:[%s360 + $0x168] sm:$0xff]
          %v3797 = vld [vmem:[%s360 + $0x170] sm:$0xff]
          %v3798 = vld [vmem:[%s360 + $0x178] sm:$0xff]
          %v3799 = vld [vmem:[%s360 + $0x180] sm:$0xff]
          %v3800 = vld [vmem:[%s360 + $0x188] sm:$0xff]
          %v3801 = vld [vmem:[%s360 + $0x190] sm:$0xff]
          %v3802 = vld [vmem:[%s360 + $0x198] sm:$0xff]
          %v3803 = vld [vmem:[%s360 + $0x1a0] sm:$0xff]
          %v3804 = vld [vmem:[%s360 + $0x1a8] sm:$0xff]
          %v3805 = vld [vmem:[%s360 + $0x1b0] sm:$0xff]
          %v3806 = vld [vmem:[%s360 + $0x1b8] sm:$0xff]
          %v3807 = vld [vmem:[%s360 + $0x1c0] sm:$0xff]
          %v3808 = vld [vmem:[%s360 + $0x1c8] sm:$0xff]
          %v3809 = vld [vmem:[%s360 + $0x1d0] sm:$0xff]
          %v3810 = vld [vmem:[%s360 + $0x1d8] sm:$0xff]
          %v3811 = vld [vmem:[%s360 + $0x1e0] sm:$0xff]
          %v3812 = vld [vmem:[%s360 + $0x1e8] sm:$0xff]
          %v3813 = vld [vmem:[%s360 + $0x1f0] sm:$0xff]
          %v3814 = vld [vmem:[%s360 + $0x1f8] sm:$0xff]
          %3815 = vmatprep.subr.mxu0 %v3752
          %3816 = vmatpush1.msra.mxu0 %v3751
          %3817 = vmatprep.subr.mxu0 %v3756
          %3818 = vmatpush1.msra.mxu0 %v3755
          %3819 = vmatprep.subr.mxu0 %v3760
          %3820 = vmatpush1.msra.mxu0 %v3759
          %3821 = vmatprep.subr.mxu0 %v3764
          %3822 = vmatpush1.msra.mxu0 %v3763
          %3823 = vmatprep.subr.mxu0 %v3768
          %3824 = vmatpush1.msra.mxu0 %v3767
          %3825 = vmatprep.subr.mxu0 %v3772
          %3826 = vmatpush1.msra.mxu0 %v3771
          %3827 = vmatprep.subr.mxu0 %v3776
          %3828 = vmatpush1.msra.mxu0 %v3775
          %3829 = vmatprep.subr.mxu0 %v3780
          %3830 = vmatpush1.msra.mxu0 %v3779
          %3831 = vmatprep.subr.mxu0 %v3784
          %3832 = vmatpush1.msra.mxu0 %v3783
          %3833 = vmatprep.subr.mxu0 %v3788
          %3834 = vmatpush1.msra.mxu0 %v3787
          %3835 = vmatprep.subr.mxu0 %v3792
          %3836 = vmatpush1.msra.mxu0 %v3791
          %3837 = vmatprep.subr.mxu0 %v3796
          %3838 = vmatpush1.msra.mxu0 %v3795
          %3839 = vmatprep.subr.mxu0 %v3800
          %3840 = vmatpush1.msra.mxu0 %v3799
          %3841 = vmatprep.subr.mxu0 %v3804
          %3842 = vmatpush1.msra.mxu0 %v3803
          %3843 = vmatprep.subr.mxu0 %v3808
          %3844 = vmatpush1.msra.mxu0 %v3807
          %3845 = vmatprep.subr.mxu0 %v3812
          %3846 = vmatpush1.msra.mxu0 %v3811
          %3847 = vmatprep.subr.mxu0 0.0
          %3848 = vmatpush1.msra.mxu0 0.0
          %3849 = vmatprep.subr.mxu0 0.0
          %3850 = vmatpush1.msra.mxu0 0.0
          %3851 = vmatprep.subr.mxu0 0.0
          %3852 = vmatpush1.msra.mxu0 0.0
          %3853 = vmatprep.subr.mxu0 0.0
          %3854 = vmatpush1.msra.mxu0 0.0
          %3855 = vmatprep.subr.mxu0 0.0
          %3856 = vmatpush1.msra.mxu0 0.0
          %3857 = vmatprep.subr.mxu0 0.0
          %3858 = vmatpush1.msra.mxu0 0.0
          %3859 = vmatprep.subr.mxu0 0.0
          %3860 = vmatpush1.msra.mxu0 0.0
          %3861 = vmatprep.subr.mxu0 0.0
          %3862 = vmatpush1.msra.mxu0 0.0
          %3863 = vmatprep.subr.mxu0 0.0
          %3864 = vmatpush1.msra.mxu0 0.0
          %3865 = vmatprep.subr.mxu0 0.0
          %3866 = vmatpush1.msra.mxu0 0.0
          %3867 = vmatprep.subr.mxu0 0.0
          %3868 = vmatpush1.msra.mxu0 0.0
          %3869 = vmatprep.subr.mxu0 0.0
          %3870 = vmatpush1.msra.mxu0 0.0
          %3871 = vmatprep.subr.mxu0 0.0
          %3872 = vmatpush1.msra.mxu0 0.0
          %3873 = vmatprep.subr.mxu0 0.0
          %3874 = vmatpush1.msra.mxu0 0.0
          %3875 = vmatprep.subr.mxu0 0.0
          %3876 = vmatpush1.msra.mxu0 0.0
          %3877 = vmatprep.subr.mxu0 0.0
          %3878 = vmatpush1.msra.mxu0 0.0
          %3879 = vmatprep.mubr.f32.mxu0 0.0
          %3880 = vmatmul.mubr.f32.gmra.mrb[0].mxu0 %v3738
          %v3881 = vpop.f32.mrb[0].mxu0
          %v3882 = vadd.f32 0.0, %v3881
          %v3883 = vpop.f32.mrb[0].mxu0
          %v3884 = vadd.f32 0.0, %v3883
          %3885 = vdwg.mxu0
          %3886 = vmatprep.subr.mxu0 %v3754
          %3887 = vmatpush1.msra.mxu0 %v3753
          %3888 = vmatprep.subr.mxu0 %v3758
          %3889 = vmatpush1.msra.mxu0 %v3757
          %3890 = vmatprep.subr.mxu0 %v3762
          %3891 = vmatpush1.msra.mxu0 %v3761
          %3892 = vmatprep.subr.mxu0 %v3766
          %3893 = vmatpush1.msra.mxu0 %v3765
          %3894 = vmatprep.subr.mxu0 %v3770
          %3895 = vmatpush1.msra.mxu0 %v3769
          %3896 = vmatprep.subr.mxu0 %v3774
          %3897 = vmatpush1.msra.mxu0 %v3773
          %3898 = vmatprep.subr.mxu0 %v3778
          %3899 = vmatpush1.msra.mxu0 %v3777
          %3900 = vmatprep.subr.mxu0 %v3782
          %3901 = vmatpush1.msra.mxu0 %v3781
          %3902 = vmatprep.subr.mxu0 %v3786
          %3903 = vmatpush1.msra.mxu0 %v3785
          %3904 = vmatprep.subr.mxu0 %v3790
          %3905 = vmatpush1.msra.mxu0 %v3789
          %3906 = vmatprep.subr.mxu0 %v3794
          %3907 = vmatpush1.msra.mxu0 %v3793
          %3908 = vmatprep.subr.mxu0 %v3798
          %3909 = vmatpush1.msra.mxu0 %v3797
          %3910 = vmatprep.subr.mxu0 %v3802
          %3911 = vmatpush1.msra.mxu0 %v3801
          %3912 = vmatprep.subr.mxu0 %v3806
          %3913 = vmatpush1.msra.mxu0 %v3805
          %3914 = vmatprep.subr.mxu0 %v3810
          %3915 = vmatpush1.msra.mxu0 %v3809
          %3916 = vmatprep.subr.mxu0 %v3814
          %3917 = vmatpush1.msra.mxu0 %v3813
          %3918 = vmatprep.subr.mxu0 0.0
          %3919 = vmatpush1.msra.mxu0 0.0
          %3920 = vmatprep.subr.mxu0 0.0
          %3921 = vmatpush1.msra.mxu0 0.0
          %3922 = vmatprep.subr.mxu0 0.0
          %3923 = vmatpush1.msra.mxu0 0.0
          %3924 = vmatprep.subr.mxu0 0.0
          %3925 = vmatpush1.msra.mxu0 0.0
          %3926 = vmatprep.subr.mxu0 0.0
          %3927 = vmatpush1.msra.mxu0 0.0
          %3928 = vmatprep.subr.mxu0 0.0
          %3929 = vmatpush1.msra.mxu0 0.0
          %3930 = vmatprep.subr.mxu0 0.0
          %3931 = vmatpush1.msra.mxu0 0.0
          %3932 = vmatprep.subr.mxu0 0.0
          %3933 = vmatpush1.msra.mxu0 0.0
          %3934 = vmatprep.subr.mxu0 0.0
          %3935 = vmatpush1.msra.mxu0 0.0
          %3936 = vmatprep.subr.mxu0 0.0
          %3937 = vmatpush1.msra.mxu0 0.0
          %3938 = vmatprep.subr.mxu0 0.0
          %3939 = vmatpush1.msra.mxu0 0.0
          %3940 = vmatprep.subr.mxu0 0.0
          %3941 = vmatpush1.msra.mxu0 0.0
          %3942 = vmatprep.subr.mxu0 0.0
          %3943 = vmatpush1.msra.mxu0 0.0
          %3944 = vmatprep.subr.mxu0 0.0
          %3945 = vmatpush1.msra.mxu0 0.0
          %3946 = vmatprep.subr.mxu0 0.0
          %3947 = vmatpush1.msra.mxu0 0.0
          %3948 = vmatprep.subr.mxu0 0.0
          %3949 = vmatpush1.msra.mxu0 0.0
          %3950 = vmatprep.mubr.f32.mxu0 0.0
          %3951 = vmatmul.mubr.f32.gmra.mrb[0].mxu0 %v3738
          %v3952 = vpop.f32.mrb[0].mxu0
          %v3953 = vadd.f32 0.0, %v3952
          %v3954 = vpop.f32.mrb[0].mxu0
          %v3955 = vadd.f32 0.0, %v3954
          %3956 = vdwg.mxu0
          %v3957 = vadd.f32 %v3747, %v3882
          %v3958 = vadd.f32 %v3748, %v3884
          %v3959 = vadd.f32 %v3749, %v3953
          %v3960 = vadd.f32 %v3750, %v3955
          %v3961 = vmul.f32 %v3957, 0.5
          %v3962 = vtanh.pop %v3961
          %v3963 = vmul.f32 %v3962, 0.5
          %v3964 = vadd.f32 %v3963, 0.5
          %v3965 = vmul.f32 %v3958, 0.5
          %v3966 = vtanh.pop %v3965
          %v3967 = vmul.f32 %v3966, 0.5
          %v3968 = vadd.f32 %v3967, 0.5
          %v3969 = vtanh.pop %v3959
          %v3970 = vmul.f32 %v3960, 0.5
          %v3971 = vtanh.pop %v3970
          %v3972 = vmul.f32 %v3971, 0.5
          %v3973 = vadd.f32 %v3972, 0.5
          %v3974 = vmul.f32 %v3968, %v3739
          %v3975 = vmul.f32 %v3964, %v3969
          %v3976 = vadd.f32 %v3974, %v3975
          %v3977 = vtanh.pop %v3976
          %v3978 = vmul.f32 %v3973, %v3977
          %v3979 = vstv %s3743
          %vm3980 = vcmp.gt.s32.totalorder %v749, %v3979
          %v3981 = vsel %vm3980, 1, 0
          %3982 = vset.pattern.permute.xlu0 0
          %3983 = vperm.xlu0 %3982, %v3981
          %v3984 = vpop.permute.xlu0 %3983
          %vm3985 = vcmp.eq.s32.totalorder %v3984, 1
          %v3986 = vsel %vm3985, %v3978, %v3738
          %v3987 = vsel %vm3985, %v3976, %v3739
          %v3988 = vsel %vm3985, %v3978, 0.0
          %s3989 = scalar_lea.vmem %s401, 24 [#allocation14]
          %3990 = vst [vmem:[%s3989] sm:$0xff] %v3988
          %s3991 = sadd.s32 %s2746, 2
          %s3992 = smul.u32 2, 4
          %s3993 = smul.addr %s3992, 8
          %s3994 = scalar_lea.vmem [#allocation2], %s3993
          %v3995 = vld [vmem:[%s3994] sm:$0xff]
          %v3996 = vld [vmem:[%s3994 + $0x8] sm:$0xff]
          %v3997 = vld [vmem:[%s3994 + $0x10] sm:$0xff]
          %v3998 = vld [vmem:[%s3994 + $0x18] sm:$0xff]
          %v3999 = vld [vmem:[%s360] sm:$0xff]
          %v4000 = vld [vmem:[%s360 + $0x8] sm:$0xff]
          %v4001 = vld [vmem:[%s360 + $0x10] sm:$0xff]
          %v4002 = vld [vmem:[%s360 + $0x18] sm:$0xff]
          %v4003 = vld [vmem:[%s360 + $0x20] sm:$0xff]
          %v4004 = vld [vmem:[%s360 + $0x28] sm:$0xff]
          %v4005 = vld [vmem:[%s360 + $0x30] sm:$0xff]
          %v4006 = vld [vmem:[%s360 + $0x38] sm:$0xff]
          %v4007 = vld [vmem:[%s360 + $0x40] sm:$0xff]
          %v4008 = vld [vmem:[%s360 + $0x48] sm:$0xff]
          %v4009 = vld [vmem:[%s360 + $0x50] sm:$0xff]
          %v4010 = vld [vmem:[%s360 + $0x58] sm:$0xff]
          %v4011 = vld [vmem:[%s360 + $0x60] sm:$0xff]
          %v4012 = vld [vmem:[%s360 + $0x68] sm:$0xff]
          %v4013 = vld [vmem:[%s360 + $0x70] sm:$0xff]
          %v4014 = vld [vmem:[%s360 + $0x78] sm:$0xff]
          %v4015 = vld [vmem:[%s360 + $0x80] sm:$0xff]
          %v4016 = vld [vmem:[%s360 + $0x88] sm:$0xff]
          %v4017 = vld [vmem:[%s360 + $0x90] sm:$0xff]
          %v4018 = vld [vmem:[%s360 + $0x98] sm:$0xff]
          %v4019 = vld [vmem:[%s360 + $0xa0] sm:$0xff]
          %v4020 = vld [vmem:[%s360 + $0xa8] sm:$0xff]
          %v4021 = vld [vmem:[%s360 + $0xb0] sm:$0xff]
          %v4022 = vld [vmem:[%s360 + $0xb8] sm:$0xff]
          %v4023 = vld [vmem:[%s360 + $0xc0] sm:$0xff]
          %v4024 = vld [vmem:[%s360 + $0xc8] sm:$0xff]
          %v4025 = vld [vmem:[%s360 + $0xd0] sm:$0xff]
          %v4026 = vld [vmem:[%s360 + $0xd8] sm:$0xff]
          %v4027 = vld [vmem:[%s360 + $0xe0] sm:$0xff]
          %v4028 = vld [vmem:[%s360 + $0xe8] sm:$0xff]
          %v4029 = vld [vmem:[%s360 + $0xf0] sm:$0xff]
          %v4030 = vld [vmem:[%s360 + $0xf8] sm:$0xff]
          %v4031 = vld [vmem:[%s360 + $0x100] sm:$0xff]
          %v4032 = vld [vmem:[%s360 + $0x108] sm:$0xff]
          %v4033 = vld [vmem:[%s360 + $0x110] sm:$0xff]
          %v4034 = vld [vmem:[%s360 + $0x118] sm:$0xff]
          %v4035 = vld [vmem:[%s360 + $0x120] sm:$0xff]
          %v4036 = vld [vmem:[%s360 + $0x128] sm:$0xff]
          %v4037 = vld [vmem:[%s360 + $0x130] sm:$0xff]
          %v4038 = vld [vmem:[%s360 + $0x138] sm:$0xff]
          %v4039 = vld [vmem:[%s360 + $0x140] sm:$0xff]
          %v4040 = vld [vmem:[%s360 + $0x148] sm:$0xff]
          %v4041 = vld [vmem:[%s360 + $0x150] sm:$0xff]
          %v4042 = vld [vmem:[%s360 + $0x158] sm:$0xff]
          %v4043 = vld [vmem:[%s360 + $0x160] sm:$0xff]
          %v4044 = vld [vmem:[%s360 + $0x168] sm:$0xff]
          %v4045 = vld [vmem:[%s360 + $0x170] sm:$0xff]
          %v4046 = vld [vmem:[%s360 + $0x178] sm:$0xff]
          %v4047 = vld [vmem:[%s360 + $0x180] sm:$0xff]
          %v4048 = vld [vmem:[%s360 + $0x188] sm:$0xff]
          %v4049 = vld [vmem:[%s360 + $0x190] sm:$0xff]
          %v4050 = vld [vmem:[%s360 + $0x198] sm:$0xff]
          %v4051 = vld [vmem:[%s360 + $0x1a0] sm:$0xff]
          %v4052 = vld [vmem:[%s360 + $0x1a8] sm:$0xff]
          %v4053 = vld [vmem:[%s360 + $0x1b0] sm:$0xff]
          %v4054 = vld [vmem:[%s360 + $0x1b8] sm:$0xff]
          %v4055 = vld [vmem:[%s360 + $0x1c0] sm:$0xff]
          %v4056 = vld [vmem:[%s360 + $0x1c8] sm:$0xff]
          %v4057 = vld [vmem:[%s360 + $0x1d0] sm:$0xff]
          %v4058 = vld [vmem:[%s360 + $0x1d8] sm:$0xff]
          %v4059 = vld [vmem:[%s360 + $0x1e0] sm:$0xff]
          %v4060 = vld [vmem:[%s360 + $0x1e8] sm:$0xff]
          %v4061 = vld [vmem:[%s360 + $0x1f0] sm:$0xff]
          %v4062 = vld [vmem:[%s360 + $0x1f8] sm:$0xff]
          %4063 = vmatprep.subr.mxu0 %v4000
          %4064 = vmatpush1.msra.mxu0 %v3999
          %4065 = vmatprep.subr.mxu0 %v4004
          %4066 = vmatpush1.msra.mxu0 %v4003
          %4067 = vmatprep.subr.mxu0 %v4008
          %4068 = vmatpush1.msra.mxu0 %v4007
          %4069 = vmatprep.subr.mxu0 %v4012
          %4070 = vmatpush1.msra.mxu0 %v4011
          %4071 = vmatprep.subr.mxu0 %v4016
          %4072 = vmatpush1.msra.mxu0 %v4015
          %4073 = vmatprep.subr.mxu0 %v4020
          %4074 = vmatpush1.msra.mxu0 %v4019
          %4075 = vmatprep.subr.mxu0 %v4024
          %4076 = vmatpush1.msra.mxu0 %v4023
          %4077 = vmatprep.subr.mxu0 %v4028
          %4078 = vmatpush1.msra.mxu0 %v4027
          %4079 = vmatprep.subr.mxu0 %v4032
          %4080 = vmatpush1.msra.mxu0 %v4031
          %4081 = vmatprep.subr.mxu0 %v4036
          %4082 = vmatpush1.msra.mxu0 %v4035
          %4083 = vmatprep.subr.mxu0 %v4040
          %4084 = vmatpush1.msra.mxu0 %v4039
          %4085 = vmatprep.subr.mxu0 %v4044
          %4086 = vmatpush1.msra.mxu0 %v4043
          %4087 = vmatprep.subr.mxu0 %v4048
          %4088 = vmatpush1.msra.mxu0 %v4047
          %4089 = vmatprep.subr.mxu0 %v4052
          %4090 = vmatpush1.msra.mxu0 %v4051
          %4091 = vmatprep.subr.mxu0 %v4056
          %4092 = vmatpush1.msra.mxu0 %v4055
          %4093 = vmatprep.subr.mxu0 %v4060
          %4094 = vmatpush1.msra.mxu0 %v4059
          %4095 = vmatprep.subr.mxu0 0.0
          %4096 = vmatpush1.msra.mxu0 0.0
          %4097 = vmatprep.subr.mxu0 0.0
          %4098 = vmatpush1.msra.mxu0 0.0
          %4099 = vmatprep.subr.mxu0 0.0
          %4100 = vmatpush1.msra.mxu0 0.0
          %4101 = vmatprep.subr.mxu0 0.0
          %4102 = vmatpush1.msra.mxu0 0.0
          %4103 = vmatprep.subr.mxu0 0.0
          %4104 = vmatpush1.msra.mxu0 0.0
          %4105 = vmatprep.subr.mxu0 0.0
          %4106 = vmatpush1.msra.mxu0 0.0
          %4107 = vmatprep.subr.mxu0 0.0
          %4108 = vmatpush1.msra.mxu0 0.0
          %4109 = vmatprep.subr.mxu0 0.0
          %4110 = vmatpush1.msra.mxu0 0.0
          %4111 = vmatprep.subr.mxu0 0.0
          %4112 = vmatpush1.msra.mxu0 0.0
          %4113 = vmatprep.subr.mxu0 0.0
          %4114 = vmatpush1.msra.mxu0 0.0
          %4115 = vmatprep.subr.mxu0 0.0
          %4116 = vmatpush1.msra.mxu0 0.0
          %4117 = vmatprep.subr.mxu0 0.0
          %4118 = vmatpush1.msra.mxu0 0.0
          %4119 = vmatprep.subr.mxu0 0.0
          %4120 = vmatpush1.msra.mxu0 0.0
          %4121 = vmatprep.subr.mxu0 0.0
          %4122 = vmatpush1.msra.mxu0 0.0
          %4123 = vmatprep.subr.mxu0 0.0
          %4124 = vmatpush1.msra.mxu0 0.0
          %4125 = vmatprep.subr.mxu0 0.0
          %4126 = vmatpush1.msra.mxu0 0.0
          %4127 = vmatprep.mubr.f32.mxu0 0.0
          %4128 = vmatmul.mubr.f32.gmra.mrb[0].mxu0 %v3986
          %v4129 = vpop.f32.mrb[0].mxu0
          %v4130 = vadd.f32 0.0, %v4129
          %v4131 = vpop.f32.mrb[0].mxu0
          %v4132 = vadd.f32 0.0, %v4131
          %4133 = vdwg.mxu0
          %4134 = vmatprep.subr.mxu0 %v4002
          %4135 = vmatpush1.msra.mxu0 %v4001
          %4136 = vmatprep.subr.mxu0 %v4006
          %4137 = vmatpush1.msra.mxu0 %v4005
          %4138 = vmatprep.subr.mxu0 %v4010
          %4139 = vmatpush1.msra.mxu0 %v4009
          %4140 = vmatprep.subr.mxu0 %v4014
          %4141 = vmatpush1.msra.mxu0 %v4013
          %4142 = vmatprep.subr.mxu0 %v4018
          %4143 = vmatpush1.msra.mxu0 %v4017
          %4144 = vmatprep.subr.mxu0 %v4022
          %4145 = vmatpush1.msra.mxu0 %v4021
          %4146 = vmatprep.subr.mxu0 %v4026
          %4147 = vmatpush1.msra.mxu0 %v4025
          %4148 = vmatprep.subr.mxu0 %v4030
          %4149 = vmatpush1.msra.mxu0 %v4029
          %4150 = vmatprep.subr.mxu0 %v4034
          %4151 = vmatpush1.msra.mxu0 %v4033
          %4152 = vmatprep.subr.mxu0 %v4038
          %4153 = vmatpush1.msra.mxu0 %v4037
          %4154 = vmatprep.subr.mxu0 %v4042
          %4155 = vmatpush1.msra.mxu0 %v4041
          %4156 = vmatprep.subr.mxu0 %v4046
          %4157 = vmatpush1.msra.mxu0 %v4045
          %4158 = vmatprep.subr.mxu0 %v4050
          %4159 = vmatpush1.msra.mxu0 %v4049
          %4160 = vmatprep.subr.mxu0 %v4054
          %4161 = vmatpush1.msra.mxu0 %v4053
          %4162 = vmatprep.subr.mxu0 %v4058
          %4163 = vmatpush1.msra.mxu0 %v4057
          %4164 = vmatprep.subr.mxu0 %v4062
          %4165 = vmatpush1.msra.mxu0 %v4061
          %4166 = vmatprep.subr.mxu0 0.0
          %4167 = vmatpush1.msra.mxu0 0.0
          %4168 = vmatprep.subr.mxu0 0.0
          %4169 = vmatpush1.msra.mxu0 0.0
          %4170 = vmatprep.subr.mxu0 0.0
          %4171 = vmatpush1.msra.mxu0 0.0
          %4172 = vmatprep.subr.mxu0 0.0
          %4173 = vmatpush1.msra.mxu0 0.0
          %4174 = vmatprep.subr.mxu0 0.0
          %4175 = vmatpush1.msra.mxu0 0.0
          %4176 = vmatprep.subr.mxu0 0.0
          %4177 = vmatpush1.msra.mxu0 0.0
          %4178 = vmatprep.subr.mxu0 0.0
          %4179 = vmatpush1.msra.mxu0 0.0
          %4180 = vmatprep.subr.mxu0 0.0
          %4181 = vmatpush1.msra.mxu0 0.0
          %4182 = vmatprep.subr.mxu0 0.0
          %4183 = vmatpush1.msra.mxu0 0.0
          %4184 = vmatprep.subr.mxu0 0.0
          %4185 = vmatpush1.msra.mxu0 0.0
          %4186 = vmatprep.subr.mxu0 0.0
          %4187 = vmatpush1.msra.mxu0 0.0
          %4188 = vmatprep.subr.mxu0 0.0
          %4189 = vmatpush1.msra.mxu0 0.0
          %4190 = vmatprep.subr.mxu0 0.0
          %4191 = vmatpush1.msra.mxu0 0.0
          %4192 = vmatprep.subr.mxu0 0.0
          %4193 = vmatpush1.msra.mxu0 0.0
          %4194 = vmatprep.subr.mxu0 0.0
          %4195 = vmatpush1.msra.mxu0 0.0
          %4196 = vmatprep.subr.mxu0 0.0
          %4197 = vmatpush1.msra.mxu0 0.0
          %4198 = vmatprep.mubr.f32.mxu0 0.0
          %4199 = vmatmul.mubr.f32.gmra.mrb[0].mxu0 %v3986
          %v4200 = vpop.f32.mrb[0].mxu0
          %v4201 = vadd.f32 0.0, %v4200
          %v4202 = vpop.f32.mrb[0].mxu0
          %v4203 = vadd.f32 0.0, %v4202
          %4204 = vdwg.mxu0
          %v4205 = vadd.f32 %v3995, %v4130
          %v4206 = vadd.f32 %v3996, %v4132
          %v4207 = vadd.f32 %v3997, %v4201
          %v4208 = vadd.f32 %v3998, %v4203
          %v4209 = vmul.f32 %v4205, 0.5
          %v4210 = vtanh.pop %v4209
          %v4211 = vmul.f32 %v4210, 0.5
          %v4212 = vadd.f32 %v4211, 0.5
          %v4213 = vmul.f32 %v4206, 0.5
          %v4214 = vtanh.pop %v4213
          %v4215 = vmul.f32 %v4214, 0.5
          %v4216 = vadd.f32 %v4215, 0.5
          %v4217 = vtanh.pop %v4207
          %v4218 = vmul.f32 %v4208, 0.5
          %v4219 = vtanh.pop %v4218
          %v4220 = vmul.f32 %v4219, 0.5
          %v4221 = vadd.f32 %v4220, 0.5
          %v4222 = vmul.f32 %v4216, %v3987
          %v4223 = vmul.f32 %v4212, %v4217
          %v4224 = vadd.f32 %v4222, %v4223
          %v4225 = vtanh.pop %v4224
          %v4226 = vmul.f32 %v4221, %v4225
          %v4227 = vstv %s3991
          %vm4228 = vcmp.gt.s32.totalorder %v749, %v4227
          %v4229 = vsel %vm4228, 1, 0
          %4230 = vset.pattern.permute.xlu0 0
          %4231 = vperm.xlu0 %4230, %v4229
          %v4232 = vpop.permute.xlu0 %4231
          %vm4233 = vcmp.eq.s32.totalorder %v4232, 1
          %v4234 = vsel %vm4233, %v4226, %v3986
          %v4235 = vsel %vm4233, %v4224, %v3987
          %v4236 = vsel %vm4233, %v4226, 0.0
          %s4237 = scalar_lea.vmem %s401, 16 [#allocation14]
          %4238 = vst [vmem:[%s4237] sm:$0xff] %v4236
          %s4239 = sadd.s32 %s2746, 1
          %s4240 = smul.u32 1, 4
          %s4241 = smul.addr %s4240, 8
          %s4242 = scalar_lea.vmem [#allocation2], %s4241
          %v4243 = vld [vmem:[%s4242] sm:$0xff]
          %v4244 = vld [vmem:[%s4242 + $0x8] sm:$0xff]
          %v4245 = vld [vmem:[%s4242 + $0x10] sm:$0xff]
          %v4246 = vld [vmem:[%s4242 + $0x18] sm:$0xff]
          %v4247 = vld [vmem:[%s360] sm:$0xff]
          %v4248 = vld [vmem:[%s360 + $0x8] sm:$0xff]
          %v4249 = vld [vmem:[%s360 + $0x10] sm:$0xff]
          %v4250 = vld [vmem:[%s360 + $0x18] sm:$0xff]
          %v4251 = vld [vmem:[%s360 + $0x20] sm:$0xff]
          %v4252 = vld [vmem:[%s360 + $0x28] sm:$0xff]
          %v4253 = vld [vmem:[%s360 + $0x30] sm:$0xff]
          %v4254 = vld [vmem:[%s360 + $0x38] sm:$0xff]
          %v4255 = vld [vmem:[%s360 + $0x40] sm:$0xff]
          %v4256 = vld [vmem:[%s360 + $0x48] sm:$0xff]
          %v4257 = vld [vmem:[%s360 + $0x50] sm:$0xff]
          %v4258 = vld [vmem:[%s360 + $0x58] sm:$0xff]
          %v4259 = vld [vmem:[%s360 + $0x60] sm:$0xff]
          %v4260 = vld [vmem:[%s360 + $0x68] sm:$0xff]
          %v4261 = vld [vmem:[%s360 + $0x70] sm:$0xff]
          %v4262 = vld [vmem:[%s360 + $0x78] sm:$0xff]
          %v4263 = vld [vmem:[%s360 + $0x80] sm:$0xff]
          %v4264 = vld [vmem:[%s360 + $0x88] sm:$0xff]
          %v4265 = vld [vmem:[%s360 + $0x90] sm:$0xff]
          %v4266 = vld [vmem:[%s360 + $0x98] sm:$0xff]
          %v4267 = vld [vmem:[%s360 + $0xa0] sm:$0xff]
          %v4268 = vld [vmem:[%s360 + $0xa8] sm:$0xff]
          %v4269 = vld [vmem:[%s360 + $0xb0] sm:$0xff]
          %v4270 = vld [vmem:[%s360 + $0xb8] sm:$0xff]
          %v4271 = vld [vmem:[%s360 + $0xc0] sm:$0xff]
          %v4272 = vld [vmem:[%s360 + $0xc8] sm:$0xff]
          %v4273 = vld [vmem:[%s360 + $0xd0] sm:$0xff]
          %v4274 = vld [vmem:[%s360 + $0xd8] sm:$0xff]
          %v4275 = vld [vmem:[%s360 + $0xe0] sm:$0xff]
          %v4276 = vld [vmem:[%s360 + $0xe8] sm:$0xff]
          %v4277 = vld [vmem:[%s360 + $0xf0] sm:$0xff]
          %v4278 = vld [vmem:[%s360 + $0xf8] sm:$0xff]
          %v4279 = vld [vmem:[%s360 + $0x100] sm:$0xff]
          %v4280 = vld [vmem:[%s360 + $0x108] sm:$0xff]
          %v4281 = vld [vmem:[%s360 + $0x110] sm:$0xff]
          %v4282 = vld [vmem:[%s360 + $0x118] sm:$0xff]
          %v4283 = vld [vmem:[%s360 + $0x120] sm:$0xff]
          %v4284 = vld [vmem:[%s360 + $0x128] sm:$0xff]
          %v4285 = vld [vmem:[%s360 + $0x130] sm:$0xff]
          %v4286 = vld [vmem:[%s360 + $0x138] sm:$0xff]
          %v4287 = vld [vmem:[%s360 + $0x140] sm:$0xff]
          %v4288 = vld [vmem:[%s360 + $0x148] sm:$0xff]
          %v4289 = vld [vmem:[%s360 + $0x150] sm:$0xff]
          %v4290 = vld [vmem:[%s360 + $0x158] sm:$0xff]
          %v4291 = vld [vmem:[%s360 + $0x160] sm:$0xff]
          %v4292 = vld [vmem:[%s360 + $0x168] sm:$0xff]
          %v4293 = vld [vmem:[%s360 + $0x170] sm:$0xff]
          %v4294 = vld [vmem:[%s360 + $0x178] sm:$0xff]
          %v4295 = vld [vmem:[%s360 + $0x180] sm:$0xff]
          %v4296 = vld [vmem:[%s360 + $0x188] sm:$0xff]
          %v4297 = vld [vmem:[%s360 + $0x190] sm:$0xff]
          %v4298 = vld [vmem:[%s360 + $0x198] sm:$0xff]
          %v4299 = vld [vmem:[%s360 + $0x1a0] sm:$0xff]
          %v4300 = vld [vmem:[%s360 + $0x1a8] sm:$0xff]
          %v4301 = vld [vmem:[%s360 + $0x1b0] sm:$0xff]
          %v4302 = vld [vmem:[%s360 + $0x1b8] sm:$0xff]
          %v4303 = vld [vmem:[%s360 + $0x1c0] sm:$0xff]
          %v4304 = vld [vmem:[%s360 + $0x1c8] sm:$0xff]
          %v4305 = vld [vmem:[%s360 + $0x1d0] sm:$0xff]
          %v4306 = vld [vmem:[%s360 + $0x1d8] sm:$0xff]
          %v4307 = vld [vmem:[%s360 + $0x1e0] sm:$0xff]
          %v4308 = vld [vmem:[%s360 + $0x1e8] sm:$0xff]
          %v4309 = vld [vmem:[%s360 + $0x1f0] sm:$0xff]
          %v4310 = vld [vmem:[%s360 + $0x1f8] sm:$0xff]
          %4311 = vmatprep.subr.mxu0 %v4248
          %4312 = vmatpush1.msra.mxu0 %v4247
          %4313 = vmatprep.subr.mxu0 %v4252
          %4314 = vmatpush1.msra.mxu0 %v4251
          %4315 = vmatprep.subr.mxu0 %v4256
          %4316 = vmatpush1.msra.mxu0 %v4255
          %4317 = vmatprep.subr.mxu0 %v4260
          %4318 = vmatpush1.msra.mxu0 %v4259
          %4319 = vmatprep.subr.mxu0 %v4264
          %4320 = vmatpush1.msra.mxu0 %v4263
          %4321 = vmatprep.subr.mxu0 %v4268
          %4322 = vmatpush1.msra.mxu0 %v4267
          %4323 = vmatprep.subr.mxu0 %v4272
          %4324 = vmatpush1.msra.mxu0 %v4271
          %4325 = vmatprep.subr.mxu0 %v4276
          %4326 = vmatpush1.msra.mxu0 %v4275
          %4327 = vmatprep.subr.mxu0 %v4280
          %4328 = vmatpush1.msra.mxu0 %v4279
          %4329 = vmatprep.subr.mxu0 %v4284
          %4330 = vmatpush1.msra.mxu0 %v4283
          %4331 = vmatprep.subr.mxu0 %v4288
          %4332 = vmatpush1.msra.mxu0 %v4287
          %4333 = vmatprep.subr.mxu0 %v4292
          %4334 = vmatpush1.msra.mxu0 %v4291
          %4335 = vmatprep.subr.mxu0 %v4296
          %4336 = vmatpush1.msra.mxu0 %v4295
          %4337 = vmatprep.subr.mxu0 %v4300
          %4338 = vmatpush1.msra.mxu0 %v4299
          %4339 = vmatprep.subr.mxu0 %v4304
          %4340 = vmatpush1.msra.mxu0 %v4303
          %4341 = vmatprep.subr.mxu0 %v4308
          %4342 = vmatpush1.msra.mxu0 %v4307
          %4343 = vmatprep.subr.mxu0 0.0
          %4344 = vmatpush1.msra.mxu0 0.0
          %4345 = vmatprep.subr.mxu0 0.0
          %4346 = vmatpush1.msra.mxu0 0.0
          %4347 = vmatprep.subr.mxu0 0.0
          %4348 = vmatpush1.msra.mxu0 0.0
          %4349 = vmatprep.subr.mxu0 0.0
          %4350 = vmatpush1.msra.mxu0 0.0
          %4351 = vmatprep.subr.mxu0 0.0
          %4352 = vmatpush1.msra.mxu0 0.0
          %4353 = vmatprep.subr.mxu0 0.0
          %4354 = vmatpush1.msra.mxu0 0.0
          %4355 = vmatprep.subr.mxu0 0.0
          %4356 = vmatpush1.msra.mxu0 0.0
          %4357 = vmatprep.subr.mxu0 0.0
          %4358 = vmatpush1.msra.mxu0 0.0
          %4359 = vmatprep.subr.mxu0 0.0
          %4360 = vmatpush1.msra.mxu0 0.0
          %4361 = vmatprep.subr.mxu0 0.0
          %4362 = vmatpush1.msra.mxu0 0.0
          %4363 = vmatprep.subr.mxu0 0.0
          %4364 = vmatpush1.msra.mxu0 0.0
          %4365 = vmatprep.subr.mxu0 0.0
          %4366 = vmatpush1.msra.mxu0 0.0
          %4367 = vmatprep.subr.mxu0 0.0
          %4368 = vmatpush1.msra.mxu0 0.0
          %4369 = vmatprep.subr.mxu0 0.0
          %4370 = vmatpush1.msra.mxu0 0.0
          %4371 = vmatprep.subr.mxu0 0.0
          %4372 = vmatpush1.msra.mxu0 0.0
          %4373 = vmatprep.subr.mxu0 0.0
          %4374 = vmatpush1.msra.mxu0 0.0
          %4375 = vmatprep.mubr.f32.mxu0 0.0
          %4376 = vmatmul.mubr.f32.gmra.mrb[0].mxu0 %v4234
          %v4377 = vpop.f32.mrb[0].mxu0
          %v4378 = vadd.f32 0.0, %v4377
          %v4379 = vpop.f32.mrb[0].mxu0
          %v4380 = vadd.f32 0.0, %v4379
          %4381 = vdwg.mxu0
          %4382 = vmatprep.subr.mxu0 %v4250
          %4383 = vmatpush1.msra.mxu0 %v4249
          %4384 = vmatprep.subr.mxu0 %v4254
          %4385 = vmatpush1.msra.mxu0 %v4253
          %4386 = vmatprep.subr.mxu0 %v4258
          %4387 = vmatpush1.msra.mxu0 %v4257
          %4388 = vmatprep.subr.mxu0 %v4262
          %4389 = vmatpush1.msra.mxu0 %v4261
          %4390 = vmatprep.subr.mxu0 %v4266
          %4391 = vmatpush1.msra.mxu0 %v4265
          %4392 = vmatprep.subr.mxu0 %v4270
          %4393 = vmatpush1.msra.mxu0 %v4269
          %4394 = vmatprep.subr.mxu0 %v4274
          %4395 = vmatpush1.msra.mxu0 %v4273
          %4396 = vmatprep.subr.mxu0 %v4278
          %4397 = vmatpush1.msra.mxu0 %v4277
          %4398 = vmatprep.subr.mxu0 %v4282
          %4399 = vmatpush1.msra.mxu0 %v4281
          %4400 = vmatprep.subr.mxu0 %v4286
          %4401 = vmatpush1.msra.mxu0 %v4285
          %4402 = vmatprep.subr.mxu0 %v4290
          %4403 = vmatpush1.msra.mxu0 %v4289
          %4404 = vmatprep.subr.mxu0 %v4294
          %4405 = vmatpush1.msra.mxu0 %v4293
          %4406 = vmatprep.subr.mxu0 %v4298
          %4407 = vmatpush1.msra.mxu0 %v4297
          %4408 = vmatprep.subr.mxu0 %v4302
          %4409 = vmatpush1.msra.mxu0 %v4301
          %4410 = vmatprep.subr.mxu0 %v4306
          %4411 = vmatpush1.msra.mxu0 %v4305
          %4412 = vmatprep.subr.mxu0 %v4310
          %4413 = vmatpush1.msra.mxu0 %v4309
          %4414 = vmatprep.subr.mxu0 0.0
          %4415 = vmatpush1.msra.mxu0 0.0
          %4416 = vmatprep.subr.mxu0 0.0
          %4417 = vmatpush1.msra.mxu0 0.0
          %4418 = vmatprep.subr.mxu0 0.0
          %4419 = vmatpush1.msra.mxu0 0.0
          %4420 = vmatprep.subr.mxu0 0.0
          %4421 = vmatpush1.msra.mxu0 0.0
          %4422 = vmatprep.subr.mxu0 0.0
          %4423 = vmatpush1.msra.mxu0 0.0
          %4424 = vmatprep.subr.mxu0 0.0
          %4425 = vmatpush1.msra.mxu0 0.0
          %4426 = vmatprep.subr.mxu0 0.0
          %4427 = vmatpush1.msra.mxu0 0.0
          %4428 = vmatprep.subr.mxu0 0.0
          %4429 = vmatpush1.msra.mxu0 0.0
          %4430 = vmatprep.subr.mxu0 0.0
          %4431 = vmatpush1.msra.mxu0 0.0
          %4432 = vmatprep.subr.mxu0 0.0
          %4433 = vmatpush1.msra.mxu0 0.0
          %4434 = vmatprep.subr.mxu0 0.0
          %4435 = vmatpush1.msra.mxu0 0.0
          %4436 = vmatprep.subr.mxu0 0.0
          %4437 = vmatpush1.msra.mxu0 0.0
          %4438 = vmatprep.subr.mxu0 0.0
          %4439 = vmatpush1.msra.mxu0 0.0
          %4440 = vmatprep.subr.mxu0 0.0
          %4441 = vmatpush1.msra.mxu0 0.0
          %4442 = vmatprep.subr.mxu0 0.0
          %4443 = vmatpush1.msra.mxu0 0.0
          %4444 = vmatprep.subr.mxu0 0.0
          %4445 = vmatpush1.msra.mxu0 0.0
          %4446 = vmatprep.mubr.f32.mxu0 0.0
          %4447 = vmatmul.mubr.f32.gmra.mrb[0].mxu0 %v4234
          %v4448 = vpop.f32.mrb[0].mxu0
          %v4449 = vadd.f32 0.0, %v4448
          %v4450 = vpop.f32.mrb[0].mxu0
          %v4451 = vadd.f32 0.0, %v4450
          %4452 = vdwg.mxu0
          %v4453 = vadd.f32 %v4243, %v4378
          %v4454 = vadd.f32 %v4244, %v4380
          %v4455 = vadd.f32 %v4245, %v4449
          %v4456 = vadd.f32 %v4246, %v4451
          %v4457 = vmul.f32 %v4453, 0.5
          %v4458 = vtanh.pop %v4457
          %v4459 = vmul.f32 %v4458, 0.5
          %v4460 = vadd.f32 %v4459, 0.5
          %v4461 = vmul.f32 %v4454, 0.5
          %v4462 = vtanh.pop %v4461
          %v4463 = vmul.f32 %v4462, 0.5
          %v4464 = vadd.f32 %v4463, 0.5
          %v4465 = vtanh.pop %v4455
          %v4466 = vmul.f32 %v4456, 0.5
          %v4467 = vtanh.pop %v4466
          %v4468 = vmul.f32 %v4467, 0.5
          %v4469 = vadd.f32 %v4468, 0.5
          %v4470 = vmul.f32 %v4464, %v4235
          %v4471 = vmul.f32 %v4460, %v4465
          %v4472 = vadd.f32 %v4470, %v4471
          %v4473 = vtanh.pop %v4472
          %v4474 = vmul.f32 %v4469, %v4473
          %v4475 = vstv %s4239
          %vm4476 = vcmp.gt.s32.totalorder %v749, %v4475
          %v4477 = vsel %vm4476, 1, 0
          %4478 = vset.pattern.permute.xlu0 0
          %4479 = vperm.xlu0 %4478, %v4477
          %v4480 = vpop.permute.xlu0 %4479
          %vm4481 = vcmp.eq.s32.totalorder %v4480, 1
          %v4482 = vsel %vm4481, %v4474, %v4234
          %v4483 = vsel %vm4481, %v4472, %v4235
          %v4484 = vsel %vm4481, %v4474, 0.0
          %s4485 = scalar_lea.vmem %s401, 8 [#allocation14]
          %4486 = vst [vmem:[%s4485] sm:$0xff] %v4484
          %s4487 = smul.u32 0, 4
          %s4488 = smul.addr %s4487, 8
          %s4489 = scalar_lea.vmem [#allocation2], %s4488
          %v4490 = vld [vmem:[%s4489] sm:$0xff]
          %v4491 = vld [vmem:[%s4489 + $0x8] sm:$0xff]
          %v4492 = vld [vmem:[%s4489 + $0x10] sm:$0xff]
          %v4493 = vld [vmem:[%s4489 + $0x18] sm:$0xff]
          %v4494 = vld [vmem:[%s360] sm:$0xff]
          %v4495 = vld [vmem:[%s360 + $0x8] sm:$0xff]
          %v4496 = vld [vmem:[%s360 + $0x10] sm:$0xff]
          %v4497 = vld [vmem:[%s360 + $0x18] sm:$0xff]
          %v4498 = vld [vmem:[%s360 + $0x20] sm:$0xff]
          %v4499 = vld [vmem:[%s360 + $0x28] sm:$0xff]
          %v4500 = vld [vmem:[%s360 + $0x30] sm:$0xff]
          %v4501 = vld [vmem:[%s360 + $0x38] sm:$0xff]
          %v4502 = vld [vmem:[%s360 + $0x40] sm:$0xff]
          %v4503 = vld [vmem:[%s360 + $0x48] sm:$0xff]
          %v4504 = vld [vmem:[%s360 + $0x50] sm:$0xff]
          %v4505 = vld [vmem:[%s360 + $0x58] sm:$0xff]
          %v4506 = vld [vmem:[%s360 + $0x60] sm:$0xff]
          %v4507 = vld [vmem:[%s360 + $0x68] sm:$0xff]
          %v4508 = vld [vmem:[%s360 + $0x70] sm:$0xff]
          %v4509 = vld [vmem:[%s360 + $0x78] sm:$0xff]
          %v4510 = vld [vmem:[%s360 + $0x80] sm:$0xff]
          %v4511 = vld [vmem:[%s360 + $0x88] sm:$0xff]
          %v4512 = vld [vmem:[%s360 + $0x90] sm:$0xff]
          %v4513 = vld [vmem:[%s360 + $0x98] sm:$0xff]
          %v4514 = vld [vmem:[%s360 + $0xa0] sm:$0xff]
          %v4515 = vld [vmem:[%s360 + $0xa8] sm:$0xff]
          %v4516 = vld [vmem:[%s360 + $0xb0] sm:$0xff]
          %v4517 = vld [vmem:[%s360 + $0xb8] sm:$0xff]
          %v4518 = vld [vmem:[%s360 + $0xc0] sm:$0xff]
          %v4519 = vld [vmem:[%s360 + $0xc8] sm:$0xff]
          %v4520 = vld [vmem:[%s360 + $0xd0] sm:$0xff]
          %v4521 = vld [vmem:[%s360 + $0xd8] sm:$0xff]
          %v4522 = vld [vmem:[%s360 + $0xe0] sm:$0xff]
          %v4523 = vld [vmem:[%s360 + $0xe8] sm:$0xff]
          %v4524 = vld [vmem:[%s360 + $0xf0] sm:$0xff]
          %v4525 = vld [vmem:[%s360 + $0xf8] sm:$0xff]
          %v4526 = vld [vmem:[%s360 + $0x100] sm:$0xff]
          %v4527 = vld [vmem:[%s360 + $0x108] sm:$0xff]
          %v4528 = vld [vmem:[%s360 + $0x110] sm:$0xff]
          %v4529 = vld [vmem:[%s360 + $0x118] sm:$0xff]
          %v4530 = vld [vmem:[%s360 + $0x120] sm:$0xff]
          %v4531 = vld [vmem:[%s360 + $0x128] sm:$0xff]
          %v4532 = vld [vmem:[%s360 + $0x130] sm:$0xff]
          %v4533 = vld [vmem:[%s360 + $0x138] sm:$0xff]
          %v4534 = vld [vmem:[%s360 + $0x140] sm:$0xff]
          %v4535 = vld [vmem:[%s360 + $0x148] sm:$0xff]
          %v4536 = vld [vmem:[%s360 + $0x150] sm:$0xff]
          %v4537 = vld [vmem:[%s360 + $0x158] sm:$0xff]
          %v4538 = vld [vmem:[%s360 + $0x160] sm:$0xff]
          %v4539 = vld [vmem:[%s360 + $0x168] sm:$0xff]
          %v4540 = vld [vmem:[%s360 + $0x170] sm:$0xff]
          %v4541 = vld [vmem:[%s360 + $0x178] sm:$0xff]
          %v4542 = vld [vmem:[%s360 + $0x180] sm:$0xff]
          %v4543 = vld [vmem:[%s360 + $0x188] sm:$0xff]
          %v4544 = vld [vmem:[%s360 + $0x190] sm:$0xff]
          %v4545 = vld [vmem:[%s360 + $0x198] sm:$0xff]
          %v4546 = vld [vmem:[%s360 + $0x1a0] sm:$0xff]
          %v4547 = vld [vmem:[%s360 + $0x1a8] sm:$0xff]
          %v4548 = vld [vmem:[%s360 + $0x1b0] sm:$0xff]
          %v4549 = vld [vmem:[%s360 + $0x1b8] sm:$0xff]
          %v4550 = vld [vmem:[%s360 + $0x1c0] sm:$0xff]
          %v4551 = vld [vmem:[%s360 + $0x1c8] sm:$0xff]
          %v4552 = vld [vmem:[%s360 + $0x1d0] sm:$0xff]
          %v4553 = vld [vmem:[%s360 + $0x1d8] sm:$0xff]
          %v4554 = vld [vmem:[%s360 + $0x1e0] sm:$0xff]
          %v4555 = vld [vmem:[%s360 + $0x1e8] sm:$0xff]
          %v4556 = vld [vmem:[%s360 + $0x1f0] sm:$0xff]
          %v4557 = vld [vmem:[%s360 + $0x1f8] sm:$0xff]
          %4558 = vmatprep.subr.mxu0 %v4495
          %4559 = vmatpush1.msra.mxu0 %v4494
          %4560 = vmatprep.subr.mxu0 %v4499
          %4561 = vmatpush1.msra.mxu0 %v4498
          %4562 = vmatprep.subr.mxu0 %v4503
          %4563 = vmatpush1.msra.mxu0 %v4502
          %4564 = vmatprep.subr.mxu0 %v4507
          %4565 = vmatpush1.msra.mxu0 %v4506
          %4566 = vmatprep.subr.mxu0 %v4511
          %4567 = vmatpush1.msra.mxu0 %v4510
          %4568 = vmatprep.subr.mxu0 %v4515
          %4569 = vmatpush1.msra.mxu0 %v4514
          %4570 = vmatprep.subr.mxu0 %v4519
          %4571 = vmatpush1.msra.mxu0 %v4518
          %4572 = vmatprep.subr.mxu0 %v4523
          %4573 = vmatpush1.msra.mxu0 %v4522
          %4574 = vmatprep.subr.mxu0 %v4527
          %4575 = vmatpush1.msra.mxu0 %v4526
          %4576 = vmatprep.subr.mxu0 %v4531
          %4577 = vmatpush1.msra.mxu0 %v4530
          %4578 = vmatprep.subr.mxu0 %v4535
          %4579 = vmatpush1.msra.mxu0 %v4534
          %4580 = vmatprep.subr.mxu0 %v4539
          %4581 = vmatpush1.msra.mxu0 %v4538
          %4582 = vmatprep.subr.mxu0 %v4543
          %4583 = vmatpush1.msra.mxu0 %v4542
          %4584 = vmatprep.subr.mxu0 %v4547
          %4585 = vmatpush1.msra.mxu0 %v4546
          %4586 = vmatprep.subr.mxu0 %v4551
          %4587 = vmatpush1.msra.mxu0 %v4550
          %4588 = vmatprep.subr.mxu0 %v4555
          %4589 = vmatpush1.msra.mxu0 %v4554
          %4590 = vmatprep.subr.mxu0 0.0
          %4591 = vmatpush1.msra.mxu0 0.0
          %4592 = vmatprep.subr.mxu0 0.0
          %4593 = vmatpush1.msra.mxu0 0.0
          %4594 = vmatprep.subr.mxu0 0.0
          %4595 = vmatpush1.msra.mxu0 0.0
          %4596 = vmatprep.subr.mxu0 0.0
          %4597 = vmatpush1.msra.mxu0 0.0
          %4598 = vmatprep.subr.mxu0 0.0
          %4599 = vmatpush1.msra.mxu0 0.0
          %4600 = vmatprep.subr.mxu0 0.0
          %4601 = vmatpush1.msra.mxu0 0.0
          %4602 = vmatprep.subr.mxu0 0.0
          %4603 = vmatpush1.msra.mxu0 0.0
          %4604 = vmatprep.subr.mxu0 0.0
          %4605 = vmatpush1.msra.mxu0 0.0
          %4606 = vmatprep.subr.mxu0 0.0
          %4607 = vmatpush1.msra.mxu0 0.0
          %4608 = vmatprep.subr.mxu0 0.0
          %4609 = vmatpush1.msra.mxu0 0.0
          %4610 = vmatprep.subr.mxu0 0.0
          %4611 = vmatpush1.msra.mxu0 0.0
          %4612 = vmatprep.subr.mxu0 0.0
          %4613 = vmatpush1.msra.mxu0 0.0
          %4614 = vmatprep.subr.mxu0 0.0
          %4615 = vmatpush1.msra.mxu0 0.0
          %4616 = vmatprep.subr.mxu0 0.0
          %4617 = vmatpush1.msra.mxu0 0.0
          %4618 = vmatprep.subr.mxu0 0.0
          %4619 = vmatpush1.msra.mxu0 0.0
          %4620 = vmatprep.subr.mxu0 0.0
          %4621 = vmatpush1.msra.mxu0 0.0
          %4622 = vmatprep.mubr.f32.mxu0 0.0
          %4623 = vmatmul.mubr.f32.gmra.mrb[0].mxu0 %v4482
          %v4624 = vpop.f32.mrb[0].mxu0
          %v4625 = vadd.f32 0.0, %v4624
          %v4626 = vpop.f32.mrb[0].mxu0
          %v4627 = vadd.f32 0.0, %v4626
          %4628 = vdwg.mxu0
          %4629 = vmatprep.subr.mxu0 %v4497
          %4630 = vmatpush1.msra.mxu0 %v4496
          %4631 = vmatprep.subr.mxu0 %v4501
          %4632 = vmatpush1.msra.mxu0 %v4500
          %4633 = vmatprep.subr.mxu0 %v4505
          %4634 = vmatpush1.msra.mxu0 %v4504
          %4635 = vmatprep.subr.mxu0 %v4509
          %4636 = vmatpush1.msra.mxu0 %v4508
          %4637 = vmatprep.subr.mxu0 %v4513
          %4638 = vmatpush1.msra.mxu0 %v4512
          %4639 = vmatprep.subr.mxu0 %v4517
          %4640 = vmatpush1.msra.mxu0 %v4516
          %4641 = vmatprep.subr.mxu0 %v4521
          %4642 = vmatpush1.msra.mxu0 %v4520
          %4643 = vmatprep.subr.mxu0 %v4525
          %4644 = vmatpush1.msra.mxu0 %v4524
          %4645 = vmatprep.subr.mxu0 %v4529
          %4646 = vmatpush1.msra.mxu0 %v4528
          %4647 = vmatprep.subr.mxu0 %v4533
          %4648 = vmatpush1.msra.mxu0 %v4532
          %4649 = vmatprep.subr.mxu0 %v4537
          %4650 = vmatpush1.msra.mxu0 %v4536
          %4651 = vmatprep.subr.mxu0 %v4541
          %4652 = vmatpush1.msra.mxu0 %v4540
          %4653 = vmatprep.subr.mxu0 %v4545
          %4654 = vmatpush1.msra.mxu0 %v4544
          %4655 = vmatprep.subr.mxu0 %v4549
          %4656 = vmatpush1.msra.mxu0 %v4548
          %4657 = vmatprep.subr.mxu0 %v4553
          %4658 = vmatpush1.msra.mxu0 %v4552
          %4659 = vmatprep.subr.mxu0 %v4557
          %4660 = vmatpush1.msra.mxu0 %v4556
          %4661 = vmatprep.subr.mxu0 0.0
          %4662 = vmatpush1.msra.mxu0 0.0
          %4663 = vmatprep.subr.mxu0 0.0
          %4664 = vmatpush1.msra.mxu0 0.0
          %4665 = vmatprep.subr.mxu0 0.0
          %4666 = vmatpush1.msra.mxu0 0.0
          %4667 = vmatprep.subr.mxu0 0.0
          %4668 = vmatpush1.msra.mxu0 0.0
          %4669 = vmatprep.subr.mxu0 0.0
          %4670 = vmatpush1.msra.mxu0 0.0
          %4671 = vmatprep.subr.mxu0 0.0
          %4672 = vmatpush1.msra.mxu0 0.0
          %4673 = vmatprep.subr.mxu0 0.0
          %4674 = vmatpush1.msra.mxu0 0.0
          %4675 = vmatprep.subr.mxu0 0.0
          %4676 = vmatpush1.msra.mxu0 0.0
          %4677 = vmatprep.subr.mxu0 0.0
          %4678 = vmatpush1.msra.mxu0 0.0
          %4679 = vmatprep.subr.mxu0 0.0
          %4680 = vmatpush1.msra.mxu0 0.0
          %4681 = vmatprep.subr.mxu0 0.0
          %4682 = vmatpush1.msra.mxu0 0.0
          %4683 = vmatprep.subr.mxu0 0.0
          %4684 = vmatpush1.msra.mxu0 0.0
          %4685 = vmatprep.subr.mxu0 0.0
          %4686 = vmatpush1.msra.mxu0 0.0
          %4687 = vmatprep.subr.mxu0 0.0
          %4688 = vmatpush1.msra.mxu0 0.0
          %4689 = vmatprep.subr.mxu0 0.0
          %4690 = vmatpush1.msra.mxu0 0.0
          %4691 = vmatprep.subr.mxu0 0.0
          %4692 = vmatpush1.msra.mxu0 0.0
          %4693 = vmatprep.mubr.f32.mxu0 0.0
          %4694 = vmatmul.mubr.f32.gmra.mrb[0].mxu0 %v4482
          %v4695 = vpop.f32.mrb[0].mxu0
          %v4696 = vadd.f32 0.0, %v4695
          %v4697 = vpop.f32.mrb[0].mxu0
          %v4698 = vadd.f32 0.0, %v4697
          %4699 = vdwg.mxu0
          %v4700 = vadd.f32 %v4490, %v4625
          %v4701 = vadd.f32 %v4491, %v4627
          %v4702 = vadd.f32 %v4492, %v4696
          %v4703 = vadd.f32 %v4493, %v4698
          %v4704 = vmul.f32 %v4700, 0.5
          %v4705 = vtanh.pop %v4704
          %v4706 = vmul.f32 %v4705, 0.5
          %v4707 = vadd.f32 %v4706, 0.5
          %v4708 = vmul.f32 %v4701, 0.5
          %v4709 = vtanh.pop %v4708
          %v4710 = vmul.f32 %v4709, 0.5
          %v4711 = vadd.f32 %v4710, 0.5
          %v4712 = vtanh.pop %v4702
          %v4713 = vmul.f32 %v4703, 0.5
          %v4714 = vtanh.pop %v4713
          %v4715 = vmul.f32 %v4714, 0.5
          %v4716 = vadd.f32 %v4715, 0.5
          %v4717 = vmul.f32 %v4711, %v4483
          %v4718 = vmul.f32 %v4707, %v4712
          %v4719 = vadd.f32 %v4717, %v4718
          %v4720 = vtanh.pop %v4719
          %v4721 = vmul.f32 %v4716, %v4720
          %v4722 = vstv %s2746
          %vm4723 = vcmp.gt.s32.totalorder %v749, %v4722
          %v4724 = vsel %vm4723, 1, 0
          %4725 = vset.pattern.permute.xlu0 0
          %4726 = vperm.xlu0 %4725, %v4724
          %v4727 = vpop.permute.xlu0 %4726
          %vm4728 = vcmp.eq.s32.totalorder %v4727, 1
          %v4729 = vsel %vm4728, %v4721, %v4482
          %v4730 = vsel %vm4728, %v4719, %v4483
          %v4731 = vsel %vm4728, %v4721, 0.0
          %4732 = vst [vmem:[%s401] sm:$0xff] %v4731
          %4733 = vst [vmem:[%s2747] sm:$0xff] %v4729
          %4734 = vst [vmem:[%s2749] sm:$0xff] %v4730
        $region72: #{tpu_custom_call.1} parent=39 // pred_fallthru
          _
        %s4735 = sand.u32 %s189, 1
        %s4736 = scalar_lea.sflag [#allocation7], %s4735
        %s4737 = sand.u32 %s189, 1
        %s4738 = smul.addr %s4737, 64
        %s4739 = scalar_lea.vmem [#allocation14], %s4738
        // Predicated region
        $region73: #{tpu_custom_call.1} parent=39 // pred_check
          %p4740 = pneg %p199
        $region74: #{tpu_custom_call.1} parent=39 // pred_check_branch
          %4742 = sbr.rel (%p4740) target = $region76
        $region75: #{tpu_custom_call.1} parent=39 // pred_region
          %s4743 = smul.u32 %s31, 2
          %s4744 = ssub.s32 0, %s4743
          %s4745 = smul.u32 %s30, %s4744
          %s4746 = sadd.s32 %s31, %s4745
          %s4747 = smul.u32 8, %s4746
          %s4749 = ssub.s32 1024, 1024
          %4750 = vsyncadd %s4736, %s4749
          %s4751 = smul.addr %s30, 8
          %s4752 = sadd.s32 %s4747, %s4751
          %s4753 = smul.addr %s4752, 128
          %s4754 = scalar_lea.hbm %s5, %s4753
          %s4755 = sshll.u32 %s4739, 4
          %s4756 = int_to_ptr.vmem [resolvable:$true] %s4755
          %4761 = dma.vmem_to_hbm [thread:$0]  %s4756, 1024, %s4754, %s4736, 128, 128, 8
        $region76: #{tpu_custom_call.1} parent=39 // pred_fallthru
          _
      $region40: #{tpu_custom_call.1} parent=5 // pred_fallthru
        _
      %p4762 = scmp.le.s32.totalorder 2, %s21
      // Predicated region
      $region77: #{tpu_custom_call.1} parent=5 // pred_check
        %p4763 = pneg %p4762
      $region78: #{tpu_custom_call.1} parent=5 // pred_check_branch
        %4765 = sbr.rel (%p4763) target = $region80
      $region79: #{tpu_custom_call.1} parent=5 // pred_region
        %s4766 = ssub.s32 %s21, 2
        // Predicated region
        $region81: #{tpu_custom_call.1} parent=79 // pred_check
          %p4767 = pneg %p205
        $region82: #{tpu_custom_call.1} parent=79 // pred_check_branch
          %4769 = sbr.rel (%p4767) target = $region84
        $region83: #{tpu_custom_call.1} parent=79 // pred_region
          %s4770 = sand.u32 %s190, 1
          %s4771 = scalar_lea.sflag [#allocation7], %s4770
          %s4772 = sand.u32 %s190, 1
          %s4773 = smul.addr %s4772, 64
          %s4774 = scalar_lea.vmem [#allocation14], %s4773
          %4775 = dma.done %s4771, 1024
        $region84: #{tpu_custom_call.1} parent=79 // pred_fallthru
          _
      $region80: #{tpu_custom_call.1} parent=5 // pred_fallthru
        _
    $region6: #{tpu_custom_call.1} parent=1 // loop_footer
      %s25 = sadd.s32 1, %s21
    $region7: #{tpu_custom_call.1} parent=1 // loop_footer_branch
      %20 = sbr.rel target = $region3
    $region8: #{tpu_custom_call.1} parent=1 // loop_exit
      _
    %4776 = vsyncpa [#allocation6], 1
    %s4777 = scalar_lea.sflag [#allocation6], 1
    %4778 = vsyncpa %s4777, 1
    %4779 = vsyncpa [#allocation9], 1
    %s4780 = scalar_lea.sflag [#allocation9], 1
    %4781 = vsyncpa %s4780, 1
    %4782 = vsyncpa [#allocation12], 1
    %s4783 = scalar_lea.sflag [#allocation12], 1
    %4784 = vsyncpa %s4783, 1
    %4785 = vsyncpa [#allocation7], 1
    %s4786 = scalar_lea.sflag [#allocation7], 1
    %4787 = vsyncpa %s4786, 1

</llo_original>
